<compile_context>
chip_gen: v5e
topology: v5e:2x2
jax: 0.10.0
libtpu: 0.0.40
codegen_flags: <defaults>
</compile_context>

<pallas_src>
import math
import jax
import jax.numpy as jnp
from jax.experimental import pallas as pl
from jax.experimental.pallas import tpu as pltpu

NC_O = 128     # self.nc_o
L = 8          # self.L (groups / number of TAggBlocks)
KSTEM = 5
KG = 5
BN_EPS = 1e-5


# ----------------------------------------------------------------------------
# fused kernel (no grid): stem conv + maxpool, L TAggBlocks (grouped conv +
# BN + ReLU + shuffled carry + tgconv/fc fold), bias + log_softmax.
# The carried l_feat lives in a small VMEM scratch (zero-padded for the next
# 'same' conv); the logits accumulate in vregs and are stored once.
# ----------------------------------------------------------------------------
def fused_kernel(xcol_ref, sw_ref, sb_ref, wg_ref, ga_ref, be_ref, wfc_ref,
                 bias_ref, o_ref, xpad_ref):
    B, Tp, C = xpad_ref.shape
    T2 = Tp - (KG - 1)
    pad = (KG - 1) // 2
    T = xcol_ref.shape[1]
    ncol = o_ref.shape[1]

    # ---------------- stem: Conv1d(k=5,'same')+bias as one im2col matmul ----
    im_s = xcol_ref[...].reshape(B * T, xcol_ref.shape[2]).astype(jnp.bfloat16)
    ys = jnp.dot(im_s, sw_ref[...],
                 preferred_element_type=jnp.float32) + sb_ref[...]
    y3 = ys.reshape(B, T, C)

    # ---------------- MaxPool1d(kernel=3, stride=2, padding=1) ---------------
    # vectorized sliding-window max: pad with very-negative rows and take the
    # elementwise max of three shifted full slabs (2 vector maxima total).
    neg = jnp.full((B, 1, C), -1e30, jnp.float32)
    ypd = jnp.concatenate([neg, y3, neg, neg], axis=1)            # (B, T+3, C)
    win = jnp.maximum(jnp.maximum(ypd[:, 0:T + 1, :], ypd[:, 1:T + 2, :]),
                      ypd[:, 2:T + 3, :])                         # window max at j
    # zero the 'same'-padding rows of the carried activation once
    xpad_ref[:, 0:pad, :] = jnp.zeros((B, pad, C), jnp.float32)
    xpad_ref[:, pad + T2:Tp, :] = jnp.zeros((B, Tp - pad - T2, C), jnp.float32)
    # stride-2 downsample into the carry.
    # TODO(synk): the T2 row copies could become one strided slab store; kept
    # as plain per-row stores for lowering portability.
    for t2 in range(T2):
        xpad_ref[:, pad + t2, :] = win[:, 2 * t2, :]

    # ---------------- L TAggBlocks, fully VMEM/vreg resident ----------------
    def block(blk, logits):
        xp = xpad_ref[...]
        # grouped Conv1d(k=5,'same',groups=L, no bias): 5 accumulating
        # (B*T2,C)x(C,C) matmuls; channel_shuffle folded into weight columns.
        acc = jnp.zeros((B * T2, C), jnp.float32)
        for k in range(KG):
            lhs = xp[:, k:k + T2, :].reshape(B * T2, C).astype(jnp.bfloat16)
            acc = acc + jnp.dot(lhs, wg_ref[blk, k],
                                preferred_element_type=jnp.float32)
        # BatchNorm1d (training-mode batch stats, biased variance) + ReLU, f32.
        # TODO(synk): running-stat updates (training-time buffers) not modeled.
        mean = jnp.mean(acc, axis=0, keepdims=True)
        var = jnp.mean((acc - mean) ** 2, axis=0, keepdims=True)
        y = (acc - mean) * jax.lax.rsqrt(var + BN_EPS) * ga_ref[blk] + be_ref[blk]
        y = jnp.maximum(y, 0.0)
        l3 = y.reshape(B, T2, C)
        # carry l_feat (already channel-shuffled) to the next block
        xpad_ref[:, pad:pad + T2, :] = l3
        # tgconv(kernel_size==T2) pre-folded with this block's fc slice:
        # T2 accumulating (B,C)x(C,ncol) matmuls into the lane-dense logits.
        for t in range(T2):
            logits = logits + jnp.dot(l3[:, t, :].astype(jnp.bfloat16),
                                      wfc_ref[blk, t],
                                      preferred_element_type=jnp.float32)
        return logits

    logits = jax.lax.fori_loop(0, L, block,
                               jnp.zeros((B, ncol), jnp.float32), unroll=True)

    # ---------------- head: bias (+ padded-lane mask) + log_softmax ----------
    # padded class lanes have zero weight columns and bias == -1e30, which
    # masks them out of the max / sum below.
    logits = logits + bias_ref[...]
    z = logits - jnp.max(logits, axis=-1, keepdims=True)
    o_ref[...] = z - jnp.log(jnp.sum(jnp.exp(z), axis=-1, keepdims=True))


# ----------------------------------------------------------------------------
# parameter construction (deterministic; matches PyTorch module shapes, with
# shuffle / im2col / tgconv-fc / class-padding folds applied at init)
# ----------------------------------------------------------------------------
def init_params(key, nc_input, n_classes, segment_size):
    C = NC_O
    cpg = C // L
    T2 = math.ceil(segment_size / 2)
    ncol = ((n_classes + 127) // 128) * 128          # lane-dense padded classes
    keys = iter(jax.random.split(key, 4 + 3 * L))
    nxt = lambda: next(keys)
    p = {}

    # stem Conv1d: torch weight (C, Cin, 5), bias (C,) -> im2col layout (5*Cin, C)
    stem_w = 0.1 * jax.random.normal(nxt(), (C, nc_input, KSTEM), jnp.float32)
    stem_b = 0.1 * jax.random.normal(nxt(), (C,), jnp.float32)
    p['stem_w'] = jnp.transpose(stem_w, (2, 1, 0)).reshape(
        KSTEM * nc_input, C).astype(jnp.bfloat16)
    p['stem_b'] = stem_b.reshape(1, C)

    # fc: torch weight (n_classes, C), bias (n_classes,)
    fc_w = 0.1 * jax.random.normal(nxt(), (n_classes, C), jnp.float32)
    fc_b = 0.1 * jax.random.normal(nxt(), (n_classes,), jnp.float32)
    fcw = jnp.transpose(fc_w)                                    # (C, n_classes)

    # channel_shuffle fold: shuffled[:, n] = y[:, src[n]]
    n_idx = jnp.arange(C)
    src = (n_idx % L) * cpg + (n_idx // L)

    o_idx = jnp.arange(C)
    grp = o_idx // cpg
    wg_l, ga_l, be_l, wfc_l = [], [], [], []
    bias_total = fc_b
    for blk in range(L):
        # grouped conv torch weight (C, cpg, 5) -> per-tap dense (5, C, C),
        # with the channel shuffle folded into the output columns.
        wg = 0.1 * jax.random.normal(nxt(), (C, cpg, KG), jnp.float32)
        dense = jnp.zeros((KG, C, C), jnp.float32)
        for j in range(cpg):
            dense = dense.at[:, grp * cpg + j, o_idx].set(
                jnp.transpose(wg[:, j, :], (1, 0)))
        dense = dense[:, :, src]                                 # shuffle fold
        wg_l.append(dense.astype(jnp.bfloat16))                  # (KG, C, C)
        # BatchNorm affine params (default init), shuffled the same way.
        ga_l.append(jnp.ones((C,), jnp.float32)[src].reshape(1, C))
        be_l.append(jnp.zeros((C,), jnp.float32)[src].reshape(1, C))
        # tgconv torch weight (cpg, C, T2), bias (cpg,), pre-multiplied with
        # this block's slice of the fc weight (exact linear-algebra fold),
        # laid out (T2, C, ncol) with zero-padded class columns.
        wt = 0.1 * jax.random.normal(nxt(), (cpg, C, T2), jnp.float32)
        bt = 0.1 * jax.random.normal(nxt(), (cpg,), jnp.float32)
        wt3 = jnp.transpose(wt, (2, 1, 0))                       # (T2, C, cpg)
        fcw_blk = fcw[blk * cpg:(blk + 1) * cpg, :]              # (cpg, n_cls)
        wfc_blk = jnp.einsum('tcj,jn->tcn', wt3, fcw_blk)        # (T2, C, n_cls)
        wfc_blk = jnp.pad(wfc_blk, ((0, 0), (0, 0), (0, ncol - n_classes)))
        wfc_l.append(wfc_blk.astype(jnp.bfloat16))
        bias_total = bias_total + jnp.dot(bt, fcw_blk)
    p['wg'] = jnp.stack(wg_l)                                    # (L, 5, C, C) bf16
    p['gamma'] = jnp.stack(ga_l)                                 # (L, 1, C)
    p['beta'] = jnp.stack(be_l)                                  # (L, 1, C)
    p['wfc'] = jnp.stack(wfc_l)                                  # (L, T2, C, ncol) bf16
    # padded class lanes get -1e30 bias -> acts as the log_softmax mask.
    bias = jnp.full((ncol,), -1e30, jnp.float32).at[:n_classes].set(bias_total)
    p['bias'] = bias.reshape(1, ncol)
    return p


# ----------------------------------------------------------------------------
# forward
# ----------------------------------------------------------------------------
def htaggnet_forward(x, params, n_classes):
    # x: (B, Cin, T) -- PyTorch NCT
    B, Cin, T = x.shape
    C = NC_O
    _, T2, _, ncol = params['wfc'].shape

    # host-side layout prep only (tiny, one-time): NCT -> NTC, zero 'same'
    # padding, stem im2col with 5*Cin columns.
    xt = jnp.transpose(x, (0, 2, 1)).astype(jnp.float32)         # (B, T, Cin)
    xp = jnp.pad(xt, ((0, 0), ((KSTEM - 1) // 2,) * 2, (0, 0)))
    xcol = jnp.concatenate([xp[:, k:k + T, :] for k in range(KSTEM)], axis=-1)

    vmem = pl.BlockSpec(memory_space=pltpu.MemorySpace.VMEM)     # whole arrays, VMEM
    out_pad = pl.pallas_call(
        fused_kernel,
        out_shape=jax.ShapeDtypeStruct((B, ncol), jnp.float32),
        in_specs=[vmem] * 8,
        out_specs=vmem,
        scratch_shapes=[pltpu.VMEM((B, T2 + KG - 1, C), jnp.float32)],
        compiler_params=pltpu.CompilerParams(
            vmem_limit_bytes=32 * 1024 * 1024),
    )(xcol, params['stem_w'], params['stem_b'], params['wg'], params['gamma'],
      params['beta'], params['wfc'], params['bias'])
    return out_pad[:, :n_classes]


if __name__ == "__main__":
    B, nc_input, segment_size, n_classes = 2, 4, 16, 10
    key = jax.random.PRNGKey(0)
    kx, kp = jax.random.split(key)
    x = jax.random.normal(kx, (B, nc_input, segment_size), jnp.float32)  # NCT
    params = init_params(kp, nc_input, n_classes, segment_size)

    fwd = jax.jit(htaggnet_forward, static_argnums=2)
    out = fwd(x, params, n_classes)
    out = jax.block_until_ready(out)

    assert out.shape == (B, n_classes), out.shape
    assert bool(jnp.all(jnp.isfinite(out)))
    # rows of log_softmax must sum (in prob space) to 1
    assert bool(jnp.allclose(jnp.sum(jnp.exp(out), axis=1), 1.0, atol=1e-4))
    print("KERNEL_OK")
</pallas_src>

<mosaic_0001>
module attributes {stable_mosaic.version = 11 : i64} {
  func.func @fused_kernel(%arg0: memref<2x16x20xf32, #tpu.memory_space<vmem>>, %arg1: memref<20x128xbf16, #tpu.memory_space<vmem>>, %arg2: memref<1x128xf32, #tpu.memory_space<vmem>>, %arg3: memref<8x5x128x128xbf16, #tpu.memory_space<vmem>>, %arg4: memref<8x1x128xf32, #tpu.memory_space<vmem>>, %arg5: memref<8x1x128xf32, #tpu.memory_space<vmem>>, %arg6: memref<8x8x128x128xbf16, #tpu.memory_space<vmem>>, %arg7: memref<1x128xf32, #tpu.memory_space<vmem>>, %arg8: memref<2x128xf32, #tpu.memory_space<vmem>>, %arg9: memref<2x12x128xf32, #tpu.memory_space<vmem>>) attributes {dimension_semantics = [], scalar_prefetch = 0 : i64, scratch_operands = 1 : i64, tpu.core_type = #tpu.core_type<tc>} {
    %c0 = arith.constant 0 : index
    %c0_0 = arith.constant 0 : index
    %c0_1 = arith.constant 0 : index
    %0 = vector.load %arg0[%c0, %c0_0, %c0_1] : memref<2x16x20xf32, #tpu.memory_space<vmem>>, vector<2x16x20xf32>
    %1 = vector.shape_cast %0 : vector<2x16x20xf32> to vector<32x20xf32>
    %2 = arith.truncf %1 : vector<32x20xf32> to vector<32x20xbf16>
    %c0_2 = arith.constant 0 : index
    %c0_3 = arith.constant 0 : index
    %3 = vector.load %arg1[%c0_2, %c0_3] : memref<20x128xbf16, #tpu.memory_space<vmem>>, vector<20x128xbf16>
    %cst = arith.constant dense<0.000000e+00> : vector<32x128xf32>
    %4 = tpu.matmul %2, %3, %cst {dimension_numbers = #tpu.dot_dimension_numbers<[1], [0], [0], [1], [0, 0, 1, 1], [], []>} : vector<32x20xbf16>, vector<20x128xbf16>, vector<32x128xf32> -> vector<32x128xf32>
    %c0_4 = arith.constant 0 : index
    %c0_5 = arith.constant 0 : index
    %5 = vector.load %arg2[%c0_4, %c0_5] : memref<1x128xf32, #tpu.memory_space<vmem>>, vector<1x128xf32>
    %6 = vector.broadcast %5 : vector<1x128xf32> to vector<32x128xf32>
    %7 = arith.addf %4, %6 : vector<32x128xf32>
    %8 = vector.shape_cast %7 : vector<32x128xf32> to vector<2x16x128xf32>
    %cst_6 = arith.constant -1.000000e+30 : f32
    %9 = vector.broadcast %cst_6 : f32 to vector<2x1x128xf32>
    %10 = tpu.concatenate %9, %8, %9, %9 in 1 : vector<2x1x128xf32>, vector<2x16x128xf32>, vector<2x1x128xf32>, vector<2x1x128xf32> -> vector<2x19x128xf32>
    %11 = vector.extract_strided_slice %10 {offsets = [0, 0, 0], sizes = [2, 17, 128], strides = [1, 1, 1]} : vector<2x19x128xf32> to vector<2x17x128xf32>
    %12 = vector.extract_strided_slice %10 {offsets = [0, 1, 0], sizes = [2, 17, 128], strides = [1, 1, 1]} : vector<2x19x128xf32> to vector<2x17x128xf32>
    %13 = arith.maximumf %11, %12 : vector<2x17x128xf32>
    %14 = vector.extract_strided_slice %10 {offsets = [0, 2, 0], sizes = [2, 17, 128], strides = [1, 1, 1]} : vector<2x19x128xf32> to vector<2x17x128xf32>
    %15 = arith.maximumf %13, %14 : vector<2x17x128xf32>
    %cst_7 = arith.constant 0.000000e+00 : f32
    %16 = vector.broadcast %cst_7 : f32 to vector<2x2x128xf32>
    %c0_8 = arith.constant 0 : index
    %c0_9 = arith.constant 0 : index
    %c0_10 = arith.constant 0 : index
    %17 = vector.load %arg9[%c0_8, %c0_9, %c0_10] : memref<2x12x128xf32, #tpu.memory_space<vmem>>, vector<2x2x128xf32>
    tpu.vector_store %arg9[%c0_8, %c0_9, %c0_10], %16 {strides = array<i32>} : memref<2x12x128xf32, #tpu.memory_space<vmem>>, vector<2x2x128xf32>,
    %cst_11 = arith.constant 0.000000e+00 : f32
    %18 = vector.broadcast %cst_11 : f32 to vector<2x2x128xf32>
    %c0_12 = arith.constant 0 : index
    %c10 = arith.constant 10 : index
    %c0_13 = arith.constant 0 : index
    %19 = vector.load %arg9[%c0_12, %c10, %c0_13] : memref<2x12x128xf32, #tpu.memory_space<vmem>>, vector<2x2x128xf32>
    tpu.vector_store %arg9[%c0_12, %c10, %c0_13], %18 {strides = array<i32>} : memref<2x12x128xf32, #tpu.memory_space<vmem>>, vector<2x2x128xf32>,
    %20 = vector.extract_strided_slice %15 {offsets = [0, 0, 0], sizes = [2, 1, 128], strides = [1, 1, 1]} : vector<2x17x128xf32> to vector<2x1x128xf32>
    %21 = vector.shape_cast %20 : vector<2x1x128xf32> to vector<2x128xf32>
    %c0_14 = arith.constant 0 : index
    %c2 = arith.constant 2 : index
    %c0_15 = arith.constant 0 : index
    %22 = vector.load %arg9[%c0_14, %c2, %c0_15] : memref<2x12x128xf32, #tpu.memory_space<vmem>>, vector<2x1x128xf32>
    %23 = vector.shape_cast %22 : vector<2x1x128xf32> to vector<2x128xf32>
    %24 = vector.shape_cast %21 : vector<2x128xf32> to vector<2x1x128xf32>
    tpu.vector_store %arg9[%c0_14, %c2, %c0_15], %24 {strides = array<i32>} : memref<2x12x128xf32, #tpu.memory_space<vmem>>, vector<2x1x128xf32>,
    %25 = vector.extract_strided_slice %15 {offsets = [0, 2, 0], sizes = [2, 1, 128], strides = [1, 1, 1]} : vector<2x17x128xf32> to vector<2x1x128xf32>
    %26 = vector.shape_cast %25 : vector<2x1x128xf32> to vector<2x128xf32>
    %c0_16 = arith.constant 0 : index
    %c3 = arith.constant 3 : index
    %c0_17 = arith.constant 0 : index
    %27 = vector.load %arg9[%c0_16, %c3, %c0_17] : memref<2x12x128xf32, #tpu.memory_space<vmem>>, vector<2x1x128xf32>
    %28 = vector.shape_cast %27 : vector<2x1x128xf32> to vector<2x128xf32>
    %29 = vector.shape_cast %26 : vector<2x128xf32> to vector<2x1x128xf32>
    tpu.vector_store %arg9[%c0_16, %c3, %c0_17], %29 {strides = array<i32>} : memref<2x12x128xf32, #tpu.memory_space<vmem>>, vector<2x1x128xf32>,
    %30 = vector.extract_strided_slice %15 {offsets = [0, 4, 0], sizes = [2, 1, 128], strides = [1, 1, 1]} : vector<2x17x128xf32> to vector<2x1x128xf32>
    %31 = vector.shape_cast %30 : vector<2x1x128xf32> to vector<2x128xf32>
    %c0_18 = arith.constant 0 : index
    %c4 = arith.constant 4 : index
    %c0_19 = arith.constant 0 : index
    %32 = vector.load %arg9[%c0_18, %c4, %c0_19] : memref<2x12x128xf32, #tpu.memory_space<vmem>>, vector<2x1x128xf32>
    %33 = vector.shape_cast %32 : vector<2x1x128xf32> to vector<2x128xf32>
    %34 = vector.shape_cast %31 : vector<2x128xf32> to vector<2x1x128xf32>
    tpu.vector_store %arg9[%c0_18, %c4, %c0_19], %34 {strides = array<i32>} : memref<2x12x128xf32, #tpu.memory_space<vmem>>, vector<2x1x128xf32>,
    %35 = vector.extract_strided_slice %15 {offsets = [0, 6, 0], sizes = [2, 1, 128], strides = [1, 1, 1]} : vector<2x17x128xf32> to vector<2x1x128xf32>
    %36 = vector.shape_cast %35 : vector<2x1x128xf32> to vector<2x128xf32>
    %c0_20 = arith.constant 0 : index
    %c5 = arith.constant 5 : index
    %c0_21 = arith.constant 0 : index
    %37 = vector.load %arg9[%c0_20, %c5, %c0_21] : memref<2x12x128xf32, #tpu.memory_space<vmem>>, vector<2x1x128xf32>
    %38 = vector.shape_cast %37 : vector<2x1x128xf32> to vector<2x128xf32>
    %39 = vector.shape_cast %36 : vector<2x128xf32> to vector<2x1x128xf32>
    tpu.vector_store %arg9[%c0_20, %c5, %c0_21], %39 {strides = array<i32>} : memref<2x12x128xf32, #tpu.memory_space<vmem>>, vector<2x1x128xf32>,
    %40 = vector.extract_strided_slice %15 {offsets = [0, 8, 0], sizes = [2, 1, 128], strides = [1, 1, 1]} : vector<2x17x128xf32> to vector<2x1x128xf32>
    %41 = vector.shape_cast %40 : vector<2x1x128xf32> to vector<2x128xf32>
    %c0_22 = arith.constant 0 : index
    %c6 = arith.constant 6 : index
    %c0_23 = arith.constant 0 : index
    %42 = vector.load %arg9[%c0_22, %c6, %c0_23] : memref<2x12x128xf32, #tpu.memory_space<vmem>>, vector<2x1x128xf32>
    %43 = vector.shape_cast %42 : vector<2x1x128xf32> to vector<2x128xf32>
    %44 = vector.shape_cast %41 : vector<2x128xf32> to vector<2x1x128xf32>
    tpu.vector_store %arg9[%c0_22, %c6, %c0_23], %44 {strides = array<i32>} : memref<2x12x128xf32, #tpu.memory_space<vmem>>, vector<2x1x128xf32>,
    %45 = vector.extract_strided_slice %15 {offsets = [0, 10, 0], sizes = [2, 1, 128], strides = [1, 1, 1]} : vector<2x17x128xf32> to vector<2x1x128xf32>
    %46 = vector.shape_cast %45 : vector<2x1x128xf32> to vector<2x128xf32>
    %c0_24 = arith.constant 0 : index
    %c7 = arith.constant 7 : index
    %c0_25 = arith.constant 0 : index
    %47 = vector.load %arg9[%c0_24, %c7, %c0_25] : memref<2x12x128xf32, #tpu.memory_space<vmem>>, vector<2x1x128xf32>
    %48 = vector.shape_cast %47 : vector<2x1x128xf32> to vector<2x128xf32>
    %49 = vector.shape_cast %46 : vector<2x128xf32> to vector<2x1x128xf32>
    tpu.vector_store %arg9[%c0_24, %c7, %c0_25], %49 {strides = array<i32>} : memref<2x12x128xf32, #tpu.memory_space<vmem>>, vector<2x1x128xf32>,
    %50 = vector.extract_strided_slice %15 {offsets = [0, 12, 0], sizes = [2, 1, 128], strides = [1, 1, 1]} : vector<2x17x128xf32> to vector<2x1x128xf32>
    %51 = vector.shape_cast %50 : vector<2x1x128xf32> to vector<2x128xf32>
    %c0_26 = arith.constant 0 : index
    %c8 = arith.constant 8 : index
    %c0_27 = arith.constant 0 : index
    %52 = vector.load %arg9[%c0_26, %c8, %c0_27] : memref<2x12x128xf32, #tpu.memory_space<vmem>>, vector<2x1x128xf32>
    %53 = vector.shape_cast %52 : vector<2x1x128xf32> to vector<2x128xf32>
    %54 = vector.shape_cast %51 : vector<2x128xf32> to vector<2x1x128xf32>
    tpu.vector_store %arg9[%c0_26, %c8, %c0_27], %54 {strides = array<i32>} : memref<2x12x128xf32, #tpu.memory_space<vmem>>, vector<2x1x128xf32>,
    %55 = vector.extract_strided_slice %15 {offsets = [0, 14, 0], sizes = [2, 1, 128], strides = [1, 1, 1]} : vector<2x17x128xf32> to vector<2x1x128xf32>
    %56 = vector.shape_cast %55 : vector<2x1x128xf32> to vector<2x128xf32>
    %c0_28 = arith.constant 0 : index
    %c9 = arith.constant 9 : index
    %c0_29 = arith.constant 0 : index
    %57 = vector.load %arg9[%c0_28, %c9, %c0_29] : memref<2x12x128xf32, #tpu.memory_space<vmem>>, vector<2x1x128xf32>
    %58 = vector.shape_cast %57 : vector<2x1x128xf32> to vector<2x128xf32>
    %59 = vector.shape_cast %56 : vector<2x128xf32> to vector<2x1x128xf32>
    tpu.vector_store %arg9[%c0_28, %c9, %c0_29], %59 {strides = array<i32>} : memref<2x12x128xf32, #tpu.memory_space<vmem>>, vector<2x1x128xf32>,
    %cst_30 = arith.constant 0.000000e+00 : f32
    %60 = vector.broadcast %cst_30 : f32 to vector<2x128xf32>
    %c0_i32 = arith.constant 0 : i32
    %c0_31 = arith.constant 0 : index
    %c0_32 = arith.constant 0 : index
    %c0_33 = arith.constant 0 : index
    %61 = vector.load %arg9[%c0_31, %c0_32, %c0_33] : memref<2x12x128xf32, #tpu.memory_space<vmem>>, vector<2x12x128xf32>
    %cst_34 = arith.constant 0.000000e+00 : f32
    %62 = vector.broadcast %cst_34 : f32 to vector<16x128xf32>
    %63 = vector.extract_strided_slice %61 {offsets = [0, 0, 0], sizes = [2, 8, 128], strides = [1, 1, 1]} : vector<2x12x128xf32> to vector<2x8x128xf32>
    %64 = vector.shape_cast %63 : vector<2x8x128xf32> to vector<16x128xf32>
    %65 = arith.truncf %64 : vector<16x128xf32> to vector<16x128xbf16>
    %66 = arith.index_cast %c0_i32 : i32 to index
    %c0_35 = arith.constant 0 : index
    %c0_36 = arith.constant 0 : index
    %c0_37 = arith.constant 0 : index
    %67 = vector.load %arg3[%66, %c0_35, %c0_36, %c0_37] : memref<8x5x128x128xbf16, #tpu.memory_space<vmem>>, vector<1x1x128x128xbf16>
    %68 = vector.shape_cast %67 : vector<1x1x128x128xbf16> to vector<128x128xbf16>
    %cst_38 = arith.constant dense<0.000000e+00> : vector<16x128xf32>
    %69 = tpu.matmul %65, %68, %cst_38 {dimension_numbers = #tpu.dot_dimension_numbers<[1], [0], [0], [1], [0, 0, 1, 1], [], []>} : vector<16x128xbf16>, vector<128x128xbf16>, vector<16x128xf32> -> vector<16x128xf32>
    %70 = arith.addf %62, %69 : vector<16x128xf32>
    %71 = vector.extract_strided_slice %61 {offsets = [0, 1, 0], sizes = [2, 8, 128], strides = [1, 1, 1]} : vector<2x12x128xf32> to vector<2x8x128xf32>
    %72 = vector.shape_cast %71 : vector<2x8x128xf32> to vector<16x128xf32>
    %73 = arith.truncf %72 : vector<16x128xf32> to vector<16x128xbf16>
    %74 = arith.index_cast %c0_i32 : i32 to index
    %c1 = arith.constant 1 : index
    %c0_39 = arith.constant 0 : index
    %c0_40 = arith.constant 0 : index
    %75 = vector.load %arg3[%74, %c1, %c0_39, %c0_40] : memref<8x5x128x128xbf16, #tpu.memory_space<vmem>>, vector<1x1x128x128xbf16>
    %76 = vector.shape_cast %75 : vector<1x1x128x128xbf16> to vector<128x128xbf16>
    %cst_41 = arith.constant dense<0.000000e+00> : vector<16x128xf32>
    %77 = tpu.matmul %73, %76, %cst_41 {dimension_numbers = #tpu.dot_dimension_numbers<[1], [0], [0], [1], [0, 0, 1, 1], [], []>} : vector<16x128xbf16>, vector<128x128xbf16>, vector<16x128xf32> -> vector<16x128xf32>
    %78 = arith.addf %70, %77 : vector<16x128xf32>
    %79 = vector.extract_strided_slice %61 {offsets = [0, 2, 0], sizes = [2, 8, 128], strides = [1, 1, 1]} : vector<2x12x128xf32> to vector<2x8x128xf32>
    %80 = vector.shape_cast %79 : vector<2x8x128xf32> to vector<16x128xf32>
    %81 = arith.truncf %80 : vector<16x128xf32> to vector<16x128xbf16>
    %82 = arith.index_cast %c0_i32 : i32 to index
    %c2_42 = arith.constant 2 : index
    %c0_43 = arith.constant 0 : index
    %c0_44 = arith.constant 0 : index
    %83 = vector.load %arg3[%82, %c2_42, %c0_43, %c0_44] : memref<8x5x128x128xbf16, #tpu.memory_space<vmem>>, vector<1x1x128x128xbf16>
    %84 = vector.shape_cast %83 : vector<1x1x128x128xbf16> to vector<128x128xbf16>
    %cst_45 = arith.constant dense<0.000000e+00> : vector<16x128xf32>
    %85 = tpu.matmul %81, %84, %cst_45 {dimension_numbers = #tpu.dot_dimension_numbers<[1], [0], [0], [1], [0, 0, 1, 1], [], []>} : vector<16x128xbf16>, vector<128x128xbf16>, vector<16x128xf32> -> vector<16x128xf32>
    %86 = arith.addf %78, %85 : vector<16x128xf32>
    %87 = vector.extract_strided_slice %61 {offsets = [0, 3, 0], sizes = [2, 8, 128], strides = [1, 1, 1]} : vector<2x12x128xf32> to vector<2x8x128xf32>
    %88 = vector.shape_cast %87 : vector<2x8x128xf32> to vector<16x128xf32>
    %89 = arith.truncf %88 : vector<16x128xf32> to vector<16x128xbf16>
    %90 = arith.index_cast %c0_i32 : i32 to index
    %c3_46 = arith.constant 3 : index
    %c0_47 = arith.constant 0 : index
    %c0_48 = arith.constant 0 : index
    %91 = vector.load %arg3[%90, %c3_46, %c0_47, %c0_48] : memref<8x5x128x128xbf16, #tpu.memory_space<vmem>>, vector<1x1x128x128xbf16>
    %92 = vector.shape_cast %91 : vector<1x1x128x128xbf16> to vector<128x128xbf16>
    %cst_49 = arith.constant dense<0.000000e+00> : vector<16x128xf32>
    %93 = tpu.matmul %89, %92, %cst_49 {dimension_numbers = #tpu.dot_dimension_numbers<[1], [0], [0], [1], [0, 0, 1, 1], [], []>} : vector<16x128xbf16>, vector<128x128xbf16>, vector<16x128xf32> -> vector<16x128xf32>
    %94 = arith.addf %86, %93 : vector<16x128xf32>
    %95 = vector.extract_strided_slice %61 {offsets = [0, 4, 0], sizes = [2, 8, 128], strides = [1, 1, 1]} : vector<2x12x128xf32> to vector<2x8x128xf32>
    %96 = vector.shape_cast %95 : vector<2x8x128xf32> to vector<16x128xf32>
    %97 = arith.truncf %96 : vector<16x128xf32> to vector<16x128xbf16>
    %98 = arith.index_cast %c0_i32 : i32 to index
    %c4_50 = arith.constant 4 : index
    %c0_51 = arith.constant 0 : index
    %c0_52 = arith.constant 0 : index
    %99 = vector.load %arg3[%98, %c4_50, %c0_51, %c0_52] : memref<8x5x128x128xbf16, #tpu.memory_space<vmem>>, vector<1x1x128x128xbf16>
    %100 = vector.shape_cast %99 : vector<1x1x128x128xbf16> to vector<128x128xbf16>
    %cst_53 = arith.constant dense<0.000000e+00> : vector<16x128xf32>
    %101 = tpu.matmul %97, %100, %cst_53 {dimension_numbers = #tpu.dot_dimension_numbers<[1], [0], [0], [1], [0, 0, 1, 1], [], []>} : vector<16x128xbf16>, vector<128x128xbf16>, vector<16x128xf32> -> vector<16x128xf32>
    %102 = arith.addf %94, %101 : vector<16x128xf32>
    %cst_54 = arith.constant dense<0.000000e+00> : vector<128xf32>
    %103 = vector.multi_reduction <add>, %102, %cst_54 [0] : vector<16x128xf32> to vector<128xf32>
    %104 = vector.shape_cast %103 : vector<128xf32> to vector<1x128xf32>
    %cst_55 = arith.constant 1.600000e+01 : f32
    %105 = vector.broadcast %cst_55 : f32 to vector<1x128xf32>
    %106 = arith.divf %104, %105 : vector<1x128xf32>
    %107 = vector.broadcast %106 : vector<1x128xf32> to vector<16x128xf32>
    %108 = arith.subf %102, %107 : vector<16x128xf32>
    %109 = arith.mulf %108, %108 : vector<16x128xf32>
    %cst_56 = arith.constant dense<0.000000e+00> : vector<128xf32>
    %110 = vector.multi_reduction <add>, %109, %cst_56 [0] : vector<16x128xf32> to vector<128xf32>
    %111 = vector.shape_cast %110 : vector<128xf32> to vector<1x128xf32>
    %cst_57 = arith.constant 1.600000e+01 : f32
    %112 = vector.broadcast %cst_57 : f32 to vector<1x128xf32>
    %113 = arith.divf %111, %112 : vector<1x128xf32>
    %114 = vector.broadcast %106 : vector<1x128xf32> to vector<16x128xf32>
    %115 = arith.subf %102, %114 : vector<16x128xf32>
    %cst_58 = arith.constant 9.99999974E-6 : f32
    %116 = vector.broadcast %cst_58 : f32 to vector<1x128xf32>
    %117 = arith.addf %113, %116 : vector<1x128xf32>
    %118 = math.rsqrt %117 : vector<1x128xf32>
    %119 = vector.broadcast %118 : vector<1x128xf32> to vector<16x128xf32>
    %120 = arith.mulf %115, %119 : vector<16x128xf32>
    %121 = arith.index_cast %c0_i32 : i32 to index
    %c0_59 = arith.constant 0 : index
    %c0_60 = arith.constant 0 : index
    %122 = vector.load %arg4[%121, %c0_59, %c0_60] : memref<8x1x128xf32, #tpu.memory_space<vmem>>, vector<1x1x128xf32>
    %123 = vector.shape_cast %122 : vector<1x1x128xf32> to vector<1x128xf32>
    %124 = vector.broadcast %123 : vector<1x128xf32> to vector<16x128xf32>
    %125 = arith.mulf %120, %124 : vector<16x128xf32>
    %126 = arith.index_cast %c0_i32 : i32 to index
    %c0_61 = arith.constant 0 : index
    %c0_62 = arith.constant 0 : index
    %127 = vector.load %arg5[%126, %c0_61, %c0_62] : memref<8x1x128xf32, #tpu.memory_space<vmem>>, vector<1x1x128xf32>
    %128 = vector.shape_cast %127 : vector<1x1x128xf32> to vector<1x128xf32>
    %129 = vector.broadcast %128 : vector<1x128xf32> to vector<16x128xf32>
    %130 = arith.addf %125, %129 : vector<16x128xf32>
    %cst_63 = arith.constant 0.000000e+00 : f32
    %131 = vector.broadcast %cst_63 : f32 to vector<16x128xf32>
    %132 = arith.maximumf %130, %131 : vector<16x128xf32>
    %133 = vector.shape_cast %132 : vector<16x128xf32> to vector<2x8x128xf32>
    %c0_64 = arith.constant 0 : index
    %c2_65 = arith.constant 2 : index
    %c0_66 = arith.constant 0 : index
    %134 = vector.load %arg9[%c0_64, %c2_65, %c0_66] : memref<2x12x128xf32, #tpu.memory_space<vmem>>, vector<2x8x128xf32>
    tpu.vector_store %arg9[%c0_64, %c2_65, %c0_66], %133 {strides = array<i32>} : memref<2x12x128xf32, #tpu.memory_space<vmem>>, vector<2x8x128xf32>,
    %135 = vector.extract_strided_slice %133 {offsets = [0, 0, 0], sizes = [2, 1, 128], strides = [1, 1, 1]} : vector<2x8x128xf32> to vector<2x1x128xf32>
    %136 = vector.shape_cast %135 : vector<2x1x128xf32> to vector<2x128xf32>
    %137 = arith.truncf %136 : vector<2x128xf32> to vector<2x128xbf16>
    %138 = arith.index_cast %c0_i32 : i32 to index
    %c0_67 = arith.constant 0 : index
    %c0_68 = arith.constant 0 : index
    %c0_69 = arith.constant 0 : index
    %139 = vector.load %arg6[%138, %c0_67, %c0_68, %c0_69] : memref<8x8x128x128xbf16, #tpu.memory_space<vmem>>, vector<1x1x128x128xbf16>
    %140 = vector.shape_cast %139 : vector<1x1x128x128xbf16> to vector<128x128xbf16>
    %cst_70 = arith.constant dense<0.000000e+00> : vector<2x128xf32>
    %141 = tpu.matmul %137, %140, %cst_70 {dimension_numbers = #tpu.dot_dimension_numbers<[1], [0], [0], [1], [0, 0, 1, 1], [], []>} : vector<2x128xbf16>, vector<128x128xbf16>, vector<2x128xf32> -> vector<2x128xf32>
    %142 = arith.addf %60, %141 : vector<2x128xf32>
    %143 = vector.extract_strided_slice %133 {offsets = [0, 1, 0], sizes = [2, 1, 128], strides = [1, 1, 1]} : vector<2x8x128xf32> to vector<2x1x128xf32>
    %144 = vector.shape_cast %143 : vector<2x1x128xf32> to vector<2x128xf32>
    %145 = arith.truncf %144 : vector<2x128xf32> to vector<2x128xbf16>
    %146 = arith.index_cast %c0_i32 : i32 to index
    %c1_71 = arith.constant 1 : index
    %c0_72 = arith.constant 0 : index
    %c0_73 = arith.constant 0 : index
    %147 = vector.load %arg6[%146, %c1_71, %c0_72, %c0_73] : memref<8x8x128x128xbf16, #tpu.memory_space<vmem>>, vector<1x1x128x128xbf16>
    %148 = vector.shape_cast %147 : vector<1x1x128x128xbf16> to vector<128x128xbf16>
    %cst_74 = arith.constant dense<0.000000e+00> : vector<2x128xf32>
    %149 = tpu.matmul %145, %148, %cst_74 {dimension_numbers = #tpu.dot_dimension_numbers<[1], [0], [0], [1], [0, 0, 1, 1], [], []>} : vector<2x128xbf16>, vector<128x128xbf16>, vector<2x128xf32> -> vector<2x128xf32>
    %150 = arith.addf %142, %149 : vector<2x128xf32>
    %151 = vector.extract_strided_slice %133 {offsets = [0, 2, 0], sizes = [2, 1, 128], strides = [1, 1, 1]} : vector<2x8x128xf32> to vector<2x1x128xf32>
    %152 = vector.shape_cast %151 : vector<2x1x128xf32> to vector<2x128xf32>
    %153 = arith.truncf %152 : vector<2x128xf32> to vector<2x128xbf16>
    %154 = arith.index_cast %c0_i32 : i32 to index
    %c2_75 = arith.constant 2 : index
    %c0_76 = arith.constant 0 : index
    %c0_77 = arith.constant 0 : index
    %155 = vector.load %arg6[%154, %c2_75, %c0_76, %c0_77] : memref<8x8x128x128xbf16, #tpu.memory_space<vmem>>, vector<1x1x128x128xbf16>
    %156 = vector.shape_cast %155 : vector<1x1x128x128xbf16> to vector<128x128xbf16>
    %cst_78 = arith.constant dense<0.000000e+00> : vector<2x128xf32>
    %157 = tpu.matmul %153, %156, %cst_78 {dimension_numbers = #tpu.dot_dimension_numbers<[1], [0], [0], [1], [0, 0, 1, 1], [], []>} : vector<2x128xbf16>, vector<128x128xbf16>, vector<2x128xf32> -> vector<2x128xf32>
    %158 = arith.addf %150, %157 : vector<2x128xf32>
    %159 = vector.extract_strided_slice %133 {offsets = [0, 3, 0], sizes = [2, 1, 128], strides = [1, 1, 1]} : vector<2x8x128xf32> to vector<2x1x128xf32>
    %160 = vector.shape_cast %159 : vector<2x1x128xf32> to vector<2x128xf32>
    %161 = arith.truncf %160 : vector<2x128xf32> to vector<2x128xbf16>
    %162 = arith.index_cast %c0_i32 : i32 to index
    %c3_79 = arith.constant 3 : index
    %c0_80 = arith.constant 0 : index
    %c0_81 = arith.constant 0 : index
    %163 = vector.load %arg6[%162, %c3_79, %c0_80, %c0_81] : memref<8x8x128x128xbf16, #tpu.memory_space<vmem>>, vector<1x1x128x128xbf16>
    %164 = vector.shape_cast %163 : vector<1x1x128x128xbf16> to vector<128x128xbf16>
    %cst_82 = arith.constant dense<0.000000e+00> : vector<2x128xf32>
    %165 = tpu.matmul %161, %164, %cst_82 {dimension_numbers = #tpu.dot_dimension_numbers<[1], [0], [0], [1], [0, 0, 1, 1], [], []>} : vector<2x128xbf16>, vector<128x128xbf16>, vector<2x128xf32> -> vector<2x128xf32>
    %166 = arith.addf %158, %165 : vector<2x128xf32>
    %167 = vector.extract_strided_slice %133 {offsets = [0, 4, 0], sizes = [2, 1, 128], strides = [1, 1, 1]} : vector<2x8x128xf32> to vector<2x1x128xf32>
    %168 = vector.shape_cast %167 : vector<2x1x128xf32> to vector<2x128xf32>
    %169 = arith.truncf %168 : vector<2x128xf32> to vector<2x128xbf16>
    %170 = arith.index_cast %c0_i32 : i32 to index
    %c4_83 = arith.constant 4 : index
    %c0_84 = arith.constant 0 : index
    %c0_85 = arith.constant 0 : index
    %171 = vector.load %arg6[%170, %c4_83, %c0_84, %c0_85] : memref<8x8x128x128xbf16, #tpu.memory_space<vmem>>, vector<1x1x128x128xbf16>
    %172 = vector.shape_cast %171 : vector<1x1x128x128xbf16> to vector<128x128xbf16>
    %cst_86 = arith.constant dense<0.000000e+00> : vector<2x128xf32>
    %173 = tpu.matmul %169, %172, %cst_86 {dimension_numbers = #tpu.dot_dimension_numbers<[1], [0], [0], [1], [0, 0, 1, 1], [], []>} : vector<2x128xbf16>, vector<128x128xbf16>, vector<2x128xf32> -> vector<2x128xf32>
    %174 = arith.addf %166, %173 : vector<2x128xf32>
    %175 = vector.extract_strided_slice %133 {offsets = [0, 5, 0], sizes = [2, 1, 128], strides = [1, 1, 1]} : vector<2x8x128xf32> to vector<2x1x128xf32>
    %176 = vector.shape_cast %175 : vector<2x1x128xf32> to vector<2x128xf32>
    %177 = arith.truncf %176 : vector<2x128xf32> to vector<2x128xbf16>
    %178 = arith.index_cast %c0_i32 : i32 to index
    %c5_87 = arith.constant 5 : index
    %c0_88 = arith.constant 0 : index
    %c0_89 = arith.constant 0 : index
    %179 = vector.load %arg6[%178, %c5_87, %c0_88, %c0_89] : memref<8x8x128x128xbf16, #tpu.memory_space<vmem>>, vector<1x1x128x128xbf16>
    %180 = vector.shape_cast %179 : vector<1x1x128x128xbf16> to vector<128x128xbf16>
    %cst_90 = arith.constant dense<0.000000e+00> : vector<2x128xf32>
    %181 = tpu.matmul %177, %180, %cst_90 {dimension_numbers = #tpu.dot_dimension_numbers<[1], [0], [0], [1], [0, 0, 1, 1], [], []>} : vector<2x128xbf16>, vector<128x128xbf16>, vector<2x128xf32> -> vector<2x128xf32>
    %182 = arith.addf %174, %181 : vector<2x128xf32>
    %183 = vector.extract_strided_slice %133 {offsets = [0, 6, 0], sizes = [2, 1, 128], strides = [1, 1, 1]} : vector<2x8x128xf32> to vector<2x1x128xf32>
    %184 = vector.shape_cast %183 : vector<2x1x128xf32> to vector<2x128xf32>
    %185 = arith.truncf %184 : vector<2x128xf32> to vector<2x128xbf16>
    %186 = arith.index_cast %c0_i32 : i32 to index
    %c6_91 = arith.constant 6 : index
    %c0_92 = arith.constant 0 : index
    %c0_93 = arith.constant 0 : index
    %187 = vector.load %arg6[%186, %c6_91, %c0_92, %c0_93] : memref<8x8x128x128xbf16, #tpu.memory_space<vmem>>, vector<1x1x128x128xbf16>
    %188 = vector.shape_cast %187 : vector<1x1x128x128xbf16> to vector<128x128xbf16>
    %cst_94 = arith.constant dense<0.000000e+00> : vector<2x128xf32>
    %189 = tpu.matmul %185, %188, %cst_94 {dimension_numbers = #tpu.dot_dimension_numbers<[1], [0], [0], [1], [0, 0, 1, 1], [], []>} : vector<2x128xbf16>, vector<128x128xbf16>, vector<2x128xf32> -> vector<2x128xf32>
    %190 = arith.addf %182, %189 : vector<2x128xf32>
    %191 = vector.extract_strided_slice %133 {offsets = [0, 7, 0], sizes = [2, 1, 128], strides = [1, 1, 1]} : vector<2x8x128xf32> to vector<2x1x128xf32>
    %192 = vector.shape_cast %191 : vector<2x1x128xf32> to vector<2x128xf32>
    %193 = arith.truncf %192 : vector<2x128xf32> to vector<2x128xbf16>
    %194 = arith.index_cast %c0_i32 : i32 to index
    %c7_95 = arith.constant 7 : index
    %c0_96 = arith.constant 0 : index
    %c0_97 = arith.constant 0 : index
    %195 = vector.load %arg6[%194, %c7_95, %c0_96, %c0_97] : memref<8x8x128x128xbf16, #tpu.memory_space<vmem>>, vector<1x1x128x128xbf16>
    %196 = vector.shape_cast %195 : vector<1x1x128x128xbf16> to vector<128x128xbf16>
    %cst_98 = arith.constant dense<0.000000e+00> : vector<2x128xf32>
    %197 = tpu.matmul %193, %196, %cst_98 {dimension_numbers = #tpu.dot_dimension_numbers<[1], [0], [0], [1], [0, 0, 1, 1], [], []>} : vector<2x128xbf16>, vector<128x128xbf16>, vector<2x128xf32> -> vector<2x128xf32>
    %198 = arith.addf %190, %197 : vector<2x128xf32>
    %c1_i32 = arith.constant 1 : i32
    %c0_99 = arith.constant 0 : index
    %c0_100 = arith.constant 0 : index
    %c0_101 = arith.constant 0 : index
    %199 = vector.load %arg9[%c0_99, %c0_100, %c0_101] : memref<2x12x128xf32, #tpu.memory_space<vmem>>, vector<2x12x128xf32>
    %cst_102 = arith.constant 0.000000e+00 : f32
    %200 = vector.broadcast %cst_102 : f32 to vector<16x128xf32>
    %201 = vector.extract_strided_slice %199 {offsets = [0, 0, 0], sizes = [2, 8, 128], strides = [1, 1, 1]} : vector<2x12x128xf32> to vector<2x8x128xf32>
    %202 = vector.shape_cast %201 : vector<2x8x128xf32> to vector<16x128xf32>
    %203 = arith.truncf %202 : vector<16x128xf32> to vector<16x128xbf16>
    %204 = arith.index_cast %c1_i32 : i32 to index
    %c0_103 = arith.constant 0 : index
    %c0_104 = arith.constant 0 : index
    %c0_105 = arith.constant 0 : index
    %205 = vector.load %arg3[%204, %c0_103, %c0_104, %c0_105] : memref<8x5x128x128xbf16, #tpu.memory_space<vmem>>, vector<1x1x128x128xbf16>
    %206 = vector.shape_cast %205 : vector<1x1x128x128xbf16> to vector<128x128xbf16>
    %cst_106 = arith.constant dense<0.000000e+00> : vector<16x128xf32>
    %207 = tpu.matmul %203, %206, %cst_106 {dimension_numbers = #tpu.dot_dimension_numbers<[1], [0], [0], [1], [0, 0, 1, 1], [], []>} : vector<16x128xbf16>, vector<128x128xbf16>, vector<16x128xf32> -> vector<16x128xf32>
    %208 = arith.addf %200, %207 : vector<16x128xf32>
    %209 = vector.extract_strided_slice %199 {offsets = [0, 1, 0], sizes = [2, 8, 128], strides = [1, 1, 1]} : vector<2x12x128xf32> to vector<2x8x128xf32>
    %210 = vector.shape_cast %209 : vector<2x8x128xf32> to vector<16x128xf32>
    %211 = arith.truncf %210 : vector<16x128xf32> to vector<16x128xbf16>
    %212 = arith.index_cast %c1_i32 : i32 to index
    %c1_107 = arith.constant 1 : index
    %c0_108 = arith.constant 0 : index
    %c0_109 = arith.constant 0 : index
    %213 = vector.load %arg3[%212, %c1_107, %c0_108, %c0_109] : memref<8x5x128x128xbf16, #tpu.memory_space<vmem>>, vector<1x1x128x128xbf16>
    %214 = vector.shape_cast %213 : vector<1x1x128x128xbf16> to vector<128x128xbf16>
    %cst_110 = arith.constant dense<0.000000e+00> : vector<16x128xf32>
    %215 = tpu.matmul %211, %214, %cst_110 {dimension_numbers = #tpu.dot_dimension_numbers<[1], [0], [0], [1], [0, 0, 1, 1], [], []>} : vector<16x128xbf16>, vector<128x128xbf16>, vector<16x128xf32> -> vector<16x128xf32>
    %216 = arith.addf %208, %215 : vector<16x128xf32>
    %217 = vector.extract_strided_slice %199 {offsets = [0, 2, 0], sizes = [2, 8, 128], strides = [1, 1, 1]} : vector<2x12x128xf32> to vector<2x8x128xf32>
    %218 = vector.shape_cast %217 : vector<2x8x128xf32> to vector<16x128xf32>
    %219 = arith.truncf %218 : vector<16x128xf32> to vector<16x128xbf16>
    %220 = arith.index_cast %c1_i32 : i32 to index
    %c2_111 = arith.constant 2 : index
    %c0_112 = arith.constant 0 : index
    %c0_113 = arith.constant 0 : index
    %221 = vector.load %arg3[%220, %c2_111, %c0_112, %c0_113] : memref<8x5x128x128xbf16, #tpu.memory_space<vmem>>, vector<1x1x128x128xbf16>
    %222 = vector.shape_cast %221 : vector<1x1x128x128xbf16> to vector<128x128xbf16>
    %cst_114 = arith.constant dense<0.000000e+00> : vector<16x128xf32>
    %223 = tpu.matmul %219, %222, %cst_114 {dimension_numbers = #tpu.dot_dimension_numbers<[1], [0], [0], [1], [0, 0, 1, 1], [], []>} : vector<16x128xbf16>, vector<128x128xbf16>, vector<16x128xf32> -> vector<16x128xf32>
    %224 = arith.addf %216, %223 : vector<16x128xf32>
    %225 = vector.extract_strided_slice %199 {offsets = [0, 3, 0], sizes = [2, 8, 128], strides = [1, 1, 1]} : vector<2x12x128xf32> to vector<2x8x128xf32>
    %226 = vector.shape_cast %225 : vector<2x8x128xf32> to vector<16x128xf32>
    %227 = arith.truncf %226 : vector<16x128xf32> to vector<16x128xbf16>
    %228 = arith.index_cast %c1_i32 : i32 to index
    %c3_115 = arith.constant 3 : index
    %c0_116 = arith.constant 0 : index
    %c0_117 = arith.constant 0 : index
    %229 = vector.load %arg3[%228, %c3_115, %c0_116, %c0_117] : memref<8x5x128x128xbf16, #tpu.memory_space<vmem>>, vector<1x1x128x128xbf16>
    %230 = vector.shape_cast %229 : vector<1x1x128x128xbf16> to vector<128x128xbf16>
    %cst_118 = arith.constant dense<0.000000e+00> : vector<16x128xf32>
    %231 = tpu.matmul %227, %230, %cst_118 {dimension_numbers = #tpu.dot_dimension_numbers<[1], [0], [0], [1], [0, 0, 1, 1], [], []>} : vector<16x128xbf16>, vector<128x128xbf16>, vector<16x128xf32> -> vector<16x128xf32>
    %232 = arith.addf %224, %231 : vector<16x128xf32>
    %233 = vector.extract_strided_slice %199 {offsets = [0, 4, 0], sizes = [2, 8, 128], strides = [1, 1, 1]} : vector<2x12x128xf32> to vector<2x8x128xf32>
    %234 = vector.shape_cast %233 : vector<2x8x128xf32> to vector<16x128xf32>
    %235 = arith.truncf %234 : vector<16x128xf32> to vector<16x128xbf16>
    %236 = arith.index_cast %c1_i32 : i32 to index
    %c4_119 = arith.constant 4 : index
    %c0_120 = arith.constant 0 : index
    %c0_121 = arith.constant 0 : index
    %237 = vector.load %arg3[%236, %c4_119, %c0_120, %c0_121] : memref<8x5x128x128xbf16, #tpu.memory_space<vmem>>, vector<1x1x128x128xbf16>
    %238 = vector.shape_cast %237 : vector<1x1x128x128xbf16> to vector<128x128xbf16>
    %cst_122 = arith.constant dense<0.000000e+00> : vector<16x128xf32>
    %239 = tpu.matmul %235, %238, %cst_122 {dimension_numbers = #tpu.dot_dimension_numbers<[1], [0], [0], [1], [0, 0, 1, 1], [], []>} : vector<16x128xbf16>, vector<128x128xbf16>, vector<16x128xf32> -> vector<16x128xf32>
    %240 = arith.addf %232, %239 : vector<16x128xf32>
    %cst_123 = arith.constant dense<0.000000e+00> : vector<128xf32>
    %241 = vector.multi_reduction <add>, %240, %cst_123 [0] : vector<16x128xf32> to vector<128xf32>
    %242 = vector.shape_cast %241 : vector<128xf32> to vector<1x128xf32>
    %cst_124 = arith.constant 1.600000e+01 : f32
    %243 = vector.broadcast %cst_124 : f32 to vector<1x128xf32>
    %244 = arith.divf %242, %243 : vector<1x128xf32>
    %245 = vector.broadcast %244 : vector<1x128xf32> to vector<16x128xf32>
    %246 = arith.subf %240, %245 : vector<16x128xf32>
    %247 = arith.mulf %246, %246 : vector<16x128xf32>
    %cst_125 = arith.constant dense<0.000000e+00> : vector<128xf32>
    %248 = vector.multi_reduction <add>, %247, %cst_125 [0] : vector<16x128xf32> to vector<128xf32>
    %249 = vector.shape_cast %248 : vector<128xf32> to vector<1x128xf32>
    %cst_126 = arith.constant 1.600000e+01 : f32
    %250 = vector.broadcast %cst_126 : f32 to vector<1x128xf32>
    %251 = arith.divf %249, %250 : vector<1x128xf32>
    %252 = vector.broadcast %244 : vector<1x128xf32> to vector<16x128xf32>
    %253 = arith.subf %240, %252 : vector<16x128xf32>
    %cst_127 = arith.constant 9.99999974E-6 : f32
    %254 = vector.broadcast %cst_127 : f32 to vector<1x128xf32>
    %255 = arith.addf %251, %254 : vector<1x128xf32>
    %256 = math.rsqrt %255 : vector<1x128xf32>
    %257 = vector.broadcast %256 : vector<1x128xf32> to vector<16x128xf32>
    %258 = arith.mulf %253, %257 : vector<16x128xf32>
    %259 = arith.index_cast %c1_i32 : i32 to index
    %c0_128 = arith.constant 0 : index
    %c0_129 = arith.constant 0 : index
    %260 = vector.load %arg4[%259, %c0_128, %c0_129] : memref<8x1x128xf32, #tpu.memory_space<vmem>>, vector<1x1x128xf32>
    %261 = vector.shape_cast %260 : vector<1x1x128xf32> to vector<1x128xf32>
    %262 = vector.broadcast %261 : vector<1x128xf32> to vector<16x128xf32>
    %263 = arith.mulf %258, %262 : vector<16x128xf32>
    %264 = arith.index_cast %c1_i32 : i32 to index
    %c0_130 = arith.constant 0 : index
    %c0_131 = arith.constant 0 : index
    %265 = vector.load %arg5[%264, %c0_130, %c0_131] : memref<8x1x128xf32, #tpu.memory_space<vmem>>, vector<1x1x128xf32>
    %266 = vector.shape_cast %265 : vector<1x1x128xf32> to vector<1x128xf32>
    %267 = vector.broadcast %266 : vector<1x128xf32> to vector<16x128xf32>
    %268 = arith.addf %263, %267 : vector<16x128xf32>
    %cst_132 = arith.constant 0.000000e+00 : f32
    %269 = vector.broadcast %cst_132 : f32 to vector<16x128xf32>
    %270 = arith.maximumf %268, %269 : vector<16x128xf32>
    %271 = vector.shape_cast %270 : vector<16x128xf32> to vector<2x8x128xf32>
    %c0_133 = arith.constant 0 : index
    %c2_134 = arith.constant 2 : index
    %c0_135 = arith.constant 0 : index
    %272 = vector.load %arg9[%c0_133, %c2_134, %c0_135] : memref<2x12x128xf32, #tpu.memory_space<vmem>>, vector<2x8x128xf32>
    tpu.vector_store %arg9[%c0_133, %c2_134, %c0_135], %271 {strides = array<i32>} : memref<2x12x128xf32, #tpu.memory_space<vmem>>, vector<2x8x128xf32>,
    %273 = vector.extract_strided_slice %271 {offsets = [0, 0, 0], sizes = [2, 1, 128], strides = [1, 1, 1]} : vector<2x8x128xf32> to vector<2x1x128xf32>
    %274 = vector.shape_cast %273 : vector<2x1x128xf32> to vector<2x128xf32>
    %275 = arith.truncf %274 : vector<2x128xf32> to vector<2x128xbf16>
    %276 = arith.index_cast %c1_i32 : i32 to index
    %c0_136 = arith.constant 0 : index
    %c0_137 = arith.constant 0 : index
    %c0_138 = arith.constant 0 : index
    %277 = vector.load %arg6[%276, %c0_136, %c0_137, %c0_138] : memref<8x8x128x128xbf16, #tpu.memory_space<vmem>>, vector<1x1x128x128xbf16>
    %278 = vector.shape_cast %277 : vector<1x1x128x128xbf16> to vector<128x128xbf16>
    %cst_139 = arith.constant dense<0.000000e+00> : vector<2x128xf32>
    %279 = tpu.matmul %275, %278, %cst_139 {dimension_numbers = #tpu.dot_dimension_numbers<[1], [0], [0], [1], [0, 0, 1, 1], [], []>} : vector<2x128xbf16>, vector<128x128xbf16>, vector<2x128xf32> -> vector<2x128xf32>
    %280 = arith.addf %198, %279 : vector<2x128xf32>
    %281 = vector.extract_strided_slice %271 {offsets = [0, 1, 0], sizes = [2, 1, 128], strides = [1, 1, 1]} : vector<2x8x128xf32> to vector<2x1x128xf32>
    %282 = vector.shape_cast %281 : vector<2x1x128xf32> to vector<2x128xf32>
    %283 = arith.truncf %282 : vector<2x128xf32> to vector<2x128xbf16>
    %284 = arith.index_cast %c1_i32 : i32 to index
    %c1_140 = arith.constant 1 : index
    %c0_141 = arith.constant 0 : index
    %c0_142 = arith.constant 0 : index
    %285 = vector.load %arg6[%284, %c1_140, %c0_141, %c0_142] : memref<8x8x128x128xbf16, #tpu.memory_space<vmem>>, vector<1x1x128x128xbf16>
    %286 = vector.shape_cast %285 : vector<1x1x128x128xbf16> to vector<128x128xbf16>
    %cst_143 = arith.constant dense<0.000000e+00> : vector<2x128xf32>
    %287 = tpu.matmul %283, %286, %cst_143 {dimension_numbers = #tpu.dot_dimension_numbers<[1], [0], [0], [1], [0, 0, 1, 1], [], []>} : vector<2x128xbf16>, vector<128x128xbf16>, vector<2x128xf32> -> vector<2x128xf32>
    %288 = arith.addf %280, %287 : vector<2x128xf32>
    %289 = vector.extract_strided_slice %271 {offsets = [0, 2, 0], sizes = [2, 1, 128], strides = [1, 1, 1]} : vector<2x8x128xf32> to vector<2x1x128xf32>
    %290 = vector.shape_cast %289 : vector<2x1x128xf32> to vector<2x128xf32>
    %291 = arith.truncf %290 : vector<2x128xf32> to vector<2x128xbf16>
    %292 = arith.index_cast %c1_i32 : i32 to index
    %c2_144 = arith.constant 2 : index
    %c0_145 = arith.constant 0 : index
    %c0_146 = arith.constant 0 : index
    %293 = vector.load %arg6[%292, %c2_144, %c0_145, %c0_146] : memref<8x8x128x128xbf16, #tpu.memory_space<vmem>>, vector<1x1x128x128xbf16>
    %294 = vector.shape_cast %293 : vector<1x1x128x128xbf16> to vector<128x128xbf16>
    %cst_147 = arith.constant dense<0.000000e+00> : vector<2x128xf32>
    %295 = tpu.matmul %291, %294, %cst_147 {dimension_numbers = #tpu.dot_dimension_numbers<[1], [0], [0], [1], [0, 0, 1, 1], [], []>} : vector<2x128xbf16>, vector<128x128xbf16>, vector<2x128xf32> -> vector<2x128xf32>
    %296 = arith.addf %288, %295 : vector<2x128xf32>
    %297 = vector.extract_strided_slice %271 {offsets = [0, 3, 0], sizes = [2, 1, 128], strides = [1, 1, 1]} : vector<2x8x128xf32> to vector<2x1x128xf32>
    %298 = vector.shape_cast %297 : vector<2x1x128xf32> to vector<2x128xf32>
    %299 = arith.truncf %298 : vector<2x128xf32> to vector<2x128xbf16>
    %300 = arith.index_cast %c1_i32 : i32 to index
    %c3_148 = arith.constant 3 : index
    %c0_149 = arith.constant 0 : index
    %c0_150 = arith.constant 0 : index
    %301 = vector.load %arg6[%300, %c3_148, %c0_149, %c0_150] : memref<8x8x128x128xbf16, #tpu.memory_space<vmem>>, vector<1x1x128x128xbf16>
    %302 = vector.shape_cast %301 : vector<1x1x128x128xbf16> to vector<128x128xbf16>
    %cst_151 = arith.constant dense<0.000000e+00> : vector<2x128xf32>
    %303 = tpu.matmul %299, %302, %cst_151 {dimension_numbers = #tpu.dot_dimension_numbers<[1], [0], [0], [1], [0, 0, 1, 1], [], []>} : vector<2x128xbf16>, vector<128x128xbf16>, vector<2x128xf32> -> vector<2x128xf32>
    %304 = arith.addf %296, %303 : vector<2x128xf32>
    %305 = vector.extract_strided_slice %271 {offsets = [0, 4, 0], sizes = [2, 1, 128], strides = [1, 1, 1]} : vector<2x8x128xf32> to vector<2x1x128xf32>
    %306 = vector.shape_cast %305 : vector<2x1x128xf32> to vector<2x128xf32>
    %307 = arith.truncf %306 : vector<2x128xf32> to vector<2x128xbf16>
    %308 = arith.index_cast %c1_i32 : i32 to index
    %c4_152 = arith.constant 4 : index
    %c0_153 = arith.constant 0 : index
    %c0_154 = arith.constant 0 : index
    %309 = vector.load %arg6[%308, %c4_152, %c0_153, %c0_154] : memref<8x8x128x128xbf16, #tpu.memory_space<vmem>>, vector<1x1x128x128xbf16>
    %310 = vector.shape_cast %309 : vector<1x1x128x128xbf16> to vector<128x128xbf16>
    %cst_155 = arith.constant dense<0.000000e+00> : vector<2x128xf32>
    %311 = tpu.matmul %307, %310, %cst_155 {dimension_numbers = #tpu.dot_dimension_numbers<[1], [0], [0], [1], [0, 0, 1, 1], [], []>} : vector<2x128xbf16>, vector<128x128xbf16>, vector<2x128xf32> -> vector<2x128xf32>
    %312 = arith.addf %304, %311 : vector<2x128xf32>
    %313 = vector.extract_strided_slice %271 {offsets = [0, 5, 0], sizes = [2, 1, 128], strides = [1, 1, 1]} : vector<2x8x128xf32> to vector<2x1x128xf32>
    %314 = vector.shape_cast %313 : vector<2x1x128xf32> to vector<2x128xf32>
    %315 = arith.truncf %314 : vector<2x128xf32> to vector<2x128xbf16>
    %316 = arith.index_cast %c1_i32 : i32 to index
    %c5_156 = arith.constant 5 : index
    %c0_157 = arith.constant 0 : index
    %c0_158 = arith.constant 0 : index
    %317 = vector.load %arg6[%316, %c5_156, %c0_157, %c0_158] : memref<8x8x128x128xbf16, #tpu.memory_space<vmem>>, vector<1x1x128x128xbf16>
    %318 = vector.shape_cast %317 : vector<1x1x128x128xbf16> to vector<128x128xbf16>
    %cst_159 = arith.constant dense<0.000000e+00> : vector<2x128xf32>
    %319 = tpu.matmul %315, %318, %cst_159 {dimension_numbers = #tpu.dot_dimension_numbers<[1], [0], [0], [1], [0, 0, 1, 1], [], []>} : vector<2x128xbf16>, vector<128x128xbf16>, vector<2x128xf32> -> vector<2x128xf32>
    %320 = arith.addf %312, %319 : vector<2x128xf32>
    %321 = vector.extract_strided_slice %271 {offsets = [0, 6, 0], sizes = [2, 1, 128], strides = [1, 1, 1]} : vector<2x8x128xf32> to vector<2x1x128xf32>
    %322 = vector.shape_cast %321 : vector<2x1x128xf32> to vector<2x128xf32>
    %323 = arith.truncf %322 : vector<2x128xf32> to vector<2x128xbf16>
    %324 = arith.index_cast %c1_i32 : i32 to index
    %c6_160 = arith.constant 6 : index
    %c0_161 = arith.constant 0 : index
    %c0_162 = arith.constant 0 : index
    %325 = vector.load %arg6[%324, %c6_160, %c0_161, %c0_162] : memref<8x8x128x128xbf16, #tpu.memory_space<vmem>>, vector<1x1x128x128xbf16>
    %326 = vector.shape_cast %325 : vector<1x1x128x128xbf16> to vector<128x128xbf16>
    %cst_163 = arith.constant dense<0.000000e+00> : vector<2x128xf32>
    %327 = tpu.matmul %323, %326, %cst_163 {dimension_numbers = #tpu.dot_dimension_numbers<[1], [0], [0], [1], [0, 0, 1, 1], [], []>} : vector<2x128xbf16>, vector<128x128xbf16>, vector<2x128xf32> -> vector<2x128xf32>
    %328 = arith.addf %320, %327 : vector<2x128xf32>
    %329 = vector.extract_strided_slice %271 {offsets = [0, 7, 0], sizes = [2, 1, 128], strides = [1, 1, 1]} : vector<2x8x128xf32> to vector<2x1x128xf32>
    %330 = vector.shape_cast %329 : vector<2x1x128xf32> to vector<2x128xf32>
    %331 = arith.truncf %330 : vector<2x128xf32> to vector<2x128xbf16>
    %332 = arith.index_cast %c1_i32 : i32 to index
    %c7_164 = arith.constant 7 : index
    %c0_165 = arith.constant 0 : index
    %c0_166 = arith.constant 0 : index
    %333 = vector.load %arg6[%332, %c7_164, %c0_165, %c0_166] : memref<8x8x128x128xbf16, #tpu.memory_space<vmem>>, vector<1x1x128x128xbf16>
    %334 = vector.shape_cast %333 : vector<1x1x128x128xbf16> to vector<128x128xbf16>
    %cst_167 = arith.constant dense<0.000000e+00> : vector<2x128xf32>
    %335 = tpu.matmul %331, %334, %cst_167 {dimension_numbers = #tpu.dot_dimension_numbers<[1], [0], [0], [1], [0, 0, 1, 1], [], []>} : vector<2x128xbf16>, vector<128x128xbf16>, vector<2x128xf32> -> vector<2x128xf32>
    %336 = arith.addf %328, %335 : vector<2x128xf32>
    %c2_i32 = arith.constant 2 : i32
    %c0_168 = arith.constant 0 : index
    %c0_169 = arith.constant 0 : index
    %c0_170 = arith.constant 0 : index
    %337 = vector.load %arg9[%c0_168, %c0_169, %c0_170] : memref<2x12x128xf32, #tpu.memory_space<vmem>>, vector<2x12x128xf32>
    %cst_171 = arith.constant 0.000000e+00 : f32
    %338 = vector.broadcast %cst_171 : f32 to vector<16x128xf32>
    %339 = vector.extract_strided_slice %337 {offsets = [0, 0, 0], sizes = [2, 8, 128], strides = [1, 1, 1]} : vector<2x12x128xf32> to vector<2x8x128xf32>
    %340 = vector.shape_cast %339 : vector<2x8x128xf32> to vector<16x128xf32>
    %341 = arith.truncf %340 : vector<16x128xf32> to vector<16x128xbf16>
    %342 = arith.index_cast %c2_i32 : i32 to index
    %c0_172 = arith.constant 0 : index
    %c0_173 = arith.constant 0 : index
    %c0_174 = arith.constant 0 : index
    %343 = vector.load %arg3[%342, %c0_172, %c0_173, %c0_174] : memref<8x5x128x128xbf16, #tpu.memory_space<vmem>>, vector<1x1x128x128xbf16>
    %344 = vector.shape_cast %343 : vector<1x1x128x128xbf16> to vector<128x128xbf16>
    %cst_175 = arith.constant dense<0.000000e+00> : vector<16x128xf32>
    %345 = tpu.matmul %341, %344, %cst_175 {dimension_numbers = #tpu.dot_dimension_numbers<[1], [0], [0], [1], [0, 0, 1, 1], [], []>} : vector<16x128xbf16>, vector<128x128xbf16>, vector<16x128xf32> -> vector<16x128xf32>
    %346 = arith.addf %338, %345 : vector<16x128xf32>
    %347 = vector.extract_strided_slice %337 {offsets = [0, 1, 0], sizes = [2, 8, 128], strides = [1, 1, 1]} : vector<2x12x128xf32> to vector<2x8x128xf32>
    %348 = vector.shape_cast %347 : vector<2x8x128xf32> to vector<16x128xf32>
    %349 = arith.truncf %348 : vector<16x128xf32> to vector<16x128xbf16>
    %350 = arith.index_cast %c2_i32 : i32 to index
    %c1_176 = arith.constant 1 : index
    %c0_177 = arith.constant 0 : index
    %c0_178 = arith.constant 0 : index
    %351 = vector.load %arg3[%350, %c1_176, %c0_177, %c0_178] : memref<8x5x128x128xbf16, #tpu.memory_space<vmem>>, vector<1x1x128x128xbf16>
    %352 = vector.shape_cast %351 : vector<1x1x128x128xbf16> to vector<128x128xbf16>
    %cst_179 = arith.constant dense<0.000000e+00> : vector<16x128xf32>
    %353 = tpu.matmul %349, %352, %cst_179 {dimension_numbers = #tpu.dot_dimension_numbers<[1], [0], [0], [1], [0, 0, 1, 1], [], []>} : vector<16x128xbf16>, vector<128x128xbf16>, vector<16x128xf32> -> vector<16x128xf32>
    %354 = arith.addf %346, %353 : vector<16x128xf32>
    %355 = vector.extract_strided_slice %337 {offsets = [0, 2, 0], sizes = [2, 8, 128], strides = [1, 1, 1]} : vector<2x12x128xf32> to vector<2x8x128xf32>
    %356 = vector.shape_cast %355 : vector<2x8x128xf32> to vector<16x128xf32>
    %357 = arith.truncf %356 : vector<16x128xf32> to vector<16x128xbf16>
    %358 = arith.index_cast %c2_i32 : i32 to index
    %c2_180 = arith.constant 2 : index
    %c0_181 = arith.constant 0 : index
    %c0_182 = arith.constant 0 : index
    %359 = vector.load %arg3[%358, %c2_180, %c0_181, %c0_182] : memref<8x5x128x128xbf16, #tpu.memory_space<vmem>>, vector<1x1x128x128xbf16>
    %360 = vector.shape_cast %359 : vector<1x1x128x128xbf16> to vector<128x128xbf16>
    %cst_183 = arith.constant dense<0.000000e+00> : vector<16x128xf32>
    %361 = tpu.matmul %357, %360, %cst_183 {dimension_numbers = #tpu.dot_dimension_numbers<[1], [0], [0], [1], [0, 0, 1, 1], [], []>} : vector<16x128xbf16>, vector<128x128xbf16>, vector<16x128xf32> -> vector<16x128xf32>
    %362 = arith.addf %354, %361 : vector<16x128xf32>
    %363 = vector.extract_strided_slice %337 {offsets = [0, 3, 0], sizes = [2, 8, 128], strides = [1, 1, 1]} : vector<2x12x128xf32> to vector<2x8x128xf32>
    %364 = vector.shape_cast %363 : vector<2x8x128xf32> to vector<16x128xf32>
    %365 = arith.truncf %364 : vector<16x128xf32> to vector<16x128xbf16>
    %366 = arith.index_cast %c2_i32 : i32 to index
    %c3_184 = arith.constant 3 : index
    %c0_185 = arith.constant 0 : index
    %c0_186 = arith.constant 0 : index
    %367 = vector.load %arg3[%366, %c3_184, %c0_185, %c0_186] : memref<8x5x128x128xbf16, #tpu.memory_space<vmem>>, vector<1x1x128x128xbf16>
    %368 = vector.shape_cast %367 : vector<1x1x128x128xbf16> to vector<128x128xbf16>
    %cst_187 = arith.constant dense<0.000000e+00> : vector<16x128xf32>
    %369 = tpu.matmul %365, %368, %cst_187 {dimension_numbers = #tpu.dot_dimension_numbers<[1], [0], [0], [1], [0, 0, 1, 1], [], []>} : vector<16x128xbf16>, vector<128x128xbf16>, vector<16x128xf32> -> vector<16x128xf32>
    %370 = arith.addf %362, %369 : vector<16x128xf32>
    %371 = vector.extract_strided_slice %337 {offsets = [0, 4, 0], sizes = [2, 8, 128], strides = [1, 1, 1]} : vector<2x12x128xf32> to vector<2x8x128xf32>
    %372 = vector.shape_cast %371 : vector<2x8x128xf32> to vector<16x128xf32>
    %373 = arith.truncf %372 : vector<16x128xf32> to vector<16x128xbf16>
    %374 = arith.index_cast %c2_i32 : i32 to index
    %c4_188 = arith.constant 4 : index
    %c0_189 = arith.constant 0 : index
    %c0_190 = arith.constant 0 : index
    %375 = vector.load %arg3[%374, %c4_188, %c0_189, %c0_190] : memref<8x5x128x128xbf16, #tpu.memory_space<vmem>>, vector<1x1x128x128xbf16>
    %376 = vector.shape_cast %375 : vector<1x1x128x128xbf16> to vector<128x128xbf16>
    %cst_191 = arith.constant dense<0.000000e+00> : vector<16x128xf32>
    %377 = tpu.matmul %373, %376, %cst_191 {dimension_numbers = #tpu.dot_dimension_numbers<[1], [0], [0], [1], [0, 0, 1, 1], [], []>} : vector<16x128xbf16>, vector<128x128xbf16>, vector<16x128xf32> -> vector<16x128xf32>
    %378 = arith.addf %370, %377 : vector<16x128xf32>
    %cst_192 = arith.constant dense<0.000000e+00> : vector<128xf32>
    %379 = vector.multi_reduction <add>, %378, %cst_192 [0] : vector<16x128xf32> to vector<128xf32>
    %380 = vector.shape_cast %379 : vector<128xf32> to vector<1x128xf32>
    %cst_193 = arith.constant 1.600000e+01 : f32
    %381 = vector.broadcast %cst_193 : f32 to vector<1x128xf32>
    %382 = arith.divf %380, %381 : vector<1x128xf32>
    %383 = vector.broadcast %382 : vector<1x128xf32> to vector<16x128xf32>
    %384 = arith.subf %378, %383 : vector<16x128xf32>
    %385 = arith.mulf %384, %384 : vector<16x128xf32>
    %cst_194 = arith.constant dense<0.000000e+00> : vector<128xf32>
    %386 = vector.multi_reduction <add>, %385, %cst_194 [0] : vector<16x128xf32> to vector<128xf32>
    %387 = vector.shape_cast %386 : vector<128xf32> to vector<1x128xf32>
    %cst_195 = arith.constant 1.600000e+01 : f32
    %388 = vector.broadcast %cst_195 : f32 to vector<1x128xf32>
    %389 = arith.divf %387, %388 : vector<1x128xf32>
    %390 = vector.broadcast %382 : vector<1x128xf32> to vector<16x128xf32>
    %391 = arith.subf %378, %390 : vector<16x128xf32>
    %cst_196 = arith.constant 9.99999974E-6 : f32
    %392 = vector.broadcast %cst_196 : f32 to vector<1x128xf32>
    %393 = arith.addf %389, %392 : vector<1x128xf32>
    %394 = math.rsqrt %393 : vector<1x128xf32>
    %395 = vector.broadcast %394 : vector<1x128xf32> to vector<16x128xf32>
    %396 = arith.mulf %391, %395 : vector<16x128xf32>
    %397 = arith.index_cast %c2_i32 : i32 to index
    %c0_197 = arith.constant 0 : index
    %c0_198 = arith.constant 0 : index
    %398 = vector.load %arg4[%397, %c0_197, %c0_198] : memref<8x1x128xf32, #tpu.memory_space<vmem>>, vector<1x1x128xf32>
    %399 = vector.shape_cast %398 : vector<1x1x128xf32> to vector<1x128xf32>
    %400 = vector.broadcast %399 : vector<1x128xf32> to vector<16x128xf32>
    %401 = arith.mulf %396, %400 : vector<16x128xf32>
    %402 = arith.index_cast %c2_i32 : i32 to index
    %c0_199 = arith.constant 0 : index
    %c0_200 = arith.constant 0 : index
    %403 = vector.load %arg5[%402, %c0_199, %c0_200] : memref<8x1x128xf32, #tpu.memory_space<vmem>>, vector<1x1x128xf32>
    %404 = vector.shape_cast %403 : vector<1x1x128xf32> to vector<1x128xf32>
    %405 = vector.broadcast %404 : vector<1x128xf32> to vector<16x128xf32>
    %406 = arith.addf %401, %405 : vector<16x128xf32>
    %cst_201 = arith.constant 0.000000e+00 : f32
    %407 = vector.broadcast %cst_201 : f32 to vector<16x128xf32>
    %408 = arith.maximumf %406, %407 : vector<16x128xf32>
    %409 = vector.shape_cast %408 : vector<16x128xf32> to vector<2x8x128xf32>
    %c0_202 = arith.constant 0 : index
    %c2_203 = arith.constant 2 : index
    %c0_204 = arith.constant 0 : index
    %410 = vector.load %arg9[%c0_202, %c2_203, %c0_204] : memref<2x12x128xf32, #tpu.memory_space<vmem>>, vector<2x8x128xf32>
    tpu.vector_store %arg9[%c0_202, %c2_203, %c0_204], %409 {strides = array<i32>} : memref<2x12x128xf32, #tpu.memory_space<vmem>>, vector<2x8x128xf32>,
    %411 = vector.extract_strided_slice %409 {offsets = [0, 0, 0], sizes = [2, 1, 128], strides = [1, 1, 1]} : vector<2x8x128xf32> to vector<2x1x128xf32>
    %412 = vector.shape_cast %411 : vector<2x1x128xf32> to vector<2x128xf32>
    %413 = arith.truncf %412 : vector<2x128xf32> to vector<2x128xbf16>
    %414 = arith.index_cast %c2_i32 : i32 to index
    %c0_205 = arith.constant 0 : index
    %c0_206 = arith.constant 0 : index
    %c0_207 = arith.constant 0 : index
    %415 = vector.load %arg6[%414, %c0_205, %c0_206, %c0_207] : memref<8x8x128x128xbf16, #tpu.memory_space<vmem>>, vector<1x1x128x128xbf16>
    %416 = vector.shape_cast %415 : vector<1x1x128x128xbf16> to vector<128x128xbf16>
    %cst_208 = arith.constant dense<0.000000e+00> : vector<2x128xf32>
    %417 = tpu.matmul %413, %416, %cst_208 {dimension_numbers = #tpu.dot_dimension_numbers<[1], [0], [0], [1], [0, 0, 1, 1], [], []>} : vector<2x128xbf16>, vector<128x128xbf16>, vector<2x128xf32> -> vector<2x128xf32>
    %418 = arith.addf %336, %417 : vector<2x128xf32>
    %419 = vector.extract_strided_slice %409 {offsets = [0, 1, 0], sizes = [2, 1, 128], strides = [1, 1, 1]} : vector<2x8x128xf32> to vector<2x1x128xf32>
    %420 = vector.shape_cast %419 : vector<2x1x128xf32> to vector<2x128xf32>
    %421 = arith.truncf %420 : vector<2x128xf32> to vector<2x128xbf16>
    %422 = arith.index_cast %c2_i32 : i32 to index
    %c1_209 = arith.constant 1 : index
    %c0_210 = arith.constant 0 : index
    %c0_211 = arith.constant 0 : index
    %423 = vector.load %arg6[%422, %c1_209, %c0_210, %c0_211] : memref<8x8x128x128xbf16, #tpu.memory_space<vmem>>, vector<1x1x128x128xbf16>
    %424 = vector.shape_cast %423 : vector<1x1x128x128xbf16> to vector<128x128xbf16>
    %cst_212 = arith.constant dense<0.000000e+00> : vector<2x128xf32>
    %425 = tpu.matmul %421, %424, %cst_212 {dimension_numbers = #tpu.dot_dimension_numbers<[1], [0], [0], [1], [0, 0, 1, 1], [], []>} : vector<2x128xbf16>, vector<128x128xbf16>, vector<2x128xf32> -> vector<2x128xf32>
    %426 = arith.addf %418, %425 : vector<2x128xf32>
    %427 = vector.extract_strided_slice %409 {offsets = [0, 2, 0], sizes = [2, 1, 128], strides = [1, 1, 1]} : vector<2x8x128xf32> to vector<2x1x128xf32>
    %428 = vector.shape_cast %427 : vector<2x1x128xf32> to vector<2x128xf32>
    %429 = arith.truncf %428 : vector<2x128xf32> to vector<2x128xbf16>
    %430 = arith.index_cast %c2_i32 : i32 to index
    %c2_213 = arith.constant 2 : index
    %c0_214 = arith.constant 0 : index
    %c0_215 = arith.constant 0 : index
    %431 = vector.load %arg6[%430, %c2_213, %c0_214, %c0_215] : memref<8x8x128x128xbf16, #tpu.memory_space<vmem>>, vector<1x1x128x128xbf16>
    %432 = vector.shape_cast %431 : vector<1x1x128x128xbf16> to vector<128x128xbf16>
    %cst_216 = arith.constant dense<0.000000e+00> : vector<2x128xf32>
    %433 = tpu.matmul %429, %432, %cst_216 {dimension_numbers = #tpu.dot_dimension_numbers<[1], [0], [0], [1], [0, 0, 1, 1], [], []>} : vector<2x128xbf16>, vector<128x128xbf16>, vector<2x128xf32> -> vector<2x128xf32>
    %434 = arith.addf %426, %433 : vector<2x128xf32>
    %435 = vector.extract_strided_slice %409 {offsets = [0, 3, 0], sizes = [2, 1, 128], strides = [1, 1, 1]} : vector<2x8x128xf32> to vector<2x1x128xf32>
    %436 = vector.shape_cast %435 : vector<2x1x128xf32> to vector<2x128xf32>
    %437 = arith.truncf %436 : vector<2x128xf32> to vector<2x128xbf16>
    %438 = arith.index_cast %c2_i32 : i32 to index
    %c3_217 = arith.constant 3 : index
    %c0_218 = arith.constant 0 : index
    %c0_219 = arith.constant 0 : index
    %439 = vector.load %arg6[%438, %c3_217, %c0_218, %c0_219] : memref<8x8x128x128xbf16, #tpu.memory_space<vmem>>, vector<1x1x128x128xbf16>
    %440 = vector.shape_cast %439 : vector<1x1x128x128xbf16> to vector<128x128xbf16>
    %cst_220 = arith.constant dense<0.000000e+00> : vector<2x128xf32>
    %441 = tpu.matmul %437, %440, %cst_220 {dimension_numbers = #tpu.dot_dimension_numbers<[1], [0], [0], [1], [0, 0, 1, 1], [], []>} : vector<2x128xbf16>, vector<128x128xbf16>, vector<2x128xf32> -> vector<2x128xf32>
    %442 = arith.addf %434, %441 : vector<2x128xf32>
    %443 = vector.extract_strided_slice %409 {offsets = [0, 4, 0], sizes = [2, 1, 128], strides = [1, 1, 1]} : vector<2x8x128xf32> to vector<2x1x128xf32>
    %444 = vector.shape_cast %443 : vector<2x1x128xf32> to vector<2x128xf32>
    %445 = arith.truncf %444 : vector<2x128xf32> to vector<2x128xbf16>
    %446 = arith.index_cast %c2_i32 : i32 to index
    %c4_221 = arith.constant 4 : index
    %c0_222 = arith.constant 0 : index
    %c0_223 = arith.constant 0 : index
    %447 = vector.load %arg6[%446, %c4_221, %c0_222, %c0_223] : memref<8x8x128x128xbf16, #tpu.memory_space<vmem>>, vector<1x1x128x128xbf16>
    %448 = vector.shape_cast %447 : vector<1x1x128x128xbf16> to vector<128x128xbf16>
    %cst_224 = arith.constant dense<0.000000e+00> : vector<2x128xf32>
    %449 = tpu.matmul %445, %448, %cst_224 {dimension_numbers = #tpu.dot_dimension_numbers<[1], [0], [0], [1], [0, 0, 1, 1], [], []>} : vector<2x128xbf16>, vector<128x128xbf16>, vector<2x128xf32> -> vector<2x128xf32>
    %450 = arith.addf %442, %449 : vector<2x128xf32>
    %451 = vector.extract_strided_slice %409 {offsets = [0, 5, 0], sizes = [2, 1, 128], strides = [1, 1, 1]} : vector<2x8x128xf32> to vector<2x1x128xf32>
    %452 = vector.shape_cast %451 : vector<2x1x128xf32> to vector<2x128xf32>
    %453 = arith.truncf %452 : vector<2x128xf32> to vector<2x128xbf16>
    %454 = arith.index_cast %c2_i32 : i32 to index
    %c5_225 = arith.constant 5 : index
    %c0_226 = arith.constant 0 : index
    %c0_227 = arith.constant 0 : index
    %455 = vector.load %arg6[%454, %c5_225, %c0_226, %c0_227] : memref<8x8x128x128xbf16, #tpu.memory_space<vmem>>, vector<1x1x128x128xbf16>
    %456 = vector.shape_cast %455 : vector<1x1x128x128xbf16> to vector<128x128xbf16>
    %cst_228 = arith.constant dense<0.000000e+00> : vector<2x128xf32>
    %457 = tpu.matmul %453, %456, %cst_228 {dimension_numbers = #tpu.dot_dimension_numbers<[1], [0], [0], [1], [0, 0, 1, 1], [], []>} : vector<2x128xbf16>, vector<128x128xbf16>, vector<2x128xf32> -> vector<2x128xf32>
    %458 = arith.addf %450, %457 : vector<2x128xf32>
    %459 = vector.extract_strided_slice %409 {offsets = [0, 6, 0], sizes = [2, 1, 128], strides = [1, 1, 1]} : vector<2x8x128xf32> to vector<2x1x128xf32>
    %460 = vector.shape_cast %459 : vector<2x1x128xf32> to vector<2x128xf32>
    %461 = arith.truncf %460 : vector<2x128xf32> to vector<2x128xbf16>
    %462 = arith.index_cast %c2_i32 : i32 to index
    %c6_229 = arith.constant 6 : index
    %c0_230 = arith.constant 0 : index
    %c0_231 = arith.constant 0 : index
    %463 = vector.load %arg6[%462, %c6_229, %c0_230, %c0_231] : memref<8x8x128x128xbf16, #tpu.memory_space<vmem>>, vector<1x1x128x128xbf16>
    %464 = vector.shape_cast %463 : vector<1x1x128x128xbf16> to vector<128x128xbf16>
    %cst_232 = arith.constant dense<0.000000e+00> : vector<2x128xf32>
    %465 = tpu.matmul %461, %464, %cst_232 {dimension_numbers = #tpu.dot_dimension_numbers<[1], [0], [0], [1], [0, 0, 1, 1], [], []>} : vector<2x128xbf16>, vector<128x128xbf16>, vector<2x128xf32> -> vector<2x128xf32>
    %466 = arith.addf %458, %465 : vector<2x128xf32>
    %467 = vector.extract_strided_slice %409 {offsets = [0, 7, 0], sizes = [2, 1, 128], strides = [1, 1, 1]} : vector<2x8x128xf32> to vector<2x1x128xf32>
    %468 = vector.shape_cast %467 : vector<2x1x128xf32> to vector<2x128xf32>
    %469 = arith.truncf %468 : vector<2x128xf32> to vector<2x128xbf16>
    %470 = arith.index_cast %c2_i32 : i32 to index
    %c7_233 = arith.constant 7 : index
    %c0_234 = arith.constant 0 : index
    %c0_235 = arith.constant 0 : index
    %471 = vector.load %arg6[%470, %c7_233, %c0_234, %c0_235] : memref<8x8x128x128xbf16, #tpu.memory_space<vmem>>, vector<1x1x128x128xbf16>
    %472 = vector.shape_cast %471 : vector<1x1x128x128xbf16> to vector<128x128xbf16>
    %cst_236 = arith.constant dense<0.000000e+00> : vector<2x128xf32>
    %473 = tpu.matmul %469, %472, %cst_236 {dimension_numbers = #tpu.dot_dimension_numbers<[1], [0], [0], [1], [0, 0, 1, 1], [], []>} : vector<2x128xbf16>, vector<128x128xbf16>, vector<2x128xf32> -> vector<2x128xf32>
    %474 = arith.addf %466, %473 : vector<2x128xf32>
    %c3_i32 = arith.constant 3 : i32
    %c0_237 = arith.constant 0 : index
    %c0_238 = arith.constant 0 : index
    %c0_239 = arith.constant 0 : index
    %475 = vector.load %arg9[%c0_237, %c0_238, %c0_239] : memref<2x12x128xf32, #tpu.memory_space<vmem>>, vector<2x12x128xf32>
    %cst_240 = arith.constant 0.000000e+00 : f32
    %476 = vector.broadcast %cst_240 : f32 to vector<16x128xf32>
    %477 = vector.extract_strided_slice %475 {offsets = [0, 0, 0], sizes = [2, 8, 128], strides = [1, 1, 1]} : vector<2x12x128xf32> to vector<2x8x128xf32>
    %478 = vector.shape_cast %477 : vector<2x8x128xf32> to vector<16x128xf32>
    %479 = arith.truncf %478 : vector<16x128xf32> to vector<16x128xbf16>
    %480 = arith.index_cast %c3_i32 : i32 to index
    %c0_241 = arith.constant 0 : index
    %c0_242 = arith.constant 0 : index
    %c0_243 = arith.constant 0 : index
    %481 = vector.load %arg3[%480, %c0_241, %c0_242, %c0_243] : memref<8x5x128x128xbf16, #tpu.memory_space<vmem>>, vector<1x1x128x128xbf16>
    %482 = vector.shape_cast %481 : vector<1x1x128x128xbf16> to vector<128x128xbf16>
    %cst_244 = arith.constant dense<0.000000e+00> : vector<16x128xf32>
    %483 = tpu.matmul %479, %482, %cst_244 {dimension_numbers = #tpu.dot_dimension_numbers<[1], [0], [0], [1], [0, 0, 1, 1], [], []>} : vector<16x128xbf16>, vector<128x128xbf16>, vector<16x128xf32> -> vector<16x128xf32>
    %484 = arith.addf %476, %483 : vector<16x128xf32>
    %485 = vector.extract_strided_slice %475 {offsets = [0, 1, 0], sizes = [2, 8, 128], strides = [1, 1, 1]} : vector<2x12x128xf32> to vector<2x8x128xf32>
    %486 = vector.shape_cast %485 : vector<2x8x128xf32> to vector<16x128xf32>
    %487 = arith.truncf %486 : vector<16x128xf32> to vector<16x128xbf16>
    %488 = arith.index_cast %c3_i32 : i32 to index
    %c1_245 = arith.constant 1 : index
    %c0_246 = arith.constant 0 : index
    %c0_247 = arith.constant 0 : index
    %489 = vector.load %arg3[%488, %c1_245, %c0_246, %c0_247] : memref<8x5x128x128xbf16, #tpu.memory_space<vmem>>, vector<1x1x128x128xbf16>
    %490 = vector.shape_cast %489 : vector<1x1x128x128xbf16> to vector<128x128xbf16>
    %cst_248 = arith.constant dense<0.000000e+00> : vector<16x128xf32>
    %491 = tpu.matmul %487, %490, %cst_248 {dimension_numbers = #tpu.dot_dimension_numbers<[1], [0], [0], [1], [0, 0, 1, 1], [], []>} : vector<16x128xbf16>, vector<128x128xbf16>, vector<16x128xf32> -> vector<16x128xf32>
    %492 = arith.addf %484, %491 : vector<16x128xf32>
    %493 = vector.extract_strided_slice %475 {offsets = [0, 2, 0], sizes = [2, 8, 128], strides = [1, 1, 1]} : vector<2x12x128xf32> to vector<2x8x128xf32>
    %494 = vector.shape_cast %493 : vector<2x8x128xf32> to vector<16x128xf32>
    %495 = arith.truncf %494 : vector<16x128xf32> to vector<16x128xbf16>
    %496 = arith.index_cast %c3_i32 : i32 to index
    %c2_249 = arith.constant 2 : index
    %c0_250 = arith.constant 0 : index
    %c0_251 = arith.constant 0 : index
    %497 = vector.load %arg3[%496, %c2_249, %c0_250, %c0_251] : memref<8x5x128x128xbf16, #tpu.memory_space<vmem>>, vector<1x1x128x128xbf16>
    %498 = vector.shape_cast %497 : vector<1x1x128x128xbf16> to vector<128x128xbf16>
    %cst_252 = arith.constant dense<0.000000e+00> : vector<16x128xf32>
    %499 = tpu.matmul %495, %498, %cst_252 {dimension_numbers = #tpu.dot_dimension_numbers<[1], [0], [0], [1], [0, 0, 1, 1], [], []>} : vector<16x128xbf16>, vector<128x128xbf16>, vector<16x128xf32> -> vector<16x128xf32>
    %500 = arith.addf %492, %499 : vector<16x128xf32>
    %501 = vector.extract_strided_slice %475 {offsets = [0, 3, 0], sizes = [2, 8, 128], strides = [1, 1, 1]} : vector<2x12x128xf32> to vector<2x8x128xf32>
    %502 = vector.shape_cast %501 : vector<2x8x128xf32> to vector<16x128xf32>
    %503 = arith.truncf %502 : vector<16x128xf32> to vector<16x128xbf16>
    %504 = arith.index_cast %c3_i32 : i32 to index
    %c3_253 = arith.constant 3 : index
    %c0_254 = arith.constant 0 : index
    %c0_255 = arith.constant 0 : index
    %505 = vector.load %arg3[%504, %c3_253, %c0_254, %c0_255] : memref<8x5x128x128xbf16, #tpu.memory_space<vmem>>, vector<1x1x128x128xbf16>
    %506 = vector.shape_cast %505 : vector<1x1x128x128xbf16> to vector<128x128xbf16>
    %cst_256 = arith.constant dense<0.000000e+00> : vector<16x128xf32>
    %507 = tpu.matmul %503, %506, %cst_256 {dimension_numbers = #tpu.dot_dimension_numbers<[1], [0], [0], [1], [0, 0, 1, 1], [], []>} : vector<16x128xbf16>, vector<128x128xbf16>, vector<16x128xf32> -> vector<16x128xf32>
    %508 = arith.addf %500, %507 : vector<16x128xf32>
    %509 = vector.extract_strided_slice %475 {offsets = [0, 4, 0], sizes = [2, 8, 128], strides = [1, 1, 1]} : vector<2x12x128xf32> to vector<2x8x128xf32>
    %510 = vector.shape_cast %509 : vector<2x8x128xf32> to vector<16x128xf32>
    %511 = arith.truncf %510 : vector<16x128xf32> to vector<16x128xbf16>
    %512 = arith.index_cast %c3_i32 : i32 to index
    %c4_257 = arith.constant 4 : index
    %c0_258 = arith.constant 0 : index
    %c0_259 = arith.constant 0 : index
    %513 = vector.load %arg3[%512, %c4_257, %c0_258, %c0_259] : memref<8x5x128x128xbf16, #tpu.memory_space<vmem>>, vector<1x1x128x128xbf16>
    %514 = vector.shape_cast %513 : vector<1x1x128x128xbf16> to vector<128x128xbf16>
    %cst_260 = arith.constant dense<0.000000e+00> : vector<16x128xf32>
    %515 = tpu.matmul %511, %514, %cst_260 {dimension_numbers = #tpu.dot_dimension_numbers<[1], [0], [0], [1], [0, 0, 1, 1], [], []>} : vector<16x128xbf16>, vector<128x128xbf16>, vector<16x128xf32> -> vector<16x128xf32>
    %516 = arith.addf %508, %515 : vector<16x128xf32>
    %cst_261 = arith.constant dense<0.000000e+00> : vector<128xf32>
    %517 = vector.multi_reduction <add>, %516, %cst_261 [0] : vector<16x128xf32> to vector<128xf32>
    %518 = vector.shape_cast %517 : vector<128xf32> to vector<1x128xf32>
    %cst_262 = arith.constant 1.600000e+01 : f32
    %519 = vector.broadcast %cst_262 : f32 to vector<1x128xf32>
    %520 = arith.divf %518, %519 : vector<1x128xf32>
    %521 = vector.broadcast %520 : vector<1x128xf32> to vector<16x128xf32>
    %522 = arith.subf %516, %521 : vector<16x128xf32>
    %523 = arith.mulf %522, %522 : vector<16x128xf32>
    %cst_263 = arith.constant dense<0.000000e+00> : vector<128xf32>
    %524 = vector.multi_reduction <add>, %523, %cst_263 [0] : vector<16x128xf32> to vector<128xf32>
    %525 = vector.shape_cast %524 : vector<128xf32> to vector<1x128xf32>
    %cst_264 = arith.constant 1.600000e+01 : f32
    %526 = vector.broadcast %cst_264 : f32 to vector<1x128xf32>
    %527 = arith.divf %525, %526 : vector<1x128xf32>
    %528 = vector.broadcast %520 : vector<1x128xf32> to vector<16x128xf32>
    %529 = arith.subf %516, %528 : vector<16x128xf32>
    %cst_265 = arith.constant 9.99999974E-6 : f32
    %530 = vector.broadcast %cst_265 : f32 to vector<1x128xf32>
    %531 = arith.addf %527, %530 : vector<1x128xf32>
    %532 = math.rsqrt %531 : vector<1x128xf32>
    %533 = vector.broadcast %532 : vector<1x128xf32> to vector<16x128xf32>
    %534 = arith.mulf %529, %533 : vector<16x128xf32>
    %535 = arith.index_cast %c3_i32 : i32 to index
    %c0_266 = arith.constant 0 : index
    %c0_267 = arith.constant 0 : index
    %536 = vector.load %arg4[%535, %c0_266, %c0_267] : memref<8x1x128xf32, #tpu.memory_space<vmem>>, vector<1x1x128xf32>
    %537 = vector.shape_cast %536 : vector<1x1x128xf32> to vector<1x128xf32>
    %538 = vector.broadcast %537 : vector<1x128xf32> to vector<16x128xf32>
    %539 = arith.mulf %534, %538 : vector<16x128xf32>
    %540 = arith.index_cast %c3_i32 : i32 to index
    %c0_268 = arith.constant 0 : index
    %c0_269 = arith.constant 0 : index
    %541 = vector.load %arg5[%540, %c0_268, %c0_269] : memref<8x1x128xf32, #tpu.memory_space<vmem>>, vector<1x1x128xf32>
    %542 = vector.shape_cast %541 : vector<1x1x128xf32> to vector<1x128xf32>
    %543 = vector.broadcast %542 : vector<1x128xf32> to vector<16x128xf32>
    %544 = arith.addf %539, %543 : vector<16x128xf32>
    %cst_270 = arith.constant 0.000000e+00 : f32
    %545 = vector.broadcast %cst_270 : f32 to vector<16x128xf32>
    %546 = arith.maximumf %544, %545 : vector<16x128xf32>
    %547 = vector.shape_cast %546 : vector<16x128xf32> to vector<2x8x128xf32>
    %c0_271 = arith.constant 0 : index
    %c2_272 = arith.constant 2 : index
    %c0_273 = arith.constant 0 : index
    %548 = vector.load %arg9[%c0_271, %c2_272, %c0_273] : memref<2x12x128xf32, #tpu.memory_space<vmem>>, vector<2x8x128xf32>
    tpu.vector_store %arg9[%c0_271, %c2_272, %c0_273], %547 {strides = array<i32>} : memref<2x12x128xf32, #tpu.memory_space<vmem>>, vector<2x8x128xf32>,
    %549 = vector.extract_strided_slice %547 {offsets = [0, 0, 0], sizes = [2, 1, 128], strides = [1, 1, 1]} : vector<2x8x128xf32> to vector<2x1x128xf32>
    %550 = vector.shape_cast %549 : vector<2x1x128xf32> to vector<2x128xf32>
    %551 = arith.truncf %550 : vector<2x128xf32> to vector<2x128xbf16>
    %552 = arith.index_cast %c3_i32 : i32 to index
    %c0_274 = arith.constant 0 : index
    %c0_275 = arith.constant 0 : index
    %c0_276 = arith.constant 0 : index
    %553 = vector.load %arg6[%552, %c0_274, %c0_275, %c0_276] : memref<8x8x128x128xbf16, #tpu.memory_space<vmem>>, vector<1x1x128x128xbf16>
    %554 = vector.shape_cast %553 : vector<1x1x128x128xbf16> to vector<128x128xbf16>
    %cst_277 = arith.constant dense<0.000000e+00> : vector<2x128xf32>
    %555 = tpu.matmul %551, %554, %cst_277 {dimension_numbers = #tpu.dot_dimension_numbers<[1], [0], [0], [1], [0, 0, 1, 1], [], []>} : vector<2x128xbf16>, vector<128x128xbf16>, vector<2x128xf32> -> vector<2x128xf32>
    %556 = arith.addf %474, %555 : vector<2x128xf32>
    %557 = vector.extract_strided_slice %547 {offsets = [0, 1, 0], sizes = [2, 1, 128], strides = [1, 1, 1]} : vector<2x8x128xf32> to vector<2x1x128xf32>
    %558 = vector.shape_cast %557 : vector<2x1x128xf32> to vector<2x128xf32>
    %559 = arith.truncf %558 : vector<2x128xf32> to vector<2x128xbf16>
    %560 = arith.index_cast %c3_i32 : i32 to index
    %c1_278 = arith.constant 1 : index
    %c0_279 = arith.constant 0 : index
    %c0_280 = arith.constant 0 : index
    %561 = vector.load %arg6[%560, %c1_278, %c0_279, %c0_280] : memref<8x8x128x128xbf16, #tpu.memory_space<vmem>>, vector<1x1x128x128xbf16>
    %562 = vector.shape_cast %561 : vector<1x1x128x128xbf16> to vector<128x128xbf16>
    %cst_281 = arith.constant dense<0.000000e+00> : vector<2x128xf32>
    %563 = tpu.matmul %559, %562, %cst_281 {dimension_numbers = #tpu.dot_dimension_numbers<[1], [0], [0], [1], [0, 0, 1, 1], [], []>} : vector<2x128xbf16>, vector<128x128xbf16>, vector<2x128xf32> -> vector<2x128xf32>
    %564 = arith.addf %556, %563 : vector<2x128xf32>
    %565 = vector.extract_strided_slice %547 {offsets = [0, 2, 0], sizes = [2, 1, 128], strides = [1, 1, 1]} : vector<2x8x128xf32> to vector<2x1x128xf32>
    %566 = vector.shape_cast %565 : vector<2x1x128xf32> to vector<2x128xf32>
    %567 = arith.truncf %566 : vector<2x128xf32> to vector<2x128xbf16>
    %568 = arith.index_cast %c3_i32 : i32 to index
    %c2_282 = arith.constant 2 : index
    %c0_283 = arith.constant 0 : index
    %c0_284 = arith.constant 0 : index
    %569 = vector.load %arg6[%568, %c2_282, %c0_283, %c0_284] : memref<8x8x128x128xbf16, #tpu.memory_space<vmem>>, vector<1x1x128x128xbf16>
    %570 = vector.shape_cast %569 : vector<1x1x128x128xbf16> to vector<128x128xbf16>
    %cst_285 = arith.constant dense<0.000000e+00> : vector<2x128xf32>
    %571 = tpu.matmul %567, %570, %cst_285 {dimension_numbers = #tpu.dot_dimension_numbers<[1], [0], [0], [1], [0, 0, 1, 1], [], []>} : vector<2x128xbf16>, vector<128x128xbf16>, vector<2x128xf32> -> vector<2x128xf32>
    %572 = arith.addf %564, %571 : vector<2x128xf32>
    %573 = vector.extract_strided_slice %547 {offsets = [0, 3, 0], sizes = [2, 1, 128], strides = [1, 1, 1]} : vector<2x8x128xf32> to vector<2x1x128xf32>
    %574 = vector.shape_cast %573 : vector<2x1x128xf32> to vector<2x128xf32>
    %575 = arith.truncf %574 : vector<2x128xf32> to vector<2x128xbf16>
    %576 = arith.index_cast %c3_i32 : i32 to index
    %c3_286 = arith.constant 3 : index
    %c0_287 = arith.constant 0 : index
    %c0_288 = arith.constant 0 : index
    %577 = vector.load %arg6[%576, %c3_286, %c0_287, %c0_288] : memref<8x8x128x128xbf16, #tpu.memory_space<vmem>>, vector<1x1x128x128xbf16>
    %578 = vector.shape_cast %577 : vector<1x1x128x128xbf16> to vector<128x128xbf16>
    %cst_289 = arith.constant dense<0.000000e+00> : vector<2x128xf32>
    %579 = tpu.matmul %575, %578, %cst_289 {dimension_numbers = #tpu.dot_dimension_numbers<[1], [0], [0], [1], [0, 0, 1, 1], [], []>} : vector<2x128xbf16>, vector<128x128xbf16>, vector<2x128xf32> -> vector<2x128xf32>
    %580 = arith.addf %572, %579 : vector<2x128xf32>
    %581 = vector.extract_strided_slice %547 {offsets = [0, 4, 0], sizes = [2, 1, 128], strides = [1, 1, 1]} : vector<2x8x128xf32> to vector<2x1x128xf32>
    %582 = vector.shape_cast %581 : vector<2x1x128xf32> to vector<2x128xf32>
    %583 = arith.truncf %582 : vector<2x128xf32> to vector<2x128xbf16>
    %584 = arith.index_cast %c3_i32 : i32 to index
    %c4_290 = arith.constant 4 : index
    %c0_291 = arith.constant 0 : index
    %c0_292 = arith.constant 0 : index
    %585 = vector.load %arg6[%584, %c4_290, %c0_291, %c0_292] : memref<8x8x128x128xbf16, #tpu.memory_space<vmem>>, vector<1x1x128x128xbf16>
    %586 = vector.shape_cast %585 : vector<1x1x128x128xbf16> to vector<128x128xbf16>
    %cst_293 = arith.constant dense<0.000000e+00> : vector<2x128xf32>
    %587 = tpu.matmul %583, %586, %cst_293 {dimension_numbers = #tpu.dot_dimension_numbers<[1], [0], [0], [1], [0, 0, 1, 1], [], []>} : vector<2x128xbf16>, vector<128x128xbf16>, vector<2x128xf32> -> vector<2x128xf32>
    %588 = arith.addf %580, %587 : vector<2x128xf32>
    %589 = vector.extract_strided_slice %547 {offsets = [0, 5, 0], sizes = [2, 1, 128], strides = [1, 1, 1]} : vector<2x8x128xf32> to vector<2x1x128xf32>
    %590 = vector.shape_cast %589 : vector<2x1x128xf32> to vector<2x128xf32>
    %591 = arith.truncf %590 : vector<2x128xf32> to vector<2x128xbf16>
    %592 = arith.index_cast %c3_i32 : i32 to index
    %c5_294 = arith.constant 5 : index
    %c0_295 = arith.constant 0 : index
    %c0_296 = arith.constant 0 : index
    %593 = vector.load %arg6[%592, %c5_294, %c0_295, %c0_296] : memref<8x8x128x128xbf16, #tpu.memory_space<vmem>>, vector<1x1x128x128xbf16>
    %594 = vector.shape_cast %593 : vector<1x1x128x128xbf16> to vector<128x128xbf16>
    %cst_297 = arith.constant dense<0.000000e+00> : vector<2x128xf32>
    %595 = tpu.matmul %591, %594, %cst_297 {dimension_numbers = #tpu.dot_dimension_numbers<[1], [0], [0], [1], [0, 0, 1, 1], [], []>} : vector<2x128xbf16>, vector<128x128xbf16>, vector<2x128xf32> -> vector<2x128xf32>
    %596 = arith.addf %588, %595 : vector<2x128xf32>
    %597 = vector.extract_strided_slice %547 {offsets = [0, 6, 0], sizes = [2, 1, 128], strides = [1, 1, 1]} : vector<2x8x128xf32> to vector<2x1x128xf32>
    %598 = vector.shape_cast %597 : vector<2x1x128xf32> to vector<2x128xf32>
    %599 = arith.truncf %598 : vector<2x128xf32> to vector<2x128xbf16>
    %600 = arith.index_cast %c3_i32 : i32 to index
    %c6_298 = arith.constant 6 : index
    %c0_299 = arith.constant 0 : index
    %c0_300 = arith.constant 0 : index
    %601 = vector.load %arg6[%600, %c6_298, %c0_299, %c0_300] : memref<8x8x128x128xbf16, #tpu.memory_space<vmem>>, vector<1x1x128x128xbf16>
    %602 = vector.shape_cast %601 : vector<1x1x128x128xbf16> to vector<128x128xbf16>
    %cst_301 = arith.constant dense<0.000000e+00> : vector<2x128xf32>
    %603 = tpu.matmul %599, %602, %cst_301 {dimension_numbers = #tpu.dot_dimension_numbers<[1], [0], [0], [1], [0, 0, 1, 1], [], []>} : vector<2x128xbf16>, vector<128x128xbf16>, vector<2x128xf32> -> vector<2x128xf32>
    %604 = arith.addf %596, %603 : vector<2x128xf32>
    %605 = vector.extract_strided_slice %547 {offsets = [0, 7, 0], sizes = [2, 1, 128], strides = [1, 1, 1]} : vector<2x8x128xf32> to vector<2x1x128xf32>
    %606 = vector.shape_cast %605 : vector<2x1x128xf32> to vector<2x128xf32>
    %607 = arith.truncf %606 : vector<2x128xf32> to vector<2x128xbf16>
    %608 = arith.index_cast %c3_i32 : i32 to index
    %c7_302 = arith.constant 7 : index
    %c0_303 = arith.constant 0 : index
    %c0_304 = arith.constant 0 : index
    %609 = vector.load %arg6[%608, %c7_302, %c0_303, %c0_304] : memref<8x8x128x128xbf16, #tpu.memory_space<vmem>>, vector<1x1x128x128xbf16>
    %610 = vector.shape_cast %609 : vector<1x1x128x128xbf16> to vector<128x128xbf16>
    %cst_305 = arith.constant dense<0.000000e+00> : vector<2x128xf32>
    %611 = tpu.matmul %607, %610, %cst_305 {dimension_numbers = #tpu.dot_dimension_numbers<[1], [0], [0], [1], [0, 0, 1, 1], [], []>} : vector<2x128xbf16>, vector<128x128xbf16>, vector<2x128xf32> -> vector<2x128xf32>
    %612 = arith.addf %604, %611 : vector<2x128xf32>
    %c4_i32 = arith.constant 4 : i32
    %c0_306 = arith.constant 0 : index
    %c0_307 = arith.constant 0 : index
    %c0_308 = arith.constant 0 : index
    %613 = vector.load %arg9[%c0_306, %c0_307, %c0_308] : memref<2x12x128xf32, #tpu.memory_space<vmem>>, vector<2x12x128xf32>
    %cst_309 = arith.constant 0.000000e+00 : f32
    %614 = vector.broadcast %cst_309 : f32 to vector<16x128xf32>
    %615 = vector.extract_strided_slice %613 {offsets = [0, 0, 0], sizes = [2, 8, 128], strides = [1, 1, 1]} : vector<2x12x128xf32> to vector<2x8x128xf32>
    %616 = vector.shape_cast %615 : vector<2x8x128xf32> to vector<16x128xf32>
    %617 = arith.truncf %616 : vector<16x128xf32> to vector<16x128xbf16>
    %618 = arith.index_cast %c4_i32 : i32 to index
    %c0_310 = arith.constant 0 : index
    %c0_311 = arith.constant 0 : index
    %c0_312 = arith.constant 0 : index
    %619 = vector.load %arg3[%618, %c0_310, %c0_311, %c0_312] : memref<8x5x128x128xbf16, #tpu.memory_space<vmem>>, vector<1x1x128x128xbf16>
    %620 = vector.shape_cast %619 : vector<1x1x128x128xbf16> to vector<128x128xbf16>
    %cst_313 = arith.constant dense<0.000000e+00> : vector<16x128xf32>
    %621 = tpu.matmul %617, %620, %cst_313 {dimension_numbers = #tpu.dot_dimension_numbers<[1], [0], [0], [1], [0, 0, 1, 1], [], []>} : vector<16x128xbf16>, vector<128x128xbf16>, vector<16x128xf32> -> vector<16x128xf32>
    %622 = arith.addf %614, %621 : vector<16x128xf32>
    %623 = vector.extract_strided_slice %613 {offsets = [0, 1, 0], sizes = [2, 8, 128], strides = [1, 1, 1]} : vector<2x12x128xf32> to vector<2x8x128xf32>
    %624 = vector.shape_cast %623 : vector<2x8x128xf32> to vector<16x128xf32>
    %625 = arith.truncf %624 : vector<16x128xf32> to vector<16x128xbf16>
    %626 = arith.index_cast %c4_i32 : i32 to index
    %c1_314 = arith.constant 1 : index
    %c0_315 = arith.constant 0 : index
    %c0_316 = arith.constant 0 : index
    %627 = vector.load %arg3[%626, %c1_314, %c0_315, %c0_316] : memref<8x5x128x128xbf16, #tpu.memory_space<vmem>>, vector<1x1x128x128xbf16>
    %628 = vector.shape_cast %627 : vector<1x1x128x128xbf16> to vector<128x128xbf16>
    %cst_317 = arith.constant dense<0.000000e+00> : vector<16x128xf32>
    %629 = tpu.matmul %625, %628, %cst_317 {dimension_numbers = #tpu.dot_dimension_numbers<[1], [0], [0], [1], [0, 0, 1, 1], [], []>} : vector<16x128xbf16>, vector<128x128xbf16>, vector<16x128xf32> -> vector<16x128xf32>
    %630 = arith.addf %622, %629 : vector<16x128xf32>
    %631 = vector.extract_strided_slice %613 {offsets = [0, 2, 0], sizes = [2, 8, 128], strides = [1, 1, 1]} : vector<2x12x128xf32> to vector<2x8x128xf32>
    %632 = vector.shape_cast %631 : vector<2x8x128xf32> to vector<16x128xf32>
    %633 = arith.truncf %632 : vector<16x128xf32> to vector<16x128xbf16>
    %634 = arith.index_cast %c4_i32 : i32 to index
    %c2_318 = arith.constant 2 : index
    %c0_319 = arith.constant 0 : index
    %c0_320 = arith.constant 0 : index
    %635 = vector.load %arg3[%634, %c2_318, %c0_319, %c0_320] : memref<8x5x128x128xbf16, #tpu.memory_space<vmem>>, vector<1x1x128x128xbf16>
    %636 = vector.shape_cast %635 : vector<1x1x128x128xbf16> to vector<128x128xbf16>
    %cst_321 = arith.constant dense<0.000000e+00> : vector<16x128xf32>
    %637 = tpu.matmul %633, %636, %cst_321 {dimension_numbers = #tpu.dot_dimension_numbers<[1], [0], [0], [1], [0, 0, 1, 1], [], []>} : vector<16x128xbf16>, vector<128x128xbf16>, vector<16x128xf32> -> vector<16x128xf32>
    %638 = arith.addf %630, %637 : vector<16x128xf32>
    %639 = vector.extract_strided_slice %613 {offsets = [0, 3, 0], sizes = [2, 8, 128], strides = [1, 1, 1]} : vector<2x12x128xf32> to vector<2x8x128xf32>
    %640 = vector.shape_cast %639 : vector<2x8x128xf32> to vector<16x128xf32>
    %641 = arith.truncf %640 : vector<16x128xf32> to vector<16x128xbf16>
    %642 = arith.index_cast %c4_i32 : i32 to index
    %c3_322 = arith.constant 3 : index
    %c0_323 = arith.constant 0 : index
    %c0_324 = arith.constant 0 : index
    %643 = vector.load %arg3[%642, %c3_322, %c0_323, %c0_324] : memref<8x5x128x128xbf16, #tpu.memory_space<vmem>>, vector<1x1x128x128xbf16>
    %644 = vector.shape_cast %643 : vector<1x1x128x128xbf16> to vector<128x128xbf16>
    %cst_325 = arith.constant dense<0.000000e+00> : vector<16x128xf32>
    %645 = tpu.matmul %641, %644, %cst_325 {dimension_numbers = #tpu.dot_dimension_numbers<[1], [0], [0], [1], [0, 0, 1, 1], [], []>} : vector<16x128xbf16>, vector<128x128xbf16>, vector<16x128xf32> -> vector<16x128xf32>
    %646 = arith.addf %638, %645 : vector<16x128xf32>
    %647 = vector.extract_strided_slice %613 {offsets = [0, 4, 0], sizes = [2, 8, 128], strides = [1, 1, 1]} : vector<2x12x128xf32> to vector<2x8x128xf32>
    %648 = vector.shape_cast %647 : vector<2x8x128xf32> to vector<16x128xf32>
    %649 = arith.truncf %648 : vector<16x128xf32> to vector<16x128xbf16>
    %650 = arith.index_cast %c4_i32 : i32 to index
    %c4_326 = arith.constant 4 : index
    %c0_327 = arith.constant 0 : index
    %c0_328 = arith.constant 0 : index
    %651 = vector.load %arg3[%650, %c4_326, %c0_327, %c0_328] : memref<8x5x128x128xbf16, #tpu.memory_space<vmem>>, vector<1x1x128x128xbf16>
    %652 = vector.shape_cast %651 : vector<1x1x128x128xbf16> to vector<128x128xbf16>
    %cst_329 = arith.constant dense<0.000000e+00> : vector<16x128xf32>
    %653 = tpu.matmul %649, %652, %cst_329 {dimension_numbers = #tpu.dot_dimension_numbers<[1], [0], [0], [1], [0, 0, 1, 1], [], []>} : vector<16x128xbf16>, vector<128x128xbf16>, vector<16x128xf32> -> vector<16x128xf32>
    %654 = arith.addf %646, %653 : vector<16x128xf32>
    %cst_330 = arith.constant dense<0.000000e+00> : vector<128xf32>
    %655 = vector.multi_reduction <add>, %654, %cst_330 [0] : vector<16x128xf32> to vector<128xf32>
    %656 = vector.shape_cast %655 : vector<128xf32> to vector<1x128xf32>
    %cst_331 = arith.constant 1.600000e+01 : f32
    %657 = vector.broadcast %cst_331 : f32 to vector<1x128xf32>
    %658 = arith.divf %656, %657 : vector<1x128xf32>
    %659 = vector.broadcast %658 : vector<1x128xf32> to vector<16x128xf32>
    %660 = arith.subf %654, %659 : vector<16x128xf32>
    %661 = arith.mulf %660, %660 : vector<16x128xf32>
    %cst_332 = arith.constant dense<0.000000e+00> : vector<128xf32>
    %662 = vector.multi_reduction <add>, %661, %cst_332 [0] : vector<16x128xf32> to vector<128xf32>
    %663 = vector.shape_cast %662 : vector<128xf32> to vector<1x128xf32>
    %cst_333 = arith.constant 1.600000e+01 : f32
    %664 = vector.broadcast %cst_333 : f32 to vector<1x128xf32>
    %665 = arith.divf %663, %664 : vector<1x128xf32>
    %666 = vector.broadcast %658 : vector<1x128xf32> to vector<16x128xf32>
    %667 = arith.subf %654, %666 : vector<16x128xf32>
    %cst_334 = arith.constant 9.99999974E-6 : f32
    %668 = vector.broadcast %cst_334 : f32 to vector<1x128xf32>
    %669 = arith.addf %665, %668 : vector<1x128xf32>
    %670 = math.rsqrt %669 : vector<1x128xf32>
    %671 = vector.broadcast %670 : vector<1x128xf32> to vector<16x128xf32>
    %672 = arith.mulf %667, %671 : vector<16x128xf32>
    %673 = arith.index_cast %c4_i32 : i32 to index
    %c0_335 = arith.constant 0 : index
    %c0_336 = arith.constant 0 : index
    %674 = vector.load %arg4[%673, %c0_335, %c0_336] : memref<8x1x128xf32, #tpu.memory_space<vmem>>, vector<1x1x128xf32>
    %675 = vector.shape_cast %674 : vector<1x1x128xf32> to vector<1x128xf32>
    %676 = vector.broadcast %675 : vector<1x128xf32> to vector<16x128xf32>
    %677 = arith.mulf %672, %676 : vector<16x128xf32>
    %678 = arith.index_cast %c4_i32 : i32 to index
    %c0_337 = arith.constant 0 : index
    %c0_338 = arith.constant 0 : index
    %679 = vector.load %arg5[%678, %c0_337, %c0_338] : memref<8x1x128xf32, #tpu.memory_space<vmem>>, vector<1x1x128xf32>
    %680 = vector.shape_cast %679 : vector<1x1x128xf32> to vector<1x128xf32>
    %681 = vector.broadcast %680 : vector<1x128xf32> to vector<16x128xf32>
    %682 = arith.addf %677, %681 : vector<16x128xf32>
    %cst_339 = arith.constant 0.000000e+00 : f32
    %683 = vector.broadcast %cst_339 : f32 to vector<16x128xf32>
    %684 = arith.maximumf %682, %683 : vector<16x128xf32>
    %685 = vector.shape_cast %684 : vector<16x128xf32> to vector<2x8x128xf32>
    %c0_340 = arith.constant 0 : index
    %c2_341 = arith.constant 2 : index
    %c0_342 = arith.constant 0 : index
    %686 = vector.load %arg9[%c0_340, %c2_341, %c0_342] : memref<2x12x128xf32, #tpu.memory_space<vmem>>, vector<2x8x128xf32>
    tpu.vector_store %arg9[%c0_340, %c2_341, %c0_342], %685 {strides = array<i32>} : memref<2x12x128xf32, #tpu.memory_space<vmem>>, vector<2x8x128xf32>,
    %687 = vector.extract_strided_slice %685 {offsets = [0, 0, 0], sizes = [2, 1, 128], strides = [1, 1, 1]} : vector<2x8x128xf32> to vector<2x1x128xf32>
    %688 = vector.shape_cast %687 : vector<2x1x128xf32> to vector<2x128xf32>
    %689 = arith.truncf %688 : vector<2x128xf32> to vector<2x128xbf16>
    %690 = arith.index_cast %c4_i32 : i32 to index
    %c0_343 = arith.constant 0 : index
    %c0_344 = arith.constant 0 : index
    %c0_345 = arith.constant 0 : index
    %691 = vector.load %arg6[%690, %c0_343, %c0_344, %c0_345] : memref<8x8x128x128xbf16, #tpu.memory_space<vmem>>, vector<1x1x128x128xbf16>
    %692 = vector.shape_cast %691 : vector<1x1x128x128xbf16> to vector<128x128xbf16>
    %cst_346 = arith.constant dense<0.000000e+00> : vector<2x128xf32>
    %693 = tpu.matmul %689, %692, %cst_346 {dimension_numbers = #tpu.dot_dimension_numbers<[1], [0], [0], [1], [0, 0, 1, 1], [], []>} : vector<2x128xbf16>, vector<128x128xbf16>, vector<2x128xf32> -> vector<2x128xf32>
    %694 = arith.addf %612, %693 : vector<2x128xf32>
    %695 = vector.extract_strided_slice %685 {offsets = [0, 1, 0], sizes = [2, 1, 128], strides = [1, 1, 1]} : vector<2x8x128xf32> to vector<2x1x128xf32>
    %696 = vector.shape_cast %695 : vector<2x1x128xf32> to vector<2x128xf32>
    %697 = arith.truncf %696 : vector<2x128xf32> to vector<2x128xbf16>
    %698 = arith.index_cast %c4_i32 : i32 to index
    %c1_347 = arith.constant 1 : index
    %c0_348 = arith.constant 0 : index
    %c0_349 = arith.constant 0 : index
    %699 = vector.load %arg6[%698, %c1_347, %c0_348, %c0_349] : memref<8x8x128x128xbf16, #tpu.memory_space<vmem>>, vector<1x1x128x128xbf16>
    %700 = vector.shape_cast %699 : vector<1x1x128x128xbf16> to vector<128x128xbf16>
    %cst_350 = arith.constant dense<0.000000e+00> : vector<2x128xf32>
    %701 = tpu.matmul %697, %700, %cst_350 {dimension_numbers = #tpu.dot_dimension_numbers<[1], [0], [0], [1], [0, 0, 1, 1], [], []>} : vector<2x128xbf16>, vector<128x128xbf16>, vector<2x128xf32> -> vector<2x128xf32>
    %702 = arith.addf %694, %701 : vector<2x128xf32>
    %703 = vector.extract_strided_slice %685 {offsets = [0, 2, 0], sizes = [2, 1, 128], strides = [1, 1, 1]} : vector<2x8x128xf32> to vector<2x1x128xf32>
    %704 = vector.shape_cast %703 : vector<2x1x128xf32> to vector<2x128xf32>
    %705 = arith.truncf %704 : vector<2x128xf32> to vector<2x128xbf16>
    %706 = arith.index_cast %c4_i32 : i32 to index
    %c2_351 = arith.constant 2 : index
    %c0_352 = arith.constant 0 : index
    %c0_353 = arith.constant 0 : index
    %707 = vector.load %arg6[%706, %c2_351, %c0_352, %c0_353] : memref<8x8x128x128xbf16, #tpu.memory_space<vmem>>, vector<1x1x128x128xbf16>
    %708 = vector.shape_cast %707 : vector<1x1x128x128xbf16> to vector<128x128xbf16>
    %cst_354 = arith.constant dense<0.000000e+00> : vector<2x128xf32>
    %709 = tpu.matmul %705, %708, %cst_354 {dimension_numbers = #tpu.dot_dimension_numbers<[1], [0], [0], [1], [0, 0, 1, 1], [], []>} : vector<2x128xbf16>, vector<128x128xbf16>, vector<2x128xf32> -> vector<2x128xf32>
    %710 = arith.addf %702, %709 : vector<2x128xf32>
    %711 = vector.extract_strided_slice %685 {offsets = [0, 3, 0], sizes = [2, 1, 128], strides = [1, 1, 1]} : vector<2x8x128xf32> to vector<2x1x128xf32>
    %712 = vector.shape_cast %711 : vector<2x1x128xf32> to vector<2x128xf32>
    %713 = arith.truncf %712 : vector<2x128xf32> to vector<2x128xbf16>
    %714 = arith.index_cast %c4_i32 : i32 to index
    %c3_355 = arith.constant 3 : index
    %c0_356 = arith.constant 0 : index
    %c0_357 = arith.constant 0 : index
    %715 = vector.load %arg6[%714, %c3_355, %c0_356, %c0_357] : memref<8x8x128x128xbf16, #tpu.memory_space<vmem>>, vector<1x1x128x128xbf16>
    %716 = vector.shape_cast %715 : vector<1x1x128x128xbf16> to vector<128x128xbf16>
    %cst_358 = arith.constant dense<0.000000e+00> : vector<2x128xf32>
    %717 = tpu.matmul %713, %716, %cst_358 {dimension_numbers = #tpu.dot_dimension_numbers<[1], [0], [0], [1], [0, 0, 1, 1], [], []>} : vector<2x128xbf16>, vector<128x128xbf16>, vector<2x128xf32> -> vector<2x128xf32>
    %718 = arith.addf %710, %717 : vector<2x128xf32>
    %719 = vector.extract_strided_slice %685 {offsets = [0, 4, 0], sizes = [2, 1, 128], strides = [1, 1, 1]} : vector<2x8x128xf32> to vector<2x1x128xf32>
    %720 = vector.shape_cast %719 : vector<2x1x128xf32> to vector<2x128xf32>
    %721 = arith.truncf %720 : vector<2x128xf32> to vector<2x128xbf16>
    %722 = arith.index_cast %c4_i32 : i32 to index
    %c4_359 = arith.constant 4 : index
    %c0_360 = arith.constant 0 : index
    %c0_361 = arith.constant 0 : index
    %723 = vector.load %arg6[%722, %c4_359, %c0_360, %c0_361] : memref<8x8x128x128xbf16, #tpu.memory_space<vmem>>, vector<1x1x128x128xbf16>
    %724 = vector.shape_cast %723 : vector<1x1x128x128xbf16> to vector<128x128xbf16>
    %cst_362 = arith.constant dense<0.000000e+00> : vector<2x128xf32>
    %725 = tpu.matmul %721, %724, %cst_362 {dimension_numbers = #tpu.dot_dimension_numbers<[1], [0], [0], [1], [0, 0, 1, 1], [], []>} : vector<2x128xbf16>, vector<128x128xbf16>, vector<2x128xf32> -> vector<2x128xf32>
    %726 = arith.addf %718, %725 : vector<2x128xf32>
    %727 = vector.extract_strided_slice %685 {offsets = [0, 5, 0], sizes = [2, 1, 128], strides = [1, 1, 1]} : vector<2x8x128xf32> to vector<2x1x128xf32>
    %728 = vector.shape_cast %727 : vector<2x1x128xf32> to vector<2x128xf32>
    %729 = arith.truncf %728 : vector<2x128xf32> to vector<2x128xbf16>
    %730 = arith.index_cast %c4_i32 : i32 to index
    %c5_363 = arith.constant 5 : index
    %c0_364 = arith.constant 0 : index
    %c0_365 = arith.constant 0 : index
    %731 = vector.load %arg6[%730, %c5_363, %c0_364, %c0_365] : memref<8x8x128x128xbf16, #tpu.memory_space<vmem>>, vector<1x1x128x128xbf16>
    %732 = vector.shape_cast %731 : vector<1x1x128x128xbf16> to vector<128x128xbf16>
    %cst_366 = arith.constant dense<0.000000e+00> : vector<2x128xf32>
    %733 = tpu.matmul %729, %732, %cst_366 {dimension_numbers = #tpu.dot_dimension_numbers<[1], [0], [0], [1], [0, 0, 1, 1], [], []>} : vector<2x128xbf16>, vector<128x128xbf16>, vector<2x128xf32> -> vector<2x128xf32>
    %734 = arith.addf %726, %733 : vector<2x128xf32>
    %735 = vector.extract_strided_slice %685 {offsets = [0, 6, 0], sizes = [2, 1, 128], strides = [1, 1, 1]} : vector<2x8x128xf32> to vector<2x1x128xf32>
    %736 = vector.shape_cast %735 : vector<2x1x128xf32> to vector<2x128xf32>
    %737 = arith.truncf %736 : vector<2x128xf32> to vector<2x128xbf16>
    %738 = arith.index_cast %c4_i32 : i32 to index
    %c6_367 = arith.constant 6 : index
    %c0_368 = arith.constant 0 : index
    %c0_369 = arith.constant 0 : index
    %739 = vector.load %arg6[%738, %c6_367, %c0_368, %c0_369] : memref<8x8x128x128xbf16, #tpu.memory_space<vmem>>, vector<1x1x128x128xbf16>
    %740 = vector.shape_cast %739 : vector<1x1x128x128xbf16> to vector<128x128xbf16>
    %cst_370 = arith.constant dense<0.000000e+00> : vector<2x128xf32>
    %741 = tpu.matmul %737, %740, %cst_370 {dimension_numbers = #tpu.dot_dimension_numbers<[1], [0], [0], [1], [0, 0, 1, 1], [], []>} : vector<2x128xbf16>, vector<128x128xbf16>, vector<2x128xf32> -> vector<2x128xf32>
    %742 = arith.addf %734, %741 : vector<2x128xf32>
    %743 = vector.extract_strided_slice %685 {offsets = [0, 7, 0], sizes = [2, 1, 128], strides = [1, 1, 1]} : vector<2x8x128xf32> to vector<2x1x128xf32>
    %744 = vector.shape_cast %743 : vector<2x1x128xf32> to vector<2x128xf32>
    %745 = arith.truncf %744 : vector<2x128xf32> to vector<2x128xbf16>
    %746 = arith.index_cast %c4_i32 : i32 to index
    %c7_371 = arith.constant 7 : index
    %c0_372 = arith.constant 0 : index
    %c0_373 = arith.constant 0 : index
    %747 = vector.load %arg6[%746, %c7_371, %c0_372, %c0_373] : memref<8x8x128x128xbf16, #tpu.memory_space<vmem>>, vector<1x1x128x128xbf16>
    %748 = vector.shape_cast %747 : vector<1x1x128x128xbf16> to vector<128x128xbf16>
    %cst_374 = arith.constant dense<0.000000e+00> : vector<2x128xf32>
    %749 = tpu.matmul %745, %748, %cst_374 {dimension_numbers = #tpu.dot_dimension_numbers<[1], [0], [0], [1], [0, 0, 1, 1], [], []>} : vector<2x128xbf16>, vector<128x128xbf16>, vector<2x128xf32> -> vector<2x128xf32>
    %750 = arith.addf %742, %749 : vector<2x128xf32>
    %c5_i32 = arith.constant 5 : i32
    %c0_375 = arith.constant 0 : index
    %c0_376 = arith.constant 0 : index
    %c0_377 = arith.constant 0 : index
    %751 = vector.load %arg9[%c0_375, %c0_376, %c0_377] : memref<2x12x128xf32, #tpu.memory_space<vmem>>, vector<2x12x128xf32>
    %cst_378 = arith.constant 0.000000e+00 : f32
    %752 = vector.broadcast %cst_378 : f32 to vector<16x128xf32>
    %753 = vector.extract_strided_slice %751 {offsets = [0, 0, 0], sizes = [2, 8, 128], strides = [1, 1, 1]} : vector<2x12x128xf32> to vector<2x8x128xf32>
    %754 = vector.shape_cast %753 : vector<2x8x128xf32> to vector<16x128xf32>
    %755 = arith.truncf %754 : vector<16x128xf32> to vector<16x128xbf16>
    %756 = arith.index_cast %c5_i32 : i32 to index
    %c0_379 = arith.constant 0 : index
    %c0_380 = arith.constant 0 : index
    %c0_381 = arith.constant 0 : index
    %757 = vector.load %arg3[%756, %c0_379, %c0_380, %c0_381] : memref<8x5x128x128xbf16, #tpu.memory_space<vmem>>, vector<1x1x128x128xbf16>
    %758 = vector.shape_cast %757 : vector<1x1x128x128xbf16> to vector<128x128xbf16>
    %cst_382 = arith.constant dense<0.000000e+00> : vector<16x128xf32>
    %759 = tpu.matmul %755, %758, %cst_382 {dimension_numbers = #tpu.dot_dimension_numbers<[1], [0], [0], [1], [0, 0, 1, 1], [], []>} : vector<16x128xbf16>, vector<128x128xbf16>, vector<16x128xf32> -> vector<16x128xf32>
    %760 = arith.addf %752, %759 : vector<16x128xf32>
    %761 = vector.extract_strided_slice %751 {offsets = [0, 1, 0], sizes = [2, 8, 128], strides = [1, 1, 1]} : vector<2x12x128xf32> to vector<2x8x128xf32>
    %762 = vector.shape_cast %761 : vector<2x8x128xf32> to vector<16x128xf32>
    %763 = arith.truncf %762 : vector<16x128xf32> to vector<16x128xbf16>
    %764 = arith.index_cast %c5_i32 : i32 to index
    %c1_383 = arith.constant 1 : index
    %c0_384 = arith.constant 0 : index
    %c0_385 = arith.constant 0 : index
    %765 = vector.load %arg3[%764, %c1_383, %c0_384, %c0_385] : memref<8x5x128x128xbf16, #tpu.memory_space<vmem>>, vector<1x1x128x128xbf16>
    %766 = vector.shape_cast %765 : vector<1x1x128x128xbf16> to vector<128x128xbf16>
    %cst_386 = arith.constant dense<0.000000e+00> : vector<16x128xf32>
    %767 = tpu.matmul %763, %766, %cst_386 {dimension_numbers = #tpu.dot_dimension_numbers<[1], [0], [0], [1], [0, 0, 1, 1], [], []>} : vector<16x128xbf16>, vector<128x128xbf16>, vector<16x128xf32> -> vector<16x128xf32>
    %768 = arith.addf %760, %767 : vector<16x128xf32>
    %769 = vector.extract_strided_slice %751 {offsets = [0, 2, 0], sizes = [2, 8, 128], strides = [1, 1, 1]} : vector<2x12x128xf32> to vector<2x8x128xf32>
    %770 = vector.shape_cast %769 : vector<2x8x128xf32> to vector<16x128xf32>
    %771 = arith.truncf %770 : vector<16x128xf32> to vector<16x128xbf16>
    %772 = arith.index_cast %c5_i32 : i32 to index
    %c2_387 = arith.constant 2 : index
    %c0_388 = arith.constant 0 : index
    %c0_389 = arith.constant 0 : index
    %773 = vector.load %arg3[%772, %c2_387, %c0_388, %c0_389] : memref<8x5x128x128xbf16, #tpu.memory_space<vmem>>, vector<1x1x128x128xbf16>
    %774 = vector.shape_cast %773 : vector<1x1x128x128xbf16> to vector<128x128xbf16>
    %cst_390 = arith.constant dense<0.000000e+00> : vector<16x128xf32>
    %775 = tpu.matmul %771, %774, %cst_390 {dimension_numbers = #tpu.dot_dimension_numbers<[1], [0], [0], [1], [0, 0, 1, 1], [], []>} : vector<16x128xbf16>, vector<128x128xbf16>, vector<16x128xf32> -> vector<16x128xf32>
    %776 = arith.addf %768, %775 : vector<16x128xf32>
    %777 = vector.extract_strided_slice %751 {offsets = [0, 3, 0], sizes = [2, 8, 128], strides = [1, 1, 1]} : vector<2x12x128xf32> to vector<2x8x128xf32>
    %778 = vector.shape_cast %777 : vector<2x8x128xf32> to vector<16x128xf32>
    %779 = arith.truncf %778 : vector<16x128xf32> to vector<16x128xbf16>
    %780 = arith.index_cast %c5_i32 : i32 to index
    %c3_391 = arith.constant 3 : index
    %c0_392 = arith.constant 0 : index
    %c0_393 = arith.constant 0 : index
    %781 = vector.load %arg3[%780, %c3_391, %c0_392, %c0_393] : memref<8x5x128x128xbf16, #tpu.memory_space<vmem>>, vector<1x1x128x128xbf16>
    %782 = vector.shape_cast %781 : vector<1x1x128x128xbf16> to vector<128x128xbf16>
    %cst_394 = arith.constant dense<0.000000e+00> : vector<16x128xf32>
    %783 = tpu.matmul %779, %782, %cst_394 {dimension_numbers = #tpu.dot_dimension_numbers<[1], [0], [0], [1], [0, 0, 1, 1], [], []>} : vector<16x128xbf16>, vector<128x128xbf16>, vector<16x128xf32> -> vector<16x128xf32>
    %784 = arith.addf %776, %783 : vector<16x128xf32>
    %785 = vector.extract_strided_slice %751 {offsets = [0, 4, 0], sizes = [2, 8, 128], strides = [1, 1, 1]} : vector<2x12x128xf32> to vector<2x8x128xf32>
    %786 = vector.shape_cast %785 : vector<2x8x128xf32> to vector<16x128xf32>
    %787 = arith.truncf %786 : vector<16x128xf32> to vector<16x128xbf16>
    %788 = arith.index_cast %c5_i32 : i32 to index
    %c4_395 = arith.constant 4 : index
    %c0_396 = arith.constant 0 : index
    %c0_397 = arith.constant 0 : index
    %789 = vector.load %arg3[%788, %c4_395, %c0_396, %c0_397] : memref<8x5x128x128xbf16, #tpu.memory_space<vmem>>, vector<1x1x128x128xbf16>
    %790 = vector.shape_cast %789 : vector<1x1x128x128xbf16> to vector<128x128xbf16>
    %cst_398 = arith.constant dense<0.000000e+00> : vector<16x128xf32>
    %791 = tpu.matmul %787, %790, %cst_398 {dimension_numbers = #tpu.dot_dimension_numbers<[1], [0], [0], [1], [0, 0, 1, 1], [], []>} : vector<16x128xbf16>, vector<128x128xbf16>, vector<16x128xf32> -> vector<16x128xf32>
    %792 = arith.addf %784, %791 : vector<16x128xf32>
    %cst_399 = arith.constant dense<0.000000e+00> : vector<128xf32>
    %793 = vector.multi_reduction <add>, %792, %cst_399 [0] : vector<16x128xf32> to vector<128xf32>
    %794 = vector.shape_cast %793 : vector<128xf32> to vector<1x128xf32>
    %cst_400 = arith.constant 1.600000e+01 : f32
    %795 = vector.broadcast %cst_400 : f32 to vector<1x128xf32>
    %796 = arith.divf %794, %795 : vector<1x128xf32>
    %797 = vector.broadcast %796 : vector<1x128xf32> to vector<16x128xf32>
    %798 = arith.subf %792, %797 : vector<16x128xf32>
    %799 = arith.mulf %798, %798 : vector<16x128xf32>
    %cst_401 = arith.constant dense<0.000000e+00> : vector<128xf32>
    %800 = vector.multi_reduction <add>, %799, %cst_401 [0] : vector<16x128xf32> to vector<128xf32>
    %801 = vector.shape_cast %800 : vector<128xf32> to vector<1x128xf32>
    %cst_402 = arith.constant 1.600000e+01 : f32
    %802 = vector.broadcast %cst_402 : f32 to vector<1x128xf32>
    %803 = arith.divf %801, %802 : vector<1x128xf32>
    %804 = vector.broadcast %796 : vector<1x128xf32> to vector<16x128xf32>
    %805 = arith.subf %792, %804 : vector<16x128xf32>
    %cst_403 = arith.constant 9.99999974E-6 : f32
    %806 = vector.broadcast %cst_403 : f32 to vector<1x128xf32>
    %807 = arith.addf %803, %806 : vector<1x128xf32>
    %808 = math.rsqrt %807 : vector<1x128xf32>
    %809 = vector.broadcast %808 : vector<1x128xf32> to vector<16x128xf32>
    %810 = arith.mulf %805, %809 : vector<16x128xf32>
    %811 = arith.index_cast %c5_i32 : i32 to index
    %c0_404 = arith.constant 0 : index
    %c0_405 = arith.constant 0 : index
    %812 = vector.load %arg4[%811, %c0_404, %c0_405] : memref<8x1x128xf32, #tpu.memory_space<vmem>>, vector<1x1x128xf32>
    %813 = vector.shape_cast %812 : vector<1x1x128xf32> to vector<1x128xf32>
    %814 = vector.broadcast %813 : vector<1x128xf32> to vector<16x128xf32>
    %815 = arith.mulf %810, %814 : vector<16x128xf32>
    %816 = arith.index_cast %c5_i32 : i32 to index
    %c0_406 = arith.constant 0 : index
    %c0_407 = arith.constant 0 : index
    %817 = vector.load %arg5[%816, %c0_406, %c0_407] : memref<8x1x128xf32, #tpu.memory_space<vmem>>, vector<1x1x128xf32>
    %818 = vector.shape_cast %817 : vector<1x1x128xf32> to vector<1x128xf32>
    %819 = vector.broadcast %818 : vector<1x128xf32> to vector<16x128xf32>
    %820 = arith.addf %815, %819 : vector<16x128xf32>
    %cst_408 = arith.constant 0.000000e+00 : f32
    %821 = vector.broadcast %cst_408 : f32 to vector<16x128xf32>
    %822 = arith.maximumf %820, %821 : vector<16x128xf32>
    %823 = vector.shape_cast %822 : vector<16x128xf32> to vector<2x8x128xf32>
    %c0_409 = arith.constant 0 : index
    %c2_410 = arith.constant 2 : index
    %c0_411 = arith.constant 0 : index
    %824 = vector.load %arg9[%c0_409, %c2_410, %c0_411] : memref<2x12x128xf32, #tpu.memory_space<vmem>>, vector<2x8x128xf32>
    tpu.vector_store %arg9[%c0_409, %c2_410, %c0_411], %823 {strides = array<i32>} : memref<2x12x128xf32, #tpu.memory_space<vmem>>, vector<2x8x128xf32>,
    %825 = vector.extract_strided_slice %823 {offsets = [0, 0, 0], sizes = [2, 1, 128], strides = [1, 1, 1]} : vector<2x8x128xf32> to vector<2x1x128xf32>
    %826 = vector.shape_cast %825 : vector<2x1x128xf32> to vector<2x128xf32>
    %827 = arith.truncf %826 : vector<2x128xf32> to vector<2x128xbf16>
    %828 = arith.index_cast %c5_i32 : i32 to index
    %c0_412 = arith.constant 0 : index
    %c0_413 = arith.constant 0 : index
    %c0_414 = arith.constant 0 : index
    %829 = vector.load %arg6[%828, %c0_412, %c0_413, %c0_414] : memref<8x8x128x128xbf16, #tpu.memory_space<vmem>>, vector<1x1x128x128xbf16>
    %830 = vector.shape_cast %829 : vector<1x1x128x128xbf16> to vector<128x128xbf16>
    %cst_415 = arith.constant dense<0.000000e+00> : vector<2x128xf32>
    %831 = tpu.matmul %827, %830, %cst_415 {dimension_numbers = #tpu.dot_dimension_numbers<[1], [0], [0], [1], [0, 0, 1, 1], [], []>} : vector<2x128xbf16>, vector<128x128xbf16>, vector<2x128xf32> -> vector<2x128xf32>
    %832 = arith.addf %750, %831 : vector<2x128xf32>
    %833 = vector.extract_strided_slice %823 {offsets = [0, 1, 0], sizes = [2, 1, 128], strides = [1, 1, 1]} : vector<2x8x128xf32> to vector<2x1x128xf32>
    %834 = vector.shape_cast %833 : vector<2x1x128xf32> to vector<2x128xf32>
    %835 = arith.truncf %834 : vector<2x128xf32> to vector<2x128xbf16>
    %836 = arith.index_cast %c5_i32 : i32 to index
    %c1_416 = arith.constant 1 : index
    %c0_417 = arith.constant 0 : index
    %c0_418 = arith.constant 0 : index
    %837 = vector.load %arg6[%836, %c1_416, %c0_417, %c0_418] : memref<8x8x128x128xbf16, #tpu.memory_space<vmem>>, vector<1x1x128x128xbf16>
    %838 = vector.shape_cast %837 : vector<1x1x128x128xbf16> to vector<128x128xbf16>
    %cst_419 = arith.constant dense<0.000000e+00> : vector<2x128xf32>
    %839 = tpu.matmul %835, %838, %cst_419 {dimension_numbers = #tpu.dot_dimension_numbers<[1], [0], [0], [1], [0, 0, 1, 1], [], []>} : vector<2x128xbf16>, vector<128x128xbf16>, vector<2x128xf32> -> vector<2x128xf32>
    %840 = arith.addf %832, %839 : vector<2x128xf32>
    %841 = vector.extract_strided_slice %823 {offsets = [0, 2, 0], sizes = [2, 1, 128], strides = [1, 1, 1]} : vector<2x8x128xf32> to vector<2x1x128xf32>
    %842 = vector.shape_cast %841 : vector<2x1x128xf32> to vector<2x128xf32>
    %843 = arith.truncf %842 : vector<2x128xf32> to vector<2x128xbf16>
    %844 = arith.index_cast %c5_i32 : i32 to index
    %c2_420 = arith.constant 2 : index
    %c0_421 = arith.constant 0 : index
    %c0_422 = arith.constant 0 : index
    %845 = vector.load %arg6[%844, %c2_420, %c0_421, %c0_422] : memref<8x8x128x128xbf16, #tpu.memory_space<vmem>>, vector<1x1x128x128xbf16>
    %846 = vector.shape_cast %845 : vector<1x1x128x128xbf16> to vector<128x128xbf16>
    %cst_423 = arith.constant dense<0.000000e+00> : vector<2x128xf32>
    %847 = tpu.matmul %843, %846, %cst_423 {dimension_numbers = #tpu.dot_dimension_numbers<[1], [0], [0], [1], [0, 0, 1, 1], [], []>} : vector<2x128xbf16>, vector<128x128xbf16>, vector<2x128xf32> -> vector<2x128xf32>
    %848 = arith.addf %840, %847 : vector<2x128xf32>
    %849 = vector.extract_strided_slice %823 {offsets = [0, 3, 0], sizes = [2, 1, 128], strides = [1, 1, 1]} : vector<2x8x128xf32> to vector<2x1x128xf32>
    %850 = vector.shape_cast %849 : vector<2x1x128xf32> to vector<2x128xf32>
    %851 = arith.truncf %850 : vector<2x128xf32> to vector<2x128xbf16>
    %852 = arith.index_cast %c5_i32 : i32 to index
    %c3_424 = arith.constant 3 : index
    %c0_425 = arith.constant 0 : index
    %c0_426 = arith.constant 0 : index
    %853 = vector.load %arg6[%852, %c3_424, %c0_425, %c0_426] : memref<8x8x128x128xbf16, #tpu.memory_space<vmem>>, vector<1x1x128x128xbf16>
    %854 = vector.shape_cast %853 : vector<1x1x128x128xbf16> to vector<128x128xbf16>
    %cst_427 = arith.constant dense<0.000000e+00> : vector<2x128xf32>
    %855 = tpu.matmul %851, %854, %cst_427 {dimension_numbers = #tpu.dot_dimension_numbers<[1], [0], [0], [1], [0, 0, 1, 1], [], []>} : vector<2x128xbf16>, vector<128x128xbf16>, vector<2x128xf32> -> vector<2x128xf32>
    %856 = arith.addf %848, %855 : vector<2x128xf32>
    %857 = vector.extract_strided_slice %823 {offsets = [0, 4, 0], sizes = [2, 1, 128], strides = [1, 1, 1]} : vector<2x8x128xf32> to vector<2x1x128xf32>
    %858 = vector.shape_cast %857 : vector<2x1x128xf32> to vector<2x128xf32>
    %859 = arith.truncf %858 : vector<2x128xf32> to vector<2x128xbf16>
    %860 = arith.index_cast %c5_i32 : i32 to index
    %c4_428 = arith.constant 4 : index
    %c0_429 = arith.constant 0 : index
    %c0_430 = arith.constant 0 : index
    %861 = vector.load %arg6[%860, %c4_428, %c0_429, %c0_430] : memref<8x8x128x128xbf16, #tpu.memory_space<vmem>>, vector<1x1x128x128xbf16>
    %862 = vector.shape_cast %861 : vector<1x1x128x128xbf16> to vector<128x128xbf16>
    %cst_431 = arith.constant dense<0.000000e+00> : vector<2x128xf32>
    %863 = tpu.matmul %859, %862, %cst_431 {dimension_numbers = #tpu.dot_dimension_numbers<[1], [0], [0], [1], [0, 0, 1, 1], [], []>} : vector<2x128xbf16>, vector<128x128xbf16>, vector<2x128xf32> -> vector<2x128xf32>
    %864 = arith.addf %856, %863 : vector<2x128xf32>
    %865 = vector.extract_strided_slice %823 {offsets = [0, 5, 0], sizes = [2, 1, 128], strides = [1, 1, 1]} : vector<2x8x128xf32> to vector<2x1x128xf32>
    %866 = vector.shape_cast %865 : vector<2x1x128xf32> to vector<2x128xf32>
    %867 = arith.truncf %866 : vector<2x128xf32> to vector<2x128xbf16>
    %868 = arith.index_cast %c5_i32 : i32 to index
    %c5_432 = arith.constant 5 : index
    %c0_433 = arith.constant 0 : index
    %c0_434 = arith.constant 0 : index
    %869 = vector.load %arg6[%868, %c5_432, %c0_433, %c0_434] : memref<8x8x128x128xbf16, #tpu.memory_space<vmem>>, vector<1x1x128x128xbf16>
    %870 = vector.shape_cast %869 : vector<1x1x128x128xbf16> to vector<128x128xbf16>
    %cst_435 = arith.constant dense<0.000000e+00> : vector<2x128xf32>
    %871 = tpu.matmul %867, %870, %cst_435 {dimension_numbers = #tpu.dot_dimension_numbers<[1], [0], [0], [1], [0, 0, 1, 1], [], []>} : vector<2x128xbf16>, vector<128x128xbf16>, vector<2x128xf32> -> vector<2x128xf32>
    %872 = arith.addf %864, %871 : vector<2x128xf32>
    %873 = vector.extract_strided_slice %823 {offsets = [0, 6, 0], sizes = [2, 1, 128], strides = [1, 1, 1]} : vector<2x8x128xf32> to vector<2x1x128xf32>
    %874 = vector.shape_cast %873 : vector<2x1x128xf32> to vector<2x128xf32>
    %875 = arith.truncf %874 : vector<2x128xf32> to vector<2x128xbf16>
    %876 = arith.index_cast %c5_i32 : i32 to index
    %c6_436 = arith.constant 6 : index
    %c0_437 = arith.constant 0 : index
    %c0_438 = arith.constant 0 : index
    %877 = vector.load %arg6[%876, %c6_436, %c0_437, %c0_438] : memref<8x8x128x128xbf16, #tpu.memory_space<vmem>>, vector<1x1x128x128xbf16>
    %878 = vector.shape_cast %877 : vector<1x1x128x128xbf16> to vector<128x128xbf16>
    %cst_439 = arith.constant dense<0.000000e+00> : vector<2x128xf32>
    %879 = tpu.matmul %875, %878, %cst_439 {dimension_numbers = #tpu.dot_dimension_numbers<[1], [0], [0], [1], [0, 0, 1, 1], [], []>} : vector<2x128xbf16>, vector<128x128xbf16>, vector<2x128xf32> -> vector<2x128xf32>
    %880 = arith.addf %872, %879 : vector<2x128xf32>
    %881 = vector.extract_strided_slice %823 {offsets = [0, 7, 0], sizes = [2, 1, 128], strides = [1, 1, 1]} : vector<2x8x128xf32> to vector<2x1x128xf32>
    %882 = vector.shape_cast %881 : vector<2x1x128xf32> to vector<2x128xf32>
    %883 = arith.truncf %882 : vector<2x128xf32> to vector<2x128xbf16>
    %884 = arith.index_cast %c5_i32 : i32 to index
    %c7_440 = arith.constant 7 : index
    %c0_441 = arith.constant 0 : index
    %c0_442 = arith.constant 0 : index
    %885 = vector.load %arg6[%884, %c7_440, %c0_441, %c0_442] : memref<8x8x128x128xbf16, #tpu.memory_space<vmem>>, vector<1x1x128x128xbf16>
    %886 = vector.shape_cast %885 : vector<1x1x128x128xbf16> to vector<128x128xbf16>
    %cst_443 = arith.constant dense<0.000000e+00> : vector<2x128xf32>
    %887 = tpu.matmul %883, %886, %cst_443 {dimension_numbers = #tpu.dot_dimension_numbers<[1], [0], [0], [1], [0, 0, 1, 1], [], []>} : vector<2x128xbf16>, vector<128x128xbf16>, vector<2x128xf32> -> vector<2x128xf32>
    %888 = arith.addf %880, %887 : vector<2x128xf32>
    %c6_i32 = arith.constant 6 : i32
    %c0_444 = arith.constant 0 : index
    %c0_445 = arith.constant 0 : index
    %c0_446 = arith.constant 0 : index
    %889 = vector.load %arg9[%c0_444, %c0_445, %c0_446] : memref<2x12x128xf32, #tpu.memory_space<vmem>>, vector<2x12x128xf32>
    %cst_447 = arith.constant 0.000000e+00 : f32
    %890 = vector.broadcast %cst_447 : f32 to vector<16x128xf32>
    %891 = vector.extract_strided_slice %889 {offsets = [0, 0, 0], sizes = [2, 8, 128], strides = [1, 1, 1]} : vector<2x12x128xf32> to vector<2x8x128xf32>
    %892 = vector.shape_cast %891 : vector<2x8x128xf32> to vector<16x128xf32>
    %893 = arith.truncf %892 : vector<16x128xf32> to vector<16x128xbf16>
    %894 = arith.index_cast %c6_i32 : i32 to index
    %c0_448 = arith.constant 0 : index
    %c0_449 = arith.constant 0 : index
    %c0_450 = arith.constant 0 : index
    %895 = vector.load %arg3[%894, %c0_448, %c0_449, %c0_450] : memref<8x5x128x128xbf16, #tpu.memory_space<vmem>>, vector<1x1x128x128xbf16>
    %896 = vector.shape_cast %895 : vector<1x1x128x128xbf16> to vector<128x128xbf16>
    %cst_451 = arith.constant dense<0.000000e+00> : vector<16x128xf32>
    %897 = tpu.matmul %893, %896, %cst_451 {dimension_numbers = #tpu.dot_dimension_numbers<[1], [0], [0], [1], [0, 0, 1, 1], [], []>} : vector<16x128xbf16>, vector<128x128xbf16>, vector<16x128xf32> -> vector<16x128xf32>
    %898 = arith.addf %890, %897 : vector<16x128xf32>
    %899 = vector.extract_strided_slice %889 {offsets = [0, 1, 0], sizes = [2, 8, 128], strides = [1, 1, 1]} : vector<2x12x128xf32> to vector<2x8x128xf32>
    %900 = vector.shape_cast %899 : vector<2x8x128xf32> to vector<16x128xf32>
    %901 = arith.truncf %900 : vector<16x128xf32> to vector<16x128xbf16>
    %902 = arith.index_cast %c6_i32 : i32 to index
    %c1_452 = arith.constant 1 : index
    %c0_453 = arith.constant 0 : index
    %c0_454 = arith.constant 0 : index
    %903 = vector.load %arg3[%902, %c1_452, %c0_453, %c0_454] : memref<8x5x128x128xbf16, #tpu.memory_space<vmem>>, vector<1x1x128x128xbf16>
    %904 = vector.shape_cast %903 : vector<1x1x128x128xbf16> to vector<128x128xbf16>
    %cst_455 = arith.constant dense<0.000000e+00> : vector<16x128xf32>
    %905 = tpu.matmul %901, %904, %cst_455 {dimension_numbers = #tpu.dot_dimension_numbers<[1], [0], [0], [1], [0, 0, 1, 1], [], []>} : vector<16x128xbf16>, vector<128x128xbf16>, vector<16x128xf32> -> vector<16x128xf32>
    %906 = arith.addf %898, %905 : vector<16x128xf32>
    %907 = vector.extract_strided_slice %889 {offsets = [0, 2, 0], sizes = [2, 8, 128], strides = [1, 1, 1]} : vector<2x12x128xf32> to vector<2x8x128xf32>
    %908 = vector.shape_cast %907 : vector<2x8x128xf32> to vector<16x128xf32>
    %909 = arith.truncf %908 : vector<16x128xf32> to vector<16x128xbf16>
    %910 = arith.index_cast %c6_i32 : i32 to index
    %c2_456 = arith.constant 2 : index
    %c0_457 = arith.constant 0 : index
    %c0_458 = arith.constant 0 : index
    %911 = vector.load %arg3[%910, %c2_456, %c0_457, %c0_458] : memref<8x5x128x128xbf16, #tpu.memory_space<vmem>>, vector<1x1x128x128xbf16>
    %912 = vector.shape_cast %911 : vector<1x1x128x128xbf16> to vector<128x128xbf16>
    %cst_459 = arith.constant dense<0.000000e+00> : vector<16x128xf32>
    %913 = tpu.matmul %909, %912, %cst_459 {dimension_numbers = #tpu.dot_dimension_numbers<[1], [0], [0], [1], [0, 0, 1, 1], [], []>} : vector<16x128xbf16>, vector<128x128xbf16>, vector<16x128xf32> -> vector<16x128xf32>
    %914 = arith.addf %906, %913 : vector<16x128xf32>
    %915 = vector.extract_strided_slice %889 {offsets = [0, 3, 0], sizes = [2, 8, 128], strides = [1, 1, 1]} : vector<2x12x128xf32> to vector<2x8x128xf32>
    %916 = vector.shape_cast %915 : vector<2x8x128xf32> to vector<16x128xf32>
    %917 = arith.truncf %916 : vector<16x128xf32> to vector<16x128xbf16>
    %918 = arith.index_cast %c6_i32 : i32 to index
    %c3_460 = arith.constant 3 : index
    %c0_461 = arith.constant 0 : index
    %c0_462 = arith.constant 0 : index
    %919 = vector.load %arg3[%918, %c3_460, %c0_461, %c0_462] : memref<8x5x128x128xbf16, #tpu.memory_space<vmem>>, vector<1x1x128x128xbf16>
    %920 = vector.shape_cast %919 : vector<1x1x128x128xbf16> to vector<128x128xbf16>
    %cst_463 = arith.constant dense<0.000000e+00> : vector<16x128xf32>
    %921 = tpu.matmul %917, %920, %cst_463 {dimension_numbers = #tpu.dot_dimension_numbers<[1], [0], [0], [1], [0, 0, 1, 1], [], []>} : vector<16x128xbf16>, vector<128x128xbf16>, vector<16x128xf32> -> vector<16x128xf32>
    %922 = arith.addf %914, %921 : vector<16x128xf32>
    %923 = vector.extract_strided_slice %889 {offsets = [0, 4, 0], sizes = [2, 8, 128], strides = [1, 1, 1]} : vector<2x12x128xf32> to vector<2x8x128xf32>
    %924 = vector.shape_cast %923 : vector<2x8x128xf32> to vector<16x128xf32>
    %925 = arith.truncf %924 : vector<16x128xf32> to vector<16x128xbf16>
    %926 = arith.index_cast %c6_i32 : i32 to index
    %c4_464 = arith.constant 4 : index
    %c0_465 = arith.constant 0 : index
    %c0_466 = arith.constant 0 : index
    %927 = vector.load %arg3[%926, %c4_464, %c0_465, %c0_466] : memref<8x5x128x128xbf16, #tpu.memory_space<vmem>>, vector<1x1x128x128xbf16>
    %928 = vector.shape_cast %927 : vector<1x1x128x128xbf16> to vector<128x128xbf16>
    %cst_467 = arith.constant dense<0.000000e+00> : vector<16x128xf32>
    %929 = tpu.matmul %925, %928, %cst_467 {dimension_numbers = #tpu.dot_dimension_numbers<[1], [0], [0], [1], [0, 0, 1, 1], [], []>} : vector<16x128xbf16>, vector<128x128xbf16>, vector<16x128xf32> -> vector<16x128xf32>
    %930 = arith.addf %922, %929 : vector<16x128xf32>
    %cst_468 = arith.constant dense<0.000000e+00> : vector<128xf32>
    %931 = vector.multi_reduction <add>, %930, %cst_468 [0] : vector<16x128xf32> to vector<128xf32>
    %932 = vector.shape_cast %931 : vector<128xf32> to vector<1x128xf32>
    %cst_469 = arith.constant 1.600000e+01 : f32
    %933 = vector.broadcast %cst_469 : f32 to vector<1x128xf32>
    %934 = arith.divf %932, %933 : vector<1x128xf32>
    %935 = vector.broadcast %934 : vector<1x128xf32> to vector<16x128xf32>
    %936 = arith.subf %930, %935 : vector<16x128xf32>
    %937 = arith.mulf %936, %936 : vector<16x128xf32>
    %cst_470 = arith.constant dense<0.000000e+00> : vector<128xf32>
    %938 = vector.multi_reduction <add>, %937, %cst_470 [0] : vector<16x128xf32> to vector<128xf32>
    %939 = vector.shape_cast %938 : vector<128xf32> to vector<1x128xf32>
    %cst_471 = arith.constant 1.600000e+01 : f32
    %940 = vector.broadcast %cst_471 : f32 to vector<1x128xf32>
    %941 = arith.divf %939, %940 : vector<1x128xf32>
    %942 = vector.broadcast %934 : vector<1x128xf32> to vector<16x128xf32>
    %943 = arith.subf %930, %942 : vector<16x128xf32>
    %cst_472 = arith.constant 9.99999974E-6 : f32
    %944 = vector.broadcast %cst_472 : f32 to vector<1x128xf32>
    %945 = arith.addf %941, %944 : vector<1x128xf32>
    %946 = math.rsqrt %945 : vector<1x128xf32>
    %947 = vector.broadcast %946 : vector<1x128xf32> to vector<16x128xf32>
    %948 = arith.mulf %943, %947 : vector<16x128xf32>
    %949 = arith.index_cast %c6_i32 : i32 to index
    %c0_473 = arith.constant 0 : index
    %c0_474 = arith.constant 0 : index
    %950 = vector.load %arg4[%949, %c0_473, %c0_474] : memref<8x1x128xf32, #tpu.memory_space<vmem>>, vector<1x1x128xf32>
    %951 = vector.shape_cast %950 : vector<1x1x128xf32> to vector<1x128xf32>
    %952 = vector.broadcast %951 : vector<1x128xf32> to vector<16x128xf32>
    %953 = arith.mulf %948, %952 : vector<16x128xf32>
    %954 = arith.index_cast %c6_i32 : i32 to index
    %c0_475 = arith.constant 0 : index
    %c0_476 = arith.constant 0 : index
    %955 = vector.load %arg5[%954, %c0_475, %c0_476] : memref<8x1x128xf32, #tpu.memory_space<vmem>>, vector<1x1x128xf32>
    %956 = vector.shape_cast %955 : vector<1x1x128xf32> to vector<1x128xf32>
    %957 = vector.broadcast %956 : vector<1x128xf32> to vector<16x128xf32>
    %958 = arith.addf %953, %957 : vector<16x128xf32>
    %cst_477 = arith.constant 0.000000e+00 : f32
    %959 = vector.broadcast %cst_477 : f32 to vector<16x128xf32>
    %960 = arith.maximumf %958, %959 : vector<16x128xf32>
    %961 = vector.shape_cast %960 : vector<16x128xf32> to vector<2x8x128xf32>
    %c0_478 = arith.constant 0 : index
    %c2_479 = arith.constant 2 : index
    %c0_480 = arith.constant 0 : index
    %962 = vector.load %arg9[%c0_478, %c2_479, %c0_480] : memref<2x12x128xf32, #tpu.memory_space<vmem>>, vector<2x8x128xf32>
    tpu.vector_store %arg9[%c0_478, %c2_479, %c0_480], %961 {strides = array<i32>} : memref<2x12x128xf32, #tpu.memory_space<vmem>>, vector<2x8x128xf32>,
    %963 = vector.extract_strided_slice %961 {offsets = [0, 0, 0], sizes = [2, 1, 128], strides = [1, 1, 1]} : vector<2x8x128xf32> to vector<2x1x128xf32>
    %964 = vector.shape_cast %963 : vector<2x1x128xf32> to vector<2x128xf32>
    %965 = arith.truncf %964 : vector<2x128xf32> to vector<2x128xbf16>
    %966 = arith.index_cast %c6_i32 : i32 to index
    %c0_481 = arith.constant 0 : index
    %c0_482 = arith.constant 0 : index
    %c0_483 = arith.constant 0 : index
    %967 = vector.load %arg6[%966, %c0_481, %c0_482, %c0_483] : memref<8x8x128x128xbf16, #tpu.memory_space<vmem>>, vector<1x1x128x128xbf16>
    %968 = vector.shape_cast %967 : vector<1x1x128x128xbf16> to vector<128x128xbf16>
    %cst_484 = arith.constant dense<0.000000e+00> : vector<2x128xf32>
    %969 = tpu.matmul %965, %968, %cst_484 {dimension_numbers = #tpu.dot_dimension_numbers<[1], [0], [0], [1], [0, 0, 1, 1], [], []>} : vector<2x128xbf16>, vector<128x128xbf16>, vector<2x128xf32> -> vector<2x128xf32>
    %970 = arith.addf %888, %969 : vector<2x128xf32>
    %971 = vector.extract_strided_slice %961 {offsets = [0, 1, 0], sizes = [2, 1, 128], strides = [1, 1, 1]} : vector<2x8x128xf32> to vector<2x1x128xf32>
    %972 = vector.shape_cast %971 : vector<2x1x128xf32> to vector<2x128xf32>
    %973 = arith.truncf %972 : vector<2x128xf32> to vector<2x128xbf16>
    %974 = arith.index_cast %c6_i32 : i32 to index
    %c1_485 = arith.constant 1 : index
    %c0_486 = arith.constant 0 : index
    %c0_487 = arith.constant 0 : index
    %975 = vector.load %arg6[%974, %c1_485, %c0_486, %c0_487] : memref<8x8x128x128xbf16, #tpu.memory_space<vmem>>, vector<1x1x128x128xbf16>
    %976 = vector.shape_cast %975 : vector<1x1x128x128xbf16> to vector<128x128xbf16>
    %cst_488 = arith.constant dense<0.000000e+00> : vector<2x128xf32>
    %977 = tpu.matmul %973, %976, %cst_488 {dimension_numbers = #tpu.dot_dimension_numbers<[1], [0], [0], [1], [0, 0, 1, 1], [], []>} : vector<2x128xbf16>, vector<128x128xbf16>, vector<2x128xf32> -> vector<2x128xf32>
    %978 = arith.addf %970, %977 : vector<2x128xf32>
    %979 = vector.extract_strided_slice %961 {offsets = [0, 2, 0], sizes = [2, 1, 128], strides = [1, 1, 1]} : vector<2x8x128xf32> to vector<2x1x128xf32>
    %980 = vector.shape_cast %979 : vector<2x1x128xf32> to vector<2x128xf32>
    %981 = arith.truncf %980 : vector<2x128xf32> to vector<2x128xbf16>
    %982 = arith.index_cast %c6_i32 : i32 to index
    %c2_489 = arith.constant 2 : index
    %c0_490 = arith.constant 0 : index
    %c0_491 = arith.constant 0 : index
    %983 = vector.load %arg6[%982, %c2_489, %c0_490, %c0_491] : memref<8x8x128x128xbf16, #tpu.memory_space<vmem>>, vector<1x1x128x128xbf16>
    %984 = vector.shape_cast %983 : vector<1x1x128x128xbf16> to vector<128x128xbf16>
    %cst_492 = arith.constant dense<0.000000e+00> : vector<2x128xf32>
    %985 = tpu.matmul %981, %984, %cst_492 {dimension_numbers = #tpu.dot_dimension_numbers<[1], [0], [0], [1], [0, 0, 1, 1], [], []>} : vector<2x128xbf16>, vector<128x128xbf16>, vector<2x128xf32> -> vector<2x128xf32>
    %986 = arith.addf %978, %985 : vector<2x128xf32>
    %987 = vector.extract_strided_slice %961 {offsets = [0, 3, 0], sizes = [2, 1, 128], strides = [1, 1, 1]} : vector<2x8x128xf32> to vector<2x1x128xf32>
    %988 = vector.shape_cast %987 : vector<2x1x128xf32> to vector<2x128xf32>
    %989 = arith.truncf %988 : vector<2x128xf32> to vector<2x128xbf16>
    %990 = arith.index_cast %c6_i32 : i32 to index
    %c3_493 = arith.constant 3 : index
    %c0_494 = arith.constant 0 : index
    %c0_495 = arith.constant 0 : index
    %991 = vector.load %arg6[%990, %c3_493, %c0_494, %c0_495] : memref<8x8x128x128xbf16, #tpu.memory_space<vmem>>, vector<1x1x128x128xbf16>
    %992 = vector.shape_cast %991 : vector<1x1x128x128xbf16> to vector<128x128xbf16>
    %cst_496 = arith.constant dense<0.000000e+00> : vector<2x128xf32>
    %993 = tpu.matmul %989, %992, %cst_496 {dimension_numbers = #tpu.dot_dimension_numbers<[1], [0], [0], [1], [0, 0, 1, 1], [], []>} : vector<2x128xbf16>, vector<128x128xbf16>, vector<2x128xf32> -> vector<2x128xf32>
    %994 = arith.addf %986, %993 : vector<2x128xf32>
    %995 = vector.extract_strided_slice %961 {offsets = [0, 4, 0], sizes = [2, 1, 128], strides = [1, 1, 1]} : vector<2x8x128xf32> to vector<2x1x128xf32>
    %996 = vector.shape_cast %995 : vector<2x1x128xf32> to vector<2x128xf32>
    %997 = arith.truncf %996 : vector<2x128xf32> to vector<2x128xbf16>
    %998 = arith.index_cast %c6_i32 : i32 to index
    %c4_497 = arith.constant 4 : index
    %c0_498 = arith.constant 0 : index
    %c0_499 = arith.constant 0 : index
    %999 = vector.load %arg6[%998, %c4_497, %c0_498, %c0_499] : memref<8x8x128x128xbf16, #tpu.memory_space<vmem>>, vector<1x1x128x128xbf16>
    %1000 = vector.shape_cast %999 : vector<1x1x128x128xbf16> to vector<128x128xbf16>
    %cst_500 = arith.constant dense<0.000000e+00> : vector<2x128xf32>
    %1001 = tpu.matmul %997, %1000, %cst_500 {dimension_numbers = #tpu.dot_dimension_numbers<[1], [0], [0], [1], [0, 0, 1, 1], [], []>} : vector<2x128xbf16>, vector<128x128xbf16>, vector<2x128xf32> -> vector<2x128xf32>
    %1002 = arith.addf %994, %1001 : vector<2x128xf32>
    %1003 = vector.extract_strided_slice %961 {offsets = [0, 5, 0], sizes = [2, 1, 128], strides = [1, 1, 1]} : vector<2x8x128xf32> to vector<2x1x128xf32>
    %1004 = vector.shape_cast %1003 : vector<2x1x128xf32> to vector<2x128xf32>
    %1005 = arith.truncf %1004 : vector<2x128xf32> to vector<2x128xbf16>
    %1006 = arith.index_cast %c6_i32 : i32 to index
    %c5_501 = arith.constant 5 : index
    %c0_502 = arith.constant 0 : index
    %c0_503 = arith.constant 0 : index
    %1007 = vector.load %arg6[%1006, %c5_501, %c0_502, %c0_503] : memref<8x8x128x128xbf16, #tpu.memory_space<vmem>>, vector<1x1x128x128xbf16>
    %1008 = vector.shape_cast %1007 : vector<1x1x128x128xbf16> to vector<128x128xbf16>
    %cst_504 = arith.constant dense<0.000000e+00> : vector<2x128xf32>
    %1009 = tpu.matmul %1005, %1008, %cst_504 {dimension_numbers = #tpu.dot_dimension_numbers<[1], [0], [0], [1], [0, 0, 1, 1], [], []>} : vector<2x128xbf16>, vector<128x128xbf16>, vector<2x128xf32> -> vector<2x128xf32>
    %1010 = arith.addf %1002, %1009 : vector<2x128xf32>
    %1011 = vector.extract_strided_slice %961 {offsets = [0, 6, 0], sizes = [2, 1, 128], strides = [1, 1, 1]} : vector<2x8x128xf32> to vector<2x1x128xf32>
    %1012 = vector.shape_cast %1011 : vector<2x1x128xf32> to vector<2x128xf32>
    %1013 = arith.truncf %1012 : vector<2x128xf32> to vector<2x128xbf16>
    %1014 = arith.index_cast %c6_i32 : i32 to index
    %c6_505 = arith.constant 6 : index
    %c0_506 = arith.constant 0 : index
    %c0_507 = arith.constant 0 : index
    %1015 = vector.load %arg6[%1014, %c6_505, %c0_506, %c0_507] : memref<8x8x128x128xbf16, #tpu.memory_space<vmem>>, vector<1x1x128x128xbf16>
    %1016 = vector.shape_cast %1015 : vector<1x1x128x128xbf16> to vector<128x128xbf16>
    %cst_508 = arith.constant dense<0.000000e+00> : vector<2x128xf32>
    %1017 = tpu.matmul %1013, %1016, %cst_508 {dimension_numbers = #tpu.dot_dimension_numbers<[1], [0], [0], [1], [0, 0, 1, 1], [], []>} : vector<2x128xbf16>, vector<128x128xbf16>, vector<2x128xf32> -> vector<2x128xf32>
    %1018 = arith.addf %1010, %1017 : vector<2x128xf32>
    %1019 = vector.extract_strided_slice %961 {offsets = [0, 7, 0], sizes = [2, 1, 128], strides = [1, 1, 1]} : vector<2x8x128xf32> to vector<2x1x128xf32>
    %1020 = vector.shape_cast %1019 : vector<2x1x128xf32> to vector<2x128xf32>
    %1021 = arith.truncf %1020 : vector<2x128xf32> to vector<2x128xbf16>
    %1022 = arith.index_cast %c6_i32 : i32 to index
    %c7_509 = arith.constant 7 : index
    %c0_510 = arith.constant 0 : index
    %c0_511 = arith.constant 0 : index
    %1023 = vector.load %arg6[%1022, %c7_509, %c0_510, %c0_511] : memref<8x8x128x128xbf16, #tpu.memory_space<vmem>>, vector<1x1x128x128xbf16>
    %1024 = vector.shape_cast %1023 : vector<1x1x128x128xbf16> to vector<128x128xbf16>
    %cst_512 = arith.constant dense<0.000000e+00> : vector<2x128xf32>
    %1025 = tpu.matmul %1021, %1024, %cst_512 {dimension_numbers = #tpu.dot_dimension_numbers<[1], [0], [0], [1], [0, 0, 1, 1], [], []>} : vector<2x128xbf16>, vector<128x128xbf16>, vector<2x128xf32> -> vector<2x128xf32>
    %1026 = arith.addf %1018, %1025 : vector<2x128xf32>
    %c7_i32 = arith.constant 7 : i32
    %c0_513 = arith.constant 0 : index
    %c0_514 = arith.constant 0 : index
    %c0_515 = arith.constant 0 : index
    %1027 = vector.load %arg9[%c0_513, %c0_514, %c0_515] : memref<2x12x128xf32, #tpu.memory_space<vmem>>, vector<2x12x128xf32>
    %cst_516 = arith.constant 0.000000e+00 : f32
    %1028 = vector.broadcast %cst_516 : f32 to vector<16x128xf32>
    %1029 = vector.extract_strided_slice %1027 {offsets = [0, 0, 0], sizes = [2, 8, 128], strides = [1, 1, 1]} : vector<2x12x128xf32> to vector<2x8x128xf32>
    %1030 = vector.shape_cast %1029 : vector<2x8x128xf32> to vector<16x128xf32>
    %1031 = arith.truncf %1030 : vector<16x128xf32> to vector<16x128xbf16>
    %1032 = arith.index_cast %c7_i32 : i32 to index
    %c0_517 = arith.constant 0 : index
    %c0_518 = arith.constant 0 : index
    %c0_519 = arith.constant 0 : index
    %1033 = vector.load %arg3[%1032, %c0_517, %c0_518, %c0_519] : memref<8x5x128x128xbf16, #tpu.memory_space<vmem>>, vector<1x1x128x128xbf16>
    %1034 = vector.shape_cast %1033 : vector<1x1x128x128xbf16> to vector<128x128xbf16>
    %cst_520 = arith.constant dense<0.000000e+00> : vector<16x128xf32>
    %1035 = tpu.matmul %1031, %1034, %cst_520 {dimension_numbers = #tpu.dot_dimension_numbers<[1], [0], [0], [1], [0, 0, 1, 1], [], []>} : vector<16x128xbf16>, vector<128x128xbf16>, vector<16x128xf32> -> vector<16x128xf32>
    %1036 = arith.addf %1028, %1035 : vector<16x128xf32>
    %1037 = vector.extract_strided_slice %1027 {offsets = [0, 1, 0], sizes = [2, 8, 128], strides = [1, 1, 1]} : vector<2x12x128xf32> to vector<2x8x128xf32>
    %1038 = vector.shape_cast %1037 : vector<2x8x128xf32> to vector<16x128xf32>
    %1039 = arith.truncf %1038 : vector<16x128xf32> to vector<16x128xbf16>
    %1040 = arith.index_cast %c7_i32 : i32 to index
    %c1_521 = arith.constant 1 : index
    %c0_522 = arith.constant 0 : index
    %c0_523 = arith.constant 0 : index
    %1041 = vector.load %arg3[%1040, %c1_521, %c0_522, %c0_523] : memref<8x5x128x128xbf16, #tpu.memory_space<vmem>>, vector<1x1x128x128xbf16>
    %1042 = vector.shape_cast %1041 : vector<1x1x128x128xbf16> to vector<128x128xbf16>
    %cst_524 = arith.constant dense<0.000000e+00> : vector<16x128xf32>
    %1043 = tpu.matmul %1039, %1042, %cst_524 {dimension_numbers = #tpu.dot_dimension_numbers<[1], [0], [0], [1], [0, 0, 1, 1], [], []>} : vector<16x128xbf16>, vector<128x128xbf16>, vector<16x128xf32> -> vector<16x128xf32>
    %1044 = arith.addf %1036, %1043 : vector<16x128xf32>
    %1045 = vector.extract_strided_slice %1027 {offsets = [0, 2, 0], sizes = [2, 8, 128], strides = [1, 1, 1]} : vector<2x12x128xf32> to vector<2x8x128xf32>
    %1046 = vector.shape_cast %1045 : vector<2x8x128xf32> to vector<16x128xf32>
    %1047 = arith.truncf %1046 : vector<16x128xf32> to vector<16x128xbf16>
    %1048 = arith.index_cast %c7_i32 : i32 to index
    %c2_525 = arith.constant 2 : index
    %c0_526 = arith.constant 0 : index
    %c0_527 = arith.constant 0 : index
    %1049 = vector.load %arg3[%1048, %c2_525, %c0_526, %c0_527] : memref<8x5x128x128xbf16, #tpu.memory_space<vmem>>, vector<1x1x128x128xbf16>
    %1050 = vector.shape_cast %1049 : vector<1x1x128x128xbf16> to vector<128x128xbf16>
    %cst_528 = arith.constant dense<0.000000e+00> : vector<16x128xf32>
    %1051 = tpu.matmul %1047, %1050, %cst_528 {dimension_numbers = #tpu.dot_dimension_numbers<[1], [0], [0], [1], [0, 0, 1, 1], [], []>} : vector<16x128xbf16>, vector<128x128xbf16>, vector<16x128xf32> -> vector<16x128xf32>
    %1052 = arith.addf %1044, %1051 : vector<16x128xf32>
    %1053 = vector.extract_strided_slice %1027 {offsets = [0, 3, 0], sizes = [2, 8, 128], strides = [1, 1, 1]} : vector<2x12x128xf32> to vector<2x8x128xf32>
    %1054 = vector.shape_cast %1053 : vector<2x8x128xf32> to vector<16x128xf32>
    %1055 = arith.truncf %1054 : vector<16x128xf32> to vector<16x128xbf16>
    %1056 = arith.index_cast %c7_i32 : i32 to index
    %c3_529 = arith.constant 3 : index
    %c0_530 = arith.constant 0 : index
    %c0_531 = arith.constant 0 : index
    %1057 = vector.load %arg3[%1056, %c3_529, %c0_530, %c0_531] : memref<8x5x128x128xbf16, #tpu.memory_space<vmem>>, vector<1x1x128x128xbf16>
    %1058 = vector.shape_cast %1057 : vector<1x1x128x128xbf16> to vector<128x128xbf16>
    %cst_532 = arith.constant dense<0.000000e+00> : vector<16x128xf32>
    %1059 = tpu.matmul %1055, %1058, %cst_532 {dimension_numbers = #tpu.dot_dimension_numbers<[1], [0], [0], [1], [0, 0, 1, 1], [], []>} : vector<16x128xbf16>, vector<128x128xbf16>, vector<16x128xf32> -> vector<16x128xf32>
    %1060 = arith.addf %1052, %1059 : vector<16x128xf32>
    %1061 = vector.extract_strided_slice %1027 {offsets = [0, 4, 0], sizes = [2, 8, 128], strides = [1, 1, 1]} : vector<2x12x128xf32> to vector<2x8x128xf32>
    %1062 = vector.shape_cast %1061 : vector<2x8x128xf32> to vector<16x128xf32>
    %1063 = arith.truncf %1062 : vector<16x128xf32> to vector<16x128xbf16>
    %1064 = arith.index_cast %c7_i32 : i32 to index
    %c4_533 = arith.constant 4 : index
    %c0_534 = arith.constant 0 : index
    %c0_535 = arith.constant 0 : index
    %1065 = vector.load %arg3[%1064, %c4_533, %c0_534, %c0_535] : memref<8x5x128x128xbf16, #tpu.memory_space<vmem>>, vector<1x1x128x128xbf16>
    %1066 = vector.shape_cast %1065 : vector<1x1x128x128xbf16> to vector<128x128xbf16>
    %cst_536 = arith.constant dense<0.000000e+00> : vector<16x128xf32>
    %1067 = tpu.matmul %1063, %1066, %cst_536 {dimension_numbers = #tpu.dot_dimension_numbers<[1], [0], [0], [1], [0, 0, 1, 1], [], []>} : vector<16x128xbf16>, vector<128x128xbf16>, vector<16x128xf32> -> vector<16x128xf32>
    %1068 = arith.addf %1060, %1067 : vector<16x128xf32>
    %cst_537 = arith.constant dense<0.000000e+00> : vector<128xf32>
    %1069 = vector.multi_reduction <add>, %1068, %cst_537 [0] : vector<16x128xf32> to vector<128xf32>
    %1070 = vector.shape_cast %1069 : vector<128xf32> to vector<1x128xf32>
    %cst_538 = arith.constant 1.600000e+01 : f32
    %1071 = vector.broadcast %cst_538 : f32 to vector<1x128xf32>
    %1072 = arith.divf %1070, %1071 : vector<1x128xf32>
    %1073 = vector.broadcast %1072 : vector<1x128xf32> to vector<16x128xf32>
    %1074 = arith.subf %1068, %1073 : vector<16x128xf32>
    %1075 = arith.mulf %1074, %1074 : vector<16x128xf32>
    %cst_539 = arith.constant dense<0.000000e+00> : vector<128xf32>
    %1076 = vector.multi_reduction <add>, %1075, %cst_539 [0] : vector<16x128xf32> to vector<128xf32>
    %1077 = vector.shape_cast %1076 : vector<128xf32> to vector<1x128xf32>
    %cst_540 = arith.constant 1.600000e+01 : f32
    %1078 = vector.broadcast %cst_540 : f32 to vector<1x128xf32>
    %1079 = arith.divf %1077, %1078 : vector<1x128xf32>
    %1080 = vector.broadcast %1072 : vector<1x128xf32> to vector<16x128xf32>
    %1081 = arith.subf %1068, %1080 : vector<16x128xf32>
    %cst_541 = arith.constant 9.99999974E-6 : f32
    %1082 = vector.broadcast %cst_541 : f32 to vector<1x128xf32>
    %1083 = arith.addf %1079, %1082 : vector<1x128xf32>
    %1084 = math.rsqrt %1083 : vector<1x128xf32>
    %1085 = vector.broadcast %1084 : vector<1x128xf32> to vector<16x128xf32>
    %1086 = arith.mulf %1081, %1085 : vector<16x128xf32>
    %1087 = arith.index_cast %c7_i32 : i32 to index
    %c0_542 = arith.constant 0 : index
    %c0_543 = arith.constant 0 : index
    %1088 = vector.load %arg4[%1087, %c0_542, %c0_543] : memref<8x1x128xf32, #tpu.memory_space<vmem>>, vector<1x1x128xf32>
    %1089 = vector.shape_cast %1088 : vector<1x1x128xf32> to vector<1x128xf32>
    %1090 = vector.broadcast %1089 : vector<1x128xf32> to vector<16x128xf32>
    %1091 = arith.mulf %1086, %1090 : vector<16x128xf32>
    %1092 = arith.index_cast %c7_i32 : i32 to index
    %c0_544 = arith.constant 0 : index
    %c0_545 = arith.constant 0 : index
    %1093 = vector.load %arg5[%1092, %c0_544, %c0_545] : memref<8x1x128xf32, #tpu.memory_space<vmem>>, vector<1x1x128xf32>
    %1094 = vector.shape_cast %1093 : vector<1x1x128xf32> to vector<1x128xf32>
    %1095 = vector.broadcast %1094 : vector<1x128xf32> to vector<16x128xf32>
    %1096 = arith.addf %1091, %1095 : vector<16x128xf32>
    %cst_546 = arith.constant 0.000000e+00 : f32
    %1097 = vector.broadcast %cst_546 : f32 to vector<16x128xf32>
    %1098 = arith.maximumf %1096, %1097 : vector<16x128xf32>
    %1099 = vector.shape_cast %1098 : vector<16x128xf32> to vector<2x8x128xf32>
    %c0_547 = arith.constant 0 : index
    %c2_548 = arith.constant 2 : index
    %c0_549 = arith.constant 0 : index
    %1100 = vector.load %arg9[%c0_547, %c2_548, %c0_549] : memref<2x12x128xf32, #tpu.memory_space<vmem>>, vector<2x8x128xf32>
    tpu.vector_store %arg9[%c0_547, %c2_548, %c0_549], %1099 {strides = array<i32>} : memref<2x12x128xf32, #tpu.memory_space<vmem>>, vector<2x8x128xf32>,
    %1101 = vector.extract_strided_slice %1099 {offsets = [0, 0, 0], sizes = [2, 1, 128], strides = [1, 1, 1]} : vector<2x8x128xf32> to vector<2x1x128xf32>
    %1102 = vector.shape_cast %1101 : vector<2x1x128xf32> to vector<2x128xf32>
    %1103 = arith.truncf %1102 : vector<2x128xf32> to vector<2x128xbf16>
    %1104 = arith.index_cast %c7_i32 : i32 to index
    %c0_550 = arith.constant 0 : index
    %c0_551 = arith.constant 0 : index
    %c0_552 = arith.constant 0 : index
    %1105 = vector.load %arg6[%1104, %c0_550, %c0_551, %c0_552] : memref<8x8x128x128xbf16, #tpu.memory_space<vmem>>, vector<1x1x128x128xbf16>
    %1106 = vector.shape_cast %1105 : vector<1x1x128x128xbf16> to vector<128x128xbf16>
    %cst_553 = arith.constant dense<0.000000e+00> : vector<2x128xf32>
    %1107 = tpu.matmul %1103, %1106, %cst_553 {dimension_numbers = #tpu.dot_dimension_numbers<[1], [0], [0], [1], [0, 0, 1, 1], [], []>} : vector<2x128xbf16>, vector<128x128xbf16>, vector<2x128xf32> -> vector<2x128xf32>
    %1108 = arith.addf %1026, %1107 : vector<2x128xf32>
    %1109 = vector.extract_strided_slice %1099 {offsets = [0, 1, 0], sizes = [2, 1, 128], strides = [1, 1, 1]} : vector<2x8x128xf32> to vector<2x1x128xf32>
    %1110 = vector.shape_cast %1109 : vector<2x1x128xf32> to vector<2x128xf32>
    %1111 = arith.truncf %1110 : vector<2x128xf32> to vector<2x128xbf16>
    %1112 = arith.index_cast %c7_i32 : i32 to index
    %c1_554 = arith.constant 1 : index
    %c0_555 = arith.constant 0 : index
    %c0_556 = arith.constant 0 : index
    %1113 = vector.load %arg6[%1112, %c1_554, %c0_555, %c0_556] : memref<8x8x128x128xbf16, #tpu.memory_space<vmem>>, vector<1x1x128x128xbf16>
    %1114 = vector.shape_cast %1113 : vector<1x1x128x128xbf16> to vector<128x128xbf16>
    %cst_557 = arith.constant dense<0.000000e+00> : vector<2x128xf32>
    %1115 = tpu.matmul %1111, %1114, %cst_557 {dimension_numbers = #tpu.dot_dimension_numbers<[1], [0], [0], [1], [0, 0, 1, 1], [], []>} : vector<2x128xbf16>, vector<128x128xbf16>, vector<2x128xf32> -> vector<2x128xf32>
    %1116 = arith.addf %1108, %1115 : vector<2x128xf32>
    %1117 = vector.extract_strided_slice %1099 {offsets = [0, 2, 0], sizes = [2, 1, 128], strides = [1, 1, 1]} : vector<2x8x128xf32> to vector<2x1x128xf32>
    %1118 = vector.shape_cast %1117 : vector<2x1x128xf32> to vector<2x128xf32>
    %1119 = arith.truncf %1118 : vector<2x128xf32> to vector<2x128xbf16>
    %1120 = arith.index_cast %c7_i32 : i32 to index
    %c2_558 = arith.constant 2 : index
    %c0_559 = arith.constant 0 : index
    %c0_560 = arith.constant 0 : index
    %1121 = vector.load %arg6[%1120, %c2_558, %c0_559, %c0_560] : memref<8x8x128x128xbf16, #tpu.memory_space<vmem>>, vector<1x1x128x128xbf16>
    %1122 = vector.shape_cast %1121 : vector<1x1x128x128xbf16> to vector<128x128xbf16>
    %cst_561 = arith.constant dense<0.000000e+00> : vector<2x128xf32>
    %1123 = tpu.matmul %1119, %1122, %cst_561 {dimension_numbers = #tpu.dot_dimension_numbers<[1], [0], [0], [1], [0, 0, 1, 1], [], []>} : vector<2x128xbf16>, vector<128x128xbf16>, vector<2x128xf32> -> vector<2x128xf32>
    %1124 = arith.addf %1116, %1123 : vector<2x128xf32>
    %1125 = vector.extract_strided_slice %1099 {offsets = [0, 3, 0], sizes = [2, 1, 128], strides = [1, 1, 1]} : vector<2x8x128xf32> to vector<2x1x128xf32>
    %1126 = vector.shape_cast %1125 : vector<2x1x128xf32> to vector<2x128xf32>
    %1127 = arith.truncf %1126 : vector<2x128xf32> to vector<2x128xbf16>
    %1128 = arith.index_cast %c7_i32 : i32 to index
    %c3_562 = arith.constant 3 : index
    %c0_563 = arith.constant 0 : index
    %c0_564 = arith.constant 0 : index
    %1129 = vector.load %arg6[%1128, %c3_562, %c0_563, %c0_564] : memref<8x8x128x128xbf16, #tpu.memory_space<vmem>>, vector<1x1x128x128xbf16>
    %1130 = vector.shape_cast %1129 : vector<1x1x128x128xbf16> to vector<128x128xbf16>
    %cst_565 = arith.constant dense<0.000000e+00> : vector<2x128xf32>
    %1131 = tpu.matmul %1127, %1130, %cst_565 {dimension_numbers = #tpu.dot_dimension_numbers<[1], [0], [0], [1], [0, 0, 1, 1], [], []>} : vector<2x128xbf16>, vector<128x128xbf16>, vector<2x128xf32> -> vector<2x128xf32>
    %1132 = arith.addf %1124, %1131 : vector<2x128xf32>
    %1133 = vector.extract_strided_slice %1099 {offsets = [0, 4, 0], sizes = [2, 1, 128], strides = [1, 1, 1]} : vector<2x8x128xf32> to vector<2x1x128xf32>
    %1134 = vector.shape_cast %1133 : vector<2x1x128xf32> to vector<2x128xf32>
    %1135 = arith.truncf %1134 : vector<2x128xf32> to vector<2x128xbf16>
    %1136 = arith.index_cast %c7_i32 : i32 to index
    %c4_566 = arith.constant 4 : index
    %c0_567 = arith.constant 0 : index
    %c0_568 = arith.constant 0 : index
    %1137 = vector.load %arg6[%1136, %c4_566, %c0_567, %c0_568] : memref<8x8x128x128xbf16, #tpu.memory_space<vmem>>, vector<1x1x128x128xbf16>
    %1138 = vector.shape_cast %1137 : vector<1x1x128x128xbf16> to vector<128x128xbf16>
    %cst_569 = arith.constant dense<0.000000e+00> : vector<2x128xf32>
    %1139 = tpu.matmul %1135, %1138, %cst_569 {dimension_numbers = #tpu.dot_dimension_numbers<[1], [0], [0], [1], [0, 0, 1, 1], [], []>} : vector<2x128xbf16>, vector<128x128xbf16>, vector<2x128xf32> -> vector<2x128xf32>
    %1140 = arith.addf %1132, %1139 : vector<2x128xf32>
    %1141 = vector.extract_strided_slice %1099 {offsets = [0, 5, 0], sizes = [2, 1, 128], strides = [1, 1, 1]} : vector<2x8x128xf32> to vector<2x1x128xf32>
    %1142 = vector.shape_cast %1141 : vector<2x1x128xf32> to vector<2x128xf32>
    %1143 = arith.truncf %1142 : vector<2x128xf32> to vector<2x128xbf16>
    %1144 = arith.index_cast %c7_i32 : i32 to index
    %c5_570 = arith.constant 5 : index
    %c0_571 = arith.constant 0 : index
    %c0_572 = arith.constant 0 : index
    %1145 = vector.load %arg6[%1144, %c5_570, %c0_571, %c0_572] : memref<8x8x128x128xbf16, #tpu.memory_space<vmem>>, vector<1x1x128x128xbf16>
    %1146 = vector.shape_cast %1145 : vector<1x1x128x128xbf16> to vector<128x128xbf16>
    %cst_573 = arith.constant dense<0.000000e+00> : vector<2x128xf32>
    %1147 = tpu.matmul %1143, %1146, %cst_573 {dimension_numbers = #tpu.dot_dimension_numbers<[1], [0], [0], [1], [0, 0, 1, 1], [], []>} : vector<2x128xbf16>, vector<128x128xbf16>, vector<2x128xf32> -> vector<2x128xf32>
    %1148 = arith.addf %1140, %1147 : vector<2x128xf32>
    %1149 = vector.extract_strided_slice %1099 {offsets = [0, 6, 0], sizes = [2, 1, 128], strides = [1, 1, 1]} : vector<2x8x128xf32> to vector<2x1x128xf32>
    %1150 = vector.shape_cast %1149 : vector<2x1x128xf32> to vector<2x128xf32>
    %1151 = arith.truncf %1150 : vector<2x128xf32> to vector<2x128xbf16>
    %1152 = arith.index_cast %c7_i32 : i32 to index
    %c6_574 = arith.constant 6 : index
    %c0_575 = arith.constant 0 : index
    %c0_576 = arith.constant 0 : index
    %1153 = vector.load %arg6[%1152, %c6_574, %c0_575, %c0_576] : memref<8x8x128x128xbf16, #tpu.memory_space<vmem>>, vector<1x1x128x128xbf16>
    %1154 = vector.shape_cast %1153 : vector<1x1x128x128xbf16> to vector<128x128xbf16>
    %cst_577 = arith.constant dense<0.000000e+00> : vector<2x128xf32>
    %1155 = tpu.matmul %1151, %1154, %cst_577 {dimension_numbers = #tpu.dot_dimension_numbers<[1], [0], [0], [1], [0, 0, 1, 1], [], []>} : vector<2x128xbf16>, vector<128x128xbf16>, vector<2x128xf32> -> vector<2x128xf32>
    %1156 = arith.addf %1148, %1155 : vector<2x128xf32>
    %1157 = vector.extract_strided_slice %1099 {offsets = [0, 7, 0], sizes = [2, 1, 128], strides = [1, 1, 1]} : vector<2x8x128xf32> to vector<2x1x128xf32>
    %1158 = vector.shape_cast %1157 : vector<2x1x128xf32> to vector<2x128xf32>
    %1159 = arith.truncf %1158 : vector<2x128xf32> to vector<2x128xbf16>
    %1160 = arith.index_cast %c7_i32 : i32 to index
    %c7_578 = arith.constant 7 : index
    %c0_579 = arith.constant 0 : index
    %c0_580 = arith.constant 0 : index
    %1161 = vector.load %arg6[%1160, %c7_578, %c0_579, %c0_580] : memref<8x8x128x128xbf16, #tpu.memory_space<vmem>>, vector<1x1x128x128xbf16>
    %1162 = vector.shape_cast %1161 : vector<1x1x128x128xbf16> to vector<128x128xbf16>
    %cst_581 = arith.constant dense<0.000000e+00> : vector<2x128xf32>
    %1163 = tpu.matmul %1159, %1162, %cst_581 {dimension_numbers = #tpu.dot_dimension_numbers<[1], [0], [0], [1], [0, 0, 1, 1], [], []>} : vector<2x128xbf16>, vector<128x128xbf16>, vector<2x128xf32> -> vector<2x128xf32>
    %1164 = arith.addf %1156, %1163 : vector<2x128xf32>
    %c8_i32 = arith.constant 8 : i32
    %c0_582 = arith.constant 0 : index
    %c0_583 = arith.constant 0 : index
    %1165 = vector.load %arg7[%c0_582, %c0_583] : memref<1x128xf32, #tpu.memory_space<vmem>>, vector<1x128xf32>
    %1166 = vector.broadcast %1165 : vector<1x128xf32> to vector<2x128xf32>
    %1167 = arith.addf %1164, %1166 : vector<2x128xf32>
    %cst_584 = arith.constant dense<0xFF800000> : vector<2xf32>
    %1168 = vector.multi_reduction <maximumf>, %1167, %cst_584 [1] : vector<2x128xf32> to vector<2xf32>
    %1169 = vector.shape_cast %1168 : vector<2xf32> to vector<2x1xf32>
    %1170 = vector.broadcast %1169 : vector<2x1xf32> to vector<2x128xf32>
    %1171 = arith.subf %1167, %1170 : vector<2x128xf32>
    %1172 = math.exp %1171 : vector<2x128xf32>
    %cst_585 = arith.constant dense<0.000000e+00> : vector<2xf32>
    %1173 = vector.multi_reduction <add>, %1172, %cst_585 [1] : vector<2x128xf32> to vector<2xf32>
    %1174 = vector.shape_cast %1173 : vector<2xf32> to vector<2x1xf32>
    %1175 = math.log %1174 : vector<2x1xf32>
    %1176 = vector.broadcast %1175 : vector<2x1xf32> to vector<2x128xf32>
    %1177 = arith.subf %1171, %1176 : vector<2x128xf32>
    %c0_586 = arith.constant 0 : index
    %c0_587 = arith.constant 0 : index
    %1178 = vector.load %arg8[%c0_586, %c0_587] : memref<2x128xf32, #tpu.memory_space<vmem>>, vector<2x128xf32>
    tpu.vector_store %arg8[%c0_586, %c0_587], %1177 {strides = array<i32>} : memref<2x128xf32, #tpu.memory_space<vmem>>, vector<2x128xf32>,
    return
  }
}

</mosaic_0001>

<llo_original>
// kernel: htaggnet_forward.1
$region0: #{htaggnet_forward.1}
  #allocation0 [shape = 'u32[]', space=smem, size = 0x4, offset = 0x4, fixed_abs, tag = 'smem constant byte address 0x4 - core index']
  #allocation1 [shape = 'u32[72,128]{1,0:T(1,128)}', space=vmem, size = 0x9000, scoped, tag = 'internal scratch']
  #allocation2 [shape = 'f32[2,12,128]{2,1,0:T(8,128)}', space=vmem, size = 0x4000, scoped, tag = 'scratch operand']
  %s0 = inlined_call_operand.vmem [shape: f32[2,16,20], index: 0, kind: input, shape index: {}]
  %s1 = inlined_call_operand.hbm [shape: bf16[20,128], index: 1, kind: input, shape index: {}]
  %s2 = inlined_call_operand.hbm [shape: f32[1,128], index: 2, kind: input, shape index: {}]
  %s3 = inlined_call_operand.hbm [shape: bf16[8,5,128,128], index: 3, kind: input, shape index: {}]
  %s4 = inlined_call_operand.hbm [shape: f32[8,1,128], index: 4, kind: input, shape index: {}]
  %s5 = inlined_call_operand.hbm [shape: f32[8,1,128], index: 5, kind: input, shape index: {}]
  %s6 = inlined_call_operand.hbm [shape: bf16[8,8,128,128], index: 6, kind: input, shape index: {}]
  %s7 = inlined_call_operand.hbm [shape: f32[1,128], index: 7, kind: input, shape index: {}]
  %s8 = inlined_call_operand.hbm [shape: f32[2,128], index: 8, kind: output, shape index: {}]
  %s9 = sld [smem:[#allocation0]]
  $region70: #{htaggnet_forward.1} parent=0
    _
  %s11 = ssub.s32 1, %s9
  %s12 = scalar_select 0, %s11, %s9
  $region1: #{htaggnet_forward.1} parent=0
    #allocation3 [shape = 'u8[6144]{0}', space=vmem, size = 0x1800, scoped, tag = 'input window, operand 1, single buffered']
    #allocation4 [shape = 's32[1]{0}', space=sflag, size = 0x4, scoped, tag = 'scoped memory for htaggnet_forward.1']
    #allocation5 [shape = 's32[1]{0}', space=sflag, size = 0x4, scoped, tag = 'scoped memory for htaggnet_forward.1']
    #allocation6 [shape = 'u8[512]{0}', space=vmem, size = 0x400, scoped, tag = 'input window, operand 2, single buffered']
    #allocation7 [shape = 's32[1]{0}', space=sflag, size = 0x4, scoped, tag = 'scoped memory for htaggnet_forward.1']
    #allocation8 [shape = 'u8[1310720]{0}', space=vmem, size = 0x140000, scoped, tag = 'input window, operand 3, single buffered']
    #allocation9 [shape = 'u8[4096]{0}', space=vmem, size = 0x1000, scoped, tag = 'input window, operand 4, single buffered']
    #allocation10 [shape = 's32[1]{0}', space=sflag, size = 0x4, scoped, tag = 'scoped memory for htaggnet_forward.1']
    #allocation11 [shape = 'u8[4096]{0}', space=vmem, size = 0x1000, scoped, tag = 'input window, operand 5, single buffered']
    #allocation12 [shape = 'u8[2097152]{0}', space=vmem, size = 0x200000, scoped, tag = 'input window, operand 6, single buffered']
    #allocation13 [shape = 's32[1]{0}', space=sflag, size = 0x4, scoped, tag = 'scoped memory for htaggnet_forward.1']
    #allocation14 [shape = 'u8[512]{0}', space=vmem, size = 0x400, scoped, tag = 'input window, operand 7, single buffered']
    #allocation15 [shape = 'u8[1024]{0}', space=vmem, size = 0x400, scoped, tag = 'output window, operand 0, single buffered']
    %13 = vsyncpa [#allocation4], 0
    %14 = vsyncpa [#allocation7], 0
    %15 = vsyncpa [#allocation10], 0
    %16 = vsyncpa [#allocation13], 0
    %17 = vsyncpa [#allocation5], 0
    // Predicated region
    $region2: #{htaggnet_forward.1} parent=1 // pred_check
      _
    $region3: #{htaggnet_forward.1} parent=1 // pred_check_branch
      %19 = sbr.rel (0) target = $region5
    $region4: #{htaggnet_forward.1} parent=1 // pred_region
      _
    $region5: #{htaggnet_forward.1} parent=1 // pred_fallthru
      _
    // Predicated region
    $region6: #{htaggnet_forward.1} parent=1 // pred_check
      _
    $region7: #{htaggnet_forward.1} parent=1 // pred_check_branch
      %21 = sbr.rel (0) target = $region9
    $region8: #{htaggnet_forward.1} parent=1 // pred_region
      %23 = vsyncadd [#allocation4], 0
      %s24 = sshll.u32 %s1, 4
      %s25 = int_to_ptr.hbm [resolvable:$true] %s24
      %s26 = sshll.u32 [#allocation3], 4
      %s27 = int_to_ptr.vmem [resolvable:$true] %s26
      %32 = dma.hbm_to_vmem [thread:$0]  %s25, 192, %s27, [#allocation4], 64, 64, 4
    $region9: #{htaggnet_forward.1} parent=1 // pred_fallthru
      _
    // Predicated region
    $region10: #{htaggnet_forward.1} parent=1 // pred_check
      _
    $region11: #{htaggnet_forward.1} parent=1 // pred_check_branch
      %34 = sbr.rel (0) target = $region13
    $region12: #{htaggnet_forward.1} parent=1 // pred_region
      %36 = vsyncadd [#allocation7], 0
      %s38 = sshll.u32 %s2, 4
      %s39 = int_to_ptr.hbm [resolvable:$true] %s38
      %s40 = sshll.u32 [#allocation6], 4
      %s41 = int_to_ptr.vmem [resolvable:$true] %s40
      %43 = dma.hbm_to_vmem [thread:$0]  %s39, 16, %s41, [#allocation7]
    $region13: #{htaggnet_forward.1} parent=1 // pred_fallthru
      _
    // Predicated region
    $region14: #{htaggnet_forward.1} parent=1 // pred_check
      _
    $region15: #{htaggnet_forward.1} parent=1 // pred_check_branch
      %45 = sbr.rel (0) target = $region17
    $region16: #{htaggnet_forward.1} parent=1 // pred_region
      %47 = vsyncadd [#allocation7], 0
      %s48 = sshll.u32 %s3, 4
      %s49 = int_to_ptr.hbm [resolvable:$true] %s48
      %s50 = sshll.u32 [#allocation8], 4
      %s51 = int_to_ptr.vmem [resolvable:$true] %s50
      %56 = dma.hbm_to_vmem [thread:$0]  %s49, 40960, %s51, [#allocation7], 64, 64, 4
    $region17: #{htaggnet_forward.1} parent=1 // pred_fallthru
      _
    // Predicated region
    $region18: #{htaggnet_forward.1} parent=1 // pred_check
      _
    $region19: #{htaggnet_forward.1} parent=1 // pred_check_branch
      %58 = sbr.rel (0) target = $region21
    $region20: #{htaggnet_forward.1} parent=1 // pred_region
      %60 = vsyncadd [#allocation10], 0
      %s61 = sshll.u32 %s4, 4
      %s62 = int_to_ptr.hbm [resolvable:$true] %s61
      %s63 = sshll.u32 [#allocation9], 4
      %s64 = int_to_ptr.vmem [resolvable:$true] %s63
      %69 = dma.hbm_to_vmem [thread:$0]  %s62, 128, %s64, [#allocation10], 16, 16, 1
    $region21: #{htaggnet_forward.1} parent=1 // pred_fallthru
      _
    // Predicated region
    $region22: #{htaggnet_forward.1} parent=1 // pred_check
      _
    $region23: #{htaggnet_forward.1} parent=1 // pred_check_branch
      %71 = sbr.rel (0) target = $region25
    $region24: #{htaggnet_forward.1} parent=1 // pred_region
      %73 = vsyncadd [#allocation10], 0
      %s74 = sshll.u32 %s5, 4
      %s75 = int_to_ptr.hbm [resolvable:$true] %s74
      %s76 = sshll.u32 [#allocation11], 4
      %s77 = int_to_ptr.vmem [resolvable:$true] %s76
      %82 = dma.hbm_to_vmem [thread:$0]  %s75, 128, %s77, [#allocation10], 16, 16, 1
    $region25: #{htaggnet_forward.1} parent=1 // pred_fallthru
      _
    // Predicated region
    $region26: #{htaggnet_forward.1} parent=1 // pred_check
      _
    $region27: #{htaggnet_forward.1} parent=1 // pred_check_branch
      %84 = sbr.rel (0) target = $region29
    $region28: #{htaggnet_forward.1} parent=1 // pred_region
      %86 = vsyncadd [#allocation13], 0
      %s87 = sshll.u32 %s6, 4
      %s88 = int_to_ptr.hbm [resolvable:$true] %s87
      %s89 = sshll.u32 [#allocation12], 4
      %s90 = int_to_ptr.vmem [resolvable:$true] %s89
      %95 = dma.hbm_to_vmem [thread:$0]  %s88, 65536, %s90, [#allocation13], 64, 64, 4
    $region29: #{htaggnet_forward.1} parent=1 // pred_fallthru
      _
    // Predicated region
    $region30: #{htaggnet_forward.1} parent=1 // pred_check
      _
    $region31: #{htaggnet_forward.1} parent=1 // pred_check_branch
      %97 = sbr.rel (0) target = $region33
    $region32: #{htaggnet_forward.1} parent=1 // pred_region
      %99 = vsyncadd [#allocation13], 0
      %s101 = sshll.u32 %s7, 4
      %s102 = int_to_ptr.hbm [resolvable:$true] %s101
      %s103 = sshll.u32 [#allocation14], 4
      %s104 = int_to_ptr.vmem [resolvable:$true] %s103
      %106 = dma.hbm_to_vmem [thread:$0]  %s102, 16, %s104, [#allocation13]
    $region33: #{htaggnet_forward.1} parent=1 // pred_fallthru
      _
    // Predicated region
    $region34: #{htaggnet_forward.1} parent=1 // pred_check
      _
    $region35: #{htaggnet_forward.1} parent=1 // pred_check_branch
      %108 = sbr.rel (0) target = $region37
    $region36: #{htaggnet_forward.1} parent=1 // pred_region
      %110 = dma.done [#allocation4], 192
    $region37: #{htaggnet_forward.1} parent=1 // pred_fallthru
      _
    // Predicated region
    $region38: #{htaggnet_forward.1} parent=1 // pred_check
      _
    $region39: #{htaggnet_forward.1} parent=1 // pred_check_branch
      %112 = sbr.rel (0) target = $region41
    $region40: #{htaggnet_forward.1} parent=1 // pred_region
      %114 = dma.done [#allocation7], 16
    $region41: #{htaggnet_forward.1} parent=1 // pred_fallthru
      _
    // Predicated region
    $region42: #{htaggnet_forward.1} parent=1 // pred_check
      _
    $region43: #{htaggnet_forward.1} parent=1 // pred_check_branch
      %116 = sbr.rel (0) target = $region45
    $region44: #{htaggnet_forward.1} parent=1 // pred_region
      %118 = dma.done [#allocation7], 40960
    $region45: #{htaggnet_forward.1} parent=1 // pred_fallthru
      _
    // Predicated region
    $region46: #{htaggnet_forward.1} parent=1 // pred_check
      _
    $region47: #{htaggnet_forward.1} parent=1 // pred_check_branch
      %120 = sbr.rel (0) target = $region49
    $region48: #{htaggnet_forward.1} parent=1 // pred_region
      %122 = dma.done [#allocation10], 128
    $region49: #{htaggnet_forward.1} parent=1 // pred_fallthru
      _
    // Predicated region
    $region50: #{htaggnet_forward.1} parent=1 // pred_check
      _
    $region51: #{htaggnet_forward.1} parent=1 // pred_check_branch
      %124 = sbr.rel (0) target = $region53
    $region52: #{htaggnet_forward.1} parent=1 // pred_region
      %126 = dma.done [#allocation10], 128
    $region53: #{htaggnet_forward.1} parent=1 // pred_fallthru
      _
    // Predicated region
    $region54: #{htaggnet_forward.1} parent=1 // pred_check
      _
    $region55: #{htaggnet_forward.1} parent=1 // pred_check_branch
      %128 = sbr.rel (0) target = $region57
    $region56: #{htaggnet_forward.1} parent=1 // pred_region
      %130 = dma.done [#allocation13], 65536
    $region57: #{htaggnet_forward.1} parent=1 // pred_fallthru
      _
    // Predicated region
    $region58: #{htaggnet_forward.1} parent=1 // pred_check
      _
    $region59: #{htaggnet_forward.1} parent=1 // pred_check_branch
      %132 = sbr.rel (0) target = $region61
    $region60: #{htaggnet_forward.1} parent=1 // pred_region
      %134 = dma.done [#allocation13], 16
    $region61: #{htaggnet_forward.1} parent=1 // pred_fallthru
      _
    %v136 = vld [vmem:[%s0] sm:$0xff]
    %v137 = vld [vmem:[%s0 + $0x8] sm:$0xff]
    %v138 = vld [vmem:[%s0 + $0x10] sm:$0xff]
    %v139 = vld [vmem:[%s0 + $0x18] sm:$0xff]
    %v140 = vpack.c.bf16 %v137, %v136
    %v141 = vpack.c.bf16 %v139, %v138
    %v142 = vld [vmem:[#allocation3] sm:$0xf]
    %v143 = vld [vmem:[#allocation3 + $0x4] sm:$0xf]
    %v144 = vld [vmem:[#allocation3 + $0x8] sm:$0x3]
    %v145 = vld [vmem:[#allocation6] sm:$0x1]
    %v147 = vperm.slane %v145, 0
    %v152 = vunpack.c.l.b16 %v142
    %v153 = vunpack.c.l.b16 %v143
    %v154 = vunpack.c.l.b16 %v144
    %v155 = vpack.c.b16 %v153, %v152
    %v156 = vpack.c.b16 %v154, %v154
    %vm158 = vcmask 162816
    %v160 = vsel %vm158, %v140, 0
    %v163 = vsel %vm158, %v141, 0
    %vm165 = vcmask 1041408
    %v167 = vsel %vm165, %v156, 0
    %169 = vmatpush.bf16.msra.mxu0 0
    %170 = vmatpush.bf16.msra.mxu0 0
    %171 = vmatpush.bf16.msra.mxu0 0
    %172 = vmatpush.bf16.msra.mxu0 0
    %173 = vmatpush.bf16.msra.mxu0 0
    %174 = vmatpush.bf16.msra.mxu0 0
    %175 = vmatpush.bf16.msra.mxu0 %v167
    %176 = vmatpush.bf16.msra.mxu0 %v155
    %177 = vmatmul.bf16.gmra.mxu0 %v160
    %v178 = vpop.f32.mrf.mxu0
    %v179 = vadd.f32 %v147, %v178
    %v180 = vpop.f32.mrf.mxu0
    %v181 = vadd.f32 %v147, %v180
    %182 = vmatmul.bf16.gmra.mxu0 %v163
    %v183 = vpop.f32.mrf.mxu0
    %v184 = vadd.f32 %v147, %v183
    %v185 = vpop.f32.mrf.mxu0
    %v186 = vadd.f32 %v147, %v185
    %187 = vdwg.mxu0
    %vm192 = vcmask 1040384
    %v193 = vrot.slane %v179, 7
    %v194 = vrot.slane %v181, 7
    %v195 = vsel %vm192, %v193, %v194
    %v196 = vrot.slane %v184, 7
    %v197 = vrot.slane %v186, 7
    %v198 = vsel %vm192, %v196, %v197
    %v205 = vsel %vm192, -1e+30, %v193
    %v206 = vsel %vm192, -1e+30, %v196
    %v207 = vsel %vm192, %v194, -1e+30
    %v208 = vsel %vm192, %v197, -1e+30
    %v209 = vsel %vm165, %v207, -1e+30
    %v210 = vsel %vm165, %v208, -1e+30
    %vm215 = vcmask 1046528
    %v216 = vrot.slane %v205, 1
    %v217 = vrot.slane %v195, 1
    %v218 = vsel %vm215, %v216, %v217
    %v219 = vrot.slane %v209, 1
    %v220 = vsel %vm215, %v217, %v219
    %v221 = vrot.slane %v206, 1
    %v222 = vrot.slane %v198, 1
    %v223 = vsel %vm215, %v221, %v222
    %v224 = vrot.slane %v210, 1
    %v225 = vsel %vm215, %v222, %v224
    %v230 = vmax.f32 %v205, %v218
    %v231 = vmax.f32 %v195, %v220
    %v232 = vmax.f32 %v206, %v223
    %v233 = vmax.f32 %v198, %v225
    %vm234 = vcmask 1045504
    %v235 = vrot.slane %v205, 2
    %v236 = vrot.slane %v195, 2
    %v237 = vsel %vm234, %v235, %v236
    %v238 = vrot.slane %v209, 2
    %v239 = vsel %vm234, %v236, %v238
    %v240 = vrot.slane %v206, 2
    %v241 = vrot.slane %v198, 2
    %v242 = vsel %vm234, %v240, %v241
    %v243 = vrot.slane %v210, 2
    %v244 = vsel %vm234, %v241, %v243
    %v249 = vmax.f32 %v230, %v237
    %v250 = vmax.f32 %v231, %v239
    %v251 = vmax.f32 %v232, %v242
    %v252 = vmax.f32 %v233, %v244
    %253 = vst [vmem:[#allocation2] sm:$0x3] 0.0
    %254 = vst [vmem:[#allocation2 + $0x10] sm:$0x3] 0.0
    %255 = vst [vmem:[#allocation2 + $0xa] sm:$0x3] 0.0
    %256 = vst [vmem:[#allocation2 + $0x1a] sm:$0x3] 0.0
    %257 = vst [vmem:[#allocation2 + $0x2] sm:$0x1] %v249
    %258 = vst [vmem:[#allocation2 + $0x12] sm:$0x1] %v251
    %259 = vst [vmem:[#allocation2 + $0x1] sm:$0x4] %v249
    %260 = vst [vmem:[#allocation2 + $0x11] sm:$0x4] %v251
    %261 = vst [vmem:[#allocation2] sm:$0x10] %v249
    %262 = vst [vmem:[#allocation2 + $0x10] sm:$0x10] %v251
    %263 = vst [vmem:[#allocation2 - $0x1] sm:$0x40] %v249
    %264 = vst [vmem:[#allocation2 + $0xf] sm:$0x40] %v251
    %265 = vst [vmem:[#allocation2 + $0x6] sm:$0x1] %v250
    %266 = vst [vmem:[#allocation2 + $0x16] sm:$0x1] %v252
    %267 = vst [vmem:[#allocation2 + $0x5] sm:$0x4] %v250
    %268 = vst [vmem:[#allocation2 + $0x15] sm:$0x4] %v252
    %269 = vst [vmem:[#allocation2 + $0x4] sm:$0x10] %v250
    %270 = vst [vmem:[#allocation2 + $0x14] sm:$0x10] %v252
    %271 = vst [vmem:[#allocation2 + $0x3] sm:$0x40] %v250
    %272 = vst [vmem:[#allocation2 + $0x13] sm:$0x40] %v252
    %v273 = vld [vmem:[#allocation2] sm:$0xff]
    %v274 = vld [vmem:[#allocation2 + $0x8] sm:$0xf]
    %v275 = vld [vmem:[#allocation2 + $0x10] sm:$0xff]
    %v276 = vld [vmem:[#allocation2 + $0x18] sm:$0xf]
    %v277 = vpack.c.bf16 %v275, %v273
    %v278 = vld [vmem:[#allocation8] sm:$0xf]
    %v279 = vld [vmem:[#allocation8 + $0x4] sm:$0xf]
    %v280 = vld [vmem:[#allocation8 + $0x8] sm:$0xf]
    %v281 = vld [vmem:[#allocation8 + $0xc] sm:$0xf]
    %v282 = vld [vmem:[#allocation8 + $0x10] sm:$0xf]
    %v283 = vld [vmem:[#allocation8 + $0x14] sm:$0xf]
    %v284 = vld [vmem:[#allocation8 + $0x18] sm:$0xf]
    %v285 = vld [vmem:[#allocation8 + $0x1c] sm:$0xf]
    %v286 = vld [vmem:[#allocation8 + $0x20] sm:$0xf]
    %v287 = vld [vmem:[#allocation8 + $0x24] sm:$0xf]
    %v288 = vld [vmem:[#allocation8 + $0x28] sm:$0xf]
    %v289 = vld [vmem:[#allocation8 + $0x2c] sm:$0xf]
    %v290 = vld [vmem:[#allocation8 + $0x30] sm:$0xf]
    %v291 = vld [vmem:[#allocation8 + $0x34] sm:$0xf]
    %v292 = vld [vmem:[#allocation8 + $0x38] sm:$0xf]
    %v293 = vld [vmem:[#allocation8 + $0x3c] sm:$0xf]
    %v298 = vrot.slane %v273, 1
    %v299 = vrot.slane %v274, 1
    %v300 = vsel %vm215, %v298, %v299
    %v301 = vrot.slane %v275, 1
    %v302 = vrot.slane %v276, 1
    %v303 = vsel %vm215, %v301, %v302
    %v306 = vpack.c.bf16 %v303, %v300
    %s307 = scalar_lea.vmem [#allocation8], 64
    %v308 = vld [vmem:[%s307] sm:$0xf]
    %v309 = vld [vmem:[%s307 + $0x4] sm:$0xf]
    %v310 = vld [vmem:[%s307 + $0x8] sm:$0xf]
    %v311 = vld [vmem:[%s307 + $0xc] sm:$0xf]
    %v312 = vld [vmem:[%s307 + $0x10] sm:$0xf]
    %v313 = vld [vmem:[%s307 + $0x14] sm:$0xf]
    %v314 = vld [vmem:[%s307 + $0x18] sm:$0xf]
    %v315 = vld [vmem:[%s307 + $0x1c] sm:$0xf]
    %v316 = vld [vmem:[%s307 + $0x20] sm:$0xf]
    %v317 = vld [vmem:[%s307 + $0x24] sm:$0xf]
    %v318 = vld [vmem:[%s307 + $0x28] sm:$0xf]
    %v319 = vld [vmem:[%s307 + $0x2c] sm:$0xf]
    %v320 = vld [vmem:[%s307 + $0x30] sm:$0xf]
    %v321 = vld [vmem:[%s307 + $0x34] sm:$0xf]
    %v322 = vld [vmem:[%s307 + $0x38] sm:$0xf]
    %v323 = vld [vmem:[%s307 + $0x3c] sm:$0xf]
    %v340 = vunpack.c.l.b16 %v308
    %v341 = vunpack.c.l.b16 %v309
    %v342 = vunpack.c.l.b16 %v310
    %v343 = vunpack.c.l.b16 %v311
    %v344 = vunpack.c.l.b16 %v312
    %v345 = vunpack.c.l.b16 %v313
    %v346 = vunpack.c.l.b16 %v314
    %v347 = vunpack.c.l.b16 %v315
    %v348 = vunpack.c.l.b16 %v316
    %v349 = vunpack.c.l.b16 %v317
    %v350 = vunpack.c.l.b16 %v318
    %v351 = vunpack.c.l.b16 %v319
    %v352 = vunpack.c.l.b16 %v320
    %v353 = vunpack.c.l.b16 %v321
    %v354 = vunpack.c.l.b16 %v322
    %v355 = vunpack.c.l.b16 %v323
    %v356 = vpack.c.b16 %v341, %v340
    %v357 = vpack.c.b16 %v343, %v342
    %v358 = vpack.c.b16 %v345, %v344
    %v359 = vpack.c.b16 %v347, %v346
    %v360 = vpack.c.b16 %v349, %v348
    %v361 = vpack.c.b16 %v351, %v350
    %v362 = vpack.c.b16 %v353, %v352
    %v363 = vpack.c.b16 %v355, %v354
    %372 = vmatpush.bf16.msra.mxu0 %v363
    %373 = vmatpush.bf16.msra.mxu0 %v362
    %374 = vmatpush.bf16.msra.mxu0 %v361
    %375 = vmatpush.bf16.msra.mxu0 %v360
    %376 = vmatpush.bf16.msra.mxu0 %v359
    %377 = vmatpush.bf16.msra.mxu0 %v358
    %378 = vmatpush.bf16.msra.mxu0 %v357
    %379 = vmatpush.bf16.msra.mxu0 %v356
    %380 = vmatmul.bf16.gmra.mxu0 %v306
    %v381 = vpop.f32.mrf.mxu0
    %v382 = vadd.f32 0.0, %v381
    %v383 = vpop.f32.mrf.mxu0
    %v384 = vadd.f32 0.0, %v383
    %385 = vdwg.mxu0
    %v402 = vunpack.c.l.b16 %v278
    %v403 = vunpack.c.l.b16 %v279
    %v404 = vunpack.c.l.b16 %v280
    %v405 = vunpack.c.l.b16 %v281
    %v406 = vunpack.c.l.b16 %v282
    %v407 = vunpack.c.l.b16 %v283
    %v408 = vunpack.c.l.b16 %v284
    %v409 = vunpack.c.l.b16 %v285
    %v410 = vunpack.c.l.b16 %v286
    %v411 = vunpack.c.l.b16 %v287
    %v412 = vunpack.c.l.b16 %v288
    %v413 = vunpack.c.l.b16 %v289
    %v414 = vunpack.c.l.b16 %v290
    %v415 = vunpack.c.l.b16 %v291
    %v416 = vunpack.c.l.b16 %v292
    %v417 = vunpack.c.l.b16 %v293
    %v418 = vpack.c.b16 %v403, %v402
    %v419 = vpack.c.b16 %v405, %v404
    %v420 = vpack.c.b16 %v407, %v406
    %v421 = vpack.c.b16 %v409, %v408
    %v422 = vpack.c.b16 %v411, %v410
    %v423 = vpack.c.b16 %v413, %v412
    %v424 = vpack.c.b16 %v415, %v414
    %v425 = vpack.c.b16 %v417, %v416
    %434 = vmatpush.bf16.msra.mxu0 %v425
    %435 = vmatpush.bf16.msra.mxu0 %v424
    %436 = vmatpush.bf16.msra.mxu0 %v423
    %437 = vmatpush.bf16.msra.mxu0 %v422
    %438 = vmatpush.bf16.msra.mxu0 %v421
    %439 = vmatpush.bf16.msra.mxu0 %v420
    %440 = vmatpush.bf16.msra.mxu0 %v419
    %441 = vmatpush.bf16.msra.mxu0 %v418
    %442 = vmatmul.bf16.gmra.mxu0 %v277
    %v443 = vpop.f32.mrf.mxu0
    %v444 = vadd.f32 %v382, %v443
    %v445 = vpop.f32.mrf.mxu0
    %v446 = vadd.f32 %v384, %v445
    %447 = vdwg.mxu0
    %v448 = vrot.slane %v273, 2
    %v449 = vrot.slane %v274, 2
    %v450 = vsel %vm234, %v448, %v449
    %v451 = vrot.slane %v275, 2
    %v452 = vrot.slane %v276, 2
    %v453 = vsel %vm234, %v451, %v452
    %v456 = vpack.c.bf16 %v453, %v450
    %s457 = scalar_lea.vmem [#allocation8], 128
    %v458 = vld [vmem:[%s457] sm:$0xf]
    %v459 = vld [vmem:[%s457 + $0x4] sm:$0xf]
    %v460 = vld [vmem:[%s457 + $0x8] sm:$0xf]
    %v461 = vld [vmem:[%s457 + $0xc] sm:$0xf]
    %v462 = vld [vmem:[%s457 + $0x10] sm:$0xf]
    %v463 = vld [vmem:[%s457 + $0x14] sm:$0xf]
    %v464 = vld [vmem:[%s457 + $0x18] sm:$0xf]
    %v465 = vld [vmem:[%s457 + $0x1c] sm:$0xf]
    %v466 = vld [vmem:[%s457 + $0x20] sm:$0xf]
    %v467 = vld [vmem:[%s457 + $0x24] sm:$0xf]
    %v468 = vld [vmem:[%s457 + $0x28] sm:$0xf]
    %v469 = vld [vmem:[%s457 + $0x2c] sm:$0xf]
    %v470 = vld [vmem:[%s457 + $0x30] sm:$0xf]
    %v471 = vld [vmem:[%s457 + $0x34] sm:$0xf]
    %v472 = vld [vmem:[%s457 + $0x38] sm:$0xf]
    %v473 = vld [vmem:[%s457 + $0x3c] sm:$0xf]
    %v490 = vunpack.c.l.b16 %v458
    %v491 = vunpack.c.l.b16 %v459
    %v492 = vunpack.c.l.b16 %v460
    %v493 = vunpack.c.l.b16 %v461
    %v494 = vunpack.c.l.b16 %v462
    %v495 = vunpack.c.l.b16 %v463
    %v496 = vunpack.c.l.b16 %v464
    %v497 = vunpack.c.l.b16 %v465
    %v498 = vunpack.c.l.b16 %v466
    %v499 = vunpack.c.l.b16 %v467
    %v500 = vunpack.c.l.b16 %v468
    %v501 = vunpack.c.l.b16 %v469
    %v502 = vunpack.c.l.b16 %v470
    %v503 = vunpack.c.l.b16 %v471
    %v504 = vunpack.c.l.b16 %v472
    %v505 = vunpack.c.l.b16 %v473
    %v506 = vpack.c.b16 %v491, %v490
    %v507 = vpack.c.b16 %v493, %v492
    %v508 = vpack.c.b16 %v495, %v494
    %v509 = vpack.c.b16 %v497, %v496
    %v510 = vpack.c.b16 %v499, %v498
    %v511 = vpack.c.b16 %v501, %v500
    %v512 = vpack.c.b16 %v503, %v502
    %v513 = vpack.c.b16 %v505, %v504
    %522 = vmatpush.bf16.msra.mxu0 %v513
    %523 = vmatpush.bf16.msra.mxu0 %v512
    %524 = vmatpush.bf16.msra.mxu0 %v511
    %525 = vmatpush.bf16.msra.mxu0 %v510
    %526 = vmatpush.bf16.msra.mxu0 %v509
    %527 = vmatpush.bf16.msra.mxu0 %v508
    %528 = vmatpush.bf16.msra.mxu0 %v507
    %529 = vmatpush.bf16.msra.mxu0 %v506
    %530 = vmatmul.bf16.gmra.mxu0 %v456
    %v531 = vpop.f32.mrf.mxu0
    %v532 = vadd.f32 0.0, %v531
    %v533 = vpop.f32.mrf.mxu0
    %v534 = vadd.f32 0.0, %v533
    %535 = vdwg.mxu0
    %v536 = vadd.f32 %v444, %v532
    %v537 = vadd.f32 %v446, %v534
    %vm538 = vcmask 1044480
    %v539 = vrot.slane %v273, 3
    %v540 = vrot.slane %v274, 3
    %v541 = vsel %vm538, %v539, %v540
    %v542 = vrot.slane %v275, 3
    %v543 = vrot.slane %v276, 3
    %v544 = vsel %vm538, %v542, %v543
    %v547 = vpack.c.bf16 %v544, %v541
    %s548 = scalar_lea.vmem [#allocation8], 192
    %v549 = vld [vmem:[%s548] sm:$0xf]
    %v550 = vld [vmem:[%s548 + $0x4] sm:$0xf]
    %v551 = vld [vmem:[%s548 + $0x8] sm:$0xf]
    %v552 = vld [vmem:[%s548 + $0xc] sm:$0xf]
    %v553 = vld [vmem:[%s548 + $0x10] sm:$0xf]
    %v554 = vld [vmem:[%s548 + $0x14] sm:$0xf]
    %v555 = vld [vmem:[%s548 + $0x18] sm:$0xf]
    %v556 = vld [vmem:[%s548 + $0x1c] sm:$0xf]
    %v557 = vld [vmem:[%s548 + $0x20] sm:$0xf]
    %v558 = vld [vmem:[%s548 + $0x24] sm:$0xf]
    %v559 = vld [vmem:[%s548 + $0x28] sm:$0xf]
    %v560 = vld [vmem:[%s548 + $0x2c] sm:$0xf]
    %v561 = vld [vmem:[%s548 + $0x30] sm:$0xf]
    %v562 = vld [vmem:[%s548 + $0x34] sm:$0xf]
    %v563 = vld [vmem:[%s548 + $0x38] sm:$0xf]
    %v564 = vld [vmem:[%s548 + $0x3c] sm:$0xf]
    %v581 = vunpack.c.l.b16 %v549
    %v582 = vunpack.c.l.b16 %v550
    %v583 = vunpack.c.l.b16 %v551
    %v584 = vunpack.c.l.b16 %v552
    %v585 = vunpack.c.l.b16 %v553
    %v586 = vunpack.c.l.b16 %v554
    %v587 = vunpack.c.l.b16 %v555
    %v588 = vunpack.c.l.b16 %v556
    %v589 = vunpack.c.l.b16 %v557
    %v590 = vunpack.c.l.b16 %v558
    %v591 = vunpack.c.l.b16 %v559
    %v592 = vunpack.c.l.b16 %v560
    %v593 = vunpack.c.l.b16 %v561
    %v594 = vunpack.c.l.b16 %v562
    %v595 = vunpack.c.l.b16 %v563
    %v596 = vunpack.c.l.b16 %v564
    %v597 = vpack.c.b16 %v582, %v581
    %v598 = vpack.c.b16 %v584, %v583
    %v599 = vpack.c.b16 %v586, %v585
    %v600 = vpack.c.b16 %v588, %v587
    %v601 = vpack.c.b16 %v590, %v589
    %v602 = vpack.c.b16 %v592, %v591
    %v603 = vpack.c.b16 %v594, %v593
    %v604 = vpack.c.b16 %v596, %v595
    %613 = vmatpush.bf16.msra.mxu0 %v604
    %614 = vmatpush.bf16.msra.mxu0 %v603
    %615 = vmatpush.bf16.msra.mxu0 %v602
    %616 = vmatpush.bf16.msra.mxu0 %v601
    %617 = vmatpush.bf16.msra.mxu0 %v600
    %618 = vmatpush.bf16.msra.mxu0 %v599
    %619 = vmatpush.bf16.msra.mxu0 %v598
    %620 = vmatpush.bf16.msra.mxu0 %v597
    %621 = vmatmul.bf16.gmra.mxu0 %v547
    %v622 = vpop.f32.mrf.mxu0
    %v623 = vadd.f32 0.0, %v622
    %v624 = vpop.f32.mrf.mxu0
    %v625 = vadd.f32 0.0, %v624
    %626 = vdwg.mxu0
    %v627 = vadd.f32 %v536, %v623
    %v628 = vadd.f32 %v537, %v625
    %vm629 = vcmask 1043456
    %v630 = vrot.slane %v273, 4
    %v631 = vrot.slane %v274, 4
    %v632 = vsel %vm629, %v630, %v631
    %v633 = vrot.slane %v275, 4
    %v634 = vrot.slane %v276, 4
    %v635 = vsel %vm629, %v633, %v634
    %v638 = vpack.c.bf16 %v635, %v632
    %s639 = scalar_lea.vmem [#allocation8], 256
    %v640 = vld [vmem:[%s639] sm:$0xf]
    %v641 = vld [vmem:[%s639 + $0x4] sm:$0xf]
    %v642 = vld [vmem:[%s639 + $0x8] sm:$0xf]
    %v643 = vld [vmem:[%s639 + $0xc] sm:$0xf]
    %v644 = vld [vmem:[%s639 + $0x10] sm:$0xf]
    %v645 = vld [vmem:[%s639 + $0x14] sm:$0xf]
    %v646 = vld [vmem:[%s639 + $0x18] sm:$0xf]
    %v647 = vld [vmem:[%s639 + $0x1c] sm:$0xf]
    %v648 = vld [vmem:[%s639 + $0x20] sm:$0xf]
    %v649 = vld [vmem:[%s639 + $0x24] sm:$0xf]
    %v650 = vld [vmem:[%s639 + $0x28] sm:$0xf]
    %v651 = vld [vmem:[%s639 + $0x2c] sm:$0xf]
    %v652 = vld [vmem:[%s639 + $0x30] sm:$0xf]
    %v653 = vld [vmem:[%s639 + $0x34] sm:$0xf]
    %v654 = vld [vmem:[%s639 + $0x38] sm:$0xf]
    %v655 = vld [vmem:[%s639 + $0x3c] sm:$0xf]
    %v672 = vunpack.c.l.b16 %v640
    %v673 = vunpack.c.l.b16 %v641
    %v674 = vunpack.c.l.b16 %v642
    %v675 = vunpack.c.l.b16 %v643
    %v676 = vunpack.c.l.b16 %v644
    %v677 = vunpack.c.l.b16 %v645
    %v678 = vunpack.c.l.b16 %v646
    %v679 = vunpack.c.l.b16 %v647
    %v680 = vunpack.c.l.b16 %v648
    %v681 = vunpack.c.l.b16 %v649
    %v682 = vunpack.c.l.b16 %v650
    %v683 = vunpack.c.l.b16 %v651
    %v684 = vunpack.c.l.b16 %v652
    %v685 = vunpack.c.l.b16 %v653
    %v686 = vunpack.c.l.b16 %v654
    %v687 = vunpack.c.l.b16 %v655
    %v688 = vpack.c.b16 %v673, %v672
    %v689 = vpack.c.b16 %v675, %v674
    %v690 = vpack.c.b16 %v677, %v676
    %v691 = vpack.c.b16 %v679, %v678
    %v692 = vpack.c.b16 %v681, %v680
    %v693 = vpack.c.b16 %v683, %v682
    %v694 = vpack.c.b16 %v685, %v684
    %v695 = vpack.c.b16 %v687, %v686
    %704 = vmatpush.bf16.msra.mxu0 %v695
    %705 = vmatpush.bf16.msra.mxu0 %v694
    %706 = vmatpush.bf16.msra.mxu0 %v693
    %707 = vmatpush.bf16.msra.mxu0 %v692
    %708 = vmatpush.bf16.msra.mxu0 %v691
    %709 = vmatpush.bf16.msra.mxu0 %v690
    %710 = vmatpush.bf16.msra.mxu0 %v689
    %711 = vmatpush.bf16.msra.mxu0 %v688
    %712 = vmatmul.bf16.gmra.mxu0 %v638
    %v713 = vpop.f32.mrf.mxu0
    %v714 = vadd.f32 0.0, %v713
    %v715 = vpop.f32.mrf.mxu0
    %v716 = vadd.f32 0.0, %v715
    %717 = vdwg.mxu0
    %v718 = vadd.f32 %v627, %v714
    %v719 = vadd.f32 %v628, %v716
    %v720 = vadd.f32 %v718, %v719
    %v721 = vrot.slane %v720, 4
    %v722 = vadd.f32 %v720, %v721
    %v723 = vrot.slane %v722, 2
    %v724 = vadd.f32 %v722, %v723
    %v725 = vrot.slane %v724, 1
    %v726 = vadd.f32 %v724, %v725
    %v727 = vrcp.pop 16.0
    %v728 = vmul.f32 16.0, %v727
    %v729 = vsub.f32 1.0, %v728
    %v730 = vmul.f32 %v727, %v729
    %v731 = vadd.f32 %v727, %v730
    %vm732 = vweird.f32 %v727
    %v733 = vsel %vm732, %v727, %v731
    %v734 = vmul.f32 %v726, %v733
    %v735 = vsub.f32 %v718, %v734
    %v736 = vsub.f32 %v719, %v734
    %v737 = vmul.f32 %v735, %v735
    %v738 = vmul.f32 %v736, %v736
    %v739 = vadd.f32 %v737, %v738
    %v740 = vrot.slane %v739, 4
    %v741 = vadd.f32 %v739, %v740
    %v742 = vrot.slane %v741, 2
    %v743 = vadd.f32 %v741, %v742
    %v744 = vrot.slane %v743, 1
    %v745 = vadd.f32 %v743, %v744
    %v746 = vmul.f32 %v745, %v733
    %v747 = vadd.f32 %v746, 1e-05
    %v748 = vrsqrt.pop %v747
    %v749 = vmul.f32 %v748, %v747
    %v750 = vmul.f32 %v749, %v748
    %v751 = vmul.f32 0.5, %v750
    %v752 = vsub.f32 1.5, %v751
    %v753 = vmul.f32 %v748, %v752
    %vm754 = vweird.f32 %v747
    %vm755 = vweird.f32 %v748
    %vm756 = vmor %vm754, %vm755
    %v757 = vsel %vm756, %v748, %v753
    %v758 = vmul.f32 %v735, %v757
    %v759 = vmul.f32 %v736, %v757
    %v760 = vld [vmem:[#allocation9] sm:$0x1]
    %v762 = vperm.slane %v760, 0
    %v764 = vmul.f32 %v758, %v762
    %v765 = vmul.f32 %v759, %v762
    %v766 = vld [vmem:[#allocation11] sm:$0x1]
    %v768 = vperm.slane %v766, 0
    %v770 = vadd.f32 %v764, %v768
    %v771 = vadd.f32 %v765, %v768
    %v772 = vmax.f32 %v770, 0.0
    %v773 = vmax.f32 %v771, 0.0
    %774 = vst [vmem:[#allocation2 + $0x2] sm:$0xff] %v772
    %775 = vst [vmem:[#allocation2 + $0x12] sm:$0xff] %v773
    %v776 = vpack.c.bf16 %v772, %v772
    %v777 = vpack.c.bf16 %v773, %v773
    %v778 = vld [vmem:[#allocation12] sm:$0xf]
    %v779 = vld [vmem:[#allocation12 + $0x4] sm:$0xf]
    %v780 = vld [vmem:[#allocation12 + $0x8] sm:$0xf]
    %v781 = vld [vmem:[#allocation12 + $0xc] sm:$0xf]
    %v782 = vld [vmem:[#allocation12 + $0x10] sm:$0xf]
    %v783 = vld [vmem:[#allocation12 + $0x14] sm:$0xf]
    %v784 = vld [vmem:[#allocation12 + $0x18] sm:$0xf]
    %v785 = vld [vmem:[#allocation12 + $0x1c] sm:$0xf]
    %v786 = vld [vmem:[#allocation12 + $0x20] sm:$0xf]
    %v787 = vld [vmem:[#allocation12 + $0x24] sm:$0xf]
    %v788 = vld [vmem:[#allocation12 + $0x28] sm:$0xf]
    %v789 = vld [vmem:[#allocation12 + $0x2c] sm:$0xf]
    %v790 = vld [vmem:[#allocation12 + $0x30] sm:$0xf]
    %v791 = vld [vmem:[#allocation12 + $0x34] sm:$0xf]
    %v792 = vld [vmem:[#allocation12 + $0x38] sm:$0xf]
    %v793 = vld [vmem:[#allocation12 + $0x3c] sm:$0xf]
    %s794 = scalar_lea.vmem [#allocation12], 64
    %v795 = vld [vmem:[%s794] sm:$0xf]
    %v796 = vld [vmem:[%s794 + $0x4] sm:$0xf]
    %v797 = vld [vmem:[%s794 + $0x8] sm:$0xf]
    %v798 = vld [vmem:[%s794 + $0xc] sm:$0xf]
    %v799 = vld [vmem:[%s794 + $0x10] sm:$0xf]
    %v800 = vld [vmem:[%s794 + $0x14] sm:$0xf]
    %v801 = vld [vmem:[%s794 + $0x18] sm:$0xf]
    %v802 = vld [vmem:[%s794 + $0x1c] sm:$0xf]
    %v803 = vld [vmem:[%s794 + $0x20] sm:$0xf]
    %v804 = vld [vmem:[%s794 + $0x24] sm:$0xf]
    %v805 = vld [vmem:[%s794 + $0x28] sm:$0xf]
    %v806 = vld [vmem:[%s794 + $0x2c] sm:$0xf]
    %v807 = vld [vmem:[%s794 + $0x30] sm:$0xf]
    %v808 = vld [vmem:[%s794 + $0x34] sm:$0xf]
    %v809 = vld [vmem:[%s794 + $0x38] sm:$0xf]
    %v810 = vld [vmem:[%s794 + $0x3c] sm:$0xf]
    %v813 = vunpack.c.l.b16 %v776
    %v814 = vunpack.c.l.b16 %v777
    %v815 = vrot.slane %v813, 1
    %vm816 = vcmask 1041409
    %v817 = vsel %vm816, %v814, %v815
    %v818 = vpack.c.b16 %v817, %v817
    %v836 = vunpack.c.l.b16 %v795
    %v837 = vunpack.c.l.b16 %v796
    %v838 = vunpack.c.l.b16 %v797
    %v839 = vunpack.c.l.b16 %v798
    %v840 = vunpack.c.l.b16 %v799
    %v841 = vunpack.c.l.b16 %v800
    %v842 = vunpack.c.l.b16 %v801
    %v843 = vunpack.c.l.b16 %v802
    %v844 = vunpack.c.l.b16 %v803
    %v845 = vunpack.c.l.b16 %v804
    %v846 = vunpack.c.l.b16 %v805
    %v847 = vunpack.c.l.b16 %v806
    %v848 = vunpack.c.l.b16 %v807
    %v849 = vunpack.c.l.b16 %v808
    %v850 = vunpack.c.l.b16 %v809
    %v851 = vunpack.c.l.b16 %v810
    %v852 = vpack.c.b16 %v837, %v836
    %v853 = vpack.c.b16 %v839, %v838
    %v854 = vpack.c.b16 %v841, %v840
    %v855 = vpack.c.b16 %v843, %v842
    %v856 = vpack.c.b16 %v845, %v844
    %v857 = vpack.c.b16 %v847, %v846
    %v858 = vpack.c.b16 %v849, %v848
    %v859 = vpack.c.b16 %v851, %v850
    %868 = vmatpush.bf16.msra.mxu0 %v859
    %869 = vmatpush.bf16.msra.mxu0 %v858
    %870 = vmatpush.bf16.msra.mxu0 %v857
    %871 = vmatpush.bf16.msra.mxu0 %v856
    %872 = vmatpush.bf16.msra.mxu0 %v855
    %873 = vmatpush.bf16.msra.mxu0 %v854
    %874 = vmatpush.bf16.msra.mxu0 %v853
    %875 = vmatpush.bf16.msra.mxu0 %v852
    %876 = vmatmul.bf16.gmra.mxu0 %v818
    %v877 = vpop.f32.mrf.mxu0
    %v878 = vadd.f32 0.0, %v877
    %v879 = vpop.f32.mrf.mxu0
    %880 = vdwg.mxu0
    %v881 = vrot.slane %v814, 7
    %v882 = vsel %vm816, %v881, %v813
    %v883 = vpack.c.b16 %v882, %v882
    %v901 = vunpack.c.l.b16 %v778
    %v902 = vunpack.c.l.b16 %v779
    %v903 = vunpack.c.l.b16 %v780
    %v904 = vunpack.c.l.b16 %v781
    %v905 = vunpack.c.l.b16 %v782
    %v906 = vunpack.c.l.b16 %v783
    %v907 = vunpack.c.l.b16 %v784
    %v908 = vunpack.c.l.b16 %v785
    %v909 = vunpack.c.l.b16 %v786
    %v910 = vunpack.c.l.b16 %v787
    %v911 = vunpack.c.l.b16 %v788
    %v912 = vunpack.c.l.b16 %v789
    %v913 = vunpack.c.l.b16 %v790
    %v914 = vunpack.c.l.b16 %v791
    %v915 = vunpack.c.l.b16 %v792
    %v916 = vunpack.c.l.b16 %v793
    %v917 = vpack.c.b16 %v902, %v901
    %v918 = vpack.c.b16 %v904, %v903
    %v919 = vpack.c.b16 %v906, %v905
    %v920 = vpack.c.b16 %v908, %v907
    %v921 = vpack.c.b16 %v910, %v909
    %v922 = vpack.c.b16 %v912, %v911
    %v923 = vpack.c.b16 %v914, %v913
    %v924 = vpack.c.b16 %v916, %v915
    %933 = vmatpush.bf16.msra.mxu0 %v924
    %934 = vmatpush.bf16.msra.mxu0 %v923
    %935 = vmatpush.bf16.msra.mxu0 %v922
    %936 = vmatpush.bf16.msra.mxu0 %v921
    %937 = vmatpush.bf16.msra.mxu0 %v920
    %938 = vmatpush.bf16.msra.mxu0 %v919
    %939 = vmatpush.bf16.msra.mxu0 %v918
    %940 = vmatpush.bf16.msra.mxu0 %v917
    %941 = vmatmul.bf16.gmra.mxu0 %v883
    %v942 = vpop.f32.mrf.mxu0
    %v943 = vadd.f32 %v878, %v942
    %v944 = vpop.f32.mrf.mxu0
    %945 = vdwg.mxu0
    %s946 = scalar_lea.vmem [#allocation12], 128
    %v947 = vld [vmem:[%s946] sm:$0xf]
    %v948 = vld [vmem:[%s946 + $0x4] sm:$0xf]
    %v949 = vld [vmem:[%s946 + $0x8] sm:$0xf]
    %v950 = vld [vmem:[%s946 + $0xc] sm:$0xf]
    %v951 = vld [vmem:[%s946 + $0x10] sm:$0xf]
    %v952 = vld [vmem:[%s946 + $0x14] sm:$0xf]
    %v953 = vld [vmem:[%s946 + $0x18] sm:$0xf]
    %v954 = vld [vmem:[%s946 + $0x1c] sm:$0xf]
    %v955 = vld [vmem:[%s946 + $0x20] sm:$0xf]
    %v956 = vld [vmem:[%s946 + $0x24] sm:$0xf]
    %v957 = vld [vmem:[%s946 + $0x28] sm:$0xf]
    %v958 = vld [vmem:[%s946 + $0x2c] sm:$0xf]
    %v959 = vld [vmem:[%s946 + $0x30] sm:$0xf]
    %v960 = vld [vmem:[%s946 + $0x34] sm:$0xf]
    %v961 = vld [vmem:[%s946 + $0x38] sm:$0xf]
    %v962 = vld [vmem:[%s946 + $0x3c] sm:$0xf]
    %v963 = vrot.slane %v813, 2
    %v964 = vrot.slane %v814, 1
    %v965 = vsel %vm816, %v964, %v963
    %v966 = vpack.c.b16 %v965, %v965
    %v984 = vunpack.c.l.b16 %v947
    %v985 = vunpack.c.l.b16 %v948
    %v986 = vunpack.c.l.b16 %v949
    %v987 = vunpack.c.l.b16 %v950
    %v988 = vunpack.c.l.b16 %v951
    %v989 = vunpack.c.l.b16 %v952
    %v990 = vunpack.c.l.b16 %v953
    %v991 = vunpack.c.l.b16 %v954
    %v992 = vunpack.c.l.b16 %v955
    %v993 = vunpack.c.l.b16 %v956
    %v994 = vunpack.c.l.b16 %v957
    %v995 = vunpack.c.l.b16 %v958
    %v996 = vunpack.c.l.b16 %v959
    %v997 = vunpack.c.l.b16 %v960
    %v998 = vunpack.c.l.b16 %v961
    %v999 = vunpack.c.l.b16 %v962
    %v1000 = vpack.c.b16 %v985, %v984
    %v1001 = vpack.c.b16 %v987, %v986
    %v1002 = vpack.c.b16 %v989, %v988
    %v1003 = vpack.c.b16 %v991, %v990
    %v1004 = vpack.c.b16 %v993, %v992
    %v1005 = vpack.c.b16 %v995, %v994
    %v1006 = vpack.c.b16 %v997, %v996
    %v1007 = vpack.c.b16 %v999, %v998
    %1016 = vmatpush.bf16.msra.mxu0 %v1007
    %1017 = vmatpush.bf16.msra.mxu0 %v1006
    %1018 = vmatpush.bf16.msra.mxu0 %v1005
    %1019 = vmatpush.bf16.msra.mxu0 %v1004
    %1020 = vmatpush.bf16.msra.mxu0 %v1003
    %1021 = vmatpush.bf16.msra.mxu0 %v1002
    %1022 = vmatpush.bf16.msra.mxu0 %v1001
    %1023 = vmatpush.bf16.msra.mxu0 %v1000
    %1024 = vmatmul.bf16.gmra.mxu0 %v966
    %v1025 = vpop.f32.mrf.mxu0
    %v1026 = vadd.f32 0.0, %v1025
    %v1027 = vpop.f32.mrf.mxu0
    %1028 = vdwg.mxu0
    %v1029 = vadd.f32 %v943, %v1026
    %s1030 = scalar_lea.vmem [#allocation12], 192
    %v1031 = vld [vmem:[%s1030] sm:$0xf]
    %v1032 = vld [vmem:[%s1030 + $0x4] sm:$0xf]
    %v1033 = vld [vmem:[%s1030 + $0x8] sm:$0xf]
    %v1034 = vld [vmem:[%s1030 + $0xc] sm:$0xf]
    %v1035 = vld [vmem:[%s1030 + $0x10] sm:$0xf]
    %v1036 = vld [vmem:[%s1030 + $0x14] sm:$0xf]
    %v1037 = vld [vmem:[%s1030 + $0x18] sm:$0xf]
    %v1038 = vld [vmem:[%s1030 + $0x1c] sm:$0xf]
    %v1039 = vld [vmem:[%s1030 + $0x20] sm:$0xf]
    %v1040 = vld [vmem:[%s1030 + $0x24] sm:$0xf]
    %v1041 = vld [vmem:[%s1030 + $0x28] sm:$0xf]
    %v1042 = vld [vmem:[%s1030 + $0x2c] sm:$0xf]
    %v1043 = vld [vmem:[%s1030 + $0x30] sm:$0xf]
    %v1044 = vld [vmem:[%s1030 + $0x34] sm:$0xf]
    %v1045 = vld [vmem:[%s1030 + $0x38] sm:$0xf]
    %v1046 = vld [vmem:[%s1030 + $0x3c] sm:$0xf]
    %v1047 = vrot.slane %v813, 3
    %v1048 = vrot.slane %v814, 2
    %v1049 = vsel %vm816, %v1048, %v1047
    %v1050 = vpack.c.b16 %v1049, %v1049
    %v1068 = vunpack.c.l.b16 %v1031
    %v1069 = vunpack.c.l.b16 %v1032
    %v1070 = vunpack.c.l.b16 %v1033
    %v1071 = vunpack.c.l.b16 %v1034
    %v1072 = vunpack.c.l.b16 %v1035
    %v1073 = vunpack.c.l.b16 %v1036
    %v1074 = vunpack.c.l.b16 %v1037
    %v1075 = vunpack.c.l.b16 %v1038
    %v1076 = vunpack.c.l.b16 %v1039
    %v1077 = vunpack.c.l.b16 %v1040
    %v1078 = vunpack.c.l.b16 %v1041
    %v1079 = vunpack.c.l.b16 %v1042
    %v1080 = vunpack.c.l.b16 %v1043
    %v1081 = vunpack.c.l.b16 %v1044
    %v1082 = vunpack.c.l.b16 %v1045
    %v1083 = vunpack.c.l.b16 %v1046
    %v1084 = vpack.c.b16 %v1069, %v1068
    %v1085 = vpack.c.b16 %v1071, %v1070
    %v1086 = vpack.c.b16 %v1073, %v1072
    %v1087 = vpack.c.b16 %v1075, %v1074
    %v1088 = vpack.c.b16 %v1077, %v1076
    %v1089 = vpack.c.b16 %v1079, %v1078
    %v1090 = vpack.c.b16 %v1081, %v1080
    %v1091 = vpack.c.b16 %v1083, %v1082
    %1100 = vmatpush.bf16.msra.mxu0 %v1091
    %1101 = vmatpush.bf16.msra.mxu0 %v1090
    %1102 = vmatpush.bf16.msra.mxu0 %v1089
    %1103 = vmatpush.bf16.msra.mxu0 %v1088
    %1104 = vmatpush.bf16.msra.mxu0 %v1087
    %1105 = vmatpush.bf16.msra.mxu0 %v1086
    %1106 = vmatpush.bf16.msra.mxu0 %v1085
    %1107 = vmatpush.bf16.msra.mxu0 %v1084
    %1108 = vmatmul.bf16.gmra.mxu0 %v1050
    %v1109 = vpop.f32.mrf.mxu0
    %v1110 = vadd.f32 0.0, %v1109
    %v1111 = vpop.f32.mrf.mxu0
    %1112 = vdwg.mxu0
    %v1113 = vadd.f32 %v1029, %v1110
    %s1114 = scalar_lea.vmem [#allocation12], 256
    %v1115 = vld [vmem:[%s1114] sm:$0xf]
    %v1116 = vld [vmem:[%s1114 + $0x4] sm:$0xf]
    %v1117 = vld [vmem:[%s1114 + $0x8] sm:$0xf]
    %v1118 = vld [vmem:[%s1114 + $0xc] sm:$0xf]
    %v1119 = vld [vmem:[%s1114 + $0x10] sm:$0xf]
    %v1120 = vld [vmem:[%s1114 + $0x14] sm:$0xf]
    %v1121 = vld [vmem:[%s1114 + $0x18] sm:$0xf]
    %v1122 = vld [vmem:[%s1114 + $0x1c] sm:$0xf]
    %v1123 = vld [vmem:[%s1114 + $0x20] sm:$0xf]
    %v1124 = vld [vmem:[%s1114 + $0x24] sm:$0xf]
    %v1125 = vld [vmem:[%s1114 + $0x28] sm:$0xf]
    %v1126 = vld [vmem:[%s1114 + $0x2c] sm:$0xf]
    %v1127 = vld [vmem:[%s1114 + $0x30] sm:$0xf]
    %v1128 = vld [vmem:[%s1114 + $0x34] sm:$0xf]
    %v1129 = vld [vmem:[%s1114 + $0x38] sm:$0xf]
    %v1130 = vld [vmem:[%s1114 + $0x3c] sm:$0xf]
    %v1131 = vrot.slane %v813, 4
    %v1132 = vrot.slane %v814, 3
    %v1133 = vsel %vm816, %v1132, %v1131
    %v1134 = vpack.c.b16 %v1133, %v1133
    %v1152 = vunpack.c.l.b16 %v1115
    %v1153 = vunpack.c.l.b16 %v1116
    %v1154 = vunpack.c.l.b16 %v1117
    %v1155 = vunpack.c.l.b16 %v1118
    %v1156 = vunpack.c.l.b16 %v1119
    %v1157 = vunpack.c.l.b16 %v1120
    %v1158 = vunpack.c.l.b16 %v1121
    %v1159 = vunpack.c.l.b16 %v1122
    %v1160 = vunpack.c.l.b16 %v1123
    %v1161 = vunpack.c.l.b16 %v1124
    %v1162 = vunpack.c.l.b16 %v1125
    %v1163 = vunpack.c.l.b16 %v1126
    %v1164 = vunpack.c.l.b16 %v1127
    %v1165 = vunpack.c.l.b16 %v1128
    %v1166 = vunpack.c.l.b16 %v1129
    %v1167 = vunpack.c.l.b16 %v1130
    %v1168 = vpack.c.b16 %v1153, %v1152
    %v1169 = vpack.c.b16 %v1155, %v1154
    %v1170 = vpack.c.b16 %v1157, %v1156
    %v1171 = vpack.c.b16 %v1159, %v1158
    %v1172 = vpack.c.b16 %v1161, %v1160
    %v1173 = vpack.c.b16 %v1163, %v1162
    %v1174 = vpack.c.b16 %v1165, %v1164
    %v1175 = vpack.c.b16 %v1167, %v1166
    %1184 = vmatpush.bf16.msra.mxu0 %v1175
    %1185 = vmatpush.bf16.msra.mxu0 %v1174
    %1186 = vmatpush.bf16.msra.mxu0 %v1173
    %1187 = vmatpush.bf16.msra.mxu0 %v1172
    %1188 = vmatpush.bf16.msra.mxu0 %v1171
    %1189 = vmatpush.bf16.msra.mxu0 %v1170
    %1190 = vmatpush.bf16.msra.mxu0 %v1169
    %1191 = vmatpush.bf16.msra.mxu0 %v1168
    %1192 = vmatmul.bf16.gmra.mxu0 %v1134
    %v1193 = vpop.f32.mrf.mxu0
    %v1194 = vadd.f32 0.0, %v1193
    %v1195 = vpop.f32.mrf.mxu0
    %1196 = vdwg.mxu0
    %v1197 = vadd.f32 %v1113, %v1194
    %s1198 = scalar_lea.vmem [#allocation12], 320
    %v1199 = vld [vmem:[%s1198] sm:$0xf]
    %v1200 = vld [vmem:[%s1198 + $0x4] sm:$0xf]
    %v1201 = vld [vmem:[%s1198 + $0x8] sm:$0xf]
    %v1202 = vld [vmem:[%s1198 + $0xc] sm:$0xf]
    %v1203 = vld [vmem:[%s1198 + $0x10] sm:$0xf]
    %v1204 = vld [vmem:[%s1198 + $0x14] sm:$0xf]
    %v1205 = vld [vmem:[%s1198 + $0x18] sm:$0xf]
    %v1206 = vld [vmem:[%s1198 + $0x1c] sm:$0xf]
    %v1207 = vld [vmem:[%s1198 + $0x20] sm:$0xf]
    %v1208 = vld [vmem:[%s1198 + $0x24] sm:$0xf]
    %v1209 = vld [vmem:[%s1198 + $0x28] sm:$0xf]
    %v1210 = vld [vmem:[%s1198 + $0x2c] sm:$0xf]
    %v1211 = vld [vmem:[%s1198 + $0x30] sm:$0xf]
    %v1212 = vld [vmem:[%s1198 + $0x34] sm:$0xf]
    %v1213 = vld [vmem:[%s1198 + $0x38] sm:$0xf]
    %v1214 = vld [vmem:[%s1198 + $0x3c] sm:$0xf]
    %v1215 = vrot.slane %v813, 5
    %v1216 = vrot.slane %v814, 4
    %v1217 = vsel %vm816, %v1216, %v1215
    %v1218 = vpack.c.b16 %v1217, %v1217
    %v1236 = vunpack.c.l.b16 %v1199
    %v1237 = vunpack.c.l.b16 %v1200
    %v1238 = vunpack.c.l.b16 %v1201
    %v1239 = vunpack.c.l.b16 %v1202
    %v1240 = vunpack.c.l.b16 %v1203
    %v1241 = vunpack.c.l.b16 %v1204
    %v1242 = vunpack.c.l.b16 %v1205
    %v1243 = vunpack.c.l.b16 %v1206
    %v1244 = vunpack.c.l.b16 %v1207
    %v1245 = vunpack.c.l.b16 %v1208
    %v1246 = vunpack.c.l.b16 %v1209
    %v1247 = vunpack.c.l.b16 %v1210
    %v1248 = vunpack.c.l.b16 %v1211
    %v1249 = vunpack.c.l.b16 %v1212
    %v1250 = vunpack.c.l.b16 %v1213
    %v1251 = vunpack.c.l.b16 %v1214
    %v1252 = vpack.c.b16 %v1237, %v1236
    %v1253 = vpack.c.b16 %v1239, %v1238
    %v1254 = vpack.c.b16 %v1241, %v1240
    %v1255 = vpack.c.b16 %v1243, %v1242
    %v1256 = vpack.c.b16 %v1245, %v1244
    %v1257 = vpack.c.b16 %v1247, %v1246
    %v1258 = vpack.c.b16 %v1249, %v1248
    %v1259 = vpack.c.b16 %v1251, %v1250
    %1268 = vmatpush.bf16.msra.mxu0 %v1259
    %1269 = vmatpush.bf16.msra.mxu0 %v1258
    %1270 = vmatpush.bf16.msra.mxu0 %v1257
    %1271 = vmatpush.bf16.msra.mxu0 %v1256
    %1272 = vmatpush.bf16.msra.mxu0 %v1255
    %1273 = vmatpush.bf16.msra.mxu0 %v1254
    %1274 = vmatpush.bf16.msra.mxu0 %v1253
    %1275 = vmatpush.bf16.msra.mxu0 %v1252
    %1276 = vmatmul.bf16.gmra.mxu0 %v1218
    %v1277 = vpop.f32.mrf.mxu0
    %v1278 = vadd.f32 0.0, %v1277
    %v1279 = vpop.f32.mrf.mxu0
    %1280 = vdwg.mxu0
    %v1281 = vadd.f32 %v1197, %v1278
    %s1282 = scalar_lea.vmem [#allocation12], 384
    %v1283 = vld [vmem:[%s1282] sm:$0xf]
    %v1284 = vld [vmem:[%s1282 + $0x4] sm:$0xf]
    %v1285 = vld [vmem:[%s1282 + $0x8] sm:$0xf]
    %v1286 = vld [vmem:[%s1282 + $0xc] sm:$0xf]
    %v1287 = vld [vmem:[%s1282 + $0x10] sm:$0xf]
    %v1288 = vld [vmem:[%s1282 + $0x14] sm:$0xf]
    %v1289 = vld [vmem:[%s1282 + $0x18] sm:$0xf]
    %v1290 = vld [vmem:[%s1282 + $0x1c] sm:$0xf]
    %v1291 = vld [vmem:[%s1282 + $0x20] sm:$0xf]
    %v1292 = vld [vmem:[%s1282 + $0x24] sm:$0xf]
    %v1293 = vld [vmem:[%s1282 + $0x28] sm:$0xf]
    %v1294 = vld [vmem:[%s1282 + $0x2c] sm:$0xf]
    %v1295 = vld [vmem:[%s1282 + $0x30] sm:$0xf]
    %v1296 = vld [vmem:[%s1282 + $0x34] sm:$0xf]
    %v1297 = vld [vmem:[%s1282 + $0x38] sm:$0xf]
    %v1298 = vld [vmem:[%s1282 + $0x3c] sm:$0xf]
    %v1299 = vrot.slane %v813, 6
    %v1300 = vrot.slane %v814, 5
    %v1301 = vsel %vm816, %v1300, %v1299
    %v1302 = vpack.c.b16 %v1301, %v1301
    %v1320 = vunpack.c.l.b16 %v1283
    %v1321 = vunpack.c.l.b16 %v1284
    %v1322 = vunpack.c.l.b16 %v1285
    %v1323 = vunpack.c.l.b16 %v1286
    %v1324 = vunpack.c.l.b16 %v1287
    %v1325 = vunpack.c.l.b16 %v1288
    %v1326 = vunpack.c.l.b16 %v1289
    %v1327 = vunpack.c.l.b16 %v1290
    %v1328 = vunpack.c.l.b16 %v1291
    %v1329 = vunpack.c.l.b16 %v1292
    %v1330 = vunpack.c.l.b16 %v1293
    %v1331 = vunpack.c.l.b16 %v1294
    %v1332 = vunpack.c.l.b16 %v1295
    %v1333 = vunpack.c.l.b16 %v1296
    %v1334 = vunpack.c.l.b16 %v1297
    %v1335 = vunpack.c.l.b16 %v1298
    %v1336 = vpack.c.b16 %v1321, %v1320
    %v1337 = vpack.c.b16 %v1323, %v1322
    %v1338 = vpack.c.b16 %v1325, %v1324
    %v1339 = vpack.c.b16 %v1327, %v1326
    %v1340 = vpack.c.b16 %v1329, %v1328
    %v1341 = vpack.c.b16 %v1331, %v1330
    %v1342 = vpack.c.b16 %v1333, %v1332
    %v1343 = vpack.c.b16 %v1335, %v1334
    %1352 = vmatpush.bf16.msra.mxu0 %v1343
    %1353 = vmatpush.bf16.msra.mxu0 %v1342
    %1354 = vmatpush.bf16.msra.mxu0 %v1341
    %1355 = vmatpush.bf16.msra.mxu0 %v1340
    %1356 = vmatpush.bf16.msra.mxu0 %v1339
    %1357 = vmatpush.bf16.msra.mxu0 %v1338
    %1358 = vmatpush.bf16.msra.mxu0 %v1337
    %1359 = vmatpush.bf16.msra.mxu0 %v1336
    %1360 = vmatmul.bf16.gmra.mxu0 %v1302
    %v1361 = vpop.f32.mrf.mxu0
    %v1362 = vadd.f32 0.0, %v1361
    %v1363 = vpop.f32.mrf.mxu0
    %1364 = vdwg.mxu0
    %v1365 = vadd.f32 %v1281, %v1362
    %s1366 = scalar_lea.vmem [#allocation12], 448
    %v1367 = vld [vmem:[%s1366] sm:$0xf]
    %v1368 = vld [vmem:[%s1366 + $0x4] sm:$0xf]
    %v1369 = vld [vmem:[%s1366 + $0x8] sm:$0xf]
    %v1370 = vld [vmem:[%s1366 + $0xc] sm:$0xf]
    %v1371 = vld [vmem:[%s1366 + $0x10] sm:$0xf]
    %v1372 = vld [vmem:[%s1366 + $0x14] sm:$0xf]
    %v1373 = vld [vmem:[%s1366 + $0x18] sm:$0xf]
    %v1374 = vld [vmem:[%s1366 + $0x1c] sm:$0xf]
    %v1375 = vld [vmem:[%s1366 + $0x20] sm:$0xf]
    %v1376 = vld [vmem:[%s1366 + $0x24] sm:$0xf]
    %v1377 = vld [vmem:[%s1366 + $0x28] sm:$0xf]
    %v1378 = vld [vmem:[%s1366 + $0x2c] sm:$0xf]
    %v1379 = vld [vmem:[%s1366 + $0x30] sm:$0xf]
    %v1380 = vld [vmem:[%s1366 + $0x34] sm:$0xf]
    %v1381 = vld [vmem:[%s1366 + $0x38] sm:$0xf]
    %v1382 = vld [vmem:[%s1366 + $0x3c] sm:$0xf]
    %v1383 = vrot.slane %v813, 7
    %v1384 = vrot.slane %v814, 6
    %v1385 = vsel %vm816, %v1384, %v1383
    %v1386 = vpack.c.b16 %v1385, %v1385
    %v1404 = vunpack.c.l.b16 %v1367
    %v1405 = vunpack.c.l.b16 %v1368
    %v1406 = vunpack.c.l.b16 %v1369
    %v1407 = vunpack.c.l.b16 %v1370
    %v1408 = vunpack.c.l.b16 %v1371
    %v1409 = vunpack.c.l.b16 %v1372
    %v1410 = vunpack.c.l.b16 %v1373
    %v1411 = vunpack.c.l.b16 %v1374
    %v1412 = vunpack.c.l.b16 %v1375
    %v1413 = vunpack.c.l.b16 %v1376
    %v1414 = vunpack.c.l.b16 %v1377
    %v1415 = vunpack.c.l.b16 %v1378
    %v1416 = vunpack.c.l.b16 %v1379
    %v1417 = vunpack.c.l.b16 %v1380
    %v1418 = vunpack.c.l.b16 %v1381
    %v1419 = vunpack.c.l.b16 %v1382
    %v1420 = vpack.c.b16 %v1405, %v1404
    %v1421 = vpack.c.b16 %v1407, %v1406
    %v1422 = vpack.c.b16 %v1409, %v1408
    %v1423 = vpack.c.b16 %v1411, %v1410
    %v1424 = vpack.c.b16 %v1413, %v1412
    %v1425 = vpack.c.b16 %v1415, %v1414
    %v1426 = vpack.c.b16 %v1417, %v1416
    %v1427 = vpack.c.b16 %v1419, %v1418
    %1436 = vmatpush.bf16.msra.mxu0 %v1427
    %1437 = vmatpush.bf16.msra.mxu0 %v1426
    %1438 = vmatpush.bf16.msra.mxu0 %v1425
    %1439 = vmatpush.bf16.msra.mxu0 %v1424
    %1440 = vmatpush.bf16.msra.mxu0 %v1423
    %1441 = vmatpush.bf16.msra.mxu0 %v1422
    %1442 = vmatpush.bf16.msra.mxu0 %v1421
    %1443 = vmatpush.bf16.msra.mxu0 %v1420
    %1444 = vmatmul.bf16.gmra.mxu0 %v1386
    %v1445 = vpop.f32.mrf.mxu0
    %v1446 = vadd.f32 0.0, %v1445
    %v1447 = vpop.f32.mrf.mxu0
    %1448 = vdwg.mxu0
    %v1449 = vadd.f32 %v1365, %v1446
    %v1450 = vld [vmem:[#allocation2] sm:$0xff]
    %v1451 = vld [vmem:[#allocation2 + $0x8] sm:$0xf]
    %v1452 = vld [vmem:[#allocation2 + $0x10] sm:$0xff]
    %v1453 = vld [vmem:[#allocation2 + $0x18] sm:$0xf]
    %v1454 = vpack.c.bf16 %v1452, %v1450
    %s1455 = scalar_lea.vmem [#allocation8], 320
    %v1456 = vld [vmem:[%s1455] sm:$0xf]
    %v1457 = vld [vmem:[%s1455 + $0x4] sm:$0xf]
    %v1458 = vld [vmem:[%s1455 + $0x8] sm:$0xf]
    %v1459 = vld [vmem:[%s1455 + $0xc] sm:$0xf]
    %v1460 = vld [vmem:[%s1455 + $0x10] sm:$0xf]
    %v1461 = vld [vmem:[%s1455 + $0x14] sm:$0xf]
    %v1462 = vld [vmem:[%s1455 + $0x18] sm:$0xf]
    %v1463 = vld [vmem:[%s1455 + $0x1c] sm:$0xf]
    %v1464 = vld [vmem:[%s1455 + $0x20] sm:$0xf]
    %v1465 = vld [vmem:[%s1455 + $0x24] sm:$0xf]
    %v1466 = vld [vmem:[%s1455 + $0x28] sm:$0xf]
    %v1467 = vld [vmem:[%s1455 + $0x2c] sm:$0xf]
    %v1468 = vld [vmem:[%s1455 + $0x30] sm:$0xf]
    %v1469 = vld [vmem:[%s1455 + $0x34] sm:$0xf]
    %v1470 = vld [vmem:[%s1455 + $0x38] sm:$0xf]
    %v1471 = vld [vmem:[%s1455 + $0x3c] sm:$0xf]
    %v1476 = vrot.slane %v1450, 1
    %v1477 = vrot.slane %v1451, 1
    %v1478 = vsel %vm215, %v1476, %v1477
    %v1479 = vrot.slane %v1452, 1
    %v1480 = vrot.slane %v1453, 1
    %v1481 = vsel %vm215, %v1479, %v1480
    %v1484 = vpack.c.bf16 %v1481, %v1478
    %s1485 = scalar_lea.vmem [#allocation8], 384
    %v1486 = vld [vmem:[%s1485] sm:$0xf]
    %v1487 = vld [vmem:[%s1485 + $0x4] sm:$0xf]
    %v1488 = vld [vmem:[%s1485 + $0x8] sm:$0xf]
    %v1489 = vld [vmem:[%s1485 + $0xc] sm:$0xf]
    %v1490 = vld [vmem:[%s1485 + $0x10] sm:$0xf]
    %v1491 = vld [vmem:[%s1485 + $0x14] sm:$0xf]
    %v1492 = vld [vmem:[%s1485 + $0x18] sm:$0xf]
    %v1493 = vld [vmem:[%s1485 + $0x1c] sm:$0xf]
    %v1494 = vld [vmem:[%s1485 + $0x20] sm:$0xf]
    %v1495 = vld [vmem:[%s1485 + $0x24] sm:$0xf]
    %v1496 = vld [vmem:[%s1485 + $0x28] sm:$0xf]
    %v1497 = vld [vmem:[%s1485 + $0x2c] sm:$0xf]
    %v1498 = vld [vmem:[%s1485 + $0x30] sm:$0xf]
    %v1499 = vld [vmem:[%s1485 + $0x34] sm:$0xf]
    %v1500 = vld [vmem:[%s1485 + $0x38] sm:$0xf]
    %v1501 = vld [vmem:[%s1485 + $0x3c] sm:$0xf]
    %v1518 = vunpack.c.l.b16 %v1486
    %v1519 = vunpack.c.l.b16 %v1487
    %v1520 = vunpack.c.l.b16 %v1488
    %v1521 = vunpack.c.l.b16 %v1489
    %v1522 = vunpack.c.l.b16 %v1490
    %v1523 = vunpack.c.l.b16 %v1491
    %v1524 = vunpack.c.l.b16 %v1492
    %v1525 = vunpack.c.l.b16 %v1493
    %v1526 = vunpack.c.l.b16 %v1494
    %v1527 = vunpack.c.l.b16 %v1495
    %v1528 = vunpack.c.l.b16 %v1496
    %v1529 = vunpack.c.l.b16 %v1497
    %v1530 = vunpack.c.l.b16 %v1498
    %v1531 = vunpack.c.l.b16 %v1499
    %v1532 = vunpack.c.l.b16 %v1500
    %v1533 = vunpack.c.l.b16 %v1501
    %v1534 = vpack.c.b16 %v1519, %v1518
    %v1535 = vpack.c.b16 %v1521, %v1520
    %v1536 = vpack.c.b16 %v1523, %v1522
    %v1537 = vpack.c.b16 %v1525, %v1524
    %v1538 = vpack.c.b16 %v1527, %v1526
    %v1539 = vpack.c.b16 %v1529, %v1528
    %v1540 = vpack.c.b16 %v1531, %v1530
    %v1541 = vpack.c.b16 %v1533, %v1532
    %1550 = vmatpush.bf16.msra.mxu0 %v1541
    %1551 = vmatpush.bf16.msra.mxu0 %v1540
    %1552 = vmatpush.bf16.msra.mxu0 %v1539
    %1553 = vmatpush.bf16.msra.mxu0 %v1538
    %1554 = vmatpush.bf16.msra.mxu0 %v1537
    %1555 = vmatpush.bf16.msra.mxu0 %v1536
    %1556 = vmatpush.bf16.msra.mxu0 %v1535
    %1557 = vmatpush.bf16.msra.mxu0 %v1534
    %1558 = vmatmul.bf16.gmra.mxu0 %v1484
    %v1559 = vpop.f32.mrf.mxu0
    %v1560 = vadd.f32 0.0, %v1559
    %v1561 = vpop.f32.mrf.mxu0
    %v1562 = vadd.f32 0.0, %v1561
    %1563 = vdwg.mxu0
    %v1580 = vunpack.c.l.b16 %v1456
    %v1581 = vunpack.c.l.b16 %v1457
    %v1582 = vunpack.c.l.b16 %v1458
    %v1583 = vunpack.c.l.b16 %v1459
    %v1584 = vunpack.c.l.b16 %v1460
    %v1585 = vunpack.c.l.b16 %v1461
    %v1586 = vunpack.c.l.b16 %v1462
    %v1587 = vunpack.c.l.b16 %v1463
    %v1588 = vunpack.c.l.b16 %v1464
    %v1589 = vunpack.c.l.b16 %v1465
    %v1590 = vunpack.c.l.b16 %v1466
    %v1591 = vunpack.c.l.b16 %v1467
    %v1592 = vunpack.c.l.b16 %v1468
    %v1593 = vunpack.c.l.b16 %v1469
    %v1594 = vunpack.c.l.b16 %v1470
    %v1595 = vunpack.c.l.b16 %v1471
    %v1596 = vpack.c.b16 %v1581, %v1580
    %v1597 = vpack.c.b16 %v1583, %v1582
    %v1598 = vpack.c.b16 %v1585, %v1584
    %v1599 = vpack.c.b16 %v1587, %v1586
    %v1600 = vpack.c.b16 %v1589, %v1588
    %v1601 = vpack.c.b16 %v1591, %v1590
    %v1602 = vpack.c.b16 %v1593, %v1592
    %v1603 = vpack.c.b16 %v1595, %v1594
    %1612 = vmatpush.bf16.msra.mxu0 %v1603
    %1613 = vmatpush.bf16.msra.mxu0 %v1602
    %1614 = vmatpush.bf16.msra.mxu0 %v1601
    %1615 = vmatpush.bf16.msra.mxu0 %v1600
    %1616 = vmatpush.bf16.msra.mxu0 %v1599
    %1617 = vmatpush.bf16.msra.mxu0 %v1598
    %1618 = vmatpush.bf16.msra.mxu0 %v1597
    %1619 = vmatpush.bf16.msra.mxu0 %v1596
    %1620 = vmatmul.bf16.gmra.mxu0 %v1454
    %v1621 = vpop.f32.mrf.mxu0
    %v1622 = vadd.f32 %v1560, %v1621
    %v1623 = vpop.f32.mrf.mxu0
    %v1624 = vadd.f32 %v1562, %v1623
    %1625 = vdwg.mxu0
    %v1626 = vrot.slane %v1450, 2
    %v1627 = vrot.slane %v1451, 2
    %v1628 = vsel %vm234, %v1626, %v1627
    %v1629 = vrot.slane %v1452, 2
    %v1630 = vrot.slane %v1453, 2
    %v1631 = vsel %vm234, %v1629, %v1630
    %v1634 = vpack.c.bf16 %v1631, %v1628
    %s1635 = scalar_lea.vmem [#allocation8], 448
    %v1636 = vld [vmem:[%s1635] sm:$0xf]
    %v1637 = vld [vmem:[%s1635 + $0x4] sm:$0xf]
    %v1638 = vld [vmem:[%s1635 + $0x8] sm:$0xf]
    %v1639 = vld [vmem:[%s1635 + $0xc] sm:$0xf]
    %v1640 = vld [vmem:[%s1635 + $0x10] sm:$0xf]
    %v1641 = vld [vmem:[%s1635 + $0x14] sm:$0xf]
    %v1642 = vld [vmem:[%s1635 + $0x18] sm:$0xf]
    %v1643 = vld [vmem:[%s1635 + $0x1c] sm:$0xf]
    %v1644 = vld [vmem:[%s1635 + $0x20] sm:$0xf]
    %v1645 = vld [vmem:[%s1635 + $0x24] sm:$0xf]
    %v1646 = vld [vmem:[%s1635 + $0x28] sm:$0xf]
    %v1647 = vld [vmem:[%s1635 + $0x2c] sm:$0xf]
    %v1648 = vld [vmem:[%s1635 + $0x30] sm:$0xf]
    %v1649 = vld [vmem:[%s1635 + $0x34] sm:$0xf]
    %v1650 = vld [vmem:[%s1635 + $0x38] sm:$0xf]
    %v1651 = vld [vmem:[%s1635 + $0x3c] sm:$0xf]
    %v1668 = vunpack.c.l.b16 %v1636
    %v1669 = vunpack.c.l.b16 %v1637
    %v1670 = vunpack.c.l.b16 %v1638
    %v1671 = vunpack.c.l.b16 %v1639
    %v1672 = vunpack.c.l.b16 %v1640
    %v1673 = vunpack.c.l.b16 %v1641
    %v1674 = vunpack.c.l.b16 %v1642
    %v1675 = vunpack.c.l.b16 %v1643
    %v1676 = vunpack.c.l.b16 %v1644
    %v1677 = vunpack.c.l.b16 %v1645
    %v1678 = vunpack.c.l.b16 %v1646
    %v1679 = vunpack.c.l.b16 %v1647
    %v1680 = vunpack.c.l.b16 %v1648
    %v1681 = vunpack.c.l.b16 %v1649
    %v1682 = vunpack.c.l.b16 %v1650
    %v1683 = vunpack.c.l.b16 %v1651
    %v1684 = vpack.c.b16 %v1669, %v1668
    %v1685 = vpack.c.b16 %v1671, %v1670
    %v1686 = vpack.c.b16 %v1673, %v1672
    %v1687 = vpack.c.b16 %v1675, %v1674
    %v1688 = vpack.c.b16 %v1677, %v1676
    %v1689 = vpack.c.b16 %v1679, %v1678
    %v1690 = vpack.c.b16 %v1681, %v1680
    %v1691 = vpack.c.b16 %v1683, %v1682
    %1700 = vmatpush.bf16.msra.mxu0 %v1691
    %1701 = vmatpush.bf16.msra.mxu0 %v1690
    %1702 = vmatpush.bf16.msra.mxu0 %v1689
    %1703 = vmatpush.bf16.msra.mxu0 %v1688
    %1704 = vmatpush.bf16.msra.mxu0 %v1687
    %1705 = vmatpush.bf16.msra.mxu0 %v1686
    %1706 = vmatpush.bf16.msra.mxu0 %v1685
    %1707 = vmatpush.bf16.msra.mxu0 %v1684
    %1708 = vmatmul.bf16.gmra.mxu0 %v1634
    %v1709 = vpop.f32.mrf.mxu0
    %v1710 = vadd.f32 0.0, %v1709
    %v1711 = vpop.f32.mrf.mxu0
    %v1712 = vadd.f32 0.0, %v1711
    %1713 = vdwg.mxu0
    %v1714 = vadd.f32 %v1622, %v1710
    %v1715 = vadd.f32 %v1624, %v1712
    %v1716 = vrot.slane %v1450, 3
    %v1717 = vrot.slane %v1451, 3
    %v1718 = vsel %vm538, %v1716, %v1717
    %v1719 = vrot.slane %v1452, 3
    %v1720 = vrot.slane %v1453, 3
    %v1721 = vsel %vm538, %v1719, %v1720
    %v1724 = vpack.c.bf16 %v1721, %v1718
    %s1725 = scalar_lea.vmem [#allocation8], 512
    %v1726 = vld [vmem:[%s1725] sm:$0xf]
    %v1727 = vld [vmem:[%s1725 + $0x4] sm:$0xf]
    %v1728 = vld [vmem:[%s1725 + $0x8] sm:$0xf]
    %v1729 = vld [vmem:[%s1725 + $0xc] sm:$0xf]
    %v1730 = vld [vmem:[%s1725 + $0x10] sm:$0xf]
    %v1731 = vld [vmem:[%s1725 + $0x14] sm:$0xf]
    %v1732 = vld [vmem:[%s1725 + $0x18] sm:$0xf]
    %v1733 = vld [vmem:[%s1725 + $0x1c] sm:$0xf]
    %v1734 = vld [vmem:[%s1725 + $0x20] sm:$0xf]
    %v1735 = vld [vmem:[%s1725 + $0x24] sm:$0xf]
    %v1736 = vld [vmem:[%s1725 + $0x28] sm:$0xf]
    %v1737 = vld [vmem:[%s1725 + $0x2c] sm:$0xf]
    %v1738 = vld [vmem:[%s1725 + $0x30] sm:$0xf]
    %v1739 = vld [vmem:[%s1725 + $0x34] sm:$0xf]
    %v1740 = vld [vmem:[%s1725 + $0x38] sm:$0xf]
    %v1741 = vld [vmem:[%s1725 + $0x3c] sm:$0xf]
    %v1758 = vunpack.c.l.b16 %v1726
    %v1759 = vunpack.c.l.b16 %v1727
    %v1760 = vunpack.c.l.b16 %v1728
    %v1761 = vunpack.c.l.b16 %v1729
    %v1762 = vunpack.c.l.b16 %v1730
    %v1763 = vunpack.c.l.b16 %v1731
    %v1764 = vunpack.c.l.b16 %v1732
    %v1765 = vunpack.c.l.b16 %v1733
    %v1766 = vunpack.c.l.b16 %v1734
    %v1767 = vunpack.c.l.b16 %v1735
    %v1768 = vunpack.c.l.b16 %v1736
    %v1769 = vunpack.c.l.b16 %v1737
    %v1770 = vunpack.c.l.b16 %v1738
    %v1771 = vunpack.c.l.b16 %v1739
    %v1772 = vunpack.c.l.b16 %v1740
    %v1773 = vunpack.c.l.b16 %v1741
    %v1774 = vpack.c.b16 %v1759, %v1758
    %v1775 = vpack.c.b16 %v1761, %v1760
    %v1776 = vpack.c.b16 %v1763, %v1762
    %v1777 = vpack.c.b16 %v1765, %v1764
    %v1778 = vpack.c.b16 %v1767, %v1766
    %v1779 = vpack.c.b16 %v1769, %v1768
    %v1780 = vpack.c.b16 %v1771, %v1770
    %v1781 = vpack.c.b16 %v1773, %v1772
    %1790 = vmatpush.bf16.msra.mxu0 %v1781
    %1791 = vmatpush.bf16.msra.mxu0 %v1780
    %1792 = vmatpush.bf16.msra.mxu0 %v1779
    %1793 = vmatpush.bf16.msra.mxu0 %v1778
    %1794 = vmatpush.bf16.msra.mxu0 %v1777
    %1795 = vmatpush.bf16.msra.mxu0 %v1776
    %1796 = vmatpush.bf16.msra.mxu0 %v1775
    %1797 = vmatpush.bf16.msra.mxu0 %v1774
    %1798 = vmatmul.bf16.gmra.mxu0 %v1724
    %v1799 = vpop.f32.mrf.mxu0
    %v1800 = vadd.f32 0.0, %v1799
    %v1801 = vpop.f32.mrf.mxu0
    %v1802 = vadd.f32 0.0, %v1801
    %1803 = vdwg.mxu0
    %v1804 = vadd.f32 %v1714, %v1800
    %v1805 = vadd.f32 %v1715, %v1802
    %v1806 = vrot.slane %v1450, 4
    %v1807 = vrot.slane %v1451, 4
    %v1808 = vsel %vm629, %v1806, %v1807
    %v1809 = vrot.slane %v1452, 4
    %v1810 = vrot.slane %v1453, 4
    %v1811 = vsel %vm629, %v1809, %v1810
    %v1814 = vpack.c.bf16 %v1811, %v1808
    %s1815 = scalar_lea.vmem [#allocation8], 576
    %v1816 = vld [vmem:[%s1815] sm:$0xf]
    %v1817 = vld [vmem:[%s1815 + $0x4] sm:$0xf]
    %v1818 = vld [vmem:[%s1815 + $0x8] sm:$0xf]
    %v1819 = vld [vmem:[%s1815 + $0xc] sm:$0xf]
    %v1820 = vld [vmem:[%s1815 + $0x10] sm:$0xf]
    %v1821 = vld [vmem:[%s1815 + $0x14] sm:$0xf]
    %v1822 = vld [vmem:[%s1815 + $0x18] sm:$0xf]
    %v1823 = vld [vmem:[%s1815 + $0x1c] sm:$0xf]
    %v1824 = vld [vmem:[%s1815 + $0x20] sm:$0xf]
    %v1825 = vld [vmem:[%s1815 + $0x24] sm:$0xf]
    %v1826 = vld [vmem:[%s1815 + $0x28] sm:$0xf]
    %v1827 = vld [vmem:[%s1815 + $0x2c] sm:$0xf]
    %v1828 = vld [vmem:[%s1815 + $0x30] sm:$0xf]
    %v1829 = vld [vmem:[%s1815 + $0x34] sm:$0xf]
    %v1830 = vld [vmem:[%s1815 + $0x38] sm:$0xf]
    %v1831 = vld [vmem:[%s1815 + $0x3c] sm:$0xf]
    %v1848 = vunpack.c.l.b16 %v1816
    %v1849 = vunpack.c.l.b16 %v1817
    %v1850 = vunpack.c.l.b16 %v1818
    %v1851 = vunpack.c.l.b16 %v1819
    %v1852 = vunpack.c.l.b16 %v1820
    %v1853 = vunpack.c.l.b16 %v1821
    %v1854 = vunpack.c.l.b16 %v1822
    %v1855 = vunpack.c.l.b16 %v1823
    %v1856 = vunpack.c.l.b16 %v1824
    %v1857 = vunpack.c.l.b16 %v1825
    %v1858 = vunpack.c.l.b16 %v1826
    %v1859 = vunpack.c.l.b16 %v1827
    %v1860 = vunpack.c.l.b16 %v1828
    %v1861 = vunpack.c.l.b16 %v1829
    %v1862 = vunpack.c.l.b16 %v1830
    %v1863 = vunpack.c.l.b16 %v1831
    %v1864 = vpack.c.b16 %v1849, %v1848
    %v1865 = vpack.c.b16 %v1851, %v1850
    %v1866 = vpack.c.b16 %v1853, %v1852
    %v1867 = vpack.c.b16 %v1855, %v1854
    %v1868 = vpack.c.b16 %v1857, %v1856
    %v1869 = vpack.c.b16 %v1859, %v1858
    %v1870 = vpack.c.b16 %v1861, %v1860
    %v1871 = vpack.c.b16 %v1863, %v1862
    %1880 = vmatpush.bf16.msra.mxu0 %v1871
    %1881 = vmatpush.bf16.msra.mxu0 %v1870
    %1882 = vmatpush.bf16.msra.mxu0 %v1869
    %1883 = vmatpush.bf16.msra.mxu0 %v1868
    %1884 = vmatpush.bf16.msra.mxu0 %v1867
    %1885 = vmatpush.bf16.msra.mxu0 %v1866
    %1886 = vmatpush.bf16.msra.mxu0 %v1865
    %1887 = vmatpush.bf16.msra.mxu0 %v1864
    %1888 = vmatmul.bf16.gmra.mxu0 %v1814
    %v1889 = vpop.f32.mrf.mxu0
    %v1890 = vadd.f32 0.0, %v1889
    %v1891 = vpop.f32.mrf.mxu0
    %v1892 = vadd.f32 0.0, %v1891
    %1893 = vdwg.mxu0
    %v1894 = vadd.f32 %v1804, %v1890
    %v1895 = vadd.f32 %v1805, %v1892
    %v1896 = vadd.f32 %v1894, %v1895
    %v1897 = vrot.slane %v1896, 4
    %v1898 = vadd.f32 %v1896, %v1897
    %v1899 = vrot.slane %v1898, 2
    %v1900 = vadd.f32 %v1898, %v1899
    %v1901 = vrot.slane %v1900, 1
    %v1902 = vadd.f32 %v1900, %v1901
    %v1903 = vmul.f32 %v1902, %v733
    %v1904 = vsub.f32 %v1894, %v1903
    %v1905 = vsub.f32 %v1895, %v1903
    %v1906 = vmul.f32 %v1904, %v1904
    %v1907 = vmul.f32 %v1905, %v1905
    %v1908 = vadd.f32 %v1906, %v1907
    %v1909 = vrot.slane %v1908, 4
    %v1910 = vadd.f32 %v1908, %v1909
    %v1911 = vrot.slane %v1910, 2
    %v1912 = vadd.f32 %v1910, %v1911
    %v1913 = vrot.slane %v1912, 1
    %v1914 = vadd.f32 %v1912, %v1913
    %v1915 = vmul.f32 %v1914, %v733
    %v1916 = vadd.f32 %v1915, 1e-05
    %v1917 = vrsqrt.pop %v1916
    %v1918 = vmul.f32 %v1917, %v1916
    %v1919 = vmul.f32 %v1918, %v1917
    %v1920 = vmul.f32 0.5, %v1919
    %v1921 = vsub.f32 1.5, %v1920
    %v1922 = vmul.f32 %v1917, %v1921
    %vm1923 = vweird.f32 %v1916
    %vm1924 = vweird.f32 %v1917
    %vm1925 = vmor %vm1923, %vm1924
    %v1926 = vsel %vm1925, %v1917, %v1922
    %v1927 = vmul.f32 %v1904, %v1926
    %v1928 = vmul.f32 %v1905, %v1926
    %s1929 = scalar_lea.vmem [#allocation9], 1
    %v1930 = vld [vmem:[%s1929] sm:$0x1]
    %v1932 = vperm.slane %v1930, 0
    %v1934 = vmul.f32 %v1927, %v1932
    %v1935 = vmul.f32 %v1928, %v1932
    %s1936 = scalar_lea.vmem [#allocation11], 1
    %v1937 = vld [vmem:[%s1936] sm:$0x1]
    %v1939 = vperm.slane %v1937, 0
    %v1941 = vadd.f32 %v1934, %v1939
    %v1942 = vadd.f32 %v1935, %v1939
    %v1943 = vmax.f32 %v1941, 0.0
    %v1944 = vmax.f32 %v1942, 0.0
    %1945 = vst [vmem:[#allocation2 + $0x2] sm:$0xff] %v1943
    %1946 = vst [vmem:[#allocation2 + $0x12] sm:$0xff] %v1944
    %v1947 = vpack.c.bf16 %v1943, %v1943
    %v1948 = vpack.c.bf16 %v1944, %v1944
    %s1949 = scalar_lea.vmem [#allocation12], 512
    %v1950 = vld [vmem:[%s1949] sm:$0xf]
    %v1951 = vld [vmem:[%s1949 + $0x4] sm:$0xf]
    %v1952 = vld [vmem:[%s1949 + $0x8] sm:$0xf]
    %v1953 = vld [vmem:[%s1949 + $0xc] sm:$0xf]
    %v1954 = vld [vmem:[%s1949 + $0x10] sm:$0xf]
    %v1955 = vld [vmem:[%s1949 + $0x14] sm:$0xf]
    %v1956 = vld [vmem:[%s1949 + $0x18] sm:$0xf]
    %v1957 = vld [vmem:[%s1949 + $0x1c] sm:$0xf]
    %v1958 = vld [vmem:[%s1949 + $0x20] sm:$0xf]
    %v1959 = vld [vmem:[%s1949 + $0x24] sm:$0xf]
    %v1960 = vld [vmem:[%s1949 + $0x28] sm:$0xf]
    %v1961 = vld [vmem:[%s1949 + $0x2c] sm:$0xf]
    %v1962 = vld [vmem:[%s1949 + $0x30] sm:$0xf]
    %v1963 = vld [vmem:[%s1949 + $0x34] sm:$0xf]
    %v1964 = vld [vmem:[%s1949 + $0x38] sm:$0xf]
    %v1965 = vld [vmem:[%s1949 + $0x3c] sm:$0xf]
    %v1968 = vunpack.c.l.b16 %v1947
    %v1969 = vunpack.c.l.b16 %v1948
    %v1970 = vrot.slane %v1969, 7
    %v1971 = vsel %vm816, %v1970, %v1968
    %v1972 = vpack.c.b16 %v1971, %v1971
    %v1990 = vunpack.c.l.b16 %v1950
    %v1991 = vunpack.c.l.b16 %v1951
    %v1992 = vunpack.c.l.b16 %v1952
    %v1993 = vunpack.c.l.b16 %v1953
    %v1994 = vunpack.c.l.b16 %v1954
    %v1995 = vunpack.c.l.b16 %v1955
    %v1996 = vunpack.c.l.b16 %v1956
    %v1997 = vunpack.c.l.b16 %v1957
    %v1998 = vunpack.c.l.b16 %v1958
    %v1999 = vunpack.c.l.b16 %v1959
    %v2000 = vunpack.c.l.b16 %v1960
    %v2001 = vunpack.c.l.b16 %v1961
    %v2002 = vunpack.c.l.b16 %v1962
    %v2003 = vunpack.c.l.b16 %v1963
    %v2004 = vunpack.c.l.b16 %v1964
    %v2005 = vunpack.c.l.b16 %v1965
    %v2006 = vpack.c.b16 %v1991, %v1990
    %v2007 = vpack.c.b16 %v1993, %v1992
    %v2008 = vpack.c.b16 %v1995, %v1994
    %v2009 = vpack.c.b16 %v1997, %v1996
    %v2010 = vpack.c.b16 %v1999, %v1998
    %v2011 = vpack.c.b16 %v2001, %v2000
    %v2012 = vpack.c.b16 %v2003, %v2002
    %v2013 = vpack.c.b16 %v2005, %v2004
    %2022 = vmatpush.bf16.msra.mxu0 %v2013
    %2023 = vmatpush.bf16.msra.mxu0 %v2012
    %2024 = vmatpush.bf16.msra.mxu0 %v2011
    %2025 = vmatpush.bf16.msra.mxu0 %v2010
    %2026 = vmatpush.bf16.msra.mxu0 %v2009
    %2027 = vmatpush.bf16.msra.mxu0 %v2008
    %2028 = vmatpush.bf16.msra.mxu0 %v2007
    %2029 = vmatpush.bf16.msra.mxu0 %v2006
    %2030 = vmatmul.bf16.gmra.mxu0 %v1972
    %v2031 = vpop.f32.mrf.mxu0
    %v2032 = vadd.f32 0.0, %v2031
    %v2033 = vpop.f32.mrf.mxu0
    %2034 = vdwg.mxu0
    %v2035 = vadd.f32 %v1449, %v2032
    %s2036 = scalar_lea.vmem [#allocation12], 576
    %v2037 = vld [vmem:[%s2036] sm:$0xf]
    %v2038 = vld [vmem:[%s2036 + $0x4] sm:$0xf]
    %v2039 = vld [vmem:[%s2036 + $0x8] sm:$0xf]
    %v2040 = vld [vmem:[%s2036 + $0xc] sm:$0xf]
    %v2041 = vld [vmem:[%s2036 + $0x10] sm:$0xf]
    %v2042 = vld [vmem:[%s2036 + $0x14] sm:$0xf]
    %v2043 = vld [vmem:[%s2036 + $0x18] sm:$0xf]
    %v2044 = vld [vmem:[%s2036 + $0x1c] sm:$0xf]
    %v2045 = vld [vmem:[%s2036 + $0x20] sm:$0xf]
    %v2046 = vld [vmem:[%s2036 + $0x24] sm:$0xf]
    %v2047 = vld [vmem:[%s2036 + $0x28] sm:$0xf]
    %v2048 = vld [vmem:[%s2036 + $0x2c] sm:$0xf]
    %v2049 = vld [vmem:[%s2036 + $0x30] sm:$0xf]
    %v2050 = vld [vmem:[%s2036 + $0x34] sm:$0xf]
    %v2051 = vld [vmem:[%s2036 + $0x38] sm:$0xf]
    %v2052 = vld [vmem:[%s2036 + $0x3c] sm:$0xf]
    %v2053 = vrot.slane %v1968, 1
    %v2054 = vsel %vm816, %v1969, %v2053
    %v2055 = vpack.c.b16 %v2054, %v2054
    %v2073 = vunpack.c.l.b16 %v2037
    %v2074 = vunpack.c.l.b16 %v2038
    %v2075 = vunpack.c.l.b16 %v2039
    %v2076 = vunpack.c.l.b16 %v2040
    %v2077 = vunpack.c.l.b16 %v2041
    %v2078 = vunpack.c.l.b16 %v2042
    %v2079 = vunpack.c.l.b16 %v2043
    %v2080 = vunpack.c.l.b16 %v2044
    %v2081 = vunpack.c.l.b16 %v2045
    %v2082 = vunpack.c.l.b16 %v2046
    %v2083 = vunpack.c.l.b16 %v2047
    %v2084 = vunpack.c.l.b16 %v2048
    %v2085 = vunpack.c.l.b16 %v2049
    %v2086 = vunpack.c.l.b16 %v2050
    %v2087 = vunpack.c.l.b16 %v2051
    %v2088 = vunpack.c.l.b16 %v2052
    %v2089 = vpack.c.b16 %v2074, %v2073
    %v2090 = vpack.c.b16 %v2076, %v2075
    %v2091 = vpack.c.b16 %v2078, %v2077
    %v2092 = vpack.c.b16 %v2080, %v2079
    %v2093 = vpack.c.b16 %v2082, %v2081
    %v2094 = vpack.c.b16 %v2084, %v2083
    %v2095 = vpack.c.b16 %v2086, %v2085
    %v2096 = vpack.c.b16 %v2088, %v2087
    %2105 = vmatpush.bf16.msra.mxu0 %v2096
    %2106 = vmatpush.bf16.msra.mxu0 %v2095
    %2107 = vmatpush.bf16.msra.mxu0 %v2094
    %2108 = vmatpush.bf16.msra.mxu0 %v2093
    %2109 = vmatpush.bf16.msra.mxu0 %v2092
    %2110 = vmatpush.bf16.msra.mxu0 %v2091
    %2111 = vmatpush.bf16.msra.mxu0 %v2090
    %2112 = vmatpush.bf16.msra.mxu0 %v2089
    %2113 = vmatmul.bf16.gmra.mxu0 %v2055
    %v2114 = vpop.f32.mrf.mxu0
    %v2115 = vadd.f32 0.0, %v2114
    %v2116 = vpop.f32.mrf.mxu0
    %2117 = vdwg.mxu0
    %v2118 = vadd.f32 %v2035, %v2115
    %s2119 = scalar_lea.vmem [#allocation12], 640
    %v2120 = vld [vmem:[%s2119] sm:$0xf]
    %v2121 = vld [vmem:[%s2119 + $0x4] sm:$0xf]
    %v2122 = vld [vmem:[%s2119 + $0x8] sm:$0xf]
    %v2123 = vld [vmem:[%s2119 + $0xc] sm:$0xf]
    %v2124 = vld [vmem:[%s2119 + $0x10] sm:$0xf]
    %v2125 = vld [vmem:[%s2119 + $0x14] sm:$0xf]
    %v2126 = vld [vmem:[%s2119 + $0x18] sm:$0xf]
    %v2127 = vld [vmem:[%s2119 + $0x1c] sm:$0xf]
    %v2128 = vld [vmem:[%s2119 + $0x20] sm:$0xf]
    %v2129 = vld [vmem:[%s2119 + $0x24] sm:$0xf]
    %v2130 = vld [vmem:[%s2119 + $0x28] sm:$0xf]
    %v2131 = vld [vmem:[%s2119 + $0x2c] sm:$0xf]
    %v2132 = vld [vmem:[%s2119 + $0x30] sm:$0xf]
    %v2133 = vld [vmem:[%s2119 + $0x34] sm:$0xf]
    %v2134 = vld [vmem:[%s2119 + $0x38] sm:$0xf]
    %v2135 = vld [vmem:[%s2119 + $0x3c] sm:$0xf]
    %v2136 = vrot.slane %v1968, 2
    %v2137 = vrot.slane %v1969, 1
    %v2138 = vsel %vm816, %v2137, %v2136
    %v2139 = vpack.c.b16 %v2138, %v2138
    %v2157 = vunpack.c.l.b16 %v2120
    %v2158 = vunpack.c.l.b16 %v2121
    %v2159 = vunpack.c.l.b16 %v2122
    %v2160 = vunpack.c.l.b16 %v2123
    %v2161 = vunpack.c.l.b16 %v2124
    %v2162 = vunpack.c.l.b16 %v2125
    %v2163 = vunpack.c.l.b16 %v2126
    %v2164 = vunpack.c.l.b16 %v2127
    %v2165 = vunpack.c.l.b16 %v2128
    %v2166 = vunpack.c.l.b16 %v2129
    %v2167 = vunpack.c.l.b16 %v2130
    %v2168 = vunpack.c.l.b16 %v2131
    %v2169 = vunpack.c.l.b16 %v2132
    %v2170 = vunpack.c.l.b16 %v2133
    %v2171 = vunpack.c.l.b16 %v2134
    %v2172 = vunpack.c.l.b16 %v2135
    %v2173 = vpack.c.b16 %v2158, %v2157
    %v2174 = vpack.c.b16 %v2160, %v2159
    %v2175 = vpack.c.b16 %v2162, %v2161
    %v2176 = vpack.c.b16 %v2164, %v2163
    %v2177 = vpack.c.b16 %v2166, %v2165
    %v2178 = vpack.c.b16 %v2168, %v2167
    %v2179 = vpack.c.b16 %v2170, %v2169
    %v2180 = vpack.c.b16 %v2172, %v2171
    %2189 = vmatpush.bf16.msra.mxu0 %v2180
    %2190 = vmatpush.bf16.msra.mxu0 %v2179
    %2191 = vmatpush.bf16.msra.mxu0 %v2178
    %2192 = vmatpush.bf16.msra.mxu0 %v2177
    %2193 = vmatpush.bf16.msra.mxu0 %v2176
    %2194 = vmatpush.bf16.msra.mxu0 %v2175
    %2195 = vmatpush.bf16.msra.mxu0 %v2174
    %2196 = vmatpush.bf16.msra.mxu0 %v2173
    %2197 = vmatmul.bf16.gmra.mxu0 %v2139
    %v2198 = vpop.f32.mrf.mxu0
    %v2199 = vadd.f32 0.0, %v2198
    %v2200 = vpop.f32.mrf.mxu0
    %2201 = vdwg.mxu0
    %v2202 = vadd.f32 %v2118, %v2199
    %s2203 = scalar_lea.vmem [#allocation12], 704
    %v2204 = vld [vmem:[%s2203] sm:$0xf]
    %v2205 = vld [vmem:[%s2203 + $0x4] sm:$0xf]
    %v2206 = vld [vmem:[%s2203 + $0x8] sm:$0xf]
    %v2207 = vld [vmem:[%s2203 + $0xc] sm:$0xf]
    %v2208 = vld [vmem:[%s2203 + $0x10] sm:$0xf]
    %v2209 = vld [vmem:[%s2203 + $0x14] sm:$0xf]
    %v2210 = vld [vmem:[%s2203 + $0x18] sm:$0xf]
    %v2211 = vld [vmem:[%s2203 + $0x1c] sm:$0xf]
    %v2212 = vld [vmem:[%s2203 + $0x20] sm:$0xf]
    %v2213 = vld [vmem:[%s2203 + $0x24] sm:$0xf]
    %v2214 = vld [vmem:[%s2203 + $0x28] sm:$0xf]
    %v2215 = vld [vmem:[%s2203 + $0x2c] sm:$0xf]
    %v2216 = vld [vmem:[%s2203 + $0x30] sm:$0xf]
    %v2217 = vld [vmem:[%s2203 + $0x34] sm:$0xf]
    %v2218 = vld [vmem:[%s2203 + $0x38] sm:$0xf]
    %v2219 = vld [vmem:[%s2203 + $0x3c] sm:$0xf]
    %v2220 = vrot.slane %v1968, 3
    %v2221 = vrot.slane %v1969, 2
    %v2222 = vsel %vm816, %v2221, %v2220
    %v2223 = vpack.c.b16 %v2222, %v2222
    %v2241 = vunpack.c.l.b16 %v2204
    %v2242 = vunpack.c.l.b16 %v2205
    %v2243 = vunpack.c.l.b16 %v2206
    %v2244 = vunpack.c.l.b16 %v2207
    %v2245 = vunpack.c.l.b16 %v2208
    %v2246 = vunpack.c.l.b16 %v2209
    %v2247 = vunpack.c.l.b16 %v2210
    %v2248 = vunpack.c.l.b16 %v2211
    %v2249 = vunpack.c.l.b16 %v2212
    %v2250 = vunpack.c.l.b16 %v2213
    %v2251 = vunpack.c.l.b16 %v2214
    %v2252 = vunpack.c.l.b16 %v2215
    %v2253 = vunpack.c.l.b16 %v2216
    %v2254 = vunpack.c.l.b16 %v2217
    %v2255 = vunpack.c.l.b16 %v2218
    %v2256 = vunpack.c.l.b16 %v2219
    %v2257 = vpack.c.b16 %v2242, %v2241
    %v2258 = vpack.c.b16 %v2244, %v2243
    %v2259 = vpack.c.b16 %v2246, %v2245
    %v2260 = vpack.c.b16 %v2248, %v2247
    %v2261 = vpack.c.b16 %v2250, %v2249
    %v2262 = vpack.c.b16 %v2252, %v2251
    %v2263 = vpack.c.b16 %v2254, %v2253
    %v2264 = vpack.c.b16 %v2256, %v2255
    %2273 = vmatpush.bf16.msra.mxu0 %v2264
    %2274 = vmatpush.bf16.msra.mxu0 %v2263
    %2275 = vmatpush.bf16.msra.mxu0 %v2262
    %2276 = vmatpush.bf16.msra.mxu0 %v2261
    %2277 = vmatpush.bf16.msra.mxu0 %v2260
    %2278 = vmatpush.bf16.msra.mxu0 %v2259
    %2279 = vmatpush.bf16.msra.mxu0 %v2258
    %2280 = vmatpush.bf16.msra.mxu0 %v2257
    %2281 = vmatmul.bf16.gmra.mxu0 %v2223
    %v2282 = vpop.f32.mrf.mxu0
    %v2283 = vadd.f32 0.0, %v2282
    %v2284 = vpop.f32.mrf.mxu0
    %2285 = vdwg.mxu0
    %v2286 = vadd.f32 %v2202, %v2283
    %s2287 = scalar_lea.vmem [#allocation12], 768
    %v2288 = vld [vmem:[%s2287] sm:$0xf]
    %v2289 = vld [vmem:[%s2287 + $0x4] sm:$0xf]
    %v2290 = vld [vmem:[%s2287 + $0x8] sm:$0xf]
    %v2291 = vld [vmem:[%s2287 + $0xc] sm:$0xf]
    %v2292 = vld [vmem:[%s2287 + $0x10] sm:$0xf]
    %v2293 = vld [vmem:[%s2287 + $0x14] sm:$0xf]
    %v2294 = vld [vmem:[%s2287 + $0x18] sm:$0xf]
    %v2295 = vld [vmem:[%s2287 + $0x1c] sm:$0xf]
    %v2296 = vld [vmem:[%s2287 + $0x20] sm:$0xf]
    %v2297 = vld [vmem:[%s2287 + $0x24] sm:$0xf]
    %v2298 = vld [vmem:[%s2287 + $0x28] sm:$0xf]
    %v2299 = vld [vmem:[%s2287 + $0x2c] sm:$0xf]
    %v2300 = vld [vmem:[%s2287 + $0x30] sm:$0xf]
    %v2301 = vld [vmem:[%s2287 + $0x34] sm:$0xf]
    %v2302 = vld [vmem:[%s2287 + $0x38] sm:$0xf]
    %v2303 = vld [vmem:[%s2287 + $0x3c] sm:$0xf]
    %v2304 = vrot.slane %v1968, 4
    %v2305 = vrot.slane %v1969, 3
    %v2306 = vsel %vm816, %v2305, %v2304
    %v2307 = vpack.c.b16 %v2306, %v2306
    %v2325 = vunpack.c.l.b16 %v2288
    %v2326 = vunpack.c.l.b16 %v2289
    %v2327 = vunpack.c.l.b16 %v2290
    %v2328 = vunpack.c.l.b16 %v2291
    %v2329 = vunpack.c.l.b16 %v2292
    %v2330 = vunpack.c.l.b16 %v2293
    %v2331 = vunpack.c.l.b16 %v2294
    %v2332 = vunpack.c.l.b16 %v2295
    %v2333 = vunpack.c.l.b16 %v2296
    %v2334 = vunpack.c.l.b16 %v2297
    %v2335 = vunpack.c.l.b16 %v2298
    %v2336 = vunpack.c.l.b16 %v2299
    %v2337 = vunpack.c.l.b16 %v2300
    %v2338 = vunpack.c.l.b16 %v2301
    %v2339 = vunpack.c.l.b16 %v2302
    %v2340 = vunpack.c.l.b16 %v2303
    %v2341 = vpack.c.b16 %v2326, %v2325
    %v2342 = vpack.c.b16 %v2328, %v2327
    %v2343 = vpack.c.b16 %v2330, %v2329
    %v2344 = vpack.c.b16 %v2332, %v2331
    %v2345 = vpack.c.b16 %v2334, %v2333
    %v2346 = vpack.c.b16 %v2336, %v2335
    %v2347 = vpack.c.b16 %v2338, %v2337
    %v2348 = vpack.c.b16 %v2340, %v2339
    %2357 = vmatpush.bf16.msra.mxu0 %v2348
    %2358 = vmatpush.bf16.msra.mxu0 %v2347
    %2359 = vmatpush.bf16.msra.mxu0 %v2346
    %2360 = vmatpush.bf16.msra.mxu0 %v2345
    %2361 = vmatpush.bf16.msra.mxu0 %v2344
    %2362 = vmatpush.bf16.msra.mxu0 %v2343
    %2363 = vmatpush.bf16.msra.mxu0 %v2342
    %2364 = vmatpush.bf16.msra.mxu0 %v2341
    %2365 = vmatmul.bf16.gmra.mxu0 %v2307
    %v2366 = vpop.f32.mrf.mxu0
    %v2367 = vadd.f32 0.0, %v2366
    %v2368 = vpop.f32.mrf.mxu0
    %2369 = vdwg.mxu0
    %v2370 = vadd.f32 %v2286, %v2367
    %s2371 = scalar_lea.vmem [#allocation12], 832
    %v2372 = vld [vmem:[%s2371] sm:$0xf]
    %v2373 = vld [vmem:[%s2371 + $0x4] sm:$0xf]
    %v2374 = vld [vmem:[%s2371 + $0x8] sm:$0xf]
    %v2375 = vld [vmem:[%s2371 + $0xc] sm:$0xf]
    %v2376 = vld [vmem:[%s2371 + $0x10] sm:$0xf]
    %v2377 = vld [vmem:[%s2371 + $0x14] sm:$0xf]
    %v2378 = vld [vmem:[%s2371 + $0x18] sm:$0xf]
    %v2379 = vld [vmem:[%s2371 + $0x1c] sm:$0xf]
    %v2380 = vld [vmem:[%s2371 + $0x20] sm:$0xf]
    %v2381 = vld [vmem:[%s2371 + $0x24] sm:$0xf]
    %v2382 = vld [vmem:[%s2371 + $0x28] sm:$0xf]
    %v2383 = vld [vmem:[%s2371 + $0x2c] sm:$0xf]
    %v2384 = vld [vmem:[%s2371 + $0x30] sm:$0xf]
    %v2385 = vld [vmem:[%s2371 + $0x34] sm:$0xf]
    %v2386 = vld [vmem:[%s2371 + $0x38] sm:$0xf]
    %v2387 = vld [vmem:[%s2371 + $0x3c] sm:$0xf]
    %v2388 = vrot.slane %v1968, 5
    %v2389 = vrot.slane %v1969, 4
    %v2390 = vsel %vm816, %v2389, %v2388
    %v2391 = vpack.c.b16 %v2390, %v2390
    %v2409 = vunpack.c.l.b16 %v2372
    %v2410 = vunpack.c.l.b16 %v2373
    %v2411 = vunpack.c.l.b16 %v2374
    %v2412 = vunpack.c.l.b16 %v2375
    %v2413 = vunpack.c.l.b16 %v2376
    %v2414 = vunpack.c.l.b16 %v2377
    %v2415 = vunpack.c.l.b16 %v2378
    %v2416 = vunpack.c.l.b16 %v2379
    %v2417 = vunpack.c.l.b16 %v2380
    %v2418 = vunpack.c.l.b16 %v2381
    %v2419 = vunpack.c.l.b16 %v2382
    %v2420 = vunpack.c.l.b16 %v2383
    %v2421 = vunpack.c.l.b16 %v2384
    %v2422 = vunpack.c.l.b16 %v2385
    %v2423 = vunpack.c.l.b16 %v2386
    %v2424 = vunpack.c.l.b16 %v2387
    %v2425 = vpack.c.b16 %v2410, %v2409
    %v2426 = vpack.c.b16 %v2412, %v2411
    %v2427 = vpack.c.b16 %v2414, %v2413
    %v2428 = vpack.c.b16 %v2416, %v2415
    %v2429 = vpack.c.b16 %v2418, %v2417
    %v2430 = vpack.c.b16 %v2420, %v2419
    %v2431 = vpack.c.b16 %v2422, %v2421
    %v2432 = vpack.c.b16 %v2424, %v2423
    %2441 = vmatpush.bf16.msra.mxu0 %v2432
    %2442 = vmatpush.bf16.msra.mxu0 %v2431
    %2443 = vmatpush.bf16.msra.mxu0 %v2430
    %2444 = vmatpush.bf16.msra.mxu0 %v2429
    %2445 = vmatpush.bf16.msra.mxu0 %v2428
    %2446 = vmatpush.bf16.msra.mxu0 %v2427
    %2447 = vmatpush.bf16.msra.mxu0 %v2426
    %2448 = vmatpush.bf16.msra.mxu0 %v2425
    %2449 = vmatmul.bf16.gmra.mxu0 %v2391
    %v2450 = vpop.f32.mrf.mxu0
    %v2451 = vadd.f32 0.0, %v2450
    %v2452 = vpop.f32.mrf.mxu0
    %2453 = vdwg.mxu0
    %v2454 = vadd.f32 %v2370, %v2451
    %s2455 = scalar_lea.vmem [#allocation12], 896
    %v2456 = vld [vmem:[%s2455] sm:$0xf]
    %v2457 = vld [vmem:[%s2455 + $0x4] sm:$0xf]
    %v2458 = vld [vmem:[%s2455 + $0x8] sm:$0xf]
    %v2459 = vld [vmem:[%s2455 + $0xc] sm:$0xf]
    %v2460 = vld [vmem:[%s2455 + $0x10] sm:$0xf]
    %v2461 = vld [vmem:[%s2455 + $0x14] sm:$0xf]
    %v2462 = vld [vmem:[%s2455 + $0x18] sm:$0xf]
    %v2463 = vld [vmem:[%s2455 + $0x1c] sm:$0xf]
    %v2464 = vld [vmem:[%s2455 + $0x20] sm:$0xf]
    %v2465 = vld [vmem:[%s2455 + $0x24] sm:$0xf]
    %v2466 = vld [vmem:[%s2455 + $0x28] sm:$0xf]
    %v2467 = vld [vmem:[%s2455 + $0x2c] sm:$0xf]
    %v2468 = vld [vmem:[%s2455 + $0x30] sm:$0xf]
    %v2469 = vld [vmem:[%s2455 + $0x34] sm:$0xf]
    %v2470 = vld [vmem:[%s2455 + $0x38] sm:$0xf]
    %v2471 = vld [vmem:[%s2455 + $0x3c] sm:$0xf]
    %v2472 = vrot.slane %v1968, 6
    %v2473 = vrot.slane %v1969, 5
    %v2474 = vsel %vm816, %v2473, %v2472
    %v2475 = vpack.c.b16 %v2474, %v2474
    %v2493 = vunpack.c.l.b16 %v2456
    %v2494 = vunpack.c.l.b16 %v2457
    %v2495 = vunpack.c.l.b16 %v2458
    %v2496 = vunpack.c.l.b16 %v2459
    %v2497 = vunpack.c.l.b16 %v2460
    %v2498 = vunpack.c.l.b16 %v2461
    %v2499 = vunpack.c.l.b16 %v2462
    %v2500 = vunpack.c.l.b16 %v2463
    %v2501 = vunpack.c.l.b16 %v2464
    %v2502 = vunpack.c.l.b16 %v2465
    %v2503 = vunpack.c.l.b16 %v2466
    %v2504 = vunpack.c.l.b16 %v2467
    %v2505 = vunpack.c.l.b16 %v2468
    %v2506 = vunpack.c.l.b16 %v2469
    %v2507 = vunpack.c.l.b16 %v2470
    %v2508 = vunpack.c.l.b16 %v2471
    %v2509 = vpack.c.b16 %v2494, %v2493
    %v2510 = vpack.c.b16 %v2496, %v2495
    %v2511 = vpack.c.b16 %v2498, %v2497
    %v2512 = vpack.c.b16 %v2500, %v2499
    %v2513 = vpack.c.b16 %v2502, %v2501
    %v2514 = vpack.c.b16 %v2504, %v2503
    %v2515 = vpack.c.b16 %v2506, %v2505
    %v2516 = vpack.c.b16 %v2508, %v2507
    %2525 = vmatpush.bf16.msra.mxu0 %v2516
    %2526 = vmatpush.bf16.msra.mxu0 %v2515
    %2527 = vmatpush.bf16.msra.mxu0 %v2514
    %2528 = vmatpush.bf16.msra.mxu0 %v2513
    %2529 = vmatpush.bf16.msra.mxu0 %v2512
    %2530 = vmatpush.bf16.msra.mxu0 %v2511
    %2531 = vmatpush.bf16.msra.mxu0 %v2510
    %2532 = vmatpush.bf16.msra.mxu0 %v2509
    %2533 = vmatmul.bf16.gmra.mxu0 %v2475
    %v2534 = vpop.f32.mrf.mxu0
    %v2535 = vadd.f32 0.0, %v2534
    %v2536 = vpop.f32.mrf.mxu0
    %2537 = vdwg.mxu0
    %v2538 = vadd.f32 %v2454, %v2535
    %s2539 = scalar_lea.vmem [#allocation12], 960
    %v2540 = vld [vmem:[%s2539] sm:$0xf]
    %v2541 = vld [vmem:[%s2539 + $0x4] sm:$0xf]
    %v2542 = vld [vmem:[%s2539 + $0x8] sm:$0xf]
    %v2543 = vld [vmem:[%s2539 + $0xc] sm:$0xf]
    %v2544 = vld [vmem:[%s2539 + $0x10] sm:$0xf]
    %v2545 = vld [vmem:[%s2539 + $0x14] sm:$0xf]
    %v2546 = vld [vmem:[%s2539 + $0x18] sm:$0xf]
    %v2547 = vld [vmem:[%s2539 + $0x1c] sm:$0xf]
    %v2548 = vld [vmem:[%s2539 + $0x20] sm:$0xf]
    %v2549 = vld [vmem:[%s2539 + $0x24] sm:$0xf]
    %v2550 = vld [vmem:[%s2539 + $0x28] sm:$0xf]
    %v2551 = vld [vmem:[%s2539 + $0x2c] sm:$0xf]
    %v2552 = vld [vmem:[%s2539 + $0x30] sm:$0xf]
    %v2553 = vld [vmem:[%s2539 + $0x34] sm:$0xf]
    %v2554 = vld [vmem:[%s2539 + $0x38] sm:$0xf]
    %v2555 = vld [vmem:[%s2539 + $0x3c] sm:$0xf]
    %v2556 = vrot.slane %v1968, 7
    %v2557 = vrot.slane %v1969, 6
    %v2558 = vsel %vm816, %v2557, %v2556
    %v2559 = vpack.c.b16 %v2558, %v2558
    %v2577 = vunpack.c.l.b16 %v2540
    %v2578 = vunpack.c.l.b16 %v2541
    %v2579 = vunpack.c.l.b16 %v2542
    %v2580 = vunpack.c.l.b16 %v2543
    %v2581 = vunpack.c.l.b16 %v2544
    %v2582 = vunpack.c.l.b16 %v2545
    %v2583 = vunpack.c.l.b16 %v2546
    %v2584 = vunpack.c.l.b16 %v2547
    %v2585 = vunpack.c.l.b16 %v2548
    %v2586 = vunpack.c.l.b16 %v2549
    %v2587 = vunpack.c.l.b16 %v2550
    %v2588 = vunpack.c.l.b16 %v2551
    %v2589 = vunpack.c.l.b16 %v2552
    %v2590 = vunpack.c.l.b16 %v2553
    %v2591 = vunpack.c.l.b16 %v2554
    %v2592 = vunpack.c.l.b16 %v2555
    %v2593 = vpack.c.b16 %v2578, %v2577
    %v2594 = vpack.c.b16 %v2580, %v2579
    %v2595 = vpack.c.b16 %v2582, %v2581
    %v2596 = vpack.c.b16 %v2584, %v2583
    %v2597 = vpack.c.b16 %v2586, %v2585
    %v2598 = vpack.c.b16 %v2588, %v2587
    %v2599 = vpack.c.b16 %v2590, %v2589
    %v2600 = vpack.c.b16 %v2592, %v2591
    %2609 = vmatpush.bf16.msra.mxu0 %v2600
    %2610 = vmatpush.bf16.msra.mxu0 %v2599
    %2611 = vmatpush.bf16.msra.mxu0 %v2598
    %2612 = vmatpush.bf16.msra.mxu0 %v2597
    %2613 = vmatpush.bf16.msra.mxu0 %v2596
    %2614 = vmatpush.bf16.msra.mxu0 %v2595
    %2615 = vmatpush.bf16.msra.mxu0 %v2594
    %2616 = vmatpush.bf16.msra.mxu0 %v2593
    %2617 = vmatmul.bf16.gmra.mxu0 %v2559
    %v2618 = vpop.f32.mrf.mxu0
    %v2619 = vadd.f32 0.0, %v2618
    %v2620 = vpop.f32.mrf.mxu0
    %2621 = vdwg.mxu0
    %v2622 = vadd.f32 %v2538, %v2619
    %v2623 = vld [vmem:[#allocation2] sm:$0xff]
    %v2624 = vld [vmem:[#allocation2 + $0x8] sm:$0xf]
    %v2625 = vld [vmem:[#allocation2 + $0x10] sm:$0xff]
    %v2626 = vld [vmem:[#allocation2 + $0x18] sm:$0xf]
    %v2627 = vpack.c.bf16 %v2625, %v2623
    %s2628 = scalar_lea.vmem [#allocation8], 640
    %v2629 = vld [vmem:[%s2628] sm:$0xf]
    %v2630 = vld [vmem:[%s2628 + $0x4] sm:$0xf]
    %v2631 = vld [vmem:[%s2628 + $0x8] sm:$0xf]
    %v2632 = vld [vmem:[%s2628 + $0xc] sm:$0xf]
    %v2633 = vld [vmem:[%s2628 + $0x10] sm:$0xf]
    %v2634 = vld [vmem:[%s2628 + $0x14] sm:$0xf]
    %v2635 = vld [vmem:[%s2628 + $0x18] sm:$0xf]
    %v2636 = vld [vmem:[%s2628 + $0x1c] sm:$0xf]
    %v2637 = vld [vmem:[%s2628 + $0x20] sm:$0xf]
    %v2638 = vld [vmem:[%s2628 + $0x24] sm:$0xf]
    %v2639 = vld [vmem:[%s2628 + $0x28] sm:$0xf]
    %v2640 = vld [vmem:[%s2628 + $0x2c] sm:$0xf]
    %v2641 = vld [vmem:[%s2628 + $0x30] sm:$0xf]
    %v2642 = vld [vmem:[%s2628 + $0x34] sm:$0xf]
    %v2643 = vld [vmem:[%s2628 + $0x38] sm:$0xf]
    %v2644 = vld [vmem:[%s2628 + $0x3c] sm:$0xf]
    %v2649 = vrot.slane %v2623, 1
    %v2650 = vrot.slane %v2624, 1
    %v2651 = vsel %vm215, %v2649, %v2650
    %v2652 = vrot.slane %v2625, 1
    %v2653 = vrot.slane %v2626, 1
    %v2654 = vsel %vm215, %v2652, %v2653
    %v2657 = vpack.c.bf16 %v2654, %v2651
    %s2658 = scalar_lea.vmem [#allocation8], 704
    %v2659 = vld [vmem:[%s2658] sm:$0xf]
    %v2660 = vld [vmem:[%s2658 + $0x4] sm:$0xf]
    %v2661 = vld [vmem:[%s2658 + $0x8] sm:$0xf]
    %v2662 = vld [vmem:[%s2658 + $0xc] sm:$0xf]
    %v2663 = vld [vmem:[%s2658 + $0x10] sm:$0xf]
    %v2664 = vld [vmem:[%s2658 + $0x14] sm:$0xf]
    %v2665 = vld [vmem:[%s2658 + $0x18] sm:$0xf]
    %v2666 = vld [vmem:[%s2658 + $0x1c] sm:$0xf]
    %v2667 = vld [vmem:[%s2658 + $0x20] sm:$0xf]
    %v2668 = vld [vmem:[%s2658 + $0x24] sm:$0xf]
    %v2669 = vld [vmem:[%s2658 + $0x28] sm:$0xf]
    %v2670 = vld [vmem:[%s2658 + $0x2c] sm:$0xf]
    %v2671 = vld [vmem:[%s2658 + $0x30] sm:$0xf]
    %v2672 = vld [vmem:[%s2658 + $0x34] sm:$0xf]
    %v2673 = vld [vmem:[%s2658 + $0x38] sm:$0xf]
    %v2674 = vld [vmem:[%s2658 + $0x3c] sm:$0xf]
    %v2691 = vunpack.c.l.b16 %v2659
    %v2692 = vunpack.c.l.b16 %v2660
    %v2693 = vunpack.c.l.b16 %v2661
    %v2694 = vunpack.c.l.b16 %v2662
    %v2695 = vunpack.c.l.b16 %v2663
    %v2696 = vunpack.c.l.b16 %v2664
    %v2697 = vunpack.c.l.b16 %v2665
    %v2698 = vunpack.c.l.b16 %v2666
    %v2699 = vunpack.c.l.b16 %v2667
    %v2700 = vunpack.c.l.b16 %v2668
    %v2701 = vunpack.c.l.b16 %v2669
    %v2702 = vunpack.c.l.b16 %v2670
    %v2703 = vunpack.c.l.b16 %v2671
    %v2704 = vunpack.c.l.b16 %v2672
    %v2705 = vunpack.c.l.b16 %v2673
    %v2706 = vunpack.c.l.b16 %v2674
    %v2707 = vpack.c.b16 %v2692, %v2691
    %v2708 = vpack.c.b16 %v2694, %v2693
    %v2709 = vpack.c.b16 %v2696, %v2695
    %v2710 = vpack.c.b16 %v2698, %v2697
    %v2711 = vpack.c.b16 %v2700, %v2699
    %v2712 = vpack.c.b16 %v2702, %v2701
    %v2713 = vpack.c.b16 %v2704, %v2703
    %v2714 = vpack.c.b16 %v2706, %v2705
    %2723 = vmatpush.bf16.msra.mxu0 %v2714
    %2724 = vmatpush.bf16.msra.mxu0 %v2713
    %2725 = vmatpush.bf16.msra.mxu0 %v2712
    %2726 = vmatpush.bf16.msra.mxu0 %v2711
    %2727 = vmatpush.bf16.msra.mxu0 %v2710
    %2728 = vmatpush.bf16.msra.mxu0 %v2709
    %2729 = vmatpush.bf16.msra.mxu0 %v2708
    %2730 = vmatpush.bf16.msra.mxu0 %v2707
    %2731 = vmatmul.bf16.gmra.mxu0 %v2657
    %v2732 = vpop.f32.mrf.mxu0
    %v2733 = vadd.f32 0.0, %v2732
    %v2734 = vpop.f32.mrf.mxu0
    %v2735 = vadd.f32 0.0, %v2734
    %2736 = vdwg.mxu0
    %v2753 = vunpack.c.l.b16 %v2629
    %v2754 = vunpack.c.l.b16 %v2630
    %v2755 = vunpack.c.l.b16 %v2631
    %v2756 = vunpack.c.l.b16 %v2632
    %v2757 = vunpack.c.l.b16 %v2633
    %v2758 = vunpack.c.l.b16 %v2634
    %v2759 = vunpack.c.l.b16 %v2635
    %v2760 = vunpack.c.l.b16 %v2636
    %v2761 = vunpack.c.l.b16 %v2637
    %v2762 = vunpack.c.l.b16 %v2638
    %v2763 = vunpack.c.l.b16 %v2639
    %v2764 = vunpack.c.l.b16 %v2640
    %v2765 = vunpack.c.l.b16 %v2641
    %v2766 = vunpack.c.l.b16 %v2642
    %v2767 = vunpack.c.l.b16 %v2643
    %v2768 = vunpack.c.l.b16 %v2644
    %v2769 = vpack.c.b16 %v2754, %v2753
    %v2770 = vpack.c.b16 %v2756, %v2755
    %v2771 = vpack.c.b16 %v2758, %v2757
    %v2772 = vpack.c.b16 %v2760, %v2759
    %v2773 = vpack.c.b16 %v2762, %v2761
    %v2774 = vpack.c.b16 %v2764, %v2763
    %v2775 = vpack.c.b16 %v2766, %v2765
    %v2776 = vpack.c.b16 %v2768, %v2767
    %2785 = vmatpush.bf16.msra.mxu0 %v2776
    %2786 = vmatpush.bf16.msra.mxu0 %v2775
    %2787 = vmatpush.bf16.msra.mxu0 %v2774
    %2788 = vmatpush.bf16.msra.mxu0 %v2773
    %2789 = vmatpush.bf16.msra.mxu0 %v2772
    %2790 = vmatpush.bf16.msra.mxu0 %v2771
    %2791 = vmatpush.bf16.msra.mxu0 %v2770
    %2792 = vmatpush.bf16.msra.mxu0 %v2769
    %2793 = vmatmul.bf16.gmra.mxu0 %v2627
    %v2794 = vpop.f32.mrf.mxu0
    %v2795 = vadd.f32 %v2733, %v2794
    %v2796 = vpop.f32.mrf.mxu0
    %v2797 = vadd.f32 %v2735, %v2796
    %2798 = vdwg.mxu0
    %v2799 = vrot.slane %v2623, 2
    %v2800 = vrot.slane %v2624, 2
    %v2801 = vsel %vm234, %v2799, %v2800
    %v2802 = vrot.slane %v2625, 2
    %v2803 = vrot.slane %v2626, 2
    %v2804 = vsel %vm234, %v2802, %v2803
    %v2807 = vpack.c.bf16 %v2804, %v2801
    %s2808 = scalar_lea.vmem [#allocation8], 768
    %v2809 = vld [vmem:[%s2808] sm:$0xf]
    %v2810 = vld [vmem:[%s2808 + $0x4] sm:$0xf]
    %v2811 = vld [vmem:[%s2808 + $0x8] sm:$0xf]
    %v2812 = vld [vmem:[%s2808 + $0xc] sm:$0xf]
    %v2813 = vld [vmem:[%s2808 + $0x10] sm:$0xf]
    %v2814 = vld [vmem:[%s2808 + $0x14] sm:$0xf]
    %v2815 = vld [vmem:[%s2808 + $0x18] sm:$0xf]
    %v2816 = vld [vmem:[%s2808 + $0x1c] sm:$0xf]
    %v2817 = vld [vmem:[%s2808 + $0x20] sm:$0xf]
    %v2818 = vld [vmem:[%s2808 + $0x24] sm:$0xf]
    %v2819 = vld [vmem:[%s2808 + $0x28] sm:$0xf]
    %v2820 = vld [vmem:[%s2808 + $0x2c] sm:$0xf]
    %v2821 = vld [vmem:[%s2808 + $0x30] sm:$0xf]
    %v2822 = vld [vmem:[%s2808 + $0x34] sm:$0xf]
    %v2823 = vld [vmem:[%s2808 + $0x38] sm:$0xf]
    %v2824 = vld [vmem:[%s2808 + $0x3c] sm:$0xf]
    %v2841 = vunpack.c.l.b16 %v2809
    %v2842 = vunpack.c.l.b16 %v2810
    %v2843 = vunpack.c.l.b16 %v2811
    %v2844 = vunpack.c.l.b16 %v2812
    %v2845 = vunpack.c.l.b16 %v2813
    %v2846 = vunpack.c.l.b16 %v2814
    %v2847 = vunpack.c.l.b16 %v2815
    %v2848 = vunpack.c.l.b16 %v2816
    %v2849 = vunpack.c.l.b16 %v2817
    %v2850 = vunpack.c.l.b16 %v2818
    %v2851 = vunpack.c.l.b16 %v2819
    %v2852 = vunpack.c.l.b16 %v2820
    %v2853 = vunpack.c.l.b16 %v2821
    %v2854 = vunpack.c.l.b16 %v2822
    %v2855 = vunpack.c.l.b16 %v2823
    %v2856 = vunpack.c.l.b16 %v2824
    %v2857 = vpack.c.b16 %v2842, %v2841
    %v2858 = vpack.c.b16 %v2844, %v2843
    %v2859 = vpack.c.b16 %v2846, %v2845
    %v2860 = vpack.c.b16 %v2848, %v2847
    %v2861 = vpack.c.b16 %v2850, %v2849
    %v2862 = vpack.c.b16 %v2852, %v2851
    %v2863 = vpack.c.b16 %v2854, %v2853
    %v2864 = vpack.c.b16 %v2856, %v2855
    %2873 = vmatpush.bf16.msra.mxu0 %v2864
    %2874 = vmatpush.bf16.msra.mxu0 %v2863
    %2875 = vmatpush.bf16.msra.mxu0 %v2862
    %2876 = vmatpush.bf16.msra.mxu0 %v2861
    %2877 = vmatpush.bf16.msra.mxu0 %v2860
    %2878 = vmatpush.bf16.msra.mxu0 %v2859
    %2879 = vmatpush.bf16.msra.mxu0 %v2858
    %2880 = vmatpush.bf16.msra.mxu0 %v2857
    %2881 = vmatmul.bf16.gmra.mxu0 %v2807
    %v2882 = vpop.f32.mrf.mxu0
    %v2883 = vadd.f32 0.0, %v2882
    %v2884 = vpop.f32.mrf.mxu0
    %v2885 = vadd.f32 0.0, %v2884
    %2886 = vdwg.mxu0
    %v2887 = vadd.f32 %v2795, %v2883
    %v2888 = vadd.f32 %v2797, %v2885
    %v2889 = vrot.slane %v2623, 3
    %v2890 = vrot.slane %v2624, 3
    %v2891 = vsel %vm538, %v2889, %v2890
    %v2892 = vrot.slane %v2625, 3
    %v2893 = vrot.slane %v2626, 3
    %v2894 = vsel %vm538, %v2892, %v2893
    %v2897 = vpack.c.bf16 %v2894, %v2891
    %s2898 = scalar_lea.vmem [#allocation8], 832
    %v2899 = vld [vmem:[%s2898] sm:$0xf]
    %v2900 = vld [vmem:[%s2898 + $0x4] sm:$0xf]
    %v2901 = vld [vmem:[%s2898 + $0x8] sm:$0xf]
    %v2902 = vld [vmem:[%s2898 + $0xc] sm:$0xf]
    %v2903 = vld [vmem:[%s2898 + $0x10] sm:$0xf]
    %v2904 = vld [vmem:[%s2898 + $0x14] sm:$0xf]
    %v2905 = vld [vmem:[%s2898 + $0x18] sm:$0xf]
    %v2906 = vld [vmem:[%s2898 + $0x1c] sm:$0xf]
    %v2907 = vld [vmem:[%s2898 + $0x20] sm:$0xf]
    %v2908 = vld [vmem:[%s2898 + $0x24] sm:$0xf]
    %v2909 = vld [vmem:[%s2898 + $0x28] sm:$0xf]
    %v2910 = vld [vmem:[%s2898 + $0x2c] sm:$0xf]
    %v2911 = vld [vmem:[%s2898 + $0x30] sm:$0xf]
    %v2912 = vld [vmem:[%s2898 + $0x34] sm:$0xf]
    %v2913 = vld [vmem:[%s2898 + $0x38] sm:$0xf]
    %v2914 = vld [vmem:[%s2898 + $0x3c] sm:$0xf]
    %v2931 = vunpack.c.l.b16 %v2899
    %v2932 = vunpack.c.l.b16 %v2900
    %v2933 = vunpack.c.l.b16 %v2901
    %v2934 = vunpack.c.l.b16 %v2902
    %v2935 = vunpack.c.l.b16 %v2903
    %v2936 = vunpack.c.l.b16 %v2904
    %v2937 = vunpack.c.l.b16 %v2905
    %v2938 = vunpack.c.l.b16 %v2906
    %v2939 = vunpack.c.l.b16 %v2907
    %v2940 = vunpack.c.l.b16 %v2908
    %v2941 = vunpack.c.l.b16 %v2909
    %v2942 = vunpack.c.l.b16 %v2910
    %v2943 = vunpack.c.l.b16 %v2911
    %v2944 = vunpack.c.l.b16 %v2912
    %v2945 = vunpack.c.l.b16 %v2913
    %v2946 = vunpack.c.l.b16 %v2914
    %v2947 = vpack.c.b16 %v2932, %v2931
    %v2948 = vpack.c.b16 %v2934, %v2933
    %v2949 = vpack.c.b16 %v2936, %v2935
    %v2950 = vpack.c.b16 %v2938, %v2937
    %v2951 = vpack.c.b16 %v2940, %v2939
    %v2952 = vpack.c.b16 %v2942, %v2941
    %v2953 = vpack.c.b16 %v2944, %v2943
    %v2954 = vpack.c.b16 %v2946, %v2945
    %2963 = vmatpush.bf16.msra.mxu0 %v2954
    %2964 = vmatpush.bf16.msra.mxu0 %v2953
    %2965 = vmatpush.bf16.msra.mxu0 %v2952
    %2966 = vmatpush.bf16.msra.mxu0 %v2951
    %2967 = vmatpush.bf16.msra.mxu0 %v2950
    %2968 = vmatpush.bf16.msra.mxu0 %v2949
    %2969 = vmatpush.bf16.msra.mxu0 %v2948
    %2970 = vmatpush.bf16.msra.mxu0 %v2947
    %2971 = vmatmul.bf16.gmra.mxu0 %v2897
    %v2972 = vpop.f32.mrf.mxu0
    %v2973 = vadd.f32 0.0, %v2972
    %v2974 = vpop.f32.mrf.mxu0
    %v2975 = vadd.f32 0.0, %v2974
    %2976 = vdwg.mxu0
    %v2977 = vadd.f32 %v2887, %v2973
    %v2978 = vadd.f32 %v2888, %v2975
    %v2979 = vrot.slane %v2623, 4
    %v2980 = vrot.slane %v2624, 4
    %v2981 = vsel %vm629, %v2979, %v2980
    %v2982 = vrot.slane %v2625, 4
    %v2983 = vrot.slane %v2626, 4
    %v2984 = vsel %vm629, %v2982, %v2983
    %v2987 = vpack.c.bf16 %v2984, %v2981
    %s2988 = scalar_lea.vmem [#allocation8], 896
    %v2989 = vld [vmem:[%s2988] sm:$0xf]
    %v2990 = vld [vmem:[%s2988 + $0x4] sm:$0xf]
    %v2991 = vld [vmem:[%s2988 + $0x8] sm:$0xf]
    %v2992 = vld [vmem:[%s2988 + $0xc] sm:$0xf]
    %v2993 = vld [vmem:[%s2988 + $0x10] sm:$0xf]
    %v2994 = vld [vmem:[%s2988 + $0x14] sm:$0xf]
    %v2995 = vld [vmem:[%s2988 + $0x18] sm:$0xf]
    %v2996 = vld [vmem:[%s2988 + $0x1c] sm:$0xf]
    %v2997 = vld [vmem:[%s2988 + $0x20] sm:$0xf]
    %v2998 = vld [vmem:[%s2988 + $0x24] sm:$0xf]
    %v2999 = vld [vmem:[%s2988 + $0x28] sm:$0xf]
    %v3000 = vld [vmem:[%s2988 + $0x2c] sm:$0xf]
    %v3001 = vld [vmem:[%s2988 + $0x30] sm:$0xf]
    %v3002 = vld [vmem:[%s2988 + $0x34] sm:$0xf]
    %v3003 = vld [vmem:[%s2988 + $0x38] sm:$0xf]
    %v3004 = vld [vmem:[%s2988 + $0x3c] sm:$0xf]
    %v3021 = vunpack.c.l.b16 %v2989
    %v3022 = vunpack.c.l.b16 %v2990
    %v3023 = vunpack.c.l.b16 %v2991
    %v3024 = vunpack.c.l.b16 %v2992
    %v3025 = vunpack.c.l.b16 %v2993
    %v3026 = vunpack.c.l.b16 %v2994
    %v3027 = vunpack.c.l.b16 %v2995
    %v3028 = vunpack.c.l.b16 %v2996
    %v3029 = vunpack.c.l.b16 %v2997
    %v3030 = vunpack.c.l.b16 %v2998
    %v3031 = vunpack.c.l.b16 %v2999
    %v3032 = vunpack.c.l.b16 %v3000
    %v3033 = vunpack.c.l.b16 %v3001
    %v3034 = vunpack.c.l.b16 %v3002
    %v3035 = vunpack.c.l.b16 %v3003
    %v3036 = vunpack.c.l.b16 %v3004
    %v3037 = vpack.c.b16 %v3022, %v3021
    %v3038 = vpack.c.b16 %v3024, %v3023
    %v3039 = vpack.c.b16 %v3026, %v3025
    %v3040 = vpack.c.b16 %v3028, %v3027
    %v3041 = vpack.c.b16 %v3030, %v3029
    %v3042 = vpack.c.b16 %v3032, %v3031
    %v3043 = vpack.c.b16 %v3034, %v3033
    %v3044 = vpack.c.b16 %v3036, %v3035
    %3053 = vmatpush.bf16.msra.mxu0 %v3044
    %3054 = vmatpush.bf16.msra.mxu0 %v3043
    %3055 = vmatpush.bf16.msra.mxu0 %v3042
    %3056 = vmatpush.bf16.msra.mxu0 %v3041
    %3057 = vmatpush.bf16.msra.mxu0 %v3040
    %3058 = vmatpush.bf16.msra.mxu0 %v3039
    %3059 = vmatpush.bf16.msra.mxu0 %v3038
    %3060 = vmatpush.bf16.msra.mxu0 %v3037
    %3061 = vmatmul.bf16.gmra.mxu0 %v2987
    %v3062 = vpop.f32.mrf.mxu0
    %v3063 = vadd.f32 0.0, %v3062
    %v3064 = vpop.f32.mrf.mxu0
    %v3065 = vadd.f32 0.0, %v3064
    %3066 = vdwg.mxu0
    %v3067 = vadd.f32 %v2977, %v3063
    %v3068 = vadd.f32 %v2978, %v3065
    %v3069 = vadd.f32 %v3067, %v3068
    %v3070 = vrot.slane %v3069, 4
    %v3071 = vadd.f32 %v3069, %v3070
    %v3072 = vrot.slane %v3071, 2
    %v3073 = vadd.f32 %v3071, %v3072
    %v3074 = vrot.slane %v3073, 1
    %v3075 = vadd.f32 %v3073, %v3074
    %v3076 = vmul.f32 %v3075, %v733
    %v3077 = vsub.f32 %v3067, %v3076
    %v3078 = vsub.f32 %v3068, %v3076
    %v3079 = vmul.f32 %v3077, %v3077
    %v3080 = vmul.f32 %v3078, %v3078
    %v3081 = vadd.f32 %v3079, %v3080
    %v3082 = vrot.slane %v3081, 4
    %v3083 = vadd.f32 %v3081, %v3082
    %v3084 = vrot.slane %v3083, 2
    %v3085 = vadd.f32 %v3083, %v3084
    %v3086 = vrot.slane %v3085, 1
    %v3087 = vadd.f32 %v3085, %v3086
    %v3088 = vmul.f32 %v3087, %v733
    %v3089 = vadd.f32 %v3088, 1e-05
    %v3090 = vrsqrt.pop %v3089
    %v3091 = vmul.f32 %v3090, %v3089
    %v3092 = vmul.f32 %v3091, %v3090
    %v3093 = vmul.f32 0.5, %v3092
    %v3094 = vsub.f32 1.5, %v3093
    %v3095 = vmul.f32 %v3090, %v3094
    %vm3096 = vweird.f32 %v3089
    %vm3097 = vweird.f32 %v3090
    %vm3098 = vmor %vm3096, %vm3097
    %v3099 = vsel %vm3098, %v3090, %v3095
    %v3100 = vmul.f32 %v3077, %v3099
    %v3101 = vmul.f32 %v3078, %v3099
    %s3102 = scalar_lea.vmem [#allocation9], 2
    %v3103 = vld [vmem:[%s3102] sm:$0x1]
    %v3105 = vperm.slane %v3103, 0
    %v3107 = vmul.f32 %v3100, %v3105
    %v3108 = vmul.f32 %v3101, %v3105
    %s3109 = scalar_lea.vmem [#allocation11], 2
    %v3110 = vld [vmem:[%s3109] sm:$0x1]
    %v3112 = vperm.slane %v3110, 0
    %v3114 = vadd.f32 %v3107, %v3112
    %v3115 = vadd.f32 %v3108, %v3112
    %v3116 = vmax.f32 %v3114, 0.0
    %v3117 = vmax.f32 %v3115, 0.0
    %3118 = vst [vmem:[#allocation2 + $0x2] sm:$0xff] %v3116
    %3119 = vst [vmem:[#allocation2 + $0x12] sm:$0xff] %v3117
    %v3120 = vpack.c.bf16 %v3116, %v3116
    %v3121 = vpack.c.bf16 %v3117, %v3117
    %s3122 = scalar_lea.vmem [#allocation12], 1024
    %v3123 = vld [vmem:[%s3122] sm:$0xf]
    %v3124 = vld [vmem:[%s3122 + $0x4] sm:$0xf]
    %v3125 = vld [vmem:[%s3122 + $0x8] sm:$0xf]
    %v3126 = vld [vmem:[%s3122 + $0xc] sm:$0xf]
    %v3127 = vld [vmem:[%s3122 + $0x10] sm:$0xf]
    %v3128 = vld [vmem:[%s3122 + $0x14] sm:$0xf]
    %v3129 = vld [vmem:[%s3122 + $0x18] sm:$0xf]
    %v3130 = vld [vmem:[%s3122 + $0x1c] sm:$0xf]
    %v3131 = vld [vmem:[%s3122 + $0x20] sm:$0xf]
    %v3132 = vld [vmem:[%s3122 + $0x24] sm:$0xf]
    %v3133 = vld [vmem:[%s3122 + $0x28] sm:$0xf]
    %v3134 = vld [vmem:[%s3122 + $0x2c] sm:$0xf]
    %v3135 = vld [vmem:[%s3122 + $0x30] sm:$0xf]
    %v3136 = vld [vmem:[%s3122 + $0x34] sm:$0xf]
    %v3137 = vld [vmem:[%s3122 + $0x38] sm:$0xf]
    %v3138 = vld [vmem:[%s3122 + $0x3c] sm:$0xf]
    %v3141 = vunpack.c.l.b16 %v3120
    %v3142 = vunpack.c.l.b16 %v3121
    %v3143 = vrot.slane %v3142, 7
    %v3144 = vsel %vm816, %v3143, %v3141
    %v3145 = vpack.c.b16 %v3144, %v3144
    %v3163 = vunpack.c.l.b16 %v3123
    %v3164 = vunpack.c.l.b16 %v3124
    %v3165 = vunpack.c.l.b16 %v3125
    %v3166 = vunpack.c.l.b16 %v3126
    %v3167 = vunpack.c.l.b16 %v3127
    %v3168 = vunpack.c.l.b16 %v3128
    %v3169 = vunpack.c.l.b16 %v3129
    %v3170 = vunpack.c.l.b16 %v3130
    %v3171 = vunpack.c.l.b16 %v3131
    %v3172 = vunpack.c.l.b16 %v3132
    %v3173 = vunpack.c.l.b16 %v3133
    %v3174 = vunpack.c.l.b16 %v3134
    %v3175 = vunpack.c.l.b16 %v3135
    %v3176 = vunpack.c.l.b16 %v3136
    %v3177 = vunpack.c.l.b16 %v3137
    %v3178 = vunpack.c.l.b16 %v3138
    %v3179 = vpack.c.b16 %v3164, %v3163
    %v3180 = vpack.c.b16 %v3166, %v3165
    %v3181 = vpack.c.b16 %v3168, %v3167
    %v3182 = vpack.c.b16 %v3170, %v3169
    %v3183 = vpack.c.b16 %v3172, %v3171
    %v3184 = vpack.c.b16 %v3174, %v3173
    %v3185 = vpack.c.b16 %v3176, %v3175
    %v3186 = vpack.c.b16 %v3178, %v3177
    %3195 = vmatpush.bf16.msra.mxu0 %v3186
    %3196 = vmatpush.bf16.msra.mxu0 %v3185
    %3197 = vmatpush.bf16.msra.mxu0 %v3184
    %3198 = vmatpush.bf16.msra.mxu0 %v3183
    %3199 = vmatpush.bf16.msra.mxu0 %v3182
    %3200 = vmatpush.bf16.msra.mxu0 %v3181
    %3201 = vmatpush.bf16.msra.mxu0 %v3180
    %3202 = vmatpush.bf16.msra.mxu0 %v3179
    %3203 = vmatmul.bf16.gmra.mxu0 %v3145
    %v3204 = vpop.f32.mrf.mxu0
    %v3205 = vadd.f32 0.0, %v3204
    %v3206 = vpop.f32.mrf.mxu0
    %3207 = vdwg.mxu0
    %v3208 = vadd.f32 %v2622, %v3205
    %s3209 = scalar_lea.vmem [#allocation12], 1088
    %v3210 = vld [vmem:[%s3209] sm:$0xf]
    %v3211 = vld [vmem:[%s3209 + $0x4] sm:$0xf]
    %v3212 = vld [vmem:[%s3209 + $0x8] sm:$0xf]
    %v3213 = vld [vmem:[%s3209 + $0xc] sm:$0xf]
    %v3214 = vld [vmem:[%s3209 + $0x10] sm:$0xf]
    %v3215 = vld [vmem:[%s3209 + $0x14] sm:$0xf]
    %v3216 = vld [vmem:[%s3209 + $0x18] sm:$0xf]
    %v3217 = vld [vmem:[%s3209 + $0x1c] sm:$0xf]
    %v3218 = vld [vmem:[%s3209 + $0x20] sm:$0xf]
    %v3219 = vld [vmem:[%s3209 + $0x24] sm:$0xf]
    %v3220 = vld [vmem:[%s3209 + $0x28] sm:$0xf]
    %v3221 = vld [vmem:[%s3209 + $0x2c] sm:$0xf]
    %v3222 = vld [vmem:[%s3209 + $0x30] sm:$0xf]
    %v3223 = vld [vmem:[%s3209 + $0x34] sm:$0xf]
    %v3224 = vld [vmem:[%s3209 + $0x38] sm:$0xf]
    %v3225 = vld [vmem:[%s3209 + $0x3c] sm:$0xf]
    %v3226 = vrot.slane %v3141, 1
    %v3227 = vsel %vm816, %v3142, %v3226
    %v3228 = vpack.c.b16 %v3227, %v3227
    %v3246 = vunpack.c.l.b16 %v3210
    %v3247 = vunpack.c.l.b16 %v3211
    %v3248 = vunpack.c.l.b16 %v3212
    %v3249 = vunpack.c.l.b16 %v3213
    %v3250 = vunpack.c.l.b16 %v3214
    %v3251 = vunpack.c.l.b16 %v3215
    %v3252 = vunpack.c.l.b16 %v3216
    %v3253 = vunpack.c.l.b16 %v3217
    %v3254 = vunpack.c.l.b16 %v3218
    %v3255 = vunpack.c.l.b16 %v3219
    %v3256 = vunpack.c.l.b16 %v3220
    %v3257 = vunpack.c.l.b16 %v3221
    %v3258 = vunpack.c.l.b16 %v3222
    %v3259 = vunpack.c.l.b16 %v3223
    %v3260 = vunpack.c.l.b16 %v3224
    %v3261 = vunpack.c.l.b16 %v3225
    %v3262 = vpack.c.b16 %v3247, %v3246
    %v3263 = vpack.c.b16 %v3249, %v3248
    %v3264 = vpack.c.b16 %v3251, %v3250
    %v3265 = vpack.c.b16 %v3253, %v3252
    %v3266 = vpack.c.b16 %v3255, %v3254
    %v3267 = vpack.c.b16 %v3257, %v3256
    %v3268 = vpack.c.b16 %v3259, %v3258
    %v3269 = vpack.c.b16 %v3261, %v3260
    %3278 = vmatpush.bf16.msra.mxu0 %v3269
    %3279 = vmatpush.bf16.msra.mxu0 %v3268
    %3280 = vmatpush.bf16.msra.mxu0 %v3267
    %3281 = vmatpush.bf16.msra.mxu0 %v3266
    %3282 = vmatpush.bf16.msra.mxu0 %v3265
    %3283 = vmatpush.bf16.msra.mxu0 %v3264
    %3284 = vmatpush.bf16.msra.mxu0 %v3263
    %3285 = vmatpush.bf16.msra.mxu0 %v3262
    %3286 = vmatmul.bf16.gmra.mxu0 %v3228
    %v3287 = vpop.f32.mrf.mxu0
    %v3288 = vadd.f32 0.0, %v3287
    %v3289 = vpop.f32.mrf.mxu0
    %3290 = vdwg.mxu0
    %v3291 = vadd.f32 %v3208, %v3288
    %s3292 = scalar_lea.vmem [#allocation12], 1152
    %v3293 = vld [vmem:[%s3292] sm:$0xf]
    %v3294 = vld [vmem:[%s3292 + $0x4] sm:$0xf]
    %v3295 = vld [vmem:[%s3292 + $0x8] sm:$0xf]
    %v3296 = vld [vmem:[%s3292 + $0xc] sm:$0xf]
    %v3297 = vld [vmem:[%s3292 + $0x10] sm:$0xf]
    %v3298 = vld [vmem:[%s3292 + $0x14] sm:$0xf]
    %v3299 = vld [vmem:[%s3292 + $0x18] sm:$0xf]
    %v3300 = vld [vmem:[%s3292 + $0x1c] sm:$0xf]
    %v3301 = vld [vmem:[%s3292 + $0x20] sm:$0xf]
    %v3302 = vld [vmem:[%s3292 + $0x24] sm:$0xf]
    %v3303 = vld [vmem:[%s3292 + $0x28] sm:$0xf]
    %v3304 = vld [vmem:[%s3292 + $0x2c] sm:$0xf]
    %v3305 = vld [vmem:[%s3292 + $0x30] sm:$0xf]
    %v3306 = vld [vmem:[%s3292 + $0x34] sm:$0xf]
    %v3307 = vld [vmem:[%s3292 + $0x38] sm:$0xf]
    %v3308 = vld [vmem:[%s3292 + $0x3c] sm:$0xf]
    %v3309 = vrot.slane %v3141, 2
    %v3310 = vrot.slane %v3142, 1
    %v3311 = vsel %vm816, %v3310, %v3309
    %v3312 = vpack.c.b16 %v3311, %v3311
    %v3330 = vunpack.c.l.b16 %v3293
    %v3331 = vunpack.c.l.b16 %v3294
    %v3332 = vunpack.c.l.b16 %v3295
    %v3333 = vunpack.c.l.b16 %v3296
    %v3334 = vunpack.c.l.b16 %v3297
    %v3335 = vunpack.c.l.b16 %v3298
    %v3336 = vunpack.c.l.b16 %v3299
    %v3337 = vunpack.c.l.b16 %v3300
    %v3338 = vunpack.c.l.b16 %v3301
    %v3339 = vunpack.c.l.b16 %v3302
    %v3340 = vunpack.c.l.b16 %v3303
    %v3341 = vunpack.c.l.b16 %v3304
    %v3342 = vunpack.c.l.b16 %v3305
    %v3343 = vunpack.c.l.b16 %v3306
    %v3344 = vunpack.c.l.b16 %v3307
    %v3345 = vunpack.c.l.b16 %v3308
    %v3346 = vpack.c.b16 %v3331, %v3330
    %v3347 = vpack.c.b16 %v3333, %v3332
    %v3348 = vpack.c.b16 %v3335, %v3334
    %v3349 = vpack.c.b16 %v3337, %v3336
    %v3350 = vpack.c.b16 %v3339, %v3338
    %v3351 = vpack.c.b16 %v3341, %v3340
    %v3352 = vpack.c.b16 %v3343, %v3342
    %v3353 = vpack.c.b16 %v3345, %v3344
    %3362 = vmatpush.bf16.msra.mxu0 %v3353
    %3363 = vmatpush.bf16.msra.mxu0 %v3352
    %3364 = vmatpush.bf16.msra.mxu0 %v3351
    %3365 = vmatpush.bf16.msra.mxu0 %v3350
    %3366 = vmatpush.bf16.msra.mxu0 %v3349
    %3367 = vmatpush.bf16.msra.mxu0 %v3348
    %3368 = vmatpush.bf16.msra.mxu0 %v3347
    %3369 = vmatpush.bf16.msra.mxu0 %v3346
    %3370 = vmatmul.bf16.gmra.mxu0 %v3312
    %v3371 = vpop.f32.mrf.mxu0
    %v3372 = vadd.f32 0.0, %v3371
    %v3373 = vpop.f32.mrf.mxu0
    %3374 = vdwg.mxu0
    %v3375 = vadd.f32 %v3291, %v3372
    %s3376 = scalar_lea.vmem [#allocation12], 1216
    %v3377 = vld [vmem:[%s3376] sm:$0xf]
    %v3378 = vld [vmem:[%s3376 + $0x4] sm:$0xf]
    %v3379 = vld [vmem:[%s3376 + $0x8] sm:$0xf]
    %v3380 = vld [vmem:[%s3376 + $0xc] sm:$0xf]
    %v3381 = vld [vmem:[%s3376 + $0x10] sm:$0xf]
    %v3382 = vld [vmem:[%s3376 + $0x14] sm:$0xf]
    %v3383 = vld [vmem:[%s3376 + $0x18] sm:$0xf]
    %v3384 = vld [vmem:[%s3376 + $0x1c] sm:$0xf]
    %v3385 = vld [vmem:[%s3376 + $0x20] sm:$0xf]
    %v3386 = vld [vmem:[%s3376 + $0x24] sm:$0xf]
    %v3387 = vld [vmem:[%s3376 + $0x28] sm:$0xf]
    %v3388 = vld [vmem:[%s3376 + $0x2c] sm:$0xf]
    %v3389 = vld [vmem:[%s3376 + $0x30] sm:$0xf]
    %v3390 = vld [vmem:[%s3376 + $0x34] sm:$0xf]
    %v3391 = vld [vmem:[%s3376 + $0x38] sm:$0xf]
    %v3392 = vld [vmem:[%s3376 + $0x3c] sm:$0xf]
    %v3393 = vrot.slane %v3141, 3
    %v3394 = vrot.slane %v3142, 2
    %v3395 = vsel %vm816, %v3394, %v3393
    %v3396 = vpack.c.b16 %v3395, %v3395
    %v3414 = vunpack.c.l.b16 %v3377
    %v3415 = vunpack.c.l.b16 %v3378
    %v3416 = vunpack.c.l.b16 %v3379
    %v3417 = vunpack.c.l.b16 %v3380
    %v3418 = vunpack.c.l.b16 %v3381
    %v3419 = vunpack.c.l.b16 %v3382
    %v3420 = vunpack.c.l.b16 %v3383
    %v3421 = vunpack.c.l.b16 %v3384
    %v3422 = vunpack.c.l.b16 %v3385
    %v3423 = vunpack.c.l.b16 %v3386
    %v3424 = vunpack.c.l.b16 %v3387
    %v3425 = vunpack.c.l.b16 %v3388
    %v3426 = vunpack.c.l.b16 %v3389
    %v3427 = vunpack.c.l.b16 %v3390
    %v3428 = vunpack.c.l.b16 %v3391
    %v3429 = vunpack.c.l.b16 %v3392
    %v3430 = vpack.c.b16 %v3415, %v3414
    %v3431 = vpack.c.b16 %v3417, %v3416
    %v3432 = vpack.c.b16 %v3419, %v3418
    %v3433 = vpack.c.b16 %v3421, %v3420
    %v3434 = vpack.c.b16 %v3423, %v3422
    %v3435 = vpack.c.b16 %v3425, %v3424
    %v3436 = vpack.c.b16 %v3427, %v3426
    %v3437 = vpack.c.b16 %v3429, %v3428
    %3446 = vmatpush.bf16.msra.mxu0 %v3437
    %3447 = vmatpush.bf16.msra.mxu0 %v3436
    %3448 = vmatpush.bf16.msra.mxu0 %v3435
    %3449 = vmatpush.bf16.msra.mxu0 %v3434
    %3450 = vmatpush.bf16.msra.mxu0 %v3433
    %3451 = vmatpush.bf16.msra.mxu0 %v3432
    %3452 = vmatpush.bf16.msra.mxu0 %v3431
    %3453 = vmatpush.bf16.msra.mxu0 %v3430
    %3454 = vmatmul.bf16.gmra.mxu0 %v3396
    %v3455 = vpop.f32.mrf.mxu0
    %v3456 = vadd.f32 0.0, %v3455
    %v3457 = vpop.f32.mrf.mxu0
    %3458 = vdwg.mxu0
    %v3459 = vadd.f32 %v3375, %v3456
    %s3460 = scalar_lea.vmem [#allocation12], 1280
    %v3461 = vld [vmem:[%s3460] sm:$0xf]
    %v3462 = vld [vmem:[%s3460 + $0x4] sm:$0xf]
    %v3463 = vld [vmem:[%s3460 + $0x8] sm:$0xf]
    %v3464 = vld [vmem:[%s3460 + $0xc] sm:$0xf]
    %v3465 = vld [vmem:[%s3460 + $0x10] sm:$0xf]
    %v3466 = vld [vmem:[%s3460 + $0x14] sm:$0xf]
    %v3467 = vld [vmem:[%s3460 + $0x18] sm:$0xf]
    %v3468 = vld [vmem:[%s3460 + $0x1c] sm:$0xf]
    %v3469 = vld [vmem:[%s3460 + $0x20] sm:$0xf]
    %v3470 = vld [vmem:[%s3460 + $0x24] sm:$0xf]
    %v3471 = vld [vmem:[%s3460 + $0x28] sm:$0xf]
    %v3472 = vld [vmem:[%s3460 + $0x2c] sm:$0xf]
    %v3473 = vld [vmem:[%s3460 + $0x30] sm:$0xf]
    %v3474 = vld [vmem:[%s3460 + $0x34] sm:$0xf]
    %v3475 = vld [vmem:[%s3460 + $0x38] sm:$0xf]
    %v3476 = vld [vmem:[%s3460 + $0x3c] sm:$0xf]
    %v3477 = vrot.slane %v3141, 4
    %v3478 = vrot.slane %v3142, 3
    %v3479 = vsel %vm816, %v3478, %v3477
    %v3480 = vpack.c.b16 %v3479, %v3479
    %v3498 = vunpack.c.l.b16 %v3461
    %v3499 = vunpack.c.l.b16 %v3462
    %v3500 = vunpack.c.l.b16 %v3463
    %v3501 = vunpack.c.l.b16 %v3464
    %v3502 = vunpack.c.l.b16 %v3465
    %v3503 = vunpack.c.l.b16 %v3466
    %v3504 = vunpack.c.l.b16 %v3467
    %v3505 = vunpack.c.l.b16 %v3468
    %v3506 = vunpack.c.l.b16 %v3469
    %v3507 = vunpack.c.l.b16 %v3470
    %v3508 = vunpack.c.l.b16 %v3471
    %v3509 = vunpack.c.l.b16 %v3472
    %v3510 = vunpack.c.l.b16 %v3473
    %v3511 = vunpack.c.l.b16 %v3474
    %v3512 = vunpack.c.l.b16 %v3475
    %v3513 = vunpack.c.l.b16 %v3476
    %v3514 = vpack.c.b16 %v3499, %v3498
    %v3515 = vpack.c.b16 %v3501, %v3500
    %v3516 = vpack.c.b16 %v3503, %v3502
    %v3517 = vpack.c.b16 %v3505, %v3504
    %v3518 = vpack.c.b16 %v3507, %v3506
    %v3519 = vpack.c.b16 %v3509, %v3508
    %v3520 = vpack.c.b16 %v3511, %v3510
    %v3521 = vpack.c.b16 %v3513, %v3512
    %3530 = vmatpush.bf16.msra.mxu0 %v3521
    %3531 = vmatpush.bf16.msra.mxu0 %v3520
    %3532 = vmatpush.bf16.msra.mxu0 %v3519
    %3533 = vmatpush.bf16.msra.mxu0 %v3518
    %3534 = vmatpush.bf16.msra.mxu0 %v3517
    %3535 = vmatpush.bf16.msra.mxu0 %v3516
    %3536 = vmatpush.bf16.msra.mxu0 %v3515
    %3537 = vmatpush.bf16.msra.mxu0 %v3514
    %3538 = vmatmul.bf16.gmra.mxu0 %v3480
    %v3539 = vpop.f32.mrf.mxu0
    %v3540 = vadd.f32 0.0, %v3539
    %v3541 = vpop.f32.mrf.mxu0
    %3542 = vdwg.mxu0
    %v3543 = vadd.f32 %v3459, %v3540
    %s3544 = scalar_lea.vmem [#allocation12], 1344
    %v3545 = vld [vmem:[%s3544] sm:$0xf]
    %v3546 = vld [vmem:[%s3544 + $0x4] sm:$0xf]
    %v3547 = vld [vmem:[%s3544 + $0x8] sm:$0xf]
    %v3548 = vld [vmem:[%s3544 + $0xc] sm:$0xf]
    %v3549 = vld [vmem:[%s3544 + $0x10] sm:$0xf]
    %v3550 = vld [vmem:[%s3544 + $0x14] sm:$0xf]
    %v3551 = vld [vmem:[%s3544 + $0x18] sm:$0xf]
    %v3552 = vld [vmem:[%s3544 + $0x1c] sm:$0xf]
    %v3553 = vld [vmem:[%s3544 + $0x20] sm:$0xf]
    %v3554 = vld [vmem:[%s3544 + $0x24] sm:$0xf]
    %v3555 = vld [vmem:[%s3544 + $0x28] sm:$0xf]
    %v3556 = vld [vmem:[%s3544 + $0x2c] sm:$0xf]
    %v3557 = vld [vmem:[%s3544 + $0x30] sm:$0xf]
    %v3558 = vld [vmem:[%s3544 + $0x34] sm:$0xf]
    %v3559 = vld [vmem:[%s3544 + $0x38] sm:$0xf]
    %v3560 = vld [vmem:[%s3544 + $0x3c] sm:$0xf]
    %v3561 = vrot.slane %v3141, 5
    %v3562 = vrot.slane %v3142, 4
    %v3563 = vsel %vm816, %v3562, %v3561
    %v3564 = vpack.c.b16 %v3563, %v3563
    %v3582 = vunpack.c.l.b16 %v3545
    %v3583 = vunpack.c.l.b16 %v3546
    %v3584 = vunpack.c.l.b16 %v3547
    %v3585 = vunpack.c.l.b16 %v3548
    %v3586 = vunpack.c.l.b16 %v3549
    %v3587 = vunpack.c.l.b16 %v3550
    %v3588 = vunpack.c.l.b16 %v3551
    %v3589 = vunpack.c.l.b16 %v3552
    %v3590 = vunpack.c.l.b16 %v3553
    %v3591 = vunpack.c.l.b16 %v3554
    %v3592 = vunpack.c.l.b16 %v3555
    %v3593 = vunpack.c.l.b16 %v3556
    %v3594 = vunpack.c.l.b16 %v3557
    %v3595 = vunpack.c.l.b16 %v3558
    %v3596 = vunpack.c.l.b16 %v3559
    %v3597 = vunpack.c.l.b16 %v3560
    %v3598 = vpack.c.b16 %v3583, %v3582
    %v3599 = vpack.c.b16 %v3585, %v3584
    %v3600 = vpack.c.b16 %v3587, %v3586
    %v3601 = vpack.c.b16 %v3589, %v3588
    %v3602 = vpack.c.b16 %v3591, %v3590
    %v3603 = vpack.c.b16 %v3593, %v3592
    %v3604 = vpack.c.b16 %v3595, %v3594
    %v3605 = vpack.c.b16 %v3597, %v3596
    %3614 = vmatpush.bf16.msra.mxu0 %v3605
    %3615 = vmatpush.bf16.msra.mxu0 %v3604
    %3616 = vmatpush.bf16.msra.mxu0 %v3603
    %3617 = vmatpush.bf16.msra.mxu0 %v3602
    %3618 = vmatpush.bf16.msra.mxu0 %v3601
    %3619 = vmatpush.bf16.msra.mxu0 %v3600
    %3620 = vmatpush.bf16.msra.mxu0 %v3599
    %3621 = vmatpush.bf16.msra.mxu0 %v3598
    %3622 = vmatmul.bf16.gmra.mxu0 %v3564
    %v3623 = vpop.f32.mrf.mxu0
    %v3624 = vadd.f32 0.0, %v3623
    %v3625 = vpop.f32.mrf.mxu0
    %3626 = vdwg.mxu0
    %v3627 = vadd.f32 %v3543, %v3624
    %s3628 = scalar_lea.vmem [#allocation12], 1408
    %v3629 = vld [vmem:[%s3628] sm:$0xf]
    %v3630 = vld [vmem:[%s3628 + $0x4] sm:$0xf]
    %v3631 = vld [vmem:[%s3628 + $0x8] sm:$0xf]
    %v3632 = vld [vmem:[%s3628 + $0xc] sm:$0xf]
    %v3633 = vld [vmem:[%s3628 + $0x10] sm:$0xf]
    %v3634 = vld [vmem:[%s3628 + $0x14] sm:$0xf]
    %v3635 = vld [vmem:[%s3628 + $0x18] sm:$0xf]
    %v3636 = vld [vmem:[%s3628 + $0x1c] sm:$0xf]
    %v3637 = vld [vmem:[%s3628 + $0x20] sm:$0xf]
    %v3638 = vld [vmem:[%s3628 + $0x24] sm:$0xf]
    %v3639 = vld [vmem:[%s3628 + $0x28] sm:$0xf]
    %v3640 = vld [vmem:[%s3628 + $0x2c] sm:$0xf]
    %v3641 = vld [vmem:[%s3628 + $0x30] sm:$0xf]
    %v3642 = vld [vmem:[%s3628 + $0x34] sm:$0xf]
    %v3643 = vld [vmem:[%s3628 + $0x38] sm:$0xf]
    %v3644 = vld [vmem:[%s3628 + $0x3c] sm:$0xf]
    %v3645 = vrot.slane %v3141, 6
    %v3646 = vrot.slane %v3142, 5
    %v3647 = vsel %vm816, %v3646, %v3645
    %v3648 = vpack.c.b16 %v3647, %v3647
    %v3666 = vunpack.c.l.b16 %v3629
    %v3667 = vunpack.c.l.b16 %v3630
    %v3668 = vunpack.c.l.b16 %v3631
    %v3669 = vunpack.c.l.b16 %v3632
    %v3670 = vunpack.c.l.b16 %v3633
    %v3671 = vunpack.c.l.b16 %v3634
    %v3672 = vunpack.c.l.b16 %v3635
    %v3673 = vunpack.c.l.b16 %v3636
    %v3674 = vunpack.c.l.b16 %v3637
    %v3675 = vunpack.c.l.b16 %v3638
    %v3676 = vunpack.c.l.b16 %v3639
    %v3677 = vunpack.c.l.b16 %v3640
    %v3678 = vunpack.c.l.b16 %v3641
    %v3679 = vunpack.c.l.b16 %v3642
    %v3680 = vunpack.c.l.b16 %v3643
    %v3681 = vunpack.c.l.b16 %v3644
    %v3682 = vpack.c.b16 %v3667, %v3666
    %v3683 = vpack.c.b16 %v3669, %v3668
    %v3684 = vpack.c.b16 %v3671, %v3670
    %v3685 = vpack.c.b16 %v3673, %v3672
    %v3686 = vpack.c.b16 %v3675, %v3674
    %v3687 = vpack.c.b16 %v3677, %v3676
    %v3688 = vpack.c.b16 %v3679, %v3678
    %v3689 = vpack.c.b16 %v3681, %v3680
    %3698 = vmatpush.bf16.msra.mxu0 %v3689
    %3699 = vmatpush.bf16.msra.mxu0 %v3688
    %3700 = vmatpush.bf16.msra.mxu0 %v3687
    %3701 = vmatpush.bf16.msra.mxu0 %v3686
    %3702 = vmatpush.bf16.msra.mxu0 %v3685
    %3703 = vmatpush.bf16.msra.mxu0 %v3684
    %3704 = vmatpush.bf16.msra.mxu0 %v3683
    %3705 = vmatpush.bf16.msra.mxu0 %v3682
    %3706 = vmatmul.bf16.gmra.mxu0 %v3648
    %v3707 = vpop.f32.mrf.mxu0
    %v3708 = vadd.f32 0.0, %v3707
    %v3709 = vpop.f32.mrf.mxu0
    %3710 = vdwg.mxu0
    %v3711 = vadd.f32 %v3627, %v3708
    %s3712 = scalar_lea.vmem [#allocation12], 1472
    %v3713 = vld [vmem:[%s3712] sm:$0xf]
    %v3714 = vld [vmem:[%s3712 + $0x4] sm:$0xf]
    %v3715 = vld [vmem:[%s3712 + $0x8] sm:$0xf]
    %v3716 = vld [vmem:[%s3712 + $0xc] sm:$0xf]
    %v3717 = vld [vmem:[%s3712 + $0x10] sm:$0xf]
    %v3718 = vld [vmem:[%s3712 + $0x14] sm:$0xf]
    %v3719 = vld [vmem:[%s3712 + $0x18] sm:$0xf]
    %v3720 = vld [vmem:[%s3712 + $0x1c] sm:$0xf]
    %v3721 = vld [vmem:[%s3712 + $0x20] sm:$0xf]
    %v3722 = vld [vmem:[%s3712 + $0x24] sm:$0xf]
    %v3723 = vld [vmem:[%s3712 + $0x28] sm:$0xf]
    %v3724 = vld [vmem:[%s3712 + $0x2c] sm:$0xf]
    %v3725 = vld [vmem:[%s3712 + $0x30] sm:$0xf]
    %v3726 = vld [vmem:[%s3712 + $0x34] sm:$0xf]
    %v3727 = vld [vmem:[%s3712 + $0x38] sm:$0xf]
    %v3728 = vld [vmem:[%s3712 + $0x3c] sm:$0xf]
    %v3729 = vrot.slane %v3141, 7
    %v3730 = vrot.slane %v3142, 6
    %v3731 = vsel %vm816, %v3730, %v3729
    %v3732 = vpack.c.b16 %v3731, %v3731
    %v3750 = vunpack.c.l.b16 %v3713
    %v3751 = vunpack.c.l.b16 %v3714
    %v3752 = vunpack.c.l.b16 %v3715
    %v3753 = vunpack.c.l.b16 %v3716
    %v3754 = vunpack.c.l.b16 %v3717
    %v3755 = vunpack.c.l.b16 %v3718
    %v3756 = vunpack.c.l.b16 %v3719
    %v3757 = vunpack.c.l.b16 %v3720
    %v3758 = vunpack.c.l.b16 %v3721
    %v3759 = vunpack.c.l.b16 %v3722
    %v3760 = vunpack.c.l.b16 %v3723
    %v3761 = vunpack.c.l.b16 %v3724
    %v3762 = vunpack.c.l.b16 %v3725
    %v3763 = vunpack.c.l.b16 %v3726
    %v3764 = vunpack.c.l.b16 %v3727
    %v3765 = vunpack.c.l.b16 %v3728
    %v3766 = vpack.c.b16 %v3751, %v3750
    %v3767 = vpack.c.b16 %v3753, %v3752
    %v3768 = vpack.c.b16 %v3755, %v3754
    %v3769 = vpack.c.b16 %v3757, %v3756
    %v3770 = vpack.c.b16 %v3759, %v3758
    %v3771 = vpack.c.b16 %v3761, %v3760
    %v3772 = vpack.c.b16 %v3763, %v3762
    %v3773 = vpack.c.b16 %v3765, %v3764
    %3782 = vmatpush.bf16.msra.mxu0 %v3773
    %3783 = vmatpush.bf16.msra.mxu0 %v3772
    %3784 = vmatpush.bf16.msra.mxu0 %v3771
    %3785 = vmatpush.bf16.msra.mxu0 %v3770
    %3786 = vmatpush.bf16.msra.mxu0 %v3769
    %3787 = vmatpush.bf16.msra.mxu0 %v3768
    %3788 = vmatpush.bf16.msra.mxu0 %v3767
    %3789 = vmatpush.bf16.msra.mxu0 %v3766
    %3790 = vmatmul.bf16.gmra.mxu0 %v3732
    %v3791 = vpop.f32.mrf.mxu0
    %v3792 = vadd.f32 0.0, %v3791
    %v3793 = vpop.f32.mrf.mxu0
    %3794 = vdwg.mxu0
    %v3795 = vadd.f32 %v3711, %v3792
    %v3796 = vld [vmem:[#allocation2] sm:$0xff]
    %v3797 = vld [vmem:[#allocation2 + $0x8] sm:$0xf]
    %v3798 = vld [vmem:[#allocation2 + $0x10] sm:$0xff]
    %v3799 = vld [vmem:[#allocation2 + $0x18] sm:$0xf]
    %v3800 = vpack.c.bf16 %v3798, %v3796
    %s3801 = scalar_lea.vmem [#allocation8], 960
    %v3802 = vld [vmem:[%s3801] sm:$0xf]
    %v3803 = vld [vmem:[%s3801 + $0x4] sm:$0xf]
    %v3804 = vld [vmem:[%s3801 + $0x8] sm:$0xf]
    %v3805 = vld [vmem:[%s3801 + $0xc] sm:$0xf]
    %v3806 = vld [vmem:[%s3801 + $0x10] sm:$0xf]
    %v3807 = vld [vmem:[%s3801 + $0x14] sm:$0xf]
    %v3808 = vld [vmem:[%s3801 + $0x18] sm:$0xf]
    %v3809 = vld [vmem:[%s3801 + $0x1c] sm:$0xf]
    %v3810 = vld [vmem:[%s3801 + $0x20] sm:$0xf]
    %v3811 = vld [vmem:[%s3801 + $0x24] sm:$0xf]
    %v3812 = vld [vmem:[%s3801 + $0x28] sm:$0xf]
    %v3813 = vld [vmem:[%s3801 + $0x2c] sm:$0xf]
    %v3814 = vld [vmem:[%s3801 + $0x30] sm:$0xf]
    %v3815 = vld [vmem:[%s3801 + $0x34] sm:$0xf]
    %v3816 = vld [vmem:[%s3801 + $0x38] sm:$0xf]
    %v3817 = vld [vmem:[%s3801 + $0x3c] sm:$0xf]
    %v3822 = vrot.slane %v3796, 1
    %v3823 = vrot.slane %v3797, 1
    %v3824 = vsel %vm215, %v3822, %v3823
    %v3825 = vrot.slane %v3798, 1
    %v3826 = vrot.slane %v3799, 1
    %v3827 = vsel %vm215, %v3825, %v3826
    %v3830 = vpack.c.bf16 %v3827, %v3824
    %s3831 = scalar_lea.vmem [#allocation8], 1024
    %v3832 = vld [vmem:[%s3831] sm:$0xf]
    %v3833 = vld [vmem:[%s3831 + $0x4] sm:$0xf]
    %v3834 = vld [vmem:[%s3831 + $0x8] sm:$0xf]
    %v3835 = vld [vmem:[%s3831 + $0xc] sm:$0xf]
    %v3836 = vld [vmem:[%s3831 + $0x10] sm:$0xf]
    %v3837 = vld [vmem:[%s3831 + $0x14] sm:$0xf]
    %v3838 = vld [vmem:[%s3831 + $0x18] sm:$0xf]
    %v3839 = vld [vmem:[%s3831 + $0x1c] sm:$0xf]
    %v3840 = vld [vmem:[%s3831 + $0x20] sm:$0xf]
    %v3841 = vld [vmem:[%s3831 + $0x24] sm:$0xf]
    %v3842 = vld [vmem:[%s3831 + $0x28] sm:$0xf]
    %v3843 = vld [vmem:[%s3831 + $0x2c] sm:$0xf]
    %v3844 = vld [vmem:[%s3831 + $0x30] sm:$0xf]
    %v3845 = vld [vmem:[%s3831 + $0x34] sm:$0xf]
    %v3846 = vld [vmem:[%s3831 + $0x38] sm:$0xf]
    %v3847 = vld [vmem:[%s3831 + $0x3c] sm:$0xf]
    %v3864 = vunpack.c.l.b16 %v3832
    %v3865 = vunpack.c.l.b16 %v3833
    %v3866 = vunpack.c.l.b16 %v3834
    %v3867 = vunpack.c.l.b16 %v3835
    %v3868 = vunpack.c.l.b16 %v3836
    %v3869 = vunpack.c.l.b16 %v3837
    %v3870 = vunpack.c.l.b16 %v3838
    %v3871 = vunpack.c.l.b16 %v3839
    %v3872 = vunpack.c.l.b16 %v3840
    %v3873 = vunpack.c.l.b16 %v3841
    %v3874 = vunpack.c.l.b16 %v3842
    %v3875 = vunpack.c.l.b16 %v3843
    %v3876 = vunpack.c.l.b16 %v3844
    %v3877 = vunpack.c.l.b16 %v3845
    %v3878 = vunpack.c.l.b16 %v3846
    %v3879 = vunpack.c.l.b16 %v3847
    %v3880 = vpack.c.b16 %v3865, %v3864
    %v3881 = vpack.c.b16 %v3867, %v3866
    %v3882 = vpack.c.b16 %v3869, %v3868
    %v3883 = vpack.c.b16 %v3871, %v3870
    %v3884 = vpack.c.b16 %v3873, %v3872
    %v3885 = vpack.c.b16 %v3875, %v3874
    %v3886 = vpack.c.b16 %v3877, %v3876
    %v3887 = vpack.c.b16 %v3879, %v3878
    %3896 = vmatpush.bf16.msra.mxu0 %v3887
    %3897 = vmatpush.bf16.msra.mxu0 %v3886
    %3898 = vmatpush.bf16.msra.mxu0 %v3885
    %3899 = vmatpush.bf16.msra.mxu0 %v3884
    %3900 = vmatpush.bf16.msra.mxu0 %v3883
    %3901 = vmatpush.bf16.msra.mxu0 %v3882
    %3902 = vmatpush.bf16.msra.mxu0 %v3881
    %3903 = vmatpush.bf16.msra.mxu0 %v3880
    %3904 = vmatmul.bf16.gmra.mxu0 %v3830
    %v3905 = vpop.f32.mrf.mxu0
    %v3906 = vadd.f32 0.0, %v3905
    %v3907 = vpop.f32.mrf.mxu0
    %v3908 = vadd.f32 0.0, %v3907
    %3909 = vdwg.mxu0
    %v3926 = vunpack.c.l.b16 %v3802
    %v3927 = vunpack.c.l.b16 %v3803
    %v3928 = vunpack.c.l.b16 %v3804
    %v3929 = vunpack.c.l.b16 %v3805
    %v3930 = vunpack.c.l.b16 %v3806
    %v3931 = vunpack.c.l.b16 %v3807
    %v3932 = vunpack.c.l.b16 %v3808
    %v3933 = vunpack.c.l.b16 %v3809
    %v3934 = vunpack.c.l.b16 %v3810
    %v3935 = vunpack.c.l.b16 %v3811
    %v3936 = vunpack.c.l.b16 %v3812
    %v3937 = vunpack.c.l.b16 %v3813
    %v3938 = vunpack.c.l.b16 %v3814
    %v3939 = vunpack.c.l.b16 %v3815
    %v3940 = vunpack.c.l.b16 %v3816
    %v3941 = vunpack.c.l.b16 %v3817
    %v3942 = vpack.c.b16 %v3927, %v3926
    %v3943 = vpack.c.b16 %v3929, %v3928
    %v3944 = vpack.c.b16 %v3931, %v3930
    %v3945 = vpack.c.b16 %v3933, %v3932
    %v3946 = vpack.c.b16 %v3935, %v3934
    %v3947 = vpack.c.b16 %v3937, %v3936
    %v3948 = vpack.c.b16 %v3939, %v3938
    %v3949 = vpack.c.b16 %v3941, %v3940
    %3958 = vmatpush.bf16.msra.mxu0 %v3949
    %3959 = vmatpush.bf16.msra.mxu0 %v3948
    %3960 = vmatpush.bf16.msra.mxu0 %v3947
    %3961 = vmatpush.bf16.msra.mxu0 %v3946
    %3962 = vmatpush.bf16.msra.mxu0 %v3945
    %3963 = vmatpush.bf16.msra.mxu0 %v3944
    %3964 = vmatpush.bf16.msra.mxu0 %v3943
    %3965 = vmatpush.bf16.msra.mxu0 %v3942
    %3966 = vmatmul.bf16.gmra.mxu0 %v3800
    %v3967 = vpop.f32.mrf.mxu0
    %v3968 = vadd.f32 %v3906, %v3967
    %v3969 = vpop.f32.mrf.mxu0
    %v3970 = vadd.f32 %v3908, %v3969
    %3971 = vdwg.mxu0
    %v3972 = vrot.slane %v3796, 2
    %v3973 = vrot.slane %v3797, 2
    %v3974 = vsel %vm234, %v3972, %v3973
    %v3975 = vrot.slane %v3798, 2
    %v3976 = vrot.slane %v3799, 2
    %v3977 = vsel %vm234, %v3975, %v3976
    %v3980 = vpack.c.bf16 %v3977, %v3974
    %s3981 = scalar_lea.vmem [#allocation8], 1088
    %v3982 = vld [vmem:[%s3981] sm:$0xf]
    %v3983 = vld [vmem:[%s3981 + $0x4] sm:$0xf]
    %v3984 = vld [vmem:[%s3981 + $0x8] sm:$0xf]
    %v3985 = vld [vmem:[%s3981 + $0xc] sm:$0xf]
    %v3986 = vld [vmem:[%s3981 + $0x10] sm:$0xf]
    %v3987 = vld [vmem:[%s3981 + $0x14] sm:$0xf]
    %v3988 = vld [vmem:[%s3981 + $0x18] sm:$0xf]
    %v3989 = vld [vmem:[%s3981 + $0x1c] sm:$0xf]
    %v3990 = vld [vmem:[%s3981 + $0x20] sm:$0xf]
    %v3991 = vld [vmem:[%s3981 + $0x24] sm:$0xf]
    %v3992 = vld [vmem:[%s3981 + $0x28] sm:$0xf]
    %v3993 = vld [vmem:[%s3981 + $0x2c] sm:$0xf]
    %v3994 = vld [vmem:[%s3981 + $0x30] sm:$0xf]
    %v3995 = vld [vmem:[%s3981 + $0x34] sm:$0xf]
    %v3996 = vld [vmem:[%s3981 + $0x38] sm:$0xf]
    %v3997 = vld [vmem:[%s3981 + $0x3c] sm:$0xf]
    %v4014 = vunpack.c.l.b16 %v3982
    %v4015 = vunpack.c.l.b16 %v3983
    %v4016 = vunpack.c.l.b16 %v3984
    %v4017 = vunpack.c.l.b16 %v3985
    %v4018 = vunpack.c.l.b16 %v3986
    %v4019 = vunpack.c.l.b16 %v3987
    %v4020 = vunpack.c.l.b16 %v3988
    %v4021 = vunpack.c.l.b16 %v3989
    %v4022 = vunpack.c.l.b16 %v3990
    %v4023 = vunpack.c.l.b16 %v3991
    %v4024 = vunpack.c.l.b16 %v3992
    %v4025 = vunpack.c.l.b16 %v3993
    %v4026 = vunpack.c.l.b16 %v3994
    %v4027 = vunpack.c.l.b16 %v3995
    %v4028 = vunpack.c.l.b16 %v3996
    %v4029 = vunpack.c.l.b16 %v3997
    %v4030 = vpack.c.b16 %v4015, %v4014
    %v4031 = vpack.c.b16 %v4017, %v4016
    %v4032 = vpack.c.b16 %v4019, %v4018
    %v4033 = vpack.c.b16 %v4021, %v4020
    %v4034 = vpack.c.b16 %v4023, %v4022
    %v4035 = vpack.c.b16 %v4025, %v4024
    %v4036 = vpack.c.b16 %v4027, %v4026
    %v4037 = vpack.c.b16 %v4029, %v4028
    %4046 = vmatpush.bf16.msra.mxu0 %v4037
    %4047 = vmatpush.bf16.msra.mxu0 %v4036
    %4048 = vmatpush.bf16.msra.mxu0 %v4035
    %4049 = vmatpush.bf16.msra.mxu0 %v4034
    %4050 = vmatpush.bf16.msra.mxu0 %v4033
    %4051 = vmatpush.bf16.msra.mxu0 %v4032
    %4052 = vmatpush.bf16.msra.mxu0 %v4031
    %4053 = vmatpush.bf16.msra.mxu0 %v4030
    %4054 = vmatmul.bf16.gmra.mxu0 %v3980
    %v4055 = vpop.f32.mrf.mxu0
    %v4056 = vadd.f32 0.0, %v4055
    %v4057 = vpop.f32.mrf.mxu0
    %v4058 = vadd.f32 0.0, %v4057
    %4059 = vdwg.mxu0
    %v4060 = vadd.f32 %v3968, %v4056
    %v4061 = vadd.f32 %v3970, %v4058
    %v4062 = vrot.slane %v3796, 3
    %v4063 = vrot.slane %v3797, 3
    %v4064 = vsel %vm538, %v4062, %v4063
    %v4065 = vrot.slane %v3798, 3
    %v4066 = vrot.slane %v3799, 3
    %v4067 = vsel %vm538, %v4065, %v4066
    %v4070 = vpack.c.bf16 %v4067, %v4064
    %s4071 = scalar_lea.vmem [#allocation8], 1152
    %v4072 = vld [vmem:[%s4071] sm:$0xf]
    %v4073 = vld [vmem:[%s4071 + $0x4] sm:$0xf]
    %v4074 = vld [vmem:[%s4071 + $0x8] sm:$0xf]
    %v4075 = vld [vmem:[%s4071 + $0xc] sm:$0xf]
    %v4076 = vld [vmem:[%s4071 + $0x10] sm:$0xf]
    %v4077 = vld [vmem:[%s4071 + $0x14] sm:$0xf]
    %v4078 = vld [vmem:[%s4071 + $0x18] sm:$0xf]
    %v4079 = vld [vmem:[%s4071 + $0x1c] sm:$0xf]
    %v4080 = vld [vmem:[%s4071 + $0x20] sm:$0xf]
    %v4081 = vld [vmem:[%s4071 + $0x24] sm:$0xf]
    %v4082 = vld [vmem:[%s4071 + $0x28] sm:$0xf]
    %v4083 = vld [vmem:[%s4071 + $0x2c] sm:$0xf]
    %v4084 = vld [vmem:[%s4071 + $0x30] sm:$0xf]
    %v4085 = vld [vmem:[%s4071 + $0x34] sm:$0xf]
    %v4086 = vld [vmem:[%s4071 + $0x38] sm:$0xf]
    %v4087 = vld [vmem:[%s4071 + $0x3c] sm:$0xf]
    %v4104 = vunpack.c.l.b16 %v4072
    %v4105 = vunpack.c.l.b16 %v4073
    %v4106 = vunpack.c.l.b16 %v4074
    %v4107 = vunpack.c.l.b16 %v4075
    %v4108 = vunpack.c.l.b16 %v4076
    %v4109 = vunpack.c.l.b16 %v4077
    %v4110 = vunpack.c.l.b16 %v4078
    %v4111 = vunpack.c.l.b16 %v4079
    %v4112 = vunpack.c.l.b16 %v4080
    %v4113 = vunpack.c.l.b16 %v4081
    %v4114 = vunpack.c.l.b16 %v4082
    %v4115 = vunpack.c.l.b16 %v4083
    %v4116 = vunpack.c.l.b16 %v4084
    %v4117 = vunpack.c.l.b16 %v4085
    %v4118 = vunpack.c.l.b16 %v4086
    %v4119 = vunpack.c.l.b16 %v4087
    %v4120 = vpack.c.b16 %v4105, %v4104
    %v4121 = vpack.c.b16 %v4107, %v4106
    %v4122 = vpack.c.b16 %v4109, %v4108
    %v4123 = vpack.c.b16 %v4111, %v4110
    %v4124 = vpack.c.b16 %v4113, %v4112
    %v4125 = vpack.c.b16 %v4115, %v4114
    %v4126 = vpack.c.b16 %v4117, %v4116
    %v4127 = vpack.c.b16 %v4119, %v4118
    %4136 = vmatpush.bf16.msra.mxu0 %v4127
    %4137 = vmatpush.bf16.msra.mxu0 %v4126
    %4138 = vmatpush.bf16.msra.mxu0 %v4125
    %4139 = vmatpush.bf16.msra.mxu0 %v4124
    %4140 = vmatpush.bf16.msra.mxu0 %v4123
    %4141 = vmatpush.bf16.msra.mxu0 %v4122
    %4142 = vmatpush.bf16.msra.mxu0 %v4121
    %4143 = vmatpush.bf16.msra.mxu0 %v4120
    %4144 = vmatmul.bf16.gmra.mxu0 %v4070
    %v4145 = vpop.f32.mrf.mxu0
    %v4146 = vadd.f32 0.0, %v4145
    %v4147 = vpop.f32.mrf.mxu0
    %v4148 = vadd.f32 0.0, %v4147
    %4149 = vdwg.mxu0
    %v4150 = vadd.f32 %v4060, %v4146
    %v4151 = vadd.f32 %v4061, %v4148
    %v4152 = vrot.slane %v3796, 4
    %v4153 = vrot.slane %v3797, 4
    %v4154 = vsel %vm629, %v4152, %v4153
    %v4155 = vrot.slane %v3798, 4
    %v4156 = vrot.slane %v3799, 4
    %v4157 = vsel %vm629, %v4155, %v4156
    %v4160 = vpack.c.bf16 %v4157, %v4154
    %s4161 = scalar_lea.vmem [#allocation8], 1216
    %v4162 = vld [vmem:[%s4161] sm:$0xf]
    %v4163 = vld [vmem:[%s4161 + $0x4] sm:$0xf]
    %v4164 = vld [vmem:[%s4161 + $0x8] sm:$0xf]
    %v4165 = vld [vmem:[%s4161 + $0xc] sm:$0xf]
    %v4166 = vld [vmem:[%s4161 + $0x10] sm:$0xf]
    %v4167 = vld [vmem:[%s4161 + $0x14] sm:$0xf]
    %v4168 = vld [vmem:[%s4161 + $0x18] sm:$0xf]
    %v4169 = vld [vmem:[%s4161 + $0x1c] sm:$0xf]
    %v4170 = vld [vmem:[%s4161 + $0x20] sm:$0xf]
    %v4171 = vld [vmem:[%s4161 + $0x24] sm:$0xf]
    %v4172 = vld [vmem:[%s4161 + $0x28] sm:$0xf]
    %v4173 = vld [vmem:[%s4161 + $0x2c] sm:$0xf]
    %v4174 = vld [vmem:[%s4161 + $0x30] sm:$0xf]
    %v4175 = vld [vmem:[%s4161 + $0x34] sm:$0xf]
    %v4176 = vld [vmem:[%s4161 + $0x38] sm:$0xf]
    %v4177 = vld [vmem:[%s4161 + $0x3c] sm:$0xf]
    %v4194 = vunpack.c.l.b16 %v4162
    %v4195 = vunpack.c.l.b16 %v4163
    %v4196 = vunpack.c.l.b16 %v4164
    %v4197 = vunpack.c.l.b16 %v4165
    %v4198 = vunpack.c.l.b16 %v4166
    %v4199 = vunpack.c.l.b16 %v4167
    %v4200 = vunpack.c.l.b16 %v4168
    %v4201 = vunpack.c.l.b16 %v4169
    %v4202 = vunpack.c.l.b16 %v4170
    %v4203 = vunpack.c.l.b16 %v4171
    %v4204 = vunpack.c.l.b16 %v4172
    %v4205 = vunpack.c.l.b16 %v4173
    %v4206 = vunpack.c.l.b16 %v4174
    %v4207 = vunpack.c.l.b16 %v4175
    %v4208 = vunpack.c.l.b16 %v4176
    %v4209 = vunpack.c.l.b16 %v4177
    %v4210 = vpack.c.b16 %v4195, %v4194
    %v4211 = vpack.c.b16 %v4197, %v4196
    %v4212 = vpack.c.b16 %v4199, %v4198
    %v4213 = vpack.c.b16 %v4201, %v4200
    %v4214 = vpack.c.b16 %v4203, %v4202
    %v4215 = vpack.c.b16 %v4205, %v4204
    %v4216 = vpack.c.b16 %v4207, %v4206
    %v4217 = vpack.c.b16 %v4209, %v4208
    %4226 = vmatpush.bf16.msra.mxu0 %v4217
    %4227 = vmatpush.bf16.msra.mxu0 %v4216
    %4228 = vmatpush.bf16.msra.mxu0 %v4215
    %4229 = vmatpush.bf16.msra.mxu0 %v4214
    %4230 = vmatpush.bf16.msra.mxu0 %v4213
    %4231 = vmatpush.bf16.msra.mxu0 %v4212
    %4232 = vmatpush.bf16.msra.mxu0 %v4211
    %4233 = vmatpush.bf16.msra.mxu0 %v4210
    %4234 = vmatmul.bf16.gmra.mxu0 %v4160
    %v4235 = vpop.f32.mrf.mxu0
    %v4236 = vadd.f32 0.0, %v4235
    %v4237 = vpop.f32.mrf.mxu0
    %v4238 = vadd.f32 0.0, %v4237
    %4239 = vdwg.mxu0
    %v4240 = vadd.f32 %v4150, %v4236
    %v4241 = vadd.f32 %v4151, %v4238
    %v4242 = vadd.f32 %v4240, %v4241
    %v4243 = vrot.slane %v4242, 4
    %v4244 = vadd.f32 %v4242, %v4243
    %v4245 = vrot.slane %v4244, 2
    %v4246 = vadd.f32 %v4244, %v4245
    %v4247 = vrot.slane %v4246, 1
    %v4248 = vadd.f32 %v4246, %v4247
    %v4249 = vmul.f32 %v4248, %v733
    %v4250 = vsub.f32 %v4240, %v4249
    %v4251 = vsub.f32 %v4241, %v4249
    %v4252 = vmul.f32 %v4250, %v4250
    %v4253 = vmul.f32 %v4251, %v4251
    %v4254 = vadd.f32 %v4252, %v4253
    %v4255 = vrot.slane %v4254, 4
    %v4256 = vadd.f32 %v4254, %v4255
    %v4257 = vrot.slane %v4256, 2
    %v4258 = vadd.f32 %v4256, %v4257
    %v4259 = vrot.slane %v4258, 1
    %v4260 = vadd.f32 %v4258, %v4259
    %v4261 = vmul.f32 %v4260, %v733
    %v4262 = vadd.f32 %v4261, 1e-05
    %v4263 = vrsqrt.pop %v4262
    %v4264 = vmul.f32 %v4263, %v4262
    %v4265 = vmul.f32 %v4264, %v4263
    %v4266 = vmul.f32 0.5, %v4265
    %v4267 = vsub.f32 1.5, %v4266
    %v4268 = vmul.f32 %v4263, %v4267
    %vm4269 = vweird.f32 %v4262
    %vm4270 = vweird.f32 %v4263
    %vm4271 = vmor %vm4269, %vm4270
    %v4272 = vsel %vm4271, %v4263, %v4268
    %v4273 = vmul.f32 %v4250, %v4272
    %v4274 = vmul.f32 %v4251, %v4272
    %s4275 = scalar_lea.vmem [#allocation9], 3
    %v4276 = vld [vmem:[%s4275] sm:$0x1]
    %v4278 = vperm.slane %v4276, 0
    %v4280 = vmul.f32 %v4273, %v4278
    %v4281 = vmul.f32 %v4274, %v4278
    %s4282 = scalar_lea.vmem [#allocation11], 3
    %v4283 = vld [vmem:[%s4282] sm:$0x1]
    %v4285 = vperm.slane %v4283, 0
    %v4287 = vadd.f32 %v4280, %v4285
    %v4288 = vadd.f32 %v4281, %v4285
    %v4289 = vmax.f32 %v4287, 0.0
    %v4290 = vmax.f32 %v4288, 0.0
    %4291 = vst [vmem:[#allocation2 + $0x2] sm:$0xff] %v4289
    %4292 = vst [vmem:[#allocation2 + $0x12] sm:$0xff] %v4290
    %v4293 = vpack.c.bf16 %v4289, %v4289
    %v4294 = vpack.c.bf16 %v4290, %v4290
    %s4295 = scalar_lea.vmem [#allocation12], 1536
    %v4296 = vld [vmem:[%s4295] sm:$0xf]
    %v4297 = vld [vmem:[%s4295 + $0x4] sm:$0xf]
    %v4298 = vld [vmem:[%s4295 + $0x8] sm:$0xf]
    %v4299 = vld [vmem:[%s4295 + $0xc] sm:$0xf]
    %v4300 = vld [vmem:[%s4295 + $0x10] sm:$0xf]
    %v4301 = vld [vmem:[%s4295 + $0x14] sm:$0xf]
    %v4302 = vld [vmem:[%s4295 + $0x18] sm:$0xf]
    %v4303 = vld [vmem:[%s4295 + $0x1c] sm:$0xf]
    %v4304 = vld [vmem:[%s4295 + $0x20] sm:$0xf]
    %v4305 = vld [vmem:[%s4295 + $0x24] sm:$0xf]
    %v4306 = vld [vmem:[%s4295 + $0x28] sm:$0xf]
    %v4307 = vld [vmem:[%s4295 + $0x2c] sm:$0xf]
    %v4308 = vld [vmem:[%s4295 + $0x30] sm:$0xf]
    %v4309 = vld [vmem:[%s4295 + $0x34] sm:$0xf]
    %v4310 = vld [vmem:[%s4295 + $0x38] sm:$0xf]
    %v4311 = vld [vmem:[%s4295 + $0x3c] sm:$0xf]
    %v4314 = vunpack.c.l.b16 %v4293
    %v4315 = vunpack.c.l.b16 %v4294
    %v4316 = vrot.slane %v4315, 7
    %v4317 = vsel %vm816, %v4316, %v4314
    %v4318 = vpack.c.b16 %v4317, %v4317
    %v4336 = vunpack.c.l.b16 %v4296
    %v4337 = vunpack.c.l.b16 %v4297
    %v4338 = vunpack.c.l.b16 %v4298
    %v4339 = vunpack.c.l.b16 %v4299
    %v4340 = vunpack.c.l.b16 %v4300
    %v4341 = vunpack.c.l.b16 %v4301
    %v4342 = vunpack.c.l.b16 %v4302
    %v4343 = vunpack.c.l.b16 %v4303
    %v4344 = vunpack.c.l.b16 %v4304
    %v4345 = vunpack.c.l.b16 %v4305
    %v4346 = vunpack.c.l.b16 %v4306
    %v4347 = vunpack.c.l.b16 %v4307
    %v4348 = vunpack.c.l.b16 %v4308
    %v4349 = vunpack.c.l.b16 %v4309
    %v4350 = vunpack.c.l.b16 %v4310
    %v4351 = vunpack.c.l.b16 %v4311
    %v4352 = vpack.c.b16 %v4337, %v4336
    %v4353 = vpack.c.b16 %v4339, %v4338
    %v4354 = vpack.c.b16 %v4341, %v4340
    %v4355 = vpack.c.b16 %v4343, %v4342
    %v4356 = vpack.c.b16 %v4345, %v4344
    %v4357 = vpack.c.b16 %v4347, %v4346
    %v4358 = vpack.c.b16 %v4349, %v4348
    %v4359 = vpack.c.b16 %v4351, %v4350
    %4368 = vmatpush.bf16.msra.mxu0 %v4359
    %4369 = vmatpush.bf16.msra.mxu0 %v4358
    %4370 = vmatpush.bf16.msra.mxu0 %v4357
    %4371 = vmatpush.bf16.msra.mxu0 %v4356
    %4372 = vmatpush.bf16.msra.mxu0 %v4355
    %4373 = vmatpush.bf16.msra.mxu0 %v4354
    %4374 = vmatpush.bf16.msra.mxu0 %v4353
    %4375 = vmatpush.bf16.msra.mxu0 %v4352
    %4376 = vmatmul.bf16.gmra.mxu0 %v4318
    %v4377 = vpop.f32.mrf.mxu0
    %v4378 = vadd.f32 0.0, %v4377
    %v4379 = vpop.f32.mrf.mxu0
    %4380 = vdwg.mxu0
    %v4381 = vadd.f32 %v3795, %v4378
    %s4382 = scalar_lea.vmem [#allocation12], 1600
    %v4383 = vld [vmem:[%s4382] sm:$0xf]
    %v4384 = vld [vmem:[%s4382 + $0x4] sm:$0xf]
    %v4385 = vld [vmem:[%s4382 + $0x8] sm:$0xf]
    %v4386 = vld [vmem:[%s4382 + $0xc] sm:$0xf]
    %v4387 = vld [vmem:[%s4382 + $0x10] sm:$0xf]
    %v4388 = vld [vmem:[%s4382 + $0x14] sm:$0xf]
    %v4389 = vld [vmem:[%s4382 + $0x18] sm:$0xf]
    %v4390 = vld [vmem:[%s4382 + $0x1c] sm:$0xf]
    %v4391 = vld [vmem:[%s4382 + $0x20] sm:$0xf]
    %v4392 = vld [vmem:[%s4382 + $0x24] sm:$0xf]
    %v4393 = vld [vmem:[%s4382 + $0x28] sm:$0xf]
    %v4394 = vld [vmem:[%s4382 + $0x2c] sm:$0xf]
    %v4395 = vld [vmem:[%s4382 + $0x30] sm:$0xf]
    %v4396 = vld [vmem:[%s4382 + $0x34] sm:$0xf]
    %v4397 = vld [vmem:[%s4382 + $0x38] sm:$0xf]
    %v4398 = vld [vmem:[%s4382 + $0x3c] sm:$0xf]
    %v4399 = vrot.slane %v4314, 1
    %v4400 = vsel %vm816, %v4315, %v4399
    %v4401 = vpack.c.b16 %v4400, %v4400
    %v4419 = vunpack.c.l.b16 %v4383
    %v4420 = vunpack.c.l.b16 %v4384
    %v4421 = vunpack.c.l.b16 %v4385
    %v4422 = vunpack.c.l.b16 %v4386
    %v4423 = vunpack.c.l.b16 %v4387
    %v4424 = vunpack.c.l.b16 %v4388
    %v4425 = vunpack.c.l.b16 %v4389
    %v4426 = vunpack.c.l.b16 %v4390
    %v4427 = vunpack.c.l.b16 %v4391
    %v4428 = vunpack.c.l.b16 %v4392
    %v4429 = vunpack.c.l.b16 %v4393
    %v4430 = vunpack.c.l.b16 %v4394
    %v4431 = vunpack.c.l.b16 %v4395
    %v4432 = vunpack.c.l.b16 %v4396
    %v4433 = vunpack.c.l.b16 %v4397
    %v4434 = vunpack.c.l.b16 %v4398
    %v4435 = vpack.c.b16 %v4420, %v4419
    %v4436 = vpack.c.b16 %v4422, %v4421
    %v4437 = vpack.c.b16 %v4424, %v4423
    %v4438 = vpack.c.b16 %v4426, %v4425
    %v4439 = vpack.c.b16 %v4428, %v4427
    %v4440 = vpack.c.b16 %v4430, %v4429
    %v4441 = vpack.c.b16 %v4432, %v4431
    %v4442 = vpack.c.b16 %v4434, %v4433
    %4451 = vmatpush.bf16.msra.mxu0 %v4442
    %4452 = vmatpush.bf16.msra.mxu0 %v4441
    %4453 = vmatpush.bf16.msra.mxu0 %v4440
    %4454 = vmatpush.bf16.msra.mxu0 %v4439
    %4455 = vmatpush.bf16.msra.mxu0 %v4438
    %4456 = vmatpush.bf16.msra.mxu0 %v4437
    %4457 = vmatpush.bf16.msra.mxu0 %v4436
    %4458 = vmatpush.bf16.msra.mxu0 %v4435
    %4459 = vmatmul.bf16.gmra.mxu0 %v4401
    %v4460 = vpop.f32.mrf.mxu0
    %v4461 = vadd.f32 0.0, %v4460
    %v4462 = vpop.f32.mrf.mxu0
    %4463 = vdwg.mxu0
    %v4464 = vadd.f32 %v4381, %v4461
    %s4465 = scalar_lea.vmem [#allocation12], 1664
    %v4466 = vld [vmem:[%s4465] sm:$0xf]
    %v4467 = vld [vmem:[%s4465 + $0x4] sm:$0xf]
    %v4468 = vld [vmem:[%s4465 + $0x8] sm:$0xf]
    %v4469 = vld [vmem:[%s4465 + $0xc] sm:$0xf]
    %v4470 = vld [vmem:[%s4465 + $0x10] sm:$0xf]
    %v4471 = vld [vmem:[%s4465 + $0x14] sm:$0xf]
    %v4472 = vld [vmem:[%s4465 + $0x18] sm:$0xf]
    %v4473 = vld [vmem:[%s4465 + $0x1c] sm:$0xf]
    %v4474 = vld [vmem:[%s4465 + $0x20] sm:$0xf]
    %v4475 = vld [vmem:[%s4465 + $0x24] sm:$0xf]
    %v4476 = vld [vmem:[%s4465 + $0x28] sm:$0xf]
    %v4477 = vld [vmem:[%s4465 + $0x2c] sm:$0xf]
    %v4478 = vld [vmem:[%s4465 + $0x30] sm:$0xf]
    %v4479 = vld [vmem:[%s4465 + $0x34] sm:$0xf]
    %v4480 = vld [vmem:[%s4465 + $0x38] sm:$0xf]
    %v4481 = vld [vmem:[%s4465 + $0x3c] sm:$0xf]
    %v4482 = vrot.slane %v4314, 2
    %v4483 = vrot.slane %v4315, 1
    %v4484 = vsel %vm816, %v4483, %v4482
    %v4485 = vpack.c.b16 %v4484, %v4484
    %v4503 = vunpack.c.l.b16 %v4466
    %v4504 = vunpack.c.l.b16 %v4467
    %v4505 = vunpack.c.l.b16 %v4468
    %v4506 = vunpack.c.l.b16 %v4469
    %v4507 = vunpack.c.l.b16 %v4470
    %v4508 = vunpack.c.l.b16 %v4471
    %v4509 = vunpack.c.l.b16 %v4472
    %v4510 = vunpack.c.l.b16 %v4473
    %v4511 = vunpack.c.l.b16 %v4474
    %v4512 = vunpack.c.l.b16 %v4475
    %v4513 = vunpack.c.l.b16 %v4476
    %v4514 = vunpack.c.l.b16 %v4477
    %v4515 = vunpack.c.l.b16 %v4478
    %v4516 = vunpack.c.l.b16 %v4479
    %v4517 = vunpack.c.l.b16 %v4480
    %v4518 = vunpack.c.l.b16 %v4481
    %v4519 = vpack.c.b16 %v4504, %v4503
    %v4520 = vpack.c.b16 %v4506, %v4505
    %v4521 = vpack.c.b16 %v4508, %v4507
    %v4522 = vpack.c.b16 %v4510, %v4509
    %v4523 = vpack.c.b16 %v4512, %v4511
    %v4524 = vpack.c.b16 %v4514, %v4513
    %v4525 = vpack.c.b16 %v4516, %v4515
    %v4526 = vpack.c.b16 %v4518, %v4517
    %4535 = vmatpush.bf16.msra.mxu0 %v4526
    %4536 = vmatpush.bf16.msra.mxu0 %v4525
    %4537 = vmatpush.bf16.msra.mxu0 %v4524
    %4538 = vmatpush.bf16.msra.mxu0 %v4523
    %4539 = vmatpush.bf16.msra.mxu0 %v4522
    %4540 = vmatpush.bf16.msra.mxu0 %v4521
    %4541 = vmatpush.bf16.msra.mxu0 %v4520
    %4542 = vmatpush.bf16.msra.mxu0 %v4519
    %4543 = vmatmul.bf16.gmra.mxu0 %v4485
    %v4544 = vpop.f32.mrf.mxu0
    %v4545 = vadd.f32 0.0, %v4544
    %v4546 = vpop.f32.mrf.mxu0
    %4547 = vdwg.mxu0
    %v4548 = vadd.f32 %v4464, %v4545
    %s4549 = scalar_lea.vmem [#allocation12], 1728
    %v4550 = vld [vmem:[%s4549] sm:$0xf]
    %v4551 = vld [vmem:[%s4549 + $0x4] sm:$0xf]
    %v4552 = vld [vmem:[%s4549 + $0x8] sm:$0xf]
    %v4553 = vld [vmem:[%s4549 + $0xc] sm:$0xf]
    %v4554 = vld [vmem:[%s4549 + $0x10] sm:$0xf]
    %v4555 = vld [vmem:[%s4549 + $0x14] sm:$0xf]
    %v4556 = vld [vmem:[%s4549 + $0x18] sm:$0xf]
    %v4557 = vld [vmem:[%s4549 + $0x1c] sm:$0xf]
    %v4558 = vld [vmem:[%s4549 + $0x20] sm:$0xf]
    %v4559 = vld [vmem:[%s4549 + $0x24] sm:$0xf]
    %v4560 = vld [vmem:[%s4549 + $0x28] sm:$0xf]
    %v4561 = vld [vmem:[%s4549 + $0x2c] sm:$0xf]
    %v4562 = vld [vmem:[%s4549 + $0x30] sm:$0xf]
    %v4563 = vld [vmem:[%s4549 + $0x34] sm:$0xf]
    %v4564 = vld [vmem:[%s4549 + $0x38] sm:$0xf]
    %v4565 = vld [vmem:[%s4549 + $0x3c] sm:$0xf]
    %v4566 = vrot.slane %v4314, 3
    %v4567 = vrot.slane %v4315, 2
    %v4568 = vsel %vm816, %v4567, %v4566
    %v4569 = vpack.c.b16 %v4568, %v4568
    %v4587 = vunpack.c.l.b16 %v4550
    %v4588 = vunpack.c.l.b16 %v4551
    %v4589 = vunpack.c.l.b16 %v4552
    %v4590 = vunpack.c.l.b16 %v4553
    %v4591 = vunpack.c.l.b16 %v4554
    %v4592 = vunpack.c.l.b16 %v4555
    %v4593 = vunpack.c.l.b16 %v4556
    %v4594 = vunpack.c.l.b16 %v4557
    %v4595 = vunpack.c.l.b16 %v4558
    %v4596 = vunpack.c.l.b16 %v4559
    %v4597 = vunpack.c.l.b16 %v4560
    %v4598 = vunpack.c.l.b16 %v4561
    %v4599 = vunpack.c.l.b16 %v4562
    %v4600 = vunpack.c.l.b16 %v4563
    %v4601 = vunpack.c.l.b16 %v4564
    %v4602 = vunpack.c.l.b16 %v4565
    %v4603 = vpack.c.b16 %v4588, %v4587
    %v4604 = vpack.c.b16 %v4590, %v4589
    %v4605 = vpack.c.b16 %v4592, %v4591
    %v4606 = vpack.c.b16 %v4594, %v4593
    %v4607 = vpack.c.b16 %v4596, %v4595
    %v4608 = vpack.c.b16 %v4598, %v4597
    %v4609 = vpack.c.b16 %v4600, %v4599
    %v4610 = vpack.c.b16 %v4602, %v4601
    %4619 = vmatpush.bf16.msra.mxu0 %v4610
    %4620 = vmatpush.bf16.msra.mxu0 %v4609
    %4621 = vmatpush.bf16.msra.mxu0 %v4608
    %4622 = vmatpush.bf16.msra.mxu0 %v4607
    %4623 = vmatpush.bf16.msra.mxu0 %v4606
    %4624 = vmatpush.bf16.msra.mxu0 %v4605
    %4625 = vmatpush.bf16.msra.mxu0 %v4604
    %4626 = vmatpush.bf16.msra.mxu0 %v4603
    %4627 = vmatmul.bf16.gmra.mxu0 %v4569
    %v4628 = vpop.f32.mrf.mxu0
    %v4629 = vadd.f32 0.0, %v4628
    %v4630 = vpop.f32.mrf.mxu0
    %4631 = vdwg.mxu0
    %v4632 = vadd.f32 %v4548, %v4629
    %s4633 = scalar_lea.vmem [#allocation12], 1792
    %v4634 = vld [vmem:[%s4633] sm:$0xf]
    %v4635 = vld [vmem:[%s4633 + $0x4] sm:$0xf]
    %v4636 = vld [vmem:[%s4633 + $0x8] sm:$0xf]
    %v4637 = vld [vmem:[%s4633 + $0xc] sm:$0xf]
    %v4638 = vld [vmem:[%s4633 + $0x10] sm:$0xf]
    %v4639 = vld [vmem:[%s4633 + $0x14] sm:$0xf]
    %v4640 = vld [vmem:[%s4633 + $0x18] sm:$0xf]
    %v4641 = vld [vmem:[%s4633 + $0x1c] sm:$0xf]
    %v4642 = vld [vmem:[%s4633 + $0x20] sm:$0xf]
    %v4643 = vld [vmem:[%s4633 + $0x24] sm:$0xf]
    %v4644 = vld [vmem:[%s4633 + $0x28] sm:$0xf]
    %v4645 = vld [vmem:[%s4633 + $0x2c] sm:$0xf]
    %v4646 = vld [vmem:[%s4633 + $0x30] sm:$0xf]
    %v4647 = vld [vmem:[%s4633 + $0x34] sm:$0xf]
    %v4648 = vld [vmem:[%s4633 + $0x38] sm:$0xf]
    %v4649 = vld [vmem:[%s4633 + $0x3c] sm:$0xf]
    %v4650 = vrot.slane %v4314, 4
    %v4651 = vrot.slane %v4315, 3
    %v4652 = vsel %vm816, %v4651, %v4650
    %v4653 = vpack.c.b16 %v4652, %v4652
    %v4671 = vunpack.c.l.b16 %v4634
    %v4672 = vunpack.c.l.b16 %v4635
    %v4673 = vunpack.c.l.b16 %v4636
    %v4674 = vunpack.c.l.b16 %v4637
    %v4675 = vunpack.c.l.b16 %v4638
    %v4676 = vunpack.c.l.b16 %v4639
    %v4677 = vunpack.c.l.b16 %v4640
    %v4678 = vunpack.c.l.b16 %v4641
    %v4679 = vunpack.c.l.b16 %v4642
    %v4680 = vunpack.c.l.b16 %v4643
    %v4681 = vunpack.c.l.b16 %v4644
    %v4682 = vunpack.c.l.b16 %v4645
    %v4683 = vunpack.c.l.b16 %v4646
    %v4684 = vunpack.c.l.b16 %v4647
    %v4685 = vunpack.c.l.b16 %v4648
    %v4686 = vunpack.c.l.b16 %v4649
    %v4687 = vpack.c.b16 %v4672, %v4671
    %v4688 = vpack.c.b16 %v4674, %v4673
    %v4689 = vpack.c.b16 %v4676, %v4675
    %v4690 = vpack.c.b16 %v4678, %v4677
    %v4691 = vpack.c.b16 %v4680, %v4679
    %v4692 = vpack.c.b16 %v4682, %v4681
    %v4693 = vpack.c.b16 %v4684, %v4683
    %v4694 = vpack.c.b16 %v4686, %v4685
    %4703 = vmatpush.bf16.msra.mxu0 %v4694
    %4704 = vmatpush.bf16.msra.mxu0 %v4693
    %4705 = vmatpush.bf16.msra.mxu0 %v4692
    %4706 = vmatpush.bf16.msra.mxu0 %v4691
    %4707 = vmatpush.bf16.msra.mxu0 %v4690
    %4708 = vmatpush.bf16.msra.mxu0 %v4689
    %4709 = vmatpush.bf16.msra.mxu0 %v4688
    %4710 = vmatpush.bf16.msra.mxu0 %v4687
    %4711 = vmatmul.bf16.gmra.mxu0 %v4653
    %v4712 = vpop.f32.mrf.mxu0
    %v4713 = vadd.f32 0.0, %v4712
    %v4714 = vpop.f32.mrf.mxu0
    %4715 = vdwg.mxu0
    %v4716 = vadd.f32 %v4632, %v4713
    %s4717 = scalar_lea.vmem [#allocation12], 1856
    %v4718 = vld [vmem:[%s4717] sm:$0xf]
    %v4719 = vld [vmem:[%s4717 + $0x4] sm:$0xf]
    %v4720 = vld [vmem:[%s4717 + $0x8] sm:$0xf]
    %v4721 = vld [vmem:[%s4717 + $0xc] sm:$0xf]
    %v4722 = vld [vmem:[%s4717 + $0x10] sm:$0xf]
    %v4723 = vld [vmem:[%s4717 + $0x14] sm:$0xf]
    %v4724 = vld [vmem:[%s4717 + $0x18] sm:$0xf]
    %v4725 = vld [vmem:[%s4717 + $0x1c] sm:$0xf]
    %v4726 = vld [vmem:[%s4717 + $0x20] sm:$0xf]
    %v4727 = vld [vmem:[%s4717 + $0x24] sm:$0xf]
    %v4728 = vld [vmem:[%s4717 + $0x28] sm:$0xf]
    %v4729 = vld [vmem:[%s4717 + $0x2c] sm:$0xf]
    %v4730 = vld [vmem:[%s4717 + $0x30] sm:$0xf]
    %v4731 = vld [vmem:[%s4717 + $0x34] sm:$0xf]
    %v4732 = vld [vmem:[%s4717 + $0x38] sm:$0xf]
    %v4733 = vld [vmem:[%s4717 + $0x3c] sm:$0xf]
    %v4734 = vrot.slane %v4314, 5
    %v4735 = vrot.slane %v4315, 4
    %v4736 = vsel %vm816, %v4735, %v4734
    %v4737 = vpack.c.b16 %v4736, %v4736
    %v4755 = vunpack.c.l.b16 %v4718
    %v4756 = vunpack.c.l.b16 %v4719
    %v4757 = vunpack.c.l.b16 %v4720
    %v4758 = vunpack.c.l.b16 %v4721
    %v4759 = vunpack.c.l.b16 %v4722
    %v4760 = vunpack.c.l.b16 %v4723
    %v4761 = vunpack.c.l.b16 %v4724
    %v4762 = vunpack.c.l.b16 %v4725
    %v4763 = vunpack.c.l.b16 %v4726
    %v4764 = vunpack.c.l.b16 %v4727
    %v4765 = vunpack.c.l.b16 %v4728
    %v4766 = vunpack.c.l.b16 %v4729
    %v4767 = vunpack.c.l.b16 %v4730
    %v4768 = vunpack.c.l.b16 %v4731
    %v4769 = vunpack.c.l.b16 %v4732
    %v4770 = vunpack.c.l.b16 %v4733
    %v4771 = vpack.c.b16 %v4756, %v4755
    %v4772 = vpack.c.b16 %v4758, %v4757
    %v4773 = vpack.c.b16 %v4760, %v4759
    %v4774 = vpack.c.b16 %v4762, %v4761
    %v4775 = vpack.c.b16 %v4764, %v4763
    %v4776 = vpack.c.b16 %v4766, %v4765
    %v4777 = vpack.c.b16 %v4768, %v4767
    %v4778 = vpack.c.b16 %v4770, %v4769
    %4787 = vmatpush.bf16.msra.mxu0 %v4778
    %4788 = vmatpush.bf16.msra.mxu0 %v4777
    %4789 = vmatpush.bf16.msra.mxu0 %v4776
    %4790 = vmatpush.bf16.msra.mxu0 %v4775
    %4791 = vmatpush.bf16.msra.mxu0 %v4774
    %4792 = vmatpush.bf16.msra.mxu0 %v4773
    %4793 = vmatpush.bf16.msra.mxu0 %v4772
    %4794 = vmatpush.bf16.msra.mxu0 %v4771
    %4795 = vmatmul.bf16.gmra.mxu0 %v4737
    %v4796 = vpop.f32.mrf.mxu0
    %v4797 = vadd.f32 0.0, %v4796
    %v4798 = vpop.f32.mrf.mxu0
    %4799 = vdwg.mxu0
    %v4800 = vadd.f32 %v4716, %v4797
    %s4801 = scalar_lea.vmem [#allocation12], 1920
    %v4802 = vld [vmem:[%s4801] sm:$0xf]
    %v4803 = vld [vmem:[%s4801 + $0x4] sm:$0xf]
    %v4804 = vld [vmem:[%s4801 + $0x8] sm:$0xf]
    %v4805 = vld [vmem:[%s4801 + $0xc] sm:$0xf]
    %v4806 = vld [vmem:[%s4801 + $0x10] sm:$0xf]
    %v4807 = vld [vmem:[%s4801 + $0x14] sm:$0xf]
    %v4808 = vld [vmem:[%s4801 + $0x18] sm:$0xf]
    %v4809 = vld [vmem:[%s4801 + $0x1c] sm:$0xf]
    %v4810 = vld [vmem:[%s4801 + $0x20] sm:$0xf]
    %v4811 = vld [vmem:[%s4801 + $0x24] sm:$0xf]
    %v4812 = vld [vmem:[%s4801 + $0x28] sm:$0xf]
    %v4813 = vld [vmem:[%s4801 + $0x2c] sm:$0xf]
    %v4814 = vld [vmem:[%s4801 + $0x30] sm:$0xf]
    %v4815 = vld [vmem:[%s4801 + $0x34] sm:$0xf]
    %v4816 = vld [vmem:[%s4801 + $0x38] sm:$0xf]
    %v4817 = vld [vmem:[%s4801 + $0x3c] sm:$0xf]
    %v4818 = vrot.slane %v4314, 6
    %v4819 = vrot.slane %v4315, 5
    %v4820 = vsel %vm816, %v4819, %v4818
    %v4821 = vpack.c.b16 %v4820, %v4820
    %v4839 = vunpack.c.l.b16 %v4802
    %v4840 = vunpack.c.l.b16 %v4803
    %v4841 = vunpack.c.l.b16 %v4804
    %v4842 = vunpack.c.l.b16 %v4805
    %v4843 = vunpack.c.l.b16 %v4806
    %v4844 = vunpack.c.l.b16 %v4807
    %v4845 = vunpack.c.l.b16 %v4808
    %v4846 = vunpack.c.l.b16 %v4809
    %v4847 = vunpack.c.l.b16 %v4810
    %v4848 = vunpack.c.l.b16 %v4811
    %v4849 = vunpack.c.l.b16 %v4812
    %v4850 = vunpack.c.l.b16 %v4813
    %v4851 = vunpack.c.l.b16 %v4814
    %v4852 = vunpack.c.l.b16 %v4815
    %v4853 = vunpack.c.l.b16 %v4816
    %v4854 = vunpack.c.l.b16 %v4817
    %v4855 = vpack.c.b16 %v4840, %v4839
    %v4856 = vpack.c.b16 %v4842, %v4841
    %v4857 = vpack.c.b16 %v4844, %v4843
    %v4858 = vpack.c.b16 %v4846, %v4845
    %v4859 = vpack.c.b16 %v4848, %v4847
    %v4860 = vpack.c.b16 %v4850, %v4849
    %v4861 = vpack.c.b16 %v4852, %v4851
    %v4862 = vpack.c.b16 %v4854, %v4853
    %4871 = vmatpush.bf16.msra.mxu0 %v4862
    %4872 = vmatpush.bf16.msra.mxu0 %v4861
    %4873 = vmatpush.bf16.msra.mxu0 %v4860
    %4874 = vmatpush.bf16.msra.mxu0 %v4859
    %4875 = vmatpush.bf16.msra.mxu0 %v4858
    %4876 = vmatpush.bf16.msra.mxu0 %v4857
    %4877 = vmatpush.bf16.msra.mxu0 %v4856
    %4878 = vmatpush.bf16.msra.mxu0 %v4855
    %4879 = vmatmul.bf16.gmra.mxu0 %v4821
    %v4880 = vpop.f32.mrf.mxu0
    %v4881 = vadd.f32 0.0, %v4880
    %v4882 = vpop.f32.mrf.mxu0
    %4883 = vdwg.mxu0
    %v4884 = vadd.f32 %v4800, %v4881
    %s4885 = scalar_lea.vmem [#allocation12], 1984
    %v4886 = vld [vmem:[%s4885] sm:$0xf]
    %v4887 = vld [vmem:[%s4885 + $0x4] sm:$0xf]
    %v4888 = vld [vmem:[%s4885 + $0x8] sm:$0xf]
    %v4889 = vld [vmem:[%s4885 + $0xc] sm:$0xf]
    %v4890 = vld [vmem:[%s4885 + $0x10] sm:$0xf]
    %v4891 = vld [vmem:[%s4885 + $0x14] sm:$0xf]
    %v4892 = vld [vmem:[%s4885 + $0x18] sm:$0xf]
    %v4893 = vld [vmem:[%s4885 + $0x1c] sm:$0xf]
    %v4894 = vld [vmem:[%s4885 + $0x20] sm:$0xf]
    %v4895 = vld [vmem:[%s4885 + $0x24] sm:$0xf]
    %v4896 = vld [vmem:[%s4885 + $0x28] sm:$0xf]
    %v4897 = vld [vmem:[%s4885 + $0x2c] sm:$0xf]
    %v4898 = vld [vmem:[%s4885 + $0x30] sm:$0xf]
    %v4899 = vld [vmem:[%s4885 + $0x34] sm:$0xf]
    %v4900 = vld [vmem:[%s4885 + $0x38] sm:$0xf]
    %v4901 = vld [vmem:[%s4885 + $0x3c] sm:$0xf]
    %v4902 = vrot.slane %v4314, 7
    %v4903 = vrot.slane %v4315, 6
    %v4904 = vsel %vm816, %v4903, %v4902
    %v4905 = vpack.c.b16 %v4904, %v4904
    %v4923 = vunpack.c.l.b16 %v4886
    %v4924 = vunpack.c.l.b16 %v4887
    %v4925 = vunpack.c.l.b16 %v4888
    %v4926 = vunpack.c.l.b16 %v4889
    %v4927 = vunpack.c.l.b16 %v4890
    %v4928 = vunpack.c.l.b16 %v4891
    %v4929 = vunpack.c.l.b16 %v4892
    %v4930 = vunpack.c.l.b16 %v4893
    %v4931 = vunpack.c.l.b16 %v4894
    %v4932 = vunpack.c.l.b16 %v4895
    %v4933 = vunpack.c.l.b16 %v4896
    %v4934 = vunpack.c.l.b16 %v4897
    %v4935 = vunpack.c.l.b16 %v4898
    %v4936 = vunpack.c.l.b16 %v4899
    %v4937 = vunpack.c.l.b16 %v4900
    %v4938 = vunpack.c.l.b16 %v4901
    %v4939 = vpack.c.b16 %v4924, %v4923
    %v4940 = vpack.c.b16 %v4926, %v4925
    %v4941 = vpack.c.b16 %v4928, %v4927
    %v4942 = vpack.c.b16 %v4930, %v4929
    %v4943 = vpack.c.b16 %v4932, %v4931
    %v4944 = vpack.c.b16 %v4934, %v4933
    %v4945 = vpack.c.b16 %v4936, %v4935
    %v4946 = vpack.c.b16 %v4938, %v4937
    %4955 = vmatpush.bf16.msra.mxu0 %v4946
    %4956 = vmatpush.bf16.msra.mxu0 %v4945
    %4957 = vmatpush.bf16.msra.mxu0 %v4944
    %4958 = vmatpush.bf16.msra.mxu0 %v4943
    %4959 = vmatpush.bf16.msra.mxu0 %v4942
    %4960 = vmatpush.bf16.msra.mxu0 %v4941
    %4961 = vmatpush.bf16.msra.mxu0 %v4940
    %4962 = vmatpush.bf16.msra.mxu0 %v4939
    %4963 = vmatmul.bf16.gmra.mxu0 %v4905
    %v4964 = vpop.f32.mrf.mxu0
    %v4965 = vadd.f32 0.0, %v4964
    %v4966 = vpop.f32.mrf.mxu0
    %4967 = vdwg.mxu0
    %v4968 = vadd.f32 %v4884, %v4965
    %v4969 = vld [vmem:[#allocation2] sm:$0xff]
    %v4970 = vld [vmem:[#allocation2 + $0x8] sm:$0xf]
    %v4971 = vld [vmem:[#allocation2 + $0x10] sm:$0xff]
    %v4972 = vld [vmem:[#allocation2 + $0x18] sm:$0xf]
    %v4973 = vpack.c.bf16 %v4971, %v4969
    %s4974 = scalar_lea.vmem [#allocation8], 1280
    %v4975 = vld [vmem:[%s4974] sm:$0xf]
    %v4976 = vld [vmem:[%s4974 + $0x4] sm:$0xf]
    %v4977 = vld [vmem:[%s4974 + $0x8] sm:$0xf]
    %v4978 = vld [vmem:[%s4974 + $0xc] sm:$0xf]
    %v4979 = vld [vmem:[%s4974 + $0x10] sm:$0xf]
    %v4980 = vld [vmem:[%s4974 + $0x14] sm:$0xf]
    %v4981 = vld [vmem:[%s4974 + $0x18] sm:$0xf]
    %v4982 = vld [vmem:[%s4974 + $0x1c] sm:$0xf]
    %v4983 = vld [vmem:[%s4974 + $0x20] sm:$0xf]
    %v4984 = vld [vmem:[%s4974 + $0x24] sm:$0xf]
    %v4985 = vld [vmem:[%s4974 + $0x28] sm:$0xf]
    %v4986 = vld [vmem:[%s4974 + $0x2c] sm:$0xf]
    %v4987 = vld [vmem:[%s4974 + $0x30] sm:$0xf]
    %v4988 = vld [vmem:[%s4974 + $0x34] sm:$0xf]
    %v4989 = vld [vmem:[%s4974 + $0x38] sm:$0xf]
    %v4990 = vld [vmem:[%s4974 + $0x3c] sm:$0xf]
    %v4995 = vrot.slane %v4969, 1
    %v4996 = vrot.slane %v4970, 1
    %v4997 = vsel %vm215, %v4995, %v4996
    %v4998 = vrot.slane %v4971, 1
    %v4999 = vrot.slane %v4972, 1
    %v5000 = vsel %vm215, %v4998, %v4999
    %v5003 = vpack.c.bf16 %v5000, %v4997
    %s5004 = scalar_lea.vmem [#allocation8], 1344
    %v5005 = vld [vmem:[%s5004] sm:$0xf]
    %v5006 = vld [vmem:[%s5004 + $0x4] sm:$0xf]
    %v5007 = vld [vmem:[%s5004 + $0x8] sm:$0xf]
    %v5008 = vld [vmem:[%s5004 + $0xc] sm:$0xf]
    %v5009 = vld [vmem:[%s5004 + $0x10] sm:$0xf]
    %v5010 = vld [vmem:[%s5004 + $0x14] sm:$0xf]
    %v5011 = vld [vmem:[%s5004 + $0x18] sm:$0xf]
    %v5012 = vld [vmem:[%s5004 + $0x1c] sm:$0xf]
    %v5013 = vld [vmem:[%s5004 + $0x20] sm:$0xf]
    %v5014 = vld [vmem:[%s5004 + $0x24] sm:$0xf]
    %v5015 = vld [vmem:[%s5004 + $0x28] sm:$0xf]
    %v5016 = vld [vmem:[%s5004 + $0x2c] sm:$0xf]
    %v5017 = vld [vmem:[%s5004 + $0x30] sm:$0xf]
    %v5018 = vld [vmem:[%s5004 + $0x34] sm:$0xf]
    %v5019 = vld [vmem:[%s5004 + $0x38] sm:$0xf]
    %v5020 = vld [vmem:[%s5004 + $0x3c] sm:$0xf]
    %v5037 = vunpack.c.l.b16 %v5005
    %v5038 = vunpack.c.l.b16 %v5006
    %v5039 = vunpack.c.l.b16 %v5007
    %v5040 = vunpack.c.l.b16 %v5008
    %v5041 = vunpack.c.l.b16 %v5009
    %v5042 = vunpack.c.l.b16 %v5010
    %v5043 = vunpack.c.l.b16 %v5011
    %v5044 = vunpack.c.l.b16 %v5012
    %v5045 = vunpack.c.l.b16 %v5013
    %v5046 = vunpack.c.l.b16 %v5014
    %v5047 = vunpack.c.l.b16 %v5015
    %v5048 = vunpack.c.l.b16 %v5016
    %v5049 = vunpack.c.l.b16 %v5017
    %v5050 = vunpack.c.l.b16 %v5018
    %v5051 = vunpack.c.l.b16 %v5019
    %v5052 = vunpack.c.l.b16 %v5020
    %v5053 = vpack.c.b16 %v5038, %v5037
    %v5054 = vpack.c.b16 %v5040, %v5039
    %v5055 = vpack.c.b16 %v5042, %v5041
    %v5056 = vpack.c.b16 %v5044, %v5043
    %v5057 = vpack.c.b16 %v5046, %v5045
    %v5058 = vpack.c.b16 %v5048, %v5047
    %v5059 = vpack.c.b16 %v5050, %v5049
    %v5060 = vpack.c.b16 %v5052, %v5051
    %5069 = vmatpush.bf16.msra.mxu0 %v5060
    %5070 = vmatpush.bf16.msra.mxu0 %v5059
    %5071 = vmatpush.bf16.msra.mxu0 %v5058
    %5072 = vmatpush.bf16.msra.mxu0 %v5057
    %5073 = vmatpush.bf16.msra.mxu0 %v5056
    %5074 = vmatpush.bf16.msra.mxu0 %v5055
    %5075 = vmatpush.bf16.msra.mxu0 %v5054
    %5076 = vmatpush.bf16.msra.mxu0 %v5053
    %5077 = vmatmul.bf16.gmra.mxu0 %v5003
    %v5078 = vpop.f32.mrf.mxu0
    %v5079 = vadd.f32 0.0, %v5078
    %v5080 = vpop.f32.mrf.mxu0
    %v5081 = vadd.f32 0.0, %v5080
    %5082 = vdwg.mxu0
    %v5099 = vunpack.c.l.b16 %v4975
    %v5100 = vunpack.c.l.b16 %v4976
    %v5101 = vunpack.c.l.b16 %v4977
    %v5102 = vunpack.c.l.b16 %v4978
    %v5103 = vunpack.c.l.b16 %v4979
    %v5104 = vunpack.c.l.b16 %v4980
    %v5105 = vunpack.c.l.b16 %v4981
    %v5106 = vunpack.c.l.b16 %v4982
    %v5107 = vunpack.c.l.b16 %v4983
    %v5108 = vunpack.c.l.b16 %v4984
    %v5109 = vunpack.c.l.b16 %v4985
    %v5110 = vunpack.c.l.b16 %v4986
    %v5111 = vunpack.c.l.b16 %v4987
    %v5112 = vunpack.c.l.b16 %v4988
    %v5113 = vunpack.c.l.b16 %v4989
    %v5114 = vunpack.c.l.b16 %v4990
    %v5115 = vpack.c.b16 %v5100, %v5099
    %v5116 = vpack.c.b16 %v5102, %v5101
    %v5117 = vpack.c.b16 %v5104, %v5103
    %v5118 = vpack.c.b16 %v5106, %v5105
    %v5119 = vpack.c.b16 %v5108, %v5107
    %v5120 = vpack.c.b16 %v5110, %v5109
    %v5121 = vpack.c.b16 %v5112, %v5111
    %v5122 = vpack.c.b16 %v5114, %v5113
    %5131 = vmatpush.bf16.msra.mxu0 %v5122
    %5132 = vmatpush.bf16.msra.mxu0 %v5121
    %5133 = vmatpush.bf16.msra.mxu0 %v5120
    %5134 = vmatpush.bf16.msra.mxu0 %v5119
    %5135 = vmatpush.bf16.msra.mxu0 %v5118
    %5136 = vmatpush.bf16.msra.mxu0 %v5117
    %5137 = vmatpush.bf16.msra.mxu0 %v5116
    %5138 = vmatpush.bf16.msra.mxu0 %v5115
    %5139 = vmatmul.bf16.gmra.mxu0 %v4973
    %v5140 = vpop.f32.mrf.mxu0
    %v5141 = vadd.f32 %v5079, %v5140
    %v5142 = vpop.f32.mrf.mxu0
    %v5143 = vadd.f32 %v5081, %v5142
    %5144 = vdwg.mxu0
    %v5145 = vrot.slane %v4969, 2
    %v5146 = vrot.slane %v4970, 2
    %v5147 = vsel %vm234, %v5145, %v5146
    %v5148 = vrot.slane %v4971, 2
    %v5149 = vrot.slane %v4972, 2
    %v5150 = vsel %vm234, %v5148, %v5149
    %v5153 = vpack.c.bf16 %v5150, %v5147
    %s5154 = scalar_lea.vmem [#allocation8], 1408
    %v5155 = vld [vmem:[%s5154] sm:$0xf]
    %v5156 = vld [vmem:[%s5154 + $0x4] sm:$0xf]
    %v5157 = vld [vmem:[%s5154 + $0x8] sm:$0xf]
    %v5158 = vld [vmem:[%s5154 + $0xc] sm:$0xf]
    %v5159 = vld [vmem:[%s5154 + $0x10] sm:$0xf]
    %v5160 = vld [vmem:[%s5154 + $0x14] sm:$0xf]
    %v5161 = vld [vmem:[%s5154 + $0x18] sm:$0xf]
    %v5162 = vld [vmem:[%s5154 + $0x1c] sm:$0xf]
    %v5163 = vld [vmem:[%s5154 + $0x20] sm:$0xf]
    %v5164 = vld [vmem:[%s5154 + $0x24] sm:$0xf]
    %v5165 = vld [vmem:[%s5154 + $0x28] sm:$0xf]
    %v5166 = vld [vmem:[%s5154 + $0x2c] sm:$0xf]
    %v5167 = vld [vmem:[%s5154 + $0x30] sm:$0xf]
    %v5168 = vld [vmem:[%s5154 + $0x34] sm:$0xf]
    %v5169 = vld [vmem:[%s5154 + $0x38] sm:$0xf]
    %v5170 = vld [vmem:[%s5154 + $0x3c] sm:$0xf]
    %v5187 = vunpack.c.l.b16 %v5155
    %v5188 = vunpack.c.l.b16 %v5156
    %v5189 = vunpack.c.l.b16 %v5157
    %v5190 = vunpack.c.l.b16 %v5158
    %v5191 = vunpack.c.l.b16 %v5159
    %v5192 = vunpack.c.l.b16 %v5160
    %v5193 = vunpack.c.l.b16 %v5161
    %v5194 = vunpack.c.l.b16 %v5162
    %v5195 = vunpack.c.l.b16 %v5163
    %v5196 = vunpack.c.l.b16 %v5164
    %v5197 = vunpack.c.l.b16 %v5165
    %v5198 = vunpack.c.l.b16 %v5166
    %v5199 = vunpack.c.l.b16 %v5167
    %v5200 = vunpack.c.l.b16 %v5168
    %v5201 = vunpack.c.l.b16 %v5169
    %v5202 = vunpack.c.l.b16 %v5170
    %v5203 = vpack.c.b16 %v5188, %v5187
    %v5204 = vpack.c.b16 %v5190, %v5189
    %v5205 = vpack.c.b16 %v5192, %v5191
    %v5206 = vpack.c.b16 %v5194, %v5193
    %v5207 = vpack.c.b16 %v5196, %v5195
    %v5208 = vpack.c.b16 %v5198, %v5197
    %v5209 = vpack.c.b16 %v5200, %v5199
    %v5210 = vpack.c.b16 %v5202, %v5201
    %5219 = vmatpush.bf16.msra.mxu0 %v5210
    %5220 = vmatpush.bf16.msra.mxu0 %v5209
    %5221 = vmatpush.bf16.msra.mxu0 %v5208
    %5222 = vmatpush.bf16.msra.mxu0 %v5207
    %5223 = vmatpush.bf16.msra.mxu0 %v5206
    %5224 = vmatpush.bf16.msra.mxu0 %v5205
    %5225 = vmatpush.bf16.msra.mxu0 %v5204
    %5226 = vmatpush.bf16.msra.mxu0 %v5203
    %5227 = vmatmul.bf16.gmra.mxu0 %v5153
    %v5228 = vpop.f32.mrf.mxu0
    %v5229 = vadd.f32 0.0, %v5228
    %v5230 = vpop.f32.mrf.mxu0
    %v5231 = vadd.f32 0.0, %v5230
    %5232 = vdwg.mxu0
    %v5233 = vadd.f32 %v5141, %v5229
    %v5234 = vadd.f32 %v5143, %v5231
    %v5235 = vrot.slane %v4969, 3
    %v5236 = vrot.slane %v4970, 3
    %v5237 = vsel %vm538, %v5235, %v5236
    %v5238 = vrot.slane %v4971, 3
    %v5239 = vrot.slane %v4972, 3
    %v5240 = vsel %vm538, %v5238, %v5239
    %v5243 = vpack.c.bf16 %v5240, %v5237
    %s5244 = scalar_lea.vmem [#allocation8], 1472
    %v5245 = vld [vmem:[%s5244] sm:$0xf]
    %v5246 = vld [vmem:[%s5244 + $0x4] sm:$0xf]
    %v5247 = vld [vmem:[%s5244 + $0x8] sm:$0xf]
    %v5248 = vld [vmem:[%s5244 + $0xc] sm:$0xf]
    %v5249 = vld [vmem:[%s5244 + $0x10] sm:$0xf]
    %v5250 = vld [vmem:[%s5244 + $0x14] sm:$0xf]
    %v5251 = vld [vmem:[%s5244 + $0x18] sm:$0xf]
    %v5252 = vld [vmem:[%s5244 + $0x1c] sm:$0xf]
    %v5253 = vld [vmem:[%s5244 + $0x20] sm:$0xf]
    %v5254 = vld [vmem:[%s5244 + $0x24] sm:$0xf]
    %v5255 = vld [vmem:[%s5244 + $0x28] sm:$0xf]
    %v5256 = vld [vmem:[%s5244 + $0x2c] sm:$0xf]
    %v5257 = vld [vmem:[%s5244 + $0x30] sm:$0xf]
    %v5258 = vld [vmem:[%s5244 + $0x34] sm:$0xf]
    %v5259 = vld [vmem:[%s5244 + $0x38] sm:$0xf]
    %v5260 = vld [vmem:[%s5244 + $0x3c] sm:$0xf]
    %v5277 = vunpack.c.l.b16 %v5245
    %v5278 = vunpack.c.l.b16 %v5246
    %v5279 = vunpack.c.l.b16 %v5247
    %v5280 = vunpack.c.l.b16 %v5248
    %v5281 = vunpack.c.l.b16 %v5249
    %v5282 = vunpack.c.l.b16 %v5250
    %v5283 = vunpack.c.l.b16 %v5251
    %v5284 = vunpack.c.l.b16 %v5252
    %v5285 = vunpack.c.l.b16 %v5253
    %v5286 = vunpack.c.l.b16 %v5254
    %v5287 = vunpack.c.l.b16 %v5255
    %v5288 = vunpack.c.l.b16 %v5256
    %v5289 = vunpack.c.l.b16 %v5257
    %v5290 = vunpack.c.l.b16 %v5258
    %v5291 = vunpack.c.l.b16 %v5259
    %v5292 = vunpack.c.l.b16 %v5260
    %v5293 = vpack.c.b16 %v5278, %v5277
    %v5294 = vpack.c.b16 %v5280, %v5279
    %v5295 = vpack.c.b16 %v5282, %v5281
    %v5296 = vpack.c.b16 %v5284, %v5283
    %v5297 = vpack.c.b16 %v5286, %v5285
    %v5298 = vpack.c.b16 %v5288, %v5287
    %v5299 = vpack.c.b16 %v5290, %v5289
    %v5300 = vpack.c.b16 %v5292, %v5291
    %5309 = vmatpush.bf16.msra.mxu0 %v5300
    %5310 = vmatpush.bf16.msra.mxu0 %v5299
    %5311 = vmatpush.bf16.msra.mxu0 %v5298
    %5312 = vmatpush.bf16.msra.mxu0 %v5297
    %5313 = vmatpush.bf16.msra.mxu0 %v5296
    %5314 = vmatpush.bf16.msra.mxu0 %v5295
    %5315 = vmatpush.bf16.msra.mxu0 %v5294
    %5316 = vmatpush.bf16.msra.mxu0 %v5293
    %5317 = vmatmul.bf16.gmra.mxu0 %v5243
    %v5318 = vpop.f32.mrf.mxu0
    %v5319 = vadd.f32 0.0, %v5318
    %v5320 = vpop.f32.mrf.mxu0
    %v5321 = vadd.f32 0.0, %v5320
    %5322 = vdwg.mxu0
    %v5323 = vadd.f32 %v5233, %v5319
    %v5324 = vadd.f32 %v5234, %v5321
    %v5325 = vrot.slane %v4969, 4
    %v5326 = vrot.slane %v4970, 4
    %v5327 = vsel %vm629, %v5325, %v5326
    %v5328 = vrot.slane %v4971, 4
    %v5329 = vrot.slane %v4972, 4
    %v5330 = vsel %vm629, %v5328, %v5329
    %v5333 = vpack.c.bf16 %v5330, %v5327
    %s5334 = scalar_lea.vmem [#allocation8], 1536
    %v5335 = vld [vmem:[%s5334] sm:$0xf]
    %v5336 = vld [vmem:[%s5334 + $0x4] sm:$0xf]
    %v5337 = vld [vmem:[%s5334 + $0x8] sm:$0xf]
    %v5338 = vld [vmem:[%s5334 + $0xc] sm:$0xf]
    %v5339 = vld [vmem:[%s5334 + $0x10] sm:$0xf]
    %v5340 = vld [vmem:[%s5334 + $0x14] sm:$0xf]
    %v5341 = vld [vmem:[%s5334 + $0x18] sm:$0xf]
    %v5342 = vld [vmem:[%s5334 + $0x1c] sm:$0xf]
    %v5343 = vld [vmem:[%s5334 + $0x20] sm:$0xf]
    %v5344 = vld [vmem:[%s5334 + $0x24] sm:$0xf]
    %v5345 = vld [vmem:[%s5334 + $0x28] sm:$0xf]
    %v5346 = vld [vmem:[%s5334 + $0x2c] sm:$0xf]
    %v5347 = vld [vmem:[%s5334 + $0x30] sm:$0xf]
    %v5348 = vld [vmem:[%s5334 + $0x34] sm:$0xf]
    %v5349 = vld [vmem:[%s5334 + $0x38] sm:$0xf]
    %v5350 = vld [vmem:[%s5334 + $0x3c] sm:$0xf]
    %v5367 = vunpack.c.l.b16 %v5335
    %v5368 = vunpack.c.l.b16 %v5336
    %v5369 = vunpack.c.l.b16 %v5337
    %v5370 = vunpack.c.l.b16 %v5338
    %v5371 = vunpack.c.l.b16 %v5339
    %v5372 = vunpack.c.l.b16 %v5340
    %v5373 = vunpack.c.l.b16 %v5341
    %v5374 = vunpack.c.l.b16 %v5342
    %v5375 = vunpack.c.l.b16 %v5343
    %v5376 = vunpack.c.l.b16 %v5344
    %v5377 = vunpack.c.l.b16 %v5345
    %v5378 = vunpack.c.l.b16 %v5346
    %v5379 = vunpack.c.l.b16 %v5347
    %v5380 = vunpack.c.l.b16 %v5348
    %v5381 = vunpack.c.l.b16 %v5349
    %v5382 = vunpack.c.l.b16 %v5350
    %v5383 = vpack.c.b16 %v5368, %v5367
    %v5384 = vpack.c.b16 %v5370, %v5369
    %v5385 = vpack.c.b16 %v5372, %v5371
    %v5386 = vpack.c.b16 %v5374, %v5373
    %v5387 = vpack.c.b16 %v5376, %v5375
    %v5388 = vpack.c.b16 %v5378, %v5377
    %v5389 = vpack.c.b16 %v5380, %v5379
    %v5390 = vpack.c.b16 %v5382, %v5381
    %5399 = vmatpush.bf16.msra.mxu0 %v5390
    %5400 = vmatpush.bf16.msra.mxu0 %v5389
    %5401 = vmatpush.bf16.msra.mxu0 %v5388
    %5402 = vmatpush.bf16.msra.mxu0 %v5387
    %5403 = vmatpush.bf16.msra.mxu0 %v5386
    %5404 = vmatpush.bf16.msra.mxu0 %v5385
    %5405 = vmatpush.bf16.msra.mxu0 %v5384
    %5406 = vmatpush.bf16.msra.mxu0 %v5383
    %5407 = vmatmul.bf16.gmra.mxu0 %v5333
    %v5408 = vpop.f32.mrf.mxu0
    %v5409 = vadd.f32 0.0, %v5408
    %v5410 = vpop.f32.mrf.mxu0
    %v5411 = vadd.f32 0.0, %v5410
    %5412 = vdwg.mxu0
    %v5413 = vadd.f32 %v5323, %v5409
    %v5414 = vadd.f32 %v5324, %v5411
    %v5415 = vadd.f32 %v5413, %v5414
    %v5416 = vrot.slane %v5415, 4
    %v5417 = vadd.f32 %v5415, %v5416
    %v5418 = vrot.slane %v5417, 2
    %v5419 = vadd.f32 %v5417, %v5418
    %v5420 = vrot.slane %v5419, 1
    %v5421 = vadd.f32 %v5419, %v5420
    %v5422 = vmul.f32 %v5421, %v733
    %v5423 = vsub.f32 %v5413, %v5422
    %v5424 = vsub.f32 %v5414, %v5422
    %v5425 = vmul.f32 %v5423, %v5423
    %v5426 = vmul.f32 %v5424, %v5424
    %v5427 = vadd.f32 %v5425, %v5426
    %v5428 = vrot.slane %v5427, 4
    %v5429 = vadd.f32 %v5427, %v5428
    %v5430 = vrot.slane %v5429, 2
    %v5431 = vadd.f32 %v5429, %v5430
    %v5432 = vrot.slane %v5431, 1
    %v5433 = vadd.f32 %v5431, %v5432
    %v5434 = vmul.f32 %v5433, %v733
    %v5435 = vadd.f32 %v5434, 1e-05
    %v5436 = vrsqrt.pop %v5435
    %v5437 = vmul.f32 %v5436, %v5435
    %v5438 = vmul.f32 %v5437, %v5436
    %v5439 = vmul.f32 0.5, %v5438
    %v5440 = vsub.f32 1.5, %v5439
    %v5441 = vmul.f32 %v5436, %v5440
    %vm5442 = vweird.f32 %v5435
    %vm5443 = vweird.f32 %v5436
    %vm5444 = vmor %vm5442, %vm5443
    %v5445 = vsel %vm5444, %v5436, %v5441
    %v5446 = vmul.f32 %v5423, %v5445
    %v5447 = vmul.f32 %v5424, %v5445
    %s5448 = scalar_lea.vmem [#allocation9], 4
    %v5449 = vld [vmem:[%s5448] sm:$0x1]
    %v5451 = vperm.slane %v5449, 0
    %v5453 = vmul.f32 %v5446, %v5451
    %v5454 = vmul.f32 %v5447, %v5451
    %s5455 = scalar_lea.vmem [#allocation11], 4
    %v5456 = vld [vmem:[%s5455] sm:$0x1]
    %v5458 = vperm.slane %v5456, 0
    %v5460 = vadd.f32 %v5453, %v5458
    %v5461 = vadd.f32 %v5454, %v5458
    %v5462 = vmax.f32 %v5460, 0.0
    %v5463 = vmax.f32 %v5461, 0.0
    %5464 = vst [vmem:[#allocation2 + $0x2] sm:$0xff] %v5462
    %5465 = vst [vmem:[#allocation2 + $0x12] sm:$0xff] %v5463
    %v5466 = vpack.c.bf16 %v5462, %v5462
    %v5467 = vpack.c.bf16 %v5463, %v5463
    %s5468 = scalar_lea.vmem [#allocation12], 2048
    %v5469 = vld [vmem:[%s5468] sm:$0xf]
    %v5470 = vld [vmem:[%s5468 + $0x4] sm:$0xf]
    %v5471 = vld [vmem:[%s5468 + $0x8] sm:$0xf]
    %v5472 = vld [vmem:[%s5468 + $0xc] sm:$0xf]
    %v5473 = vld [vmem:[%s5468 + $0x10] sm:$0xf]
    %v5474 = vld [vmem:[%s5468 + $0x14] sm:$0xf]
    %v5475 = vld [vmem:[%s5468 + $0x18] sm:$0xf]
    %v5476 = vld [vmem:[%s5468 + $0x1c] sm:$0xf]
    %v5477 = vld [vmem:[%s5468 + $0x20] sm:$0xf]
    %v5478 = vld [vmem:[%s5468 + $0x24] sm:$0xf]
    %v5479 = vld [vmem:[%s5468 + $0x28] sm:$0xf]
    %v5480 = vld [vmem:[%s5468 + $0x2c] sm:$0xf]
    %v5481 = vld [vmem:[%s5468 + $0x30] sm:$0xf]
    %v5482 = vld [vmem:[%s5468 + $0x34] sm:$0xf]
    %v5483 = vld [vmem:[%s5468 + $0x38] sm:$0xf]
    %v5484 = vld [vmem:[%s5468 + $0x3c] sm:$0xf]
    %v5487 = vunpack.c.l.b16 %v5466
    %v5488 = vunpack.c.l.b16 %v5467
    %v5489 = vrot.slane %v5488, 7
    %v5490 = vsel %vm816, %v5489, %v5487
    %v5491 = vpack.c.b16 %v5490, %v5490
    %v5509 = vunpack.c.l.b16 %v5469
    %v5510 = vunpack.c.l.b16 %v5470
    %v5511 = vunpack.c.l.b16 %v5471
    %v5512 = vunpack.c.l.b16 %v5472
    %v5513 = vunpack.c.l.b16 %v5473
    %v5514 = vunpack.c.l.b16 %v5474
    %v5515 = vunpack.c.l.b16 %v5475
    %v5516 = vunpack.c.l.b16 %v5476
    %v5517 = vunpack.c.l.b16 %v5477
    %v5518 = vunpack.c.l.b16 %v5478
    %v5519 = vunpack.c.l.b16 %v5479
    %v5520 = vunpack.c.l.b16 %v5480
    %v5521 = vunpack.c.l.b16 %v5481
    %v5522 = vunpack.c.l.b16 %v5482
    %v5523 = vunpack.c.l.b16 %v5483
    %v5524 = vunpack.c.l.b16 %v5484
    %v5525 = vpack.c.b16 %v5510, %v5509
    %v5526 = vpack.c.b16 %v5512, %v5511
    %v5527 = vpack.c.b16 %v5514, %v5513
    %v5528 = vpack.c.b16 %v5516, %v5515
    %v5529 = vpack.c.b16 %v5518, %v5517
    %v5530 = vpack.c.b16 %v5520, %v5519
    %v5531 = vpack.c.b16 %v5522, %v5521
    %v5532 = vpack.c.b16 %v5524, %v5523
    %5541 = vmatpush.bf16.msra.mxu0 %v5532
    %5542 = vmatpush.bf16.msra.mxu0 %v5531
    %5543 = vmatpush.bf16.msra.mxu0 %v5530
    %5544 = vmatpush.bf16.msra.mxu0 %v5529
    %5545 = vmatpush.bf16.msra.mxu0 %v5528
    %5546 = vmatpush.bf16.msra.mxu0 %v5527
    %5547 = vmatpush.bf16.msra.mxu0 %v5526
    %5548 = vmatpush.bf16.msra.mxu0 %v5525
    %5549 = vmatmul.bf16.gmra.mxu0 %v5491
    %v5550 = vpop.f32.mrf.mxu0
    %v5551 = vadd.f32 0.0, %v5550
    %v5552 = vpop.f32.mrf.mxu0
    %5553 = vdwg.mxu0
    %v5554 = vadd.f32 %v4968, %v5551
    %s5555 = scalar_lea.vmem [#allocation12], 2112
    %v5556 = vld [vmem:[%s5555] sm:$0xf]
    %v5557 = vld [vmem:[%s5555 + $0x4] sm:$0xf]
    %v5558 = vld [vmem:[%s5555 + $0x8] sm:$0xf]
    %v5559 = vld [vmem:[%s5555 + $0xc] sm:$0xf]
    %v5560 = vld [vmem:[%s5555 + $0x10] sm:$0xf]
    %v5561 = vld [vmem:[%s5555 + $0x14] sm:$0xf]
    %v5562 = vld [vmem:[%s5555 + $0x18] sm:$0xf]
    %v5563 = vld [vmem:[%s5555 + $0x1c] sm:$0xf]
    %v5564 = vld [vmem:[%s5555 + $0x20] sm:$0xf]
    %v5565 = vld [vmem:[%s5555 + $0x24] sm:$0xf]
    %v5566 = vld [vmem:[%s5555 + $0x28] sm:$0xf]
    %v5567 = vld [vmem:[%s5555 + $0x2c] sm:$0xf]
    %v5568 = vld [vmem:[%s5555 + $0x30] sm:$0xf]
    %v5569 = vld [vmem:[%s5555 + $0x34] sm:$0xf]
    %v5570 = vld [vmem:[%s5555 + $0x38] sm:$0xf]
    %v5571 = vld [vmem:[%s5555 + $0x3c] sm:$0xf]
    %v5572 = vrot.slane %v5487, 1
    %v5573 = vsel %vm816, %v5488, %v5572
    %v5574 = vpack.c.b16 %v5573, %v5573
    %v5592 = vunpack.c.l.b16 %v5556
    %v5593 = vunpack.c.l.b16 %v5557
    %v5594 = vunpack.c.l.b16 %v5558
    %v5595 = vunpack.c.l.b16 %v5559
    %v5596 = vunpack.c.l.b16 %v5560
    %v5597 = vunpack.c.l.b16 %v5561
    %v5598 = vunpack.c.l.b16 %v5562
    %v5599 = vunpack.c.l.b16 %v5563
    %v5600 = vunpack.c.l.b16 %v5564
    %v5601 = vunpack.c.l.b16 %v5565
    %v5602 = vunpack.c.l.b16 %v5566
    %v5603 = vunpack.c.l.b16 %v5567
    %v5604 = vunpack.c.l.b16 %v5568
    %v5605 = vunpack.c.l.b16 %v5569
    %v5606 = vunpack.c.l.b16 %v5570
    %v5607 = vunpack.c.l.b16 %v5571
    %v5608 = vpack.c.b16 %v5593, %v5592
    %v5609 = vpack.c.b16 %v5595, %v5594
    %v5610 = vpack.c.b16 %v5597, %v5596
    %v5611 = vpack.c.b16 %v5599, %v5598
    %v5612 = vpack.c.b16 %v5601, %v5600
    %v5613 = vpack.c.b16 %v5603, %v5602
    %v5614 = vpack.c.b16 %v5605, %v5604
    %v5615 = vpack.c.b16 %v5607, %v5606
    %5624 = vmatpush.bf16.msra.mxu0 %v5615
    %5625 = vmatpush.bf16.msra.mxu0 %v5614
    %5626 = vmatpush.bf16.msra.mxu0 %v5613
    %5627 = vmatpush.bf16.msra.mxu0 %v5612
    %5628 = vmatpush.bf16.msra.mxu0 %v5611
    %5629 = vmatpush.bf16.msra.mxu0 %v5610
    %5630 = vmatpush.bf16.msra.mxu0 %v5609
    %5631 = vmatpush.bf16.msra.mxu0 %v5608
    %5632 = vmatmul.bf16.gmra.mxu0 %v5574
    %v5633 = vpop.f32.mrf.mxu0
    %v5634 = vadd.f32 0.0, %v5633
    %v5635 = vpop.f32.mrf.mxu0
    %5636 = vdwg.mxu0
    %v5637 = vadd.f32 %v5554, %v5634
    %s5638 = scalar_lea.vmem [#allocation12], 2176
    %v5639 = vld [vmem:[%s5638] sm:$0xf]
    %v5640 = vld [vmem:[%s5638 + $0x4] sm:$0xf]
    %v5641 = vld [vmem:[%s5638 + $0x8] sm:$0xf]
    %v5642 = vld [vmem:[%s5638 + $0xc] sm:$0xf]
    %v5643 = vld [vmem:[%s5638 + $0x10] sm:$0xf]
    %v5644 = vld [vmem:[%s5638 + $0x14] sm:$0xf]
    %v5645 = vld [vmem:[%s5638 + $0x18] sm:$0xf]
    %v5646 = vld [vmem:[%s5638 + $0x1c] sm:$0xf]
    %v5647 = vld [vmem:[%s5638 + $0x20] sm:$0xf]
    %v5648 = vld [vmem:[%s5638 + $0x24] sm:$0xf]
    %v5649 = vld [vmem:[%s5638 + $0x28] sm:$0xf]
    %v5650 = vld [vmem:[%s5638 + $0x2c] sm:$0xf]
    %v5651 = vld [vmem:[%s5638 + $0x30] sm:$0xf]
    %v5652 = vld [vmem:[%s5638 + $0x34] sm:$0xf]
    %v5653 = vld [vmem:[%s5638 + $0x38] sm:$0xf]
    %v5654 = vld [vmem:[%s5638 + $0x3c] sm:$0xf]
    %v5655 = vrot.slane %v5487, 2
    %v5656 = vrot.slane %v5488, 1
    %v5657 = vsel %vm816, %v5656, %v5655
    %v5658 = vpack.c.b16 %v5657, %v5657
    %v5676 = vunpack.c.l.b16 %v5639
    %v5677 = vunpack.c.l.b16 %v5640
    %v5678 = vunpack.c.l.b16 %v5641
    %v5679 = vunpack.c.l.b16 %v5642
    %v5680 = vunpack.c.l.b16 %v5643
    %v5681 = vunpack.c.l.b16 %v5644
    %v5682 = vunpack.c.l.b16 %v5645
    %v5683 = vunpack.c.l.b16 %v5646
    %v5684 = vunpack.c.l.b16 %v5647
    %v5685 = vunpack.c.l.b16 %v5648
    %v5686 = vunpack.c.l.b16 %v5649
    %v5687 = vunpack.c.l.b16 %v5650
    %v5688 = vunpack.c.l.b16 %v5651
    %v5689 = vunpack.c.l.b16 %v5652
    %v5690 = vunpack.c.l.b16 %v5653
    %v5691 = vunpack.c.l.b16 %v5654
    %v5692 = vpack.c.b16 %v5677, %v5676
    %v5693 = vpack.c.b16 %v5679, %v5678
    %v5694 = vpack.c.b16 %v5681, %v5680
    %v5695 = vpack.c.b16 %v5683, %v5682
    %v5696 = vpack.c.b16 %v5685, %v5684
    %v5697 = vpack.c.b16 %v5687, %v5686
    %v5698 = vpack.c.b16 %v5689, %v5688
    %v5699 = vpack.c.b16 %v5691, %v5690
    %5708 = vmatpush.bf16.msra.mxu0 %v5699
    %5709 = vmatpush.bf16.msra.mxu0 %v5698
    %5710 = vmatpush.bf16.msra.mxu0 %v5697
    %5711 = vmatpush.bf16.msra.mxu0 %v5696
    %5712 = vmatpush.bf16.msra.mxu0 %v5695
    %5713 = vmatpush.bf16.msra.mxu0 %v5694
    %5714 = vmatpush.bf16.msra.mxu0 %v5693
    %5715 = vmatpush.bf16.msra.mxu0 %v5692
    %5716 = vmatmul.bf16.gmra.mxu0 %v5658
    %v5717 = vpop.f32.mrf.mxu0
    %v5718 = vadd.f32 0.0, %v5717
    %v5719 = vpop.f32.mrf.mxu0
    %5720 = vdwg.mxu0
    %v5721 = vadd.f32 %v5637, %v5718
    %s5722 = scalar_lea.vmem [#allocation12], 2240
    %v5723 = vld [vmem:[%s5722] sm:$0xf]
    %v5724 = vld [vmem:[%s5722 + $0x4] sm:$0xf]
    %v5725 = vld [vmem:[%s5722 + $0x8] sm:$0xf]
    %v5726 = vld [vmem:[%s5722 + $0xc] sm:$0xf]
    %v5727 = vld [vmem:[%s5722 + $0x10] sm:$0xf]
    %v5728 = vld [vmem:[%s5722 + $0x14] sm:$0xf]
    %v5729 = vld [vmem:[%s5722 + $0x18] sm:$0xf]
    %v5730 = vld [vmem:[%s5722 + $0x1c] sm:$0xf]
    %v5731 = vld [vmem:[%s5722 + $0x20] sm:$0xf]
    %v5732 = vld [vmem:[%s5722 + $0x24] sm:$0xf]
    %v5733 = vld [vmem:[%s5722 + $0x28] sm:$0xf]
    %v5734 = vld [vmem:[%s5722 + $0x2c] sm:$0xf]
    %v5735 = vld [vmem:[%s5722 + $0x30] sm:$0xf]
    %v5736 = vld [vmem:[%s5722 + $0x34] sm:$0xf]
    %v5737 = vld [vmem:[%s5722 + $0x38] sm:$0xf]
    %v5738 = vld [vmem:[%s5722 + $0x3c] sm:$0xf]
    %v5739 = vrot.slane %v5487, 3
    %v5740 = vrot.slane %v5488, 2
    %v5741 = vsel %vm816, %v5740, %v5739
    %v5742 = vpack.c.b16 %v5741, %v5741
    %v5760 = vunpack.c.l.b16 %v5723
    %v5761 = vunpack.c.l.b16 %v5724
    %v5762 = vunpack.c.l.b16 %v5725
    %v5763 = vunpack.c.l.b16 %v5726
    %v5764 = vunpack.c.l.b16 %v5727
    %v5765 = vunpack.c.l.b16 %v5728
    %v5766 = vunpack.c.l.b16 %v5729
    %v5767 = vunpack.c.l.b16 %v5730
    %v5768 = vunpack.c.l.b16 %v5731
    %v5769 = vunpack.c.l.b16 %v5732
    %v5770 = vunpack.c.l.b16 %v5733
    %v5771 = vunpack.c.l.b16 %v5734
    %v5772 = vunpack.c.l.b16 %v5735
    %v5773 = vunpack.c.l.b16 %v5736
    %v5774 = vunpack.c.l.b16 %v5737
    %v5775 = vunpack.c.l.b16 %v5738
    %v5776 = vpack.c.b16 %v5761, %v5760
    %v5777 = vpack.c.b16 %v5763, %v5762
    %v5778 = vpack.c.b16 %v5765, %v5764
    %v5779 = vpack.c.b16 %v5767, %v5766
    %v5780 = vpack.c.b16 %v5769, %v5768
    %v5781 = vpack.c.b16 %v5771, %v5770
    %v5782 = vpack.c.b16 %v5773, %v5772
    %v5783 = vpack.c.b16 %v5775, %v5774
    %5792 = vmatpush.bf16.msra.mxu0 %v5783
    %5793 = vmatpush.bf16.msra.mxu0 %v5782
    %5794 = vmatpush.bf16.msra.mxu0 %v5781
    %5795 = vmatpush.bf16.msra.mxu0 %v5780
    %5796 = vmatpush.bf16.msra.mxu0 %v5779
    %5797 = vmatpush.bf16.msra.mxu0 %v5778
    %5798 = vmatpush.bf16.msra.mxu0 %v5777
    %5799 = vmatpush.bf16.msra.mxu0 %v5776
    %5800 = vmatmul.bf16.gmra.mxu0 %v5742
    %v5801 = vpop.f32.mrf.mxu0
    %v5802 = vadd.f32 0.0, %v5801
    %v5803 = vpop.f32.mrf.mxu0
    %5804 = vdwg.mxu0
    %v5805 = vadd.f32 %v5721, %v5802
    %s5806 = scalar_lea.vmem [#allocation12], 2304
    %v5807 = vld [vmem:[%s5806] sm:$0xf]
    %v5808 = vld [vmem:[%s5806 + $0x4] sm:$0xf]
    %v5809 = vld [vmem:[%s5806 + $0x8] sm:$0xf]
    %v5810 = vld [vmem:[%s5806 + $0xc] sm:$0xf]
    %v5811 = vld [vmem:[%s5806 + $0x10] sm:$0xf]
    %v5812 = vld [vmem:[%s5806 + $0x14] sm:$0xf]
    %v5813 = vld [vmem:[%s5806 + $0x18] sm:$0xf]
    %v5814 = vld [vmem:[%s5806 + $0x1c] sm:$0xf]
    %v5815 = vld [vmem:[%s5806 + $0x20] sm:$0xf]
    %v5816 = vld [vmem:[%s5806 + $0x24] sm:$0xf]
    %v5817 = vld [vmem:[%s5806 + $0x28] sm:$0xf]
    %v5818 = vld [vmem:[%s5806 + $0x2c] sm:$0xf]
    %v5819 = vld [vmem:[%s5806 + $0x30] sm:$0xf]
    %v5820 = vld [vmem:[%s5806 + $0x34] sm:$0xf]
    %v5821 = vld [vmem:[%s5806 + $0x38] sm:$0xf]
    %v5822 = vld [vmem:[%s5806 + $0x3c] sm:$0xf]
    %v5823 = vrot.slane %v5487, 4
    %v5824 = vrot.slane %v5488, 3
    %v5825 = vsel %vm816, %v5824, %v5823
    %v5826 = vpack.c.b16 %v5825, %v5825
    %v5844 = vunpack.c.l.b16 %v5807
    %v5845 = vunpack.c.l.b16 %v5808
    %v5846 = vunpack.c.l.b16 %v5809
    %v5847 = vunpack.c.l.b16 %v5810
    %v5848 = vunpack.c.l.b16 %v5811
    %v5849 = vunpack.c.l.b16 %v5812
    %v5850 = vunpack.c.l.b16 %v5813
    %v5851 = vunpack.c.l.b16 %v5814
    %v5852 = vunpack.c.l.b16 %v5815
    %v5853 = vunpack.c.l.b16 %v5816
    %v5854 = vunpack.c.l.b16 %v5817
    %v5855 = vunpack.c.l.b16 %v5818
    %v5856 = vunpack.c.l.b16 %v5819
    %v5857 = vunpack.c.l.b16 %v5820
    %v5858 = vunpack.c.l.b16 %v5821
    %v5859 = vunpack.c.l.b16 %v5822
    %v5860 = vpack.c.b16 %v5845, %v5844
    %v5861 = vpack.c.b16 %v5847, %v5846
    %v5862 = vpack.c.b16 %v5849, %v5848
    %v5863 = vpack.c.b16 %v5851, %v5850
    %v5864 = vpack.c.b16 %v5853, %v5852
    %v5865 = vpack.c.b16 %v5855, %v5854
    %v5866 = vpack.c.b16 %v5857, %v5856
    %v5867 = vpack.c.b16 %v5859, %v5858
    %5876 = vmatpush.bf16.msra.mxu0 %v5867
    %5877 = vmatpush.bf16.msra.mxu0 %v5866
    %5878 = vmatpush.bf16.msra.mxu0 %v5865
    %5879 = vmatpush.bf16.msra.mxu0 %v5864
    %5880 = vmatpush.bf16.msra.mxu0 %v5863
    %5881 = vmatpush.bf16.msra.mxu0 %v5862
    %5882 = vmatpush.bf16.msra.mxu0 %v5861
    %5883 = vmatpush.bf16.msra.mxu0 %v5860
    %5884 = vmatmul.bf16.gmra.mxu0 %v5826
    %v5885 = vpop.f32.mrf.mxu0
    %v5886 = vadd.f32 0.0, %v5885
    %v5887 = vpop.f32.mrf.mxu0
    %5888 = vdwg.mxu0
    %v5889 = vadd.f32 %v5805, %v5886
    %s5890 = scalar_lea.vmem [#allocation12], 2368
    %v5891 = vld [vmem:[%s5890] sm:$0xf]
    %v5892 = vld [vmem:[%s5890 + $0x4] sm:$0xf]
    %v5893 = vld [vmem:[%s5890 + $0x8] sm:$0xf]
    %v5894 = vld [vmem:[%s5890 + $0xc] sm:$0xf]
    %v5895 = vld [vmem:[%s5890 + $0x10] sm:$0xf]
    %v5896 = vld [vmem:[%s5890 + $0x14] sm:$0xf]
    %v5897 = vld [vmem:[%s5890 + $0x18] sm:$0xf]
    %v5898 = vld [vmem:[%s5890 + $0x1c] sm:$0xf]
    %v5899 = vld [vmem:[%s5890 + $0x20] sm:$0xf]
    %v5900 = vld [vmem:[%s5890 + $0x24] sm:$0xf]
    %v5901 = vld [vmem:[%s5890 + $0x28] sm:$0xf]
    %v5902 = vld [vmem:[%s5890 + $0x2c] sm:$0xf]
    %v5903 = vld [vmem:[%s5890 + $0x30] sm:$0xf]
    %v5904 = vld [vmem:[%s5890 + $0x34] sm:$0xf]
    %v5905 = vld [vmem:[%s5890 + $0x38] sm:$0xf]
    %v5906 = vld [vmem:[%s5890 + $0x3c] sm:$0xf]
    %v5907 = vrot.slane %v5487, 5
    %v5908 = vrot.slane %v5488, 4
    %v5909 = vsel %vm816, %v5908, %v5907
    %v5910 = vpack.c.b16 %v5909, %v5909
    %v5928 = vunpack.c.l.b16 %v5891
    %v5929 = vunpack.c.l.b16 %v5892
    %v5930 = vunpack.c.l.b16 %v5893
    %v5931 = vunpack.c.l.b16 %v5894
    %v5932 = vunpack.c.l.b16 %v5895
    %v5933 = vunpack.c.l.b16 %v5896
    %v5934 = vunpack.c.l.b16 %v5897
    %v5935 = vunpack.c.l.b16 %v5898
    %v5936 = vunpack.c.l.b16 %v5899
    %v5937 = vunpack.c.l.b16 %v5900
    %v5938 = vunpack.c.l.b16 %v5901
    %v5939 = vunpack.c.l.b16 %v5902
    %v5940 = vunpack.c.l.b16 %v5903
    %v5941 = vunpack.c.l.b16 %v5904
    %v5942 = vunpack.c.l.b16 %v5905
    %v5943 = vunpack.c.l.b16 %v5906
    %v5944 = vpack.c.b16 %v5929, %v5928
    %v5945 = vpack.c.b16 %v5931, %v5930
    %v5946 = vpack.c.b16 %v5933, %v5932
    %v5947 = vpack.c.b16 %v5935, %v5934
    %v5948 = vpack.c.b16 %v5937, %v5936
    %v5949 = vpack.c.b16 %v5939, %v5938
    %v5950 = vpack.c.b16 %v5941, %v5940
    %v5951 = vpack.c.b16 %v5943, %v5942
    %5960 = vmatpush.bf16.msra.mxu0 %v5951
    %5961 = vmatpush.bf16.msra.mxu0 %v5950
    %5962 = vmatpush.bf16.msra.mxu0 %v5949
    %5963 = vmatpush.bf16.msra.mxu0 %v5948
    %5964 = vmatpush.bf16.msra.mxu0 %v5947
    %5965 = vmatpush.bf16.msra.mxu0 %v5946
    %5966 = vmatpush.bf16.msra.mxu0 %v5945
    %5967 = vmatpush.bf16.msra.mxu0 %v5944
    %5968 = vmatmul.bf16.gmra.mxu0 %v5910
    %v5969 = vpop.f32.mrf.mxu0
    %v5970 = vadd.f32 0.0, %v5969
    %v5971 = vpop.f32.mrf.mxu0
    %5972 = vdwg.mxu0
    %v5973 = vadd.f32 %v5889, %v5970
    %s5974 = scalar_lea.vmem [#allocation12], 2432
    %v5975 = vld [vmem:[%s5974] sm:$0xf]
    %v5976 = vld [vmem:[%s5974 + $0x4] sm:$0xf]
    %v5977 = vld [vmem:[%s5974 + $0x8] sm:$0xf]
    %v5978 = vld [vmem:[%s5974 + $0xc] sm:$0xf]
    %v5979 = vld [vmem:[%s5974 + $0x10] sm:$0xf]
    %v5980 = vld [vmem:[%s5974 + $0x14] sm:$0xf]
    %v5981 = vld [vmem:[%s5974 + $0x18] sm:$0xf]
    %v5982 = vld [vmem:[%s5974 + $0x1c] sm:$0xf]
    %v5983 = vld [vmem:[%s5974 + $0x20] sm:$0xf]
    %v5984 = vld [vmem:[%s5974 + $0x24] sm:$0xf]
    %v5985 = vld [vmem:[%s5974 + $0x28] sm:$0xf]
    %v5986 = vld [vmem:[%s5974 + $0x2c] sm:$0xf]
    %v5987 = vld [vmem:[%s5974 + $0x30] sm:$0xf]
    %v5988 = vld [vmem:[%s5974 + $0x34] sm:$0xf]
    %v5989 = vld [vmem:[%s5974 + $0x38] sm:$0xf]
    %v5990 = vld [vmem:[%s5974 + $0x3c] sm:$0xf]
    %v5991 = vrot.slane %v5487, 6
    %v5992 = vrot.slane %v5488, 5
    %v5993 = vsel %vm816, %v5992, %v5991
    %v5994 = vpack.c.b16 %v5993, %v5993
    %v6012 = vunpack.c.l.b16 %v5975
    %v6013 = vunpack.c.l.b16 %v5976
    %v6014 = vunpack.c.l.b16 %v5977
    %v6015 = vunpack.c.l.b16 %v5978
    %v6016 = vunpack.c.l.b16 %v5979
    %v6017 = vunpack.c.l.b16 %v5980
    %v6018 = vunpack.c.l.b16 %v5981
    %v6019 = vunpack.c.l.b16 %v5982
    %v6020 = vunpack.c.l.b16 %v5983
    %v6021 = vunpack.c.l.b16 %v5984
    %v6022 = vunpack.c.l.b16 %v5985
    %v6023 = vunpack.c.l.b16 %v5986
    %v6024 = vunpack.c.l.b16 %v5987
    %v6025 = vunpack.c.l.b16 %v5988
    %v6026 = vunpack.c.l.b16 %v5989
    %v6027 = vunpack.c.l.b16 %v5990
    %v6028 = vpack.c.b16 %v6013, %v6012
    %v6029 = vpack.c.b16 %v6015, %v6014
    %v6030 = vpack.c.b16 %v6017, %v6016
    %v6031 = vpack.c.b16 %v6019, %v6018
    %v6032 = vpack.c.b16 %v6021, %v6020
    %v6033 = vpack.c.b16 %v6023, %v6022
    %v6034 = vpack.c.b16 %v6025, %v6024
    %v6035 = vpack.c.b16 %v6027, %v6026
    %6044 = vmatpush.bf16.msra.mxu0 %v6035
    %6045 = vmatpush.bf16.msra.mxu0 %v6034
    %6046 = vmatpush.bf16.msra.mxu0 %v6033
    %6047 = vmatpush.bf16.msra.mxu0 %v6032
    %6048 = vmatpush.bf16.msra.mxu0 %v6031
    %6049 = vmatpush.bf16.msra.mxu0 %v6030
    %6050 = vmatpush.bf16.msra.mxu0 %v6029
    %6051 = vmatpush.bf16.msra.mxu0 %v6028
    %6052 = vmatmul.bf16.gmra.mxu0 %v5994
    %v6053 = vpop.f32.mrf.mxu0
    %v6054 = vadd.f32 0.0, %v6053
    %v6055 = vpop.f32.mrf.mxu0
    %6056 = vdwg.mxu0
    %v6057 = vadd.f32 %v5973, %v6054
    %s6058 = scalar_lea.vmem [#allocation12], 2496
    %v6059 = vld [vmem:[%s6058] sm:$0xf]
    %v6060 = vld [vmem:[%s6058 + $0x4] sm:$0xf]
    %v6061 = vld [vmem:[%s6058 + $0x8] sm:$0xf]
    %v6062 = vld [vmem:[%s6058 + $0xc] sm:$0xf]
    %v6063 = vld [vmem:[%s6058 + $0x10] sm:$0xf]
    %v6064 = vld [vmem:[%s6058 + $0x14] sm:$0xf]
    %v6065 = vld [vmem:[%s6058 + $0x18] sm:$0xf]
    %v6066 = vld [vmem:[%s6058 + $0x1c] sm:$0xf]
    %v6067 = vld [vmem:[%s6058 + $0x20] sm:$0xf]
    %v6068 = vld [vmem:[%s6058 + $0x24] sm:$0xf]
    %v6069 = vld [vmem:[%s6058 + $0x28] sm:$0xf]
    %v6070 = vld [vmem:[%s6058 + $0x2c] sm:$0xf]
    %v6071 = vld [vmem:[%s6058 + $0x30] sm:$0xf]
    %v6072 = vld [vmem:[%s6058 + $0x34] sm:$0xf]
    %v6073 = vld [vmem:[%s6058 + $0x38] sm:$0xf]
    %v6074 = vld [vmem:[%s6058 + $0x3c] sm:$0xf]
    %v6075 = vrot.slane %v5487, 7
    %v6076 = vrot.slane %v5488, 6
    %v6077 = vsel %vm816, %v6076, %v6075
    %v6078 = vpack.c.b16 %v6077, %v6077
    %v6096 = vunpack.c.l.b16 %v6059
    %v6097 = vunpack.c.l.b16 %v6060
    %v6098 = vunpack.c.l.b16 %v6061
    %v6099 = vunpack.c.l.b16 %v6062
    %v6100 = vunpack.c.l.b16 %v6063
    %v6101 = vunpack.c.l.b16 %v6064
    %v6102 = vunpack.c.l.b16 %v6065
    %v6103 = vunpack.c.l.b16 %v6066
    %v6104 = vunpack.c.l.b16 %v6067
    %v6105 = vunpack.c.l.b16 %v6068
    %v6106 = vunpack.c.l.b16 %v6069
    %v6107 = vunpack.c.l.b16 %v6070
    %v6108 = vunpack.c.l.b16 %v6071
    %v6109 = vunpack.c.l.b16 %v6072
    %v6110 = vunpack.c.l.b16 %v6073
    %v6111 = vunpack.c.l.b16 %v6074
    %v6112 = vpack.c.b16 %v6097, %v6096
    %v6113 = vpack.c.b16 %v6099, %v6098
    %v6114 = vpack.c.b16 %v6101, %v6100
    %v6115 = vpack.c.b16 %v6103, %v6102
    %v6116 = vpack.c.b16 %v6105, %v6104
    %v6117 = vpack.c.b16 %v6107, %v6106
    %v6118 = vpack.c.b16 %v6109, %v6108
    %v6119 = vpack.c.b16 %v6111, %v6110
    %6128 = vmatpush.bf16.msra.mxu0 %v6119
    %6129 = vmatpush.bf16.msra.mxu0 %v6118
    %6130 = vmatpush.bf16.msra.mxu0 %v6117
    %6131 = vmatpush.bf16.msra.mxu0 %v6116
    %6132 = vmatpush.bf16.msra.mxu0 %v6115
    %6133 = vmatpush.bf16.msra.mxu0 %v6114
    %6134 = vmatpush.bf16.msra.mxu0 %v6113
    %6135 = vmatpush.bf16.msra.mxu0 %v6112
    %6136 = vmatmul.bf16.gmra.mxu0 %v6078
    %v6137 = vpop.f32.mrf.mxu0
    %v6138 = vadd.f32 0.0, %v6137
    %v6139 = vpop.f32.mrf.mxu0
    %6140 = vdwg.mxu0
    %v6141 = vadd.f32 %v6057, %v6138
    %v6142 = vld [vmem:[#allocation2] sm:$0xff]
    %v6143 = vld [vmem:[#allocation2 + $0x8] sm:$0xf]
    %v6144 = vld [vmem:[#allocation2 + $0x10] sm:$0xff]
    %v6145 = vld [vmem:[#allocation2 + $0x18] sm:$0xf]
    %v6146 = vpack.c.bf16 %v6144, %v6142
    %s6147 = scalar_lea.vmem [#allocation8], 1600
    %v6148 = vld [vmem:[%s6147] sm:$0xf]
    %v6149 = vld [vmem:[%s6147 + $0x4] sm:$0xf]
    %v6150 = vld [vmem:[%s6147 + $0x8] sm:$0xf]
    %v6151 = vld [vmem:[%s6147 + $0xc] sm:$0xf]
    %v6152 = vld [vmem:[%s6147 + $0x10] sm:$0xf]
    %v6153 = vld [vmem:[%s6147 + $0x14] sm:$0xf]
    %v6154 = vld [vmem:[%s6147 + $0x18] sm:$0xf]
    %v6155 = vld [vmem:[%s6147 + $0x1c] sm:$0xf]
    %v6156 = vld [vmem:[%s6147 + $0x20] sm:$0xf]
    %v6157 = vld [vmem:[%s6147 + $0x24] sm:$0xf]
    %v6158 = vld [vmem:[%s6147 + $0x28] sm:$0xf]
    %v6159 = vld [vmem:[%s6147 + $0x2c] sm:$0xf]
    %v6160 = vld [vmem:[%s6147 + $0x30] sm:$0xf]
    %v6161 = vld [vmem:[%s6147 + $0x34] sm:$0xf]
    %v6162 = vld [vmem:[%s6147 + $0x38] sm:$0xf]
    %v6163 = vld [vmem:[%s6147 + $0x3c] sm:$0xf]
    %v6168 = vrot.slane %v6142, 1
    %v6169 = vrot.slane %v6143, 1
    %v6170 = vsel %vm215, %v6168, %v6169
    %v6171 = vrot.slane %v6144, 1
    %v6172 = vrot.slane %v6145, 1
    %v6173 = vsel %vm215, %v6171, %v6172
    %v6176 = vpack.c.bf16 %v6173, %v6170
    %s6177 = scalar_lea.vmem [#allocation8], 1664
    %v6178 = vld [vmem:[%s6177] sm:$0xf]
    %v6179 = vld [vmem:[%s6177 + $0x4] sm:$0xf]
    %v6180 = vld [vmem:[%s6177 + $0x8] sm:$0xf]
    %v6181 = vld [vmem:[%s6177 + $0xc] sm:$0xf]
    %v6182 = vld [vmem:[%s6177 + $0x10] sm:$0xf]
    %v6183 = vld [vmem:[%s6177 + $0x14] sm:$0xf]
    %v6184 = vld [vmem:[%s6177 + $0x18] sm:$0xf]
    %v6185 = vld [vmem:[%s6177 + $0x1c] sm:$0xf]
    %v6186 = vld [vmem:[%s6177 + $0x20] sm:$0xf]
    %v6187 = vld [vmem:[%s6177 + $0x24] sm:$0xf]
    %v6188 = vld [vmem:[%s6177 + $0x28] sm:$0xf]
    %v6189 = vld [vmem:[%s6177 + $0x2c] sm:$0xf]
    %v6190 = vld [vmem:[%s6177 + $0x30] sm:$0xf]
    %v6191 = vld [vmem:[%s6177 + $0x34] sm:$0xf]
    %v6192 = vld [vmem:[%s6177 + $0x38] sm:$0xf]
    %v6193 = vld [vmem:[%s6177 + $0x3c] sm:$0xf]
    %v6210 = vunpack.c.l.b16 %v6178
    %v6211 = vunpack.c.l.b16 %v6179
    %v6212 = vunpack.c.l.b16 %v6180
    %v6213 = vunpack.c.l.b16 %v6181
    %v6214 = vunpack.c.l.b16 %v6182
    %v6215 = vunpack.c.l.b16 %v6183
    %v6216 = vunpack.c.l.b16 %v6184
    %v6217 = vunpack.c.l.b16 %v6185
    %v6218 = vunpack.c.l.b16 %v6186
    %v6219 = vunpack.c.l.b16 %v6187
    %v6220 = vunpack.c.l.b16 %v6188
    %v6221 = vunpack.c.l.b16 %v6189
    %v6222 = vunpack.c.l.b16 %v6190
    %v6223 = vunpack.c.l.b16 %v6191
    %v6224 = vunpack.c.l.b16 %v6192
    %v6225 = vunpack.c.l.b16 %v6193
    %v6226 = vpack.c.b16 %v6211, %v6210
    %v6227 = vpack.c.b16 %v6213, %v6212
    %v6228 = vpack.c.b16 %v6215, %v6214
    %v6229 = vpack.c.b16 %v6217, %v6216
    %v6230 = vpack.c.b16 %v6219, %v6218
    %v6231 = vpack.c.b16 %v6221, %v6220
    %v6232 = vpack.c.b16 %v6223, %v6222
    %v6233 = vpack.c.b16 %v6225, %v6224
    %6242 = vmatpush.bf16.msra.mxu0 %v6233
    %6243 = vmatpush.bf16.msra.mxu0 %v6232
    %6244 = vmatpush.bf16.msra.mxu0 %v6231
    %6245 = vmatpush.bf16.msra.mxu0 %v6230
    %6246 = vmatpush.bf16.msra.mxu0 %v6229
    %6247 = vmatpush.bf16.msra.mxu0 %v6228
    %6248 = vmatpush.bf16.msra.mxu0 %v6227
    %6249 = vmatpush.bf16.msra.mxu0 %v6226
    %6250 = vmatmul.bf16.gmra.mxu0 %v6176
    %v6251 = vpop.f32.mrf.mxu0
    %v6252 = vadd.f32 0.0, %v6251
    %v6253 = vpop.f32.mrf.mxu0
    %v6254 = vadd.f32 0.0, %v6253
    %6255 = vdwg.mxu0
    %v6272 = vunpack.c.l.b16 %v6148
    %v6273 = vunpack.c.l.b16 %v6149
    %v6274 = vunpack.c.l.b16 %v6150
    %v6275 = vunpack.c.l.b16 %v6151
    %v6276 = vunpack.c.l.b16 %v6152
    %v6277 = vunpack.c.l.b16 %v6153
    %v6278 = vunpack.c.l.b16 %v6154
    %v6279 = vunpack.c.l.b16 %v6155
    %v6280 = vunpack.c.l.b16 %v6156
    %v6281 = vunpack.c.l.b16 %v6157
    %v6282 = vunpack.c.l.b16 %v6158
    %v6283 = vunpack.c.l.b16 %v6159
    %v6284 = vunpack.c.l.b16 %v6160
    %v6285 = vunpack.c.l.b16 %v6161
    %v6286 = vunpack.c.l.b16 %v6162
    %v6287 = vunpack.c.l.b16 %v6163
    %v6288 = vpack.c.b16 %v6273, %v6272
    %v6289 = vpack.c.b16 %v6275, %v6274
    %v6290 = vpack.c.b16 %v6277, %v6276
    %v6291 = vpack.c.b16 %v6279, %v6278
    %v6292 = vpack.c.b16 %v6281, %v6280
    %v6293 = vpack.c.b16 %v6283, %v6282
    %v6294 = vpack.c.b16 %v6285, %v6284
    %v6295 = vpack.c.b16 %v6287, %v6286
    %6304 = vmatpush.bf16.msra.mxu0 %v6295
    %6305 = vmatpush.bf16.msra.mxu0 %v6294
    %6306 = vmatpush.bf16.msra.mxu0 %v6293
    %6307 = vmatpush.bf16.msra.mxu0 %v6292
    %6308 = vmatpush.bf16.msra.mxu0 %v6291
    %6309 = vmatpush.bf16.msra.mxu0 %v6290
    %6310 = vmatpush.bf16.msra.mxu0 %v6289
    %6311 = vmatpush.bf16.msra.mxu0 %v6288
    %6312 = vmatmul.bf16.gmra.mxu0 %v6146
    %v6313 = vpop.f32.mrf.mxu0
    %v6314 = vadd.f32 %v6252, %v6313
    %v6315 = vpop.f32.mrf.mxu0
    %v6316 = vadd.f32 %v6254, %v6315
    %6317 = vdwg.mxu0
    %v6318 = vrot.slane %v6142, 2
    %v6319 = vrot.slane %v6143, 2
    %v6320 = vsel %vm234, %v6318, %v6319
    %v6321 = vrot.slane %v6144, 2
    %v6322 = vrot.slane %v6145, 2
    %v6323 = vsel %vm234, %v6321, %v6322
    %v6326 = vpack.c.bf16 %v6323, %v6320
    %s6327 = scalar_lea.vmem [#allocation8], 1728
    %v6328 = vld [vmem:[%s6327] sm:$0xf]
    %v6329 = vld [vmem:[%s6327 + $0x4] sm:$0xf]
    %v6330 = vld [vmem:[%s6327 + $0x8] sm:$0xf]
    %v6331 = vld [vmem:[%s6327 + $0xc] sm:$0xf]
    %v6332 = vld [vmem:[%s6327 + $0x10] sm:$0xf]
    %v6333 = vld [vmem:[%s6327 + $0x14] sm:$0xf]
    %v6334 = vld [vmem:[%s6327 + $0x18] sm:$0xf]
    %v6335 = vld [vmem:[%s6327 + $0x1c] sm:$0xf]
    %v6336 = vld [vmem:[%s6327 + $0x20] sm:$0xf]
    %v6337 = vld [vmem:[%s6327 + $0x24] sm:$0xf]
    %v6338 = vld [vmem:[%s6327 + $0x28] sm:$0xf]
    %v6339 = vld [vmem:[%s6327 + $0x2c] sm:$0xf]
    %v6340 = vld [vmem:[%s6327 + $0x30] sm:$0xf]
    %v6341 = vld [vmem:[%s6327 + $0x34] sm:$0xf]
    %v6342 = vld [vmem:[%s6327 + $0x38] sm:$0xf]
    %v6343 = vld [vmem:[%s6327 + $0x3c] sm:$0xf]
    %v6360 = vunpack.c.l.b16 %v6328
    %v6361 = vunpack.c.l.b16 %v6329
    %v6362 = vunpack.c.l.b16 %v6330
    %v6363 = vunpack.c.l.b16 %v6331
    %v6364 = vunpack.c.l.b16 %v6332
    %v6365 = vunpack.c.l.b16 %v6333
    %v6366 = vunpack.c.l.b16 %v6334
    %v6367 = vunpack.c.l.b16 %v6335
    %v6368 = vunpack.c.l.b16 %v6336
    %v6369 = vunpack.c.l.b16 %v6337
    %v6370 = vunpack.c.l.b16 %v6338
    %v6371 = vunpack.c.l.b16 %v6339
    %v6372 = vunpack.c.l.b16 %v6340
    %v6373 = vunpack.c.l.b16 %v6341
    %v6374 = vunpack.c.l.b16 %v6342
    %v6375 = vunpack.c.l.b16 %v6343
    %v6376 = vpack.c.b16 %v6361, %v6360
    %v6377 = vpack.c.b16 %v6363, %v6362
    %v6378 = vpack.c.b16 %v6365, %v6364
    %v6379 = vpack.c.b16 %v6367, %v6366
    %v6380 = vpack.c.b16 %v6369, %v6368
    %v6381 = vpack.c.b16 %v6371, %v6370
    %v6382 = vpack.c.b16 %v6373, %v6372
    %v6383 = vpack.c.b16 %v6375, %v6374
    %6392 = vmatpush.bf16.msra.mxu0 %v6383
    %6393 = vmatpush.bf16.msra.mxu0 %v6382
    %6394 = vmatpush.bf16.msra.mxu0 %v6381
    %6395 = vmatpush.bf16.msra.mxu0 %v6380
    %6396 = vmatpush.bf16.msra.mxu0 %v6379
    %6397 = vmatpush.bf16.msra.mxu0 %v6378
    %6398 = vmatpush.bf16.msra.mxu0 %v6377
    %6399 = vmatpush.bf16.msra.mxu0 %v6376
    %6400 = vmatmul.bf16.gmra.mxu0 %v6326
    %v6401 = vpop.f32.mrf.mxu0
    %v6402 = vadd.f32 0.0, %v6401
    %v6403 = vpop.f32.mrf.mxu0
    %v6404 = vadd.f32 0.0, %v6403
    %6405 = vdwg.mxu0
    %v6406 = vadd.f32 %v6314, %v6402
    %v6407 = vadd.f32 %v6316, %v6404
    %v6408 = vrot.slane %v6142, 3
    %v6409 = vrot.slane %v6143, 3
    %v6410 = vsel %vm538, %v6408, %v6409
    %v6411 = vrot.slane %v6144, 3
    %v6412 = vrot.slane %v6145, 3
    %v6413 = vsel %vm538, %v6411, %v6412
    %v6416 = vpack.c.bf16 %v6413, %v6410
    %s6417 = scalar_lea.vmem [#allocation8], 1792
    %v6418 = vld [vmem:[%s6417] sm:$0xf]
    %v6419 = vld [vmem:[%s6417 + $0x4] sm:$0xf]
    %v6420 = vld [vmem:[%s6417 + $0x8] sm:$0xf]
    %v6421 = vld [vmem:[%s6417 + $0xc] sm:$0xf]
    %v6422 = vld [vmem:[%s6417 + $0x10] sm:$0xf]
    %v6423 = vld [vmem:[%s6417 + $0x14] sm:$0xf]
    %v6424 = vld [vmem:[%s6417 + $0x18] sm:$0xf]
    %v6425 = vld [vmem:[%s6417 + $0x1c] sm:$0xf]
    %v6426 = vld [vmem:[%s6417 + $0x20] sm:$0xf]
    %v6427 = vld [vmem:[%s6417 + $0x24] sm:$0xf]
    %v6428 = vld [vmem:[%s6417 + $0x28] sm:$0xf]
    %v6429 = vld [vmem:[%s6417 + $0x2c] sm:$0xf]
    %v6430 = vld [vmem:[%s6417 + $0x30] sm:$0xf]
    %v6431 = vld [vmem:[%s6417 + $0x34] sm:$0xf]
    %v6432 = vld [vmem:[%s6417 + $0x38] sm:$0xf]
    %v6433 = vld [vmem:[%s6417 + $0x3c] sm:$0xf]
    %v6450 = vunpack.c.l.b16 %v6418
    %v6451 = vunpack.c.l.b16 %v6419
    %v6452 = vunpack.c.l.b16 %v6420
    %v6453 = vunpack.c.l.b16 %v6421
    %v6454 = vunpack.c.l.b16 %v6422
    %v6455 = vunpack.c.l.b16 %v6423
    %v6456 = vunpack.c.l.b16 %v6424
    %v6457 = vunpack.c.l.b16 %v6425
    %v6458 = vunpack.c.l.b16 %v6426
    %v6459 = vunpack.c.l.b16 %v6427
    %v6460 = vunpack.c.l.b16 %v6428
    %v6461 = vunpack.c.l.b16 %v6429
    %v6462 = vunpack.c.l.b16 %v6430
    %v6463 = vunpack.c.l.b16 %v6431
    %v6464 = vunpack.c.l.b16 %v6432
    %v6465 = vunpack.c.l.b16 %v6433
    %v6466 = vpack.c.b16 %v6451, %v6450
    %v6467 = vpack.c.b16 %v6453, %v6452
    %v6468 = vpack.c.b16 %v6455, %v6454
    %v6469 = vpack.c.b16 %v6457, %v6456
    %v6470 = vpack.c.b16 %v6459, %v6458
    %v6471 = vpack.c.b16 %v6461, %v6460
    %v6472 = vpack.c.b16 %v6463, %v6462
    %v6473 = vpack.c.b16 %v6465, %v6464
    %6482 = vmatpush.bf16.msra.mxu0 %v6473
    %6483 = vmatpush.bf16.msra.mxu0 %v6472
    %6484 = vmatpush.bf16.msra.mxu0 %v6471
    %6485 = vmatpush.bf16.msra.mxu0 %v6470
    %6486 = vmatpush.bf16.msra.mxu0 %v6469
    %6487 = vmatpush.bf16.msra.mxu0 %v6468
    %6488 = vmatpush.bf16.msra.mxu0 %v6467
    %6489 = vmatpush.bf16.msra.mxu0 %v6466
    %6490 = vmatmul.bf16.gmra.mxu0 %v6416
    %v6491 = vpop.f32.mrf.mxu0
    %v6492 = vadd.f32 0.0, %v6491
    %v6493 = vpop.f32.mrf.mxu0
    %v6494 = vadd.f32 0.0, %v6493
    %6495 = vdwg.mxu0
    %v6496 = vadd.f32 %v6406, %v6492
    %v6497 = vadd.f32 %v6407, %v6494
    %v6498 = vrot.slane %v6142, 4
    %v6499 = vrot.slane %v6143, 4
    %v6500 = vsel %vm629, %v6498, %v6499
    %v6501 = vrot.slane %v6144, 4
    %v6502 = vrot.slane %v6145, 4
    %v6503 = vsel %vm629, %v6501, %v6502
    %v6506 = vpack.c.bf16 %v6503, %v6500
    %s6507 = scalar_lea.vmem [#allocation8], 1856
    %v6508 = vld [vmem:[%s6507] sm:$0xf]
    %v6509 = vld [vmem:[%s6507 + $0x4] sm:$0xf]
    %v6510 = vld [vmem:[%s6507 + $0x8] sm:$0xf]
    %v6511 = vld [vmem:[%s6507 + $0xc] sm:$0xf]
    %v6512 = vld [vmem:[%s6507 + $0x10] sm:$0xf]
    %v6513 = vld [vmem:[%s6507 + $0x14] sm:$0xf]
    %v6514 = vld [vmem:[%s6507 + $0x18] sm:$0xf]
    %v6515 = vld [vmem:[%s6507 + $0x1c] sm:$0xf]
    %v6516 = vld [vmem:[%s6507 + $0x20] sm:$0xf]
    %v6517 = vld [vmem:[%s6507 + $0x24] sm:$0xf]
    %v6518 = vld [vmem:[%s6507 + $0x28] sm:$0xf]
    %v6519 = vld [vmem:[%s6507 + $0x2c] sm:$0xf]
    %v6520 = vld [vmem:[%s6507 + $0x30] sm:$0xf]
    %v6521 = vld [vmem:[%s6507 + $0x34] sm:$0xf]
    %v6522 = vld [vmem:[%s6507 + $0x38] sm:$0xf]
    %v6523 = vld [vmem:[%s6507 + $0x3c] sm:$0xf]
    %v6540 = vunpack.c.l.b16 %v6508
    %v6541 = vunpack.c.l.b16 %v6509
    %v6542 = vunpack.c.l.b16 %v6510
    %v6543 = vunpack.c.l.b16 %v6511
    %v6544 = vunpack.c.l.b16 %v6512
    %v6545 = vunpack.c.l.b16 %v6513
    %v6546 = vunpack.c.l.b16 %v6514
    %v6547 = vunpack.c.l.b16 %v6515
    %v6548 = vunpack.c.l.b16 %v6516
    %v6549 = vunpack.c.l.b16 %v6517
    %v6550 = vunpack.c.l.b16 %v6518
    %v6551 = vunpack.c.l.b16 %v6519
    %v6552 = vunpack.c.l.b16 %v6520
    %v6553 = vunpack.c.l.b16 %v6521
    %v6554 = vunpack.c.l.b16 %v6522
    %v6555 = vunpack.c.l.b16 %v6523
    %v6556 = vpack.c.b16 %v6541, %v6540
    %v6557 = vpack.c.b16 %v6543, %v6542
    %v6558 = vpack.c.b16 %v6545, %v6544
    %v6559 = vpack.c.b16 %v6547, %v6546
    %v6560 = vpack.c.b16 %v6549, %v6548
    %v6561 = vpack.c.b16 %v6551, %v6550
    %v6562 = vpack.c.b16 %v6553, %v6552
    %v6563 = vpack.c.b16 %v6555, %v6554
    %6572 = vmatpush.bf16.msra.mxu0 %v6563
    %6573 = vmatpush.bf16.msra.mxu0 %v6562
    %6574 = vmatpush.bf16.msra.mxu0 %v6561
    %6575 = vmatpush.bf16.msra.mxu0 %v6560
    %6576 = vmatpush.bf16.msra.mxu0 %v6559
    %6577 = vmatpush.bf16.msra.mxu0 %v6558
    %6578 = vmatpush.bf16.msra.mxu0 %v6557
    %6579 = vmatpush.bf16.msra.mxu0 %v6556
    %6580 = vmatmul.bf16.gmra.mxu0 %v6506
    %v6581 = vpop.f32.mrf.mxu0
    %v6582 = vadd.f32 0.0, %v6581
    %v6583 = vpop.f32.mrf.mxu0
    %v6584 = vadd.f32 0.0, %v6583
    %6585 = vdwg.mxu0
    %v6586 = vadd.f32 %v6496, %v6582
    %v6587 = vadd.f32 %v6497, %v6584
    %v6588 = vadd.f32 %v6586, %v6587
    %v6589 = vrot.slane %v6588, 4
    %v6590 = vadd.f32 %v6588, %v6589
    %v6591 = vrot.slane %v6590, 2
    %v6592 = vadd.f32 %v6590, %v6591
    %v6593 = vrot.slane %v6592, 1
    %v6594 = vadd.f32 %v6592, %v6593
    %v6595 = vmul.f32 %v6594, %v733
    %v6596 = vsub.f32 %v6586, %v6595
    %v6597 = vsub.f32 %v6587, %v6595
    %v6598 = vmul.f32 %v6596, %v6596
    %v6599 = vmul.f32 %v6597, %v6597
    %v6600 = vadd.f32 %v6598, %v6599
    %v6601 = vrot.slane %v6600, 4
    %v6602 = vadd.f32 %v6600, %v6601
    %v6603 = vrot.slane %v6602, 2
    %v6604 = vadd.f32 %v6602, %v6603
    %v6605 = vrot.slane %v6604, 1
    %v6606 = vadd.f32 %v6604, %v6605
    %v6607 = vmul.f32 %v6606, %v733
    %v6608 = vadd.f32 %v6607, 1e-05
    %v6609 = vrsqrt.pop %v6608
    %v6610 = vmul.f32 %v6609, %v6608
    %v6611 = vmul.f32 %v6610, %v6609
    %v6612 = vmul.f32 0.5, %v6611
    %v6613 = vsub.f32 1.5, %v6612
    %v6614 = vmul.f32 %v6609, %v6613
    %vm6615 = vweird.f32 %v6608
    %vm6616 = vweird.f32 %v6609
    %vm6617 = vmor %vm6615, %vm6616
    %v6618 = vsel %vm6617, %v6609, %v6614
    %v6619 = vmul.f32 %v6596, %v6618
    %v6620 = vmul.f32 %v6597, %v6618
    %s6621 = scalar_lea.vmem [#allocation9], 5
    %v6622 = vld [vmem:[%s6621] sm:$0x1]
    %v6624 = vperm.slane %v6622, 0
    %v6626 = vmul.f32 %v6619, %v6624
    %v6627 = vmul.f32 %v6620, %v6624
    %s6628 = scalar_lea.vmem [#allocation11], 5
    %v6629 = vld [vmem:[%s6628] sm:$0x1]
    %v6631 = vperm.slane %v6629, 0
    %v6633 = vadd.f32 %v6626, %v6631
    %v6634 = vadd.f32 %v6627, %v6631
    %v6635 = vmax.f32 %v6633, 0.0
    %v6636 = vmax.f32 %v6634, 0.0
    %6637 = vst [vmem:[#allocation2 + $0x2] sm:$0xff] %v6635
    %6638 = vst [vmem:[#allocation2 + $0x12] sm:$0xff] %v6636
    %v6639 = vpack.c.bf16 %v6635, %v6635
    %v6640 = vpack.c.bf16 %v6636, %v6636
    %s6641 = scalar_lea.vmem [#allocation12], 2560
    %v6642 = vld [vmem:[%s6641] sm:$0xf]
    %v6643 = vld [vmem:[%s6641 + $0x4] sm:$0xf]
    %v6644 = vld [vmem:[%s6641 + $0x8] sm:$0xf]
    %v6645 = vld [vmem:[%s6641 + $0xc] sm:$0xf]
    %v6646 = vld [vmem:[%s6641 + $0x10] sm:$0xf]
    %v6647 = vld [vmem:[%s6641 + $0x14] sm:$0xf]
    %v6648 = vld [vmem:[%s6641 + $0x18] sm:$0xf]
    %v6649 = vld [vmem:[%s6641 + $0x1c] sm:$0xf]
    %v6650 = vld [vmem:[%s6641 + $0x20] sm:$0xf]
    %v6651 = vld [vmem:[%s6641 + $0x24] sm:$0xf]
    %v6652 = vld [vmem:[%s6641 + $0x28] sm:$0xf]
    %v6653 = vld [vmem:[%s6641 + $0x2c] sm:$0xf]
    %v6654 = vld [vmem:[%s6641 + $0x30] sm:$0xf]
    %v6655 = vld [vmem:[%s6641 + $0x34] sm:$0xf]
    %v6656 = vld [vmem:[%s6641 + $0x38] sm:$0xf]
    %v6657 = vld [vmem:[%s6641 + $0x3c] sm:$0xf]
    %v6660 = vunpack.c.l.b16 %v6639
    %v6661 = vunpack.c.l.b16 %v6640
    %v6662 = vrot.slane %v6661, 7
    %v6663 = vsel %vm816, %v6662, %v6660
    %v6664 = vpack.c.b16 %v6663, %v6663
    %v6682 = vunpack.c.l.b16 %v6642
    %v6683 = vunpack.c.l.b16 %v6643
    %v6684 = vunpack.c.l.b16 %v6644
    %v6685 = vunpack.c.l.b16 %v6645
    %v6686 = vunpack.c.l.b16 %v6646
    %v6687 = vunpack.c.l.b16 %v6647
    %v6688 = vunpack.c.l.b16 %v6648
    %v6689 = vunpack.c.l.b16 %v6649
    %v6690 = vunpack.c.l.b16 %v6650
    %v6691 = vunpack.c.l.b16 %v6651
    %v6692 = vunpack.c.l.b16 %v6652
    %v6693 = vunpack.c.l.b16 %v6653
    %v6694 = vunpack.c.l.b16 %v6654
    %v6695 = vunpack.c.l.b16 %v6655
    %v6696 = vunpack.c.l.b16 %v6656
    %v6697 = vunpack.c.l.b16 %v6657
    %v6698 = vpack.c.b16 %v6683, %v6682
    %v6699 = vpack.c.b16 %v6685, %v6684
    %v6700 = vpack.c.b16 %v6687, %v6686
    %v6701 = vpack.c.b16 %v6689, %v6688
    %v6702 = vpack.c.b16 %v6691, %v6690
    %v6703 = vpack.c.b16 %v6693, %v6692
    %v6704 = vpack.c.b16 %v6695, %v6694
    %v6705 = vpack.c.b16 %v6697, %v6696
    %6714 = vmatpush.bf16.msra.mxu0 %v6705
    %6715 = vmatpush.bf16.msra.mxu0 %v6704
    %6716 = vmatpush.bf16.msra.mxu0 %v6703
    %6717 = vmatpush.bf16.msra.mxu0 %v6702
    %6718 = vmatpush.bf16.msra.mxu0 %v6701
    %6719 = vmatpush.bf16.msra.mxu0 %v6700
    %6720 = vmatpush.bf16.msra.mxu0 %v6699
    %6721 = vmatpush.bf16.msra.mxu0 %v6698
    %6722 = vmatmul.bf16.gmra.mxu0 %v6664
    %v6723 = vpop.f32.mrf.mxu0
    %v6724 = vadd.f32 0.0, %v6723
    %v6725 = vpop.f32.mrf.mxu0
    %6726 = vdwg.mxu0
    %v6727 = vadd.f32 %v6141, %v6724
    %s6728 = scalar_lea.vmem [#allocation12], 2624
    %v6729 = vld [vmem:[%s6728] sm:$0xf]
    %v6730 = vld [vmem:[%s6728 + $0x4] sm:$0xf]
    %v6731 = vld [vmem:[%s6728 + $0x8] sm:$0xf]
    %v6732 = vld [vmem:[%s6728 + $0xc] sm:$0xf]
    %v6733 = vld [vmem:[%s6728 + $0x10] sm:$0xf]
    %v6734 = vld [vmem:[%s6728 + $0x14] sm:$0xf]
    %v6735 = vld [vmem:[%s6728 + $0x18] sm:$0xf]
    %v6736 = vld [vmem:[%s6728 + $0x1c] sm:$0xf]
    %v6737 = vld [vmem:[%s6728 + $0x20] sm:$0xf]
    %v6738 = vld [vmem:[%s6728 + $0x24] sm:$0xf]
    %v6739 = vld [vmem:[%s6728 + $0x28] sm:$0xf]
    %v6740 = vld [vmem:[%s6728 + $0x2c] sm:$0xf]
    %v6741 = vld [vmem:[%s6728 + $0x30] sm:$0xf]
    %v6742 = vld [vmem:[%s6728 + $0x34] sm:$0xf]
    %v6743 = vld [vmem:[%s6728 + $0x38] sm:$0xf]
    %v6744 = vld [vmem:[%s6728 + $0x3c] sm:$0xf]
    %v6745 = vrot.slane %v6660, 1
    %v6746 = vsel %vm816, %v6661, %v6745
    %v6747 = vpack.c.b16 %v6746, %v6746
    %v6765 = vunpack.c.l.b16 %v6729
    %v6766 = vunpack.c.l.b16 %v6730
    %v6767 = vunpack.c.l.b16 %v6731
    %v6768 = vunpack.c.l.b16 %v6732
    %v6769 = vunpack.c.l.b16 %v6733
    %v6770 = vunpack.c.l.b16 %v6734
    %v6771 = vunpack.c.l.b16 %v6735
    %v6772 = vunpack.c.l.b16 %v6736
    %v6773 = vunpack.c.l.b16 %v6737
    %v6774 = vunpack.c.l.b16 %v6738
    %v6775 = vunpack.c.l.b16 %v6739
    %v6776 = vunpack.c.l.b16 %v6740
    %v6777 = vunpack.c.l.b16 %v6741
    %v6778 = vunpack.c.l.b16 %v6742
    %v6779 = vunpack.c.l.b16 %v6743
    %v6780 = vunpack.c.l.b16 %v6744
    %v6781 = vpack.c.b16 %v6766, %v6765
    %v6782 = vpack.c.b16 %v6768, %v6767
    %v6783 = vpack.c.b16 %v6770, %v6769
    %v6784 = vpack.c.b16 %v6772, %v6771
    %v6785 = vpack.c.b16 %v6774, %v6773
    %v6786 = vpack.c.b16 %v6776, %v6775
    %v6787 = vpack.c.b16 %v6778, %v6777
    %v6788 = vpack.c.b16 %v6780, %v6779
    %6797 = vmatpush.bf16.msra.mxu0 %v6788
    %6798 = vmatpush.bf16.msra.mxu0 %v6787
    %6799 = vmatpush.bf16.msra.mxu0 %v6786
    %6800 = vmatpush.bf16.msra.mxu0 %v6785
    %6801 = vmatpush.bf16.msra.mxu0 %v6784
    %6802 = vmatpush.bf16.msra.mxu0 %v6783
    %6803 = vmatpush.bf16.msra.mxu0 %v6782
    %6804 = vmatpush.bf16.msra.mxu0 %v6781
    %6805 = vmatmul.bf16.gmra.mxu0 %v6747
    %v6806 = vpop.f32.mrf.mxu0
    %v6807 = vadd.f32 0.0, %v6806
    %v6808 = vpop.f32.mrf.mxu0
    %6809 = vdwg.mxu0
    %v6810 = vadd.f32 %v6727, %v6807
    %s6811 = scalar_lea.vmem [#allocation12], 2688
    %v6812 = vld [vmem:[%s6811] sm:$0xf]
    %v6813 = vld [vmem:[%s6811 + $0x4] sm:$0xf]
    %v6814 = vld [vmem:[%s6811 + $0x8] sm:$0xf]
    %v6815 = vld [vmem:[%s6811 + $0xc] sm:$0xf]
    %v6816 = vld [vmem:[%s6811 + $0x10] sm:$0xf]
    %v6817 = vld [vmem:[%s6811 + $0x14] sm:$0xf]
    %v6818 = vld [vmem:[%s6811 + $0x18] sm:$0xf]
    %v6819 = vld [vmem:[%s6811 + $0x1c] sm:$0xf]
    %v6820 = vld [vmem:[%s6811 + $0x20] sm:$0xf]
    %v6821 = vld [vmem:[%s6811 + $0x24] sm:$0xf]
    %v6822 = vld [vmem:[%s6811 + $0x28] sm:$0xf]
    %v6823 = vld [vmem:[%s6811 + $0x2c] sm:$0xf]
    %v6824 = vld [vmem:[%s6811 + $0x30] sm:$0xf]
    %v6825 = vld [vmem:[%s6811 + $0x34] sm:$0xf]
    %v6826 = vld [vmem:[%s6811 + $0x38] sm:$0xf]
    %v6827 = vld [vmem:[%s6811 + $0x3c] sm:$0xf]
    %v6828 = vrot.slane %v6660, 2
    %v6829 = vrot.slane %v6661, 1
    %v6830 = vsel %vm816, %v6829, %v6828
    %v6831 = vpack.c.b16 %v6830, %v6830
    %v6849 = vunpack.c.l.b16 %v6812
    %v6850 = vunpack.c.l.b16 %v6813
    %v6851 = vunpack.c.l.b16 %v6814
    %v6852 = vunpack.c.l.b16 %v6815
    %v6853 = vunpack.c.l.b16 %v6816
    %v6854 = vunpack.c.l.b16 %v6817
    %v6855 = vunpack.c.l.b16 %v6818
    %v6856 = vunpack.c.l.b16 %v6819
    %v6857 = vunpack.c.l.b16 %v6820
    %v6858 = vunpack.c.l.b16 %v6821
    %v6859 = vunpack.c.l.b16 %v6822
    %v6860 = vunpack.c.l.b16 %v6823
    %v6861 = vunpack.c.l.b16 %v6824
    %v6862 = vunpack.c.l.b16 %v6825
    %v6863 = vunpack.c.l.b16 %v6826
    %v6864 = vunpack.c.l.b16 %v6827
    %v6865 = vpack.c.b16 %v6850, %v6849
    %v6866 = vpack.c.b16 %v6852, %v6851
    %v6867 = vpack.c.b16 %v6854, %v6853
    %v6868 = vpack.c.b16 %v6856, %v6855
    %v6869 = vpack.c.b16 %v6858, %v6857
    %v6870 = vpack.c.b16 %v6860, %v6859
    %v6871 = vpack.c.b16 %v6862, %v6861
    %v6872 = vpack.c.b16 %v6864, %v6863
    %6881 = vmatpush.bf16.msra.mxu0 %v6872
    %6882 = vmatpush.bf16.msra.mxu0 %v6871
    %6883 = vmatpush.bf16.msra.mxu0 %v6870
    %6884 = vmatpush.bf16.msra.mxu0 %v6869
    %6885 = vmatpush.bf16.msra.mxu0 %v6868
    %6886 = vmatpush.bf16.msra.mxu0 %v6867
    %6887 = vmatpush.bf16.msra.mxu0 %v6866
    %6888 = vmatpush.bf16.msra.mxu0 %v6865
    %6889 = vmatmul.bf16.gmra.mxu0 %v6831
    %v6890 = vpop.f32.mrf.mxu0
    %v6891 = vadd.f32 0.0, %v6890
    %v6892 = vpop.f32.mrf.mxu0
    %6893 = vdwg.mxu0
    %v6894 = vadd.f32 %v6810, %v6891
    %s6895 = scalar_lea.vmem [#allocation12], 2752
    %v6896 = vld [vmem:[%s6895] sm:$0xf]
    %v6897 = vld [vmem:[%s6895 + $0x4] sm:$0xf]
    %v6898 = vld [vmem:[%s6895 + $0x8] sm:$0xf]
    %v6899 = vld [vmem:[%s6895 + $0xc] sm:$0xf]
    %v6900 = vld [vmem:[%s6895 + $0x10] sm:$0xf]
    %v6901 = vld [vmem:[%s6895 + $0x14] sm:$0xf]
    %v6902 = vld [vmem:[%s6895 + $0x18] sm:$0xf]
    %v6903 = vld [vmem:[%s6895 + $0x1c] sm:$0xf]
    %v6904 = vld [vmem:[%s6895 + $0x20] sm:$0xf]
    %v6905 = vld [vmem:[%s6895 + $0x24] sm:$0xf]
    %v6906 = vld [vmem:[%s6895 + $0x28] sm:$0xf]
    %v6907 = vld [vmem:[%s6895 + $0x2c] sm:$0xf]
    %v6908 = vld [vmem:[%s6895 + $0x30] sm:$0xf]
    %v6909 = vld [vmem:[%s6895 + $0x34] sm:$0xf]
    %v6910 = vld [vmem:[%s6895 + $0x38] sm:$0xf]
    %v6911 = vld [vmem:[%s6895 + $0x3c] sm:$0xf]
    %v6912 = vrot.slane %v6660, 3
    %v6913 = vrot.slane %v6661, 2
    %v6914 = vsel %vm816, %v6913, %v6912
    %v6915 = vpack.c.b16 %v6914, %v6914
    %v6933 = vunpack.c.l.b16 %v6896
    %v6934 = vunpack.c.l.b16 %v6897
    %v6935 = vunpack.c.l.b16 %v6898
    %v6936 = vunpack.c.l.b16 %v6899
    %v6937 = vunpack.c.l.b16 %v6900
    %v6938 = vunpack.c.l.b16 %v6901
    %v6939 = vunpack.c.l.b16 %v6902
    %v6940 = vunpack.c.l.b16 %v6903
    %v6941 = vunpack.c.l.b16 %v6904
    %v6942 = vunpack.c.l.b16 %v6905
    %v6943 = vunpack.c.l.b16 %v6906
    %v6944 = vunpack.c.l.b16 %v6907
    %v6945 = vunpack.c.l.b16 %v6908
    %v6946 = vunpack.c.l.b16 %v6909
    %v6947 = vunpack.c.l.b16 %v6910
    %v6948 = vunpack.c.l.b16 %v6911
    %v6949 = vpack.c.b16 %v6934, %v6933
    %v6950 = vpack.c.b16 %v6936, %v6935
    %v6951 = vpack.c.b16 %v6938, %v6937
    %v6952 = vpack.c.b16 %v6940, %v6939
    %v6953 = vpack.c.b16 %v6942, %v6941
    %v6954 = vpack.c.b16 %v6944, %v6943
    %v6955 = vpack.c.b16 %v6946, %v6945
    %v6956 = vpack.c.b16 %v6948, %v6947
    %6965 = vmatpush.bf16.msra.mxu0 %v6956
    %6966 = vmatpush.bf16.msra.mxu0 %v6955
    %6967 = vmatpush.bf16.msra.mxu0 %v6954
    %6968 = vmatpush.bf16.msra.mxu0 %v6953
    %6969 = vmatpush.bf16.msra.mxu0 %v6952
    %6970 = vmatpush.bf16.msra.mxu0 %v6951
    %6971 = vmatpush.bf16.msra.mxu0 %v6950
    %6972 = vmatpush.bf16.msra.mxu0 %v6949
    %6973 = vmatmul.bf16.gmra.mxu0 %v6915
    %v6974 = vpop.f32.mrf.mxu0
    %v6975 = vadd.f32 0.0, %v6974
    %v6976 = vpop.f32.mrf.mxu0
    %6977 = vdwg.mxu0
    %v6978 = vadd.f32 %v6894, %v6975
    %s6979 = scalar_lea.vmem [#allocation12], 2816
    %v6980 = vld [vmem:[%s6979] sm:$0xf]
    %v6981 = vld [vmem:[%s6979 + $0x4] sm:$0xf]
    %v6982 = vld [vmem:[%s6979 + $0x8] sm:$0xf]
    %v6983 = vld [vmem:[%s6979 + $0xc] sm:$0xf]
    %v6984 = vld [vmem:[%s6979 + $0x10] sm:$0xf]
    %v6985 = vld [vmem:[%s6979 + $0x14] sm:$0xf]
    %v6986 = vld [vmem:[%s6979 + $0x18] sm:$0xf]
    %v6987 = vld [vmem:[%s6979 + $0x1c] sm:$0xf]
    %v6988 = vld [vmem:[%s6979 + $0x20] sm:$0xf]
    %v6989 = vld [vmem:[%s6979 + $0x24] sm:$0xf]
    %v6990 = vld [vmem:[%s6979 + $0x28] sm:$0xf]
    %v6991 = vld [vmem:[%s6979 + $0x2c] sm:$0xf]
    %v6992 = vld [vmem:[%s6979 + $0x30] sm:$0xf]
    %v6993 = vld [vmem:[%s6979 + $0x34] sm:$0xf]
    %v6994 = vld [vmem:[%s6979 + $0x38] sm:$0xf]
    %v6995 = vld [vmem:[%s6979 + $0x3c] sm:$0xf]
    %v6996 = vrot.slane %v6660, 4
    %v6997 = vrot.slane %v6661, 3
    %v6998 = vsel %vm816, %v6997, %v6996
    %v6999 = vpack.c.b16 %v6998, %v6998
    %v7017 = vunpack.c.l.b16 %v6980
    %v7018 = vunpack.c.l.b16 %v6981
    %v7019 = vunpack.c.l.b16 %v6982
    %v7020 = vunpack.c.l.b16 %v6983
    %v7021 = vunpack.c.l.b16 %v6984
    %v7022 = vunpack.c.l.b16 %v6985
    %v7023 = vunpack.c.l.b16 %v6986
    %v7024 = vunpack.c.l.b16 %v6987
    %v7025 = vunpack.c.l.b16 %v6988
    %v7026 = vunpack.c.l.b16 %v6989
    %v7027 = vunpack.c.l.b16 %v6990
    %v7028 = vunpack.c.l.b16 %v6991
    %v7029 = vunpack.c.l.b16 %v6992
    %v7030 = vunpack.c.l.b16 %v6993
    %v7031 = vunpack.c.l.b16 %v6994
    %v7032 = vunpack.c.l.b16 %v6995
    %v7033 = vpack.c.b16 %v7018, %v7017
    %v7034 = vpack.c.b16 %v7020, %v7019
    %v7035 = vpack.c.b16 %v7022, %v7021
    %v7036 = vpack.c.b16 %v7024, %v7023
    %v7037 = vpack.c.b16 %v7026, %v7025
    %v7038 = vpack.c.b16 %v7028, %v7027
    %v7039 = vpack.c.b16 %v7030, %v7029
    %v7040 = vpack.c.b16 %v7032, %v7031
    %7049 = vmatpush.bf16.msra.mxu0 %v7040
    %7050 = vmatpush.bf16.msra.mxu0 %v7039
    %7051 = vmatpush.bf16.msra.mxu0 %v7038
    %7052 = vmatpush.bf16.msra.mxu0 %v7037
    %7053 = vmatpush.bf16.msra.mxu0 %v7036
    %7054 = vmatpush.bf16.msra.mxu0 %v7035
    %7055 = vmatpush.bf16.msra.mxu0 %v7034
    %7056 = vmatpush.bf16.msra.mxu0 %v7033
    %7057 = vmatmul.bf16.gmra.mxu0 %v6999
    %v7058 = vpop.f32.mrf.mxu0
    %v7059 = vadd.f32 0.0, %v7058
    %v7060 = vpop.f32.mrf.mxu0
    %7061 = vdwg.mxu0
    %v7062 = vadd.f32 %v6978, %v7059
    %s7063 = scalar_lea.vmem [#allocation12], 2880
    %v7064 = vld [vmem:[%s7063] sm:$0xf]
    %v7065 = vld [vmem:[%s7063 + $0x4] sm:$0xf]
    %v7066 = vld [vmem:[%s7063 + $0x8] sm:$0xf]
    %v7067 = vld [vmem:[%s7063 + $0xc] sm:$0xf]
    %v7068 = vld [vmem:[%s7063 + $0x10] sm:$0xf]
    %v7069 = vld [vmem:[%s7063 + $0x14] sm:$0xf]
    %v7070 = vld [vmem:[%s7063 + $0x18] sm:$0xf]
    %v7071 = vld [vmem:[%s7063 + $0x1c] sm:$0xf]
    %v7072 = vld [vmem:[%s7063 + $0x20] sm:$0xf]
    %v7073 = vld [vmem:[%s7063 + $0x24] sm:$0xf]
    %v7074 = vld [vmem:[%s7063 + $0x28] sm:$0xf]
    %v7075 = vld [vmem:[%s7063 + $0x2c] sm:$0xf]
    %v7076 = vld [vmem:[%s7063 + $0x30] sm:$0xf]
    %v7077 = vld [vmem:[%s7063 + $0x34] sm:$0xf]
    %v7078 = vld [vmem:[%s7063 + $0x38] sm:$0xf]
    %v7079 = vld [vmem:[%s7063 + $0x3c] sm:$0xf]
    %v7080 = vrot.slane %v6660, 5
    %v7081 = vrot.slane %v6661, 4
    %v7082 = vsel %vm816, %v7081, %v7080
    %v7083 = vpack.c.b16 %v7082, %v7082
    %v7101 = vunpack.c.l.b16 %v7064
    %v7102 = vunpack.c.l.b16 %v7065
    %v7103 = vunpack.c.l.b16 %v7066
    %v7104 = vunpack.c.l.b16 %v7067
    %v7105 = vunpack.c.l.b16 %v7068
    %v7106 = vunpack.c.l.b16 %v7069
    %v7107 = vunpack.c.l.b16 %v7070
    %v7108 = vunpack.c.l.b16 %v7071
    %v7109 = vunpack.c.l.b16 %v7072
    %v7110 = vunpack.c.l.b16 %v7073
    %v7111 = vunpack.c.l.b16 %v7074
    %v7112 = vunpack.c.l.b16 %v7075
    %v7113 = vunpack.c.l.b16 %v7076
    %v7114 = vunpack.c.l.b16 %v7077
    %v7115 = vunpack.c.l.b16 %v7078
    %v7116 = vunpack.c.l.b16 %v7079
    %v7117 = vpack.c.b16 %v7102, %v7101
    %v7118 = vpack.c.b16 %v7104, %v7103
    %v7119 = vpack.c.b16 %v7106, %v7105
    %v7120 = vpack.c.b16 %v7108, %v7107
    %v7121 = vpack.c.b16 %v7110, %v7109
    %v7122 = vpack.c.b16 %v7112, %v7111
    %v7123 = vpack.c.b16 %v7114, %v7113
    %v7124 = vpack.c.b16 %v7116, %v7115
    %7133 = vmatpush.bf16.msra.mxu0 %v7124
    %7134 = vmatpush.bf16.msra.mxu0 %v7123
    %7135 = vmatpush.bf16.msra.mxu0 %v7122
    %7136 = vmatpush.bf16.msra.mxu0 %v7121
    %7137 = vmatpush.bf16.msra.mxu0 %v7120
    %7138 = vmatpush.bf16.msra.mxu0 %v7119
    %7139 = vmatpush.bf16.msra.mxu0 %v7118
    %7140 = vmatpush.bf16.msra.mxu0 %v7117
    %7141 = vmatmul.bf16.gmra.mxu0 %v7083
    %v7142 = vpop.f32.mrf.mxu0
    %v7143 = vadd.f32 0.0, %v7142
    %v7144 = vpop.f32.mrf.mxu0
    %7145 = vdwg.mxu0
    %v7146 = vadd.f32 %v7062, %v7143
    %s7147 = scalar_lea.vmem [#allocation12], 2944
    %v7148 = vld [vmem:[%s7147] sm:$0xf]
    %v7149 = vld [vmem:[%s7147 + $0x4] sm:$0xf]
    %v7150 = vld [vmem:[%s7147 + $0x8] sm:$0xf]
    %v7151 = vld [vmem:[%s7147 + $0xc] sm:$0xf]
    %v7152 = vld [vmem:[%s7147 + $0x10] sm:$0xf]
    %v7153 = vld [vmem:[%s7147 + $0x14] sm:$0xf]
    %v7154 = vld [vmem:[%s7147 + $0x18] sm:$0xf]
    %v7155 = vld [vmem:[%s7147 + $0x1c] sm:$0xf]
    %v7156 = vld [vmem:[%s7147 + $0x20] sm:$0xf]
    %v7157 = vld [vmem:[%s7147 + $0x24] sm:$0xf]
    %v7158 = vld [vmem:[%s7147 + $0x28] sm:$0xf]
    %v7159 = vld [vmem:[%s7147 + $0x2c] sm:$0xf]
    %v7160 = vld [vmem:[%s7147 + $0x30] sm:$0xf]
    %v7161 = vld [vmem:[%s7147 + $0x34] sm:$0xf]
    %v7162 = vld [vmem:[%s7147 + $0x38] sm:$0xf]
    %v7163 = vld [vmem:[%s7147 + $0x3c] sm:$0xf]
    %v7164 = vrot.slane %v6660, 6
    %v7165 = vrot.slane %v6661, 5
    %v7166 = vsel %vm816, %v7165, %v7164
    %v7167 = vpack.c.b16 %v7166, %v7166
    %v7185 = vunpack.c.l.b16 %v7148
    %v7186 = vunpack.c.l.b16 %v7149
    %v7187 = vunpack.c.l.b16 %v7150
    %v7188 = vunpack.c.l.b16 %v7151
    %v7189 = vunpack.c.l.b16 %v7152
    %v7190 = vunpack.c.l.b16 %v7153
    %v7191 = vunpack.c.l.b16 %v7154
    %v7192 = vunpack.c.l.b16 %v7155
    %v7193 = vunpack.c.l.b16 %v7156
    %v7194 = vunpack.c.l.b16 %v7157
    %v7195 = vunpack.c.l.b16 %v7158
    %v7196 = vunpack.c.l.b16 %v7159
    %v7197 = vunpack.c.l.b16 %v7160
    %v7198 = vunpack.c.l.b16 %v7161
    %v7199 = vunpack.c.l.b16 %v7162
    %v7200 = vunpack.c.l.b16 %v7163
    %v7201 = vpack.c.b16 %v7186, %v7185
    %v7202 = vpack.c.b16 %v7188, %v7187
    %v7203 = vpack.c.b16 %v7190, %v7189
    %v7204 = vpack.c.b16 %v7192, %v7191
    %v7205 = vpack.c.b16 %v7194, %v7193
    %v7206 = vpack.c.b16 %v7196, %v7195
    %v7207 = vpack.c.b16 %v7198, %v7197
    %v7208 = vpack.c.b16 %v7200, %v7199
    %7217 = vmatpush.bf16.msra.mxu0 %v7208
    %7218 = vmatpush.bf16.msra.mxu0 %v7207
    %7219 = vmatpush.bf16.msra.mxu0 %v7206
    %7220 = vmatpush.bf16.msra.mxu0 %v7205
    %7221 = vmatpush.bf16.msra.mxu0 %v7204
    %7222 = vmatpush.bf16.msra.mxu0 %v7203
    %7223 = vmatpush.bf16.msra.mxu0 %v7202
    %7224 = vmatpush.bf16.msra.mxu0 %v7201
    %7225 = vmatmul.bf16.gmra.mxu0 %v7167
    %v7226 = vpop.f32.mrf.mxu0
    %v7227 = vadd.f32 0.0, %v7226
    %v7228 = vpop.f32.mrf.mxu0
    %7229 = vdwg.mxu0
    %v7230 = vadd.f32 %v7146, %v7227
    %s7231 = scalar_lea.vmem [#allocation12], 3008
    %v7232 = vld [vmem:[%s7231] sm:$0xf]
    %v7233 = vld [vmem:[%s7231 + $0x4] sm:$0xf]
    %v7234 = vld [vmem:[%s7231 + $0x8] sm:$0xf]
    %v7235 = vld [vmem:[%s7231 + $0xc] sm:$0xf]
    %v7236 = vld [vmem:[%s7231 + $0x10] sm:$0xf]
    %v7237 = vld [vmem:[%s7231 + $0x14] sm:$0xf]
    %v7238 = vld [vmem:[%s7231 + $0x18] sm:$0xf]
    %v7239 = vld [vmem:[%s7231 + $0x1c] sm:$0xf]
    %v7240 = vld [vmem:[%s7231 + $0x20] sm:$0xf]
    %v7241 = vld [vmem:[%s7231 + $0x24] sm:$0xf]
    %v7242 = vld [vmem:[%s7231 + $0x28] sm:$0xf]
    %v7243 = vld [vmem:[%s7231 + $0x2c] sm:$0xf]
    %v7244 = vld [vmem:[%s7231 + $0x30] sm:$0xf]
    %v7245 = vld [vmem:[%s7231 + $0x34] sm:$0xf]
    %v7246 = vld [vmem:[%s7231 + $0x38] sm:$0xf]
    %v7247 = vld [vmem:[%s7231 + $0x3c] sm:$0xf]
    %v7248 = vrot.slane %v6660, 7
    %v7249 = vrot.slane %v6661, 6
    %v7250 = vsel %vm816, %v7249, %v7248
    %v7251 = vpack.c.b16 %v7250, %v7250
    %v7269 = vunpack.c.l.b16 %v7232
    %v7270 = vunpack.c.l.b16 %v7233
    %v7271 = vunpack.c.l.b16 %v7234
    %v7272 = vunpack.c.l.b16 %v7235
    %v7273 = vunpack.c.l.b16 %v7236
    %v7274 = vunpack.c.l.b16 %v7237
    %v7275 = vunpack.c.l.b16 %v7238
    %v7276 = vunpack.c.l.b16 %v7239
    %v7277 = vunpack.c.l.b16 %v7240
    %v7278 = vunpack.c.l.b16 %v7241
    %v7279 = vunpack.c.l.b16 %v7242
    %v7280 = vunpack.c.l.b16 %v7243
    %v7281 = vunpack.c.l.b16 %v7244
    %v7282 = vunpack.c.l.b16 %v7245
    %v7283 = vunpack.c.l.b16 %v7246
    %v7284 = vunpack.c.l.b16 %v7247
    %v7285 = vpack.c.b16 %v7270, %v7269
    %v7286 = vpack.c.b16 %v7272, %v7271
    %v7287 = vpack.c.b16 %v7274, %v7273
    %v7288 = vpack.c.b16 %v7276, %v7275
    %v7289 = vpack.c.b16 %v7278, %v7277
    %v7290 = vpack.c.b16 %v7280, %v7279
    %v7291 = vpack.c.b16 %v7282, %v7281
    %v7292 = vpack.c.b16 %v7284, %v7283
    %7301 = vmatpush.bf16.msra.mxu0 %v7292
    %7302 = vmatpush.bf16.msra.mxu0 %v7291
    %7303 = vmatpush.bf16.msra.mxu0 %v7290
    %7304 = vmatpush.bf16.msra.mxu0 %v7289
    %7305 = vmatpush.bf16.msra.mxu0 %v7288
    %7306 = vmatpush.bf16.msra.mxu0 %v7287
    %7307 = vmatpush.bf16.msra.mxu0 %v7286
    %7308 = vmatpush.bf16.msra.mxu0 %v7285
    %7309 = vmatmul.bf16.gmra.mxu0 %v7251
    %v7310 = vpop.f32.mrf.mxu0
    %v7311 = vadd.f32 0.0, %v7310
    %v7312 = vpop.f32.mrf.mxu0
    %7313 = vdwg.mxu0
    %v7314 = vadd.f32 %v7230, %v7311
    %v7315 = vld [vmem:[#allocation2] sm:$0xff]
    %v7316 = vld [vmem:[#allocation2 + $0x8] sm:$0xf]
    %v7317 = vld [vmem:[#allocation2 + $0x10] sm:$0xff]
    %v7318 = vld [vmem:[#allocation2 + $0x18] sm:$0xf]
    %v7319 = vpack.c.bf16 %v7317, %v7315
    %s7320 = scalar_lea.vmem [#allocation8], 1920
    %v7321 = vld [vmem:[%s7320] sm:$0xf]
    %v7322 = vld [vmem:[%s7320 + $0x4] sm:$0xf]
    %v7323 = vld [vmem:[%s7320 + $0x8] sm:$0xf]
    %v7324 = vld [vmem:[%s7320 + $0xc] sm:$0xf]
    %v7325 = vld [vmem:[%s7320 + $0x10] sm:$0xf]
    %v7326 = vld [vmem:[%s7320 + $0x14] sm:$0xf]
    %v7327 = vld [vmem:[%s7320 + $0x18] sm:$0xf]
    %v7328 = vld [vmem:[%s7320 + $0x1c] sm:$0xf]
    %v7329 = vld [vmem:[%s7320 + $0x20] sm:$0xf]
    %v7330 = vld [vmem:[%s7320 + $0x24] sm:$0xf]
    %v7331 = vld [vmem:[%s7320 + $0x28] sm:$0xf]
    %v7332 = vld [vmem:[%s7320 + $0x2c] sm:$0xf]
    %v7333 = vld [vmem:[%s7320 + $0x30] sm:$0xf]
    %v7334 = vld [vmem:[%s7320 + $0x34] sm:$0xf]
    %v7335 = vld [vmem:[%s7320 + $0x38] sm:$0xf]
    %v7336 = vld [vmem:[%s7320 + $0x3c] sm:$0xf]
    %v7341 = vrot.slane %v7315, 1
    %v7342 = vrot.slane %v7316, 1
    %v7343 = vsel %vm215, %v7341, %v7342
    %v7344 = vrot.slane %v7317, 1
    %v7345 = vrot.slane %v7318, 1
    %v7346 = vsel %vm215, %v7344, %v7345
    %v7349 = vpack.c.bf16 %v7346, %v7343
    %s7350 = scalar_lea.vmem [#allocation8], 1984
    %v7351 = vld [vmem:[%s7350] sm:$0xf]
    %v7352 = vld [vmem:[%s7350 + $0x4] sm:$0xf]
    %v7353 = vld [vmem:[%s7350 + $0x8] sm:$0xf]
    %v7354 = vld [vmem:[%s7350 + $0xc] sm:$0xf]
    %v7355 = vld [vmem:[%s7350 + $0x10] sm:$0xf]
    %v7356 = vld [vmem:[%s7350 + $0x14] sm:$0xf]
    %v7357 = vld [vmem:[%s7350 + $0x18] sm:$0xf]
    %v7358 = vld [vmem:[%s7350 + $0x1c] sm:$0xf]
    %v7359 = vld [vmem:[%s7350 + $0x20] sm:$0xf]
    %v7360 = vld [vmem:[%s7350 + $0x24] sm:$0xf]
    %v7361 = vld [vmem:[%s7350 + $0x28] sm:$0xf]
    %v7362 = vld [vmem:[%s7350 + $0x2c] sm:$0xf]
    %v7363 = vld [vmem:[%s7350 + $0x30] sm:$0xf]
    %v7364 = vld [vmem:[%s7350 + $0x34] sm:$0xf]
    %v7365 = vld [vmem:[%s7350 + $0x38] sm:$0xf]
    %v7366 = vld [vmem:[%s7350 + $0x3c] sm:$0xf]
    %v7383 = vunpack.c.l.b16 %v7351
    %v7384 = vunpack.c.l.b16 %v7352
    %v7385 = vunpack.c.l.b16 %v7353
    %v7386 = vunpack.c.l.b16 %v7354
    %v7387 = vunpack.c.l.b16 %v7355
    %v7388 = vunpack.c.l.b16 %v7356
    %v7389 = vunpack.c.l.b16 %v7357
    %v7390 = vunpack.c.l.b16 %v7358
    %v7391 = vunpack.c.l.b16 %v7359
    %v7392 = vunpack.c.l.b16 %v7360
    %v7393 = vunpack.c.l.b16 %v7361
    %v7394 = vunpack.c.l.b16 %v7362
    %v7395 = vunpack.c.l.b16 %v7363
    %v7396 = vunpack.c.l.b16 %v7364
    %v7397 = vunpack.c.l.b16 %v7365
    %v7398 = vunpack.c.l.b16 %v7366
    %v7399 = vpack.c.b16 %v7384, %v7383
    %v7400 = vpack.c.b16 %v7386, %v7385
    %v7401 = vpack.c.b16 %v7388, %v7387
    %v7402 = vpack.c.b16 %v7390, %v7389
    %v7403 = vpack.c.b16 %v7392, %v7391
    %v7404 = vpack.c.b16 %v7394, %v7393
    %v7405 = vpack.c.b16 %v7396, %v7395
    %v7406 = vpack.c.b16 %v7398, %v7397
    %7415 = vmatpush.bf16.msra.mxu0 %v7406
    %7416 = vmatpush.bf16.msra.mxu0 %v7405
    %7417 = vmatpush.bf16.msra.mxu0 %v7404
    %7418 = vmatpush.bf16.msra.mxu0 %v7403
    %7419 = vmatpush.bf16.msra.mxu0 %v7402
    %7420 = vmatpush.bf16.msra.mxu0 %v7401
    %7421 = vmatpush.bf16.msra.mxu0 %v7400
    %7422 = vmatpush.bf16.msra.mxu0 %v7399
    %7423 = vmatmul.bf16.gmra.mxu0 %v7349
    %v7424 = vpop.f32.mrf.mxu0
    %v7425 = vadd.f32 0.0, %v7424
    %v7426 = vpop.f32.mrf.mxu0
    %v7427 = vadd.f32 0.0, %v7426
    %7428 = vdwg.mxu0
    %v7445 = vunpack.c.l.b16 %v7321
    %v7446 = vunpack.c.l.b16 %v7322
    %v7447 = vunpack.c.l.b16 %v7323
    %v7448 = vunpack.c.l.b16 %v7324
    %v7449 = vunpack.c.l.b16 %v7325
    %v7450 = vunpack.c.l.b16 %v7326
    %v7451 = vunpack.c.l.b16 %v7327
    %v7452 = vunpack.c.l.b16 %v7328
    %v7453 = vunpack.c.l.b16 %v7329
    %v7454 = vunpack.c.l.b16 %v7330
    %v7455 = vunpack.c.l.b16 %v7331
    %v7456 = vunpack.c.l.b16 %v7332
    %v7457 = vunpack.c.l.b16 %v7333
    %v7458 = vunpack.c.l.b16 %v7334
    %v7459 = vunpack.c.l.b16 %v7335
    %v7460 = vunpack.c.l.b16 %v7336
    %v7461 = vpack.c.b16 %v7446, %v7445
    %v7462 = vpack.c.b16 %v7448, %v7447
    %v7463 = vpack.c.b16 %v7450, %v7449
    %v7464 = vpack.c.b16 %v7452, %v7451
    %v7465 = vpack.c.b16 %v7454, %v7453
    %v7466 = vpack.c.b16 %v7456, %v7455
    %v7467 = vpack.c.b16 %v7458, %v7457
    %v7468 = vpack.c.b16 %v7460, %v7459
    %7477 = vmatpush.bf16.msra.mxu0 %v7468
    %7478 = vmatpush.bf16.msra.mxu0 %v7467
    %7479 = vmatpush.bf16.msra.mxu0 %v7466
    %7480 = vmatpush.bf16.msra.mxu0 %v7465
    %7481 = vmatpush.bf16.msra.mxu0 %v7464
    %7482 = vmatpush.bf16.msra.mxu0 %v7463
    %7483 = vmatpush.bf16.msra.mxu0 %v7462
    %7484 = vmatpush.bf16.msra.mxu0 %v7461
    %7485 = vmatmul.bf16.gmra.mxu0 %v7319
    %v7486 = vpop.f32.mrf.mxu0
    %v7487 = vadd.f32 %v7425, %v7486
    %v7488 = vpop.f32.mrf.mxu0
    %v7489 = vadd.f32 %v7427, %v7488
    %7490 = vdwg.mxu0
    %v7491 = vrot.slane %v7315, 2
    %v7492 = vrot.slane %v7316, 2
    %v7493 = vsel %vm234, %v7491, %v7492
    %v7494 = vrot.slane %v7317, 2
    %v7495 = vrot.slane %v7318, 2
    %v7496 = vsel %vm234, %v7494, %v7495
    %v7499 = vpack.c.bf16 %v7496, %v7493
    %s7500 = scalar_lea.vmem [#allocation8], 2048
    %v7501 = vld [vmem:[%s7500] sm:$0xf]
    %v7502 = vld [vmem:[%s7500 + $0x4] sm:$0xf]
    %v7503 = vld [vmem:[%s7500 + $0x8] sm:$0xf]
    %v7504 = vld [vmem:[%s7500 + $0xc] sm:$0xf]
    %v7505 = vld [vmem:[%s7500 + $0x10] sm:$0xf]
    %v7506 = vld [vmem:[%s7500 + $0x14] sm:$0xf]
    %v7507 = vld [vmem:[%s7500 + $0x18] sm:$0xf]
    %v7508 = vld [vmem:[%s7500 + $0x1c] sm:$0xf]
    %v7509 = vld [vmem:[%s7500 + $0x20] sm:$0xf]
    %v7510 = vld [vmem:[%s7500 + $0x24] sm:$0xf]
    %v7511 = vld [vmem:[%s7500 + $0x28] sm:$0xf]
    %v7512 = vld [vmem:[%s7500 + $0x2c] sm:$0xf]
    %v7513 = vld [vmem:[%s7500 + $0x30] sm:$0xf]
    %v7514 = vld [vmem:[%s7500 + $0x34] sm:$0xf]
    %v7515 = vld [vmem:[%s7500 + $0x38] sm:$0xf]
    %v7516 = vld [vmem:[%s7500 + $0x3c] sm:$0xf]
    %v7533 = vunpack.c.l.b16 %v7501
    %v7534 = vunpack.c.l.b16 %v7502
    %v7535 = vunpack.c.l.b16 %v7503
    %v7536 = vunpack.c.l.b16 %v7504
    %v7537 = vunpack.c.l.b16 %v7505
    %v7538 = vunpack.c.l.b16 %v7506
    %v7539 = vunpack.c.l.b16 %v7507
    %v7540 = vunpack.c.l.b16 %v7508
    %v7541 = vunpack.c.l.b16 %v7509
    %v7542 = vunpack.c.l.b16 %v7510
    %v7543 = vunpack.c.l.b16 %v7511
    %v7544 = vunpack.c.l.b16 %v7512
    %v7545 = vunpack.c.l.b16 %v7513
    %v7546 = vunpack.c.l.b16 %v7514
    %v7547 = vunpack.c.l.b16 %v7515
    %v7548 = vunpack.c.l.b16 %v7516
    %v7549 = vpack.c.b16 %v7534, %v7533
    %v7550 = vpack.c.b16 %v7536, %v7535
    %v7551 = vpack.c.b16 %v7538, %v7537
    %v7552 = vpack.c.b16 %v7540, %v7539
    %v7553 = vpack.c.b16 %v7542, %v7541
    %v7554 = vpack.c.b16 %v7544, %v7543
    %v7555 = vpack.c.b16 %v7546, %v7545
    %v7556 = vpack.c.b16 %v7548, %v7547
    %7565 = vmatpush.bf16.msra.mxu0 %v7556
    %7566 = vmatpush.bf16.msra.mxu0 %v7555
    %7567 = vmatpush.bf16.msra.mxu0 %v7554
    %7568 = vmatpush.bf16.msra.mxu0 %v7553
    %7569 = vmatpush.bf16.msra.mxu0 %v7552
    %7570 = vmatpush.bf16.msra.mxu0 %v7551
    %7571 = vmatpush.bf16.msra.mxu0 %v7550
    %7572 = vmatpush.bf16.msra.mxu0 %v7549
    %7573 = vmatmul.bf16.gmra.mxu0 %v7499
    %v7574 = vpop.f32.mrf.mxu0
    %v7575 = vadd.f32 0.0, %v7574
    %v7576 = vpop.f32.mrf.mxu0
    %v7577 = vadd.f32 0.0, %v7576
    %7578 = vdwg.mxu0
    %v7579 = vadd.f32 %v7487, %v7575
    %v7580 = vadd.f32 %v7489, %v7577
    %v7581 = vrot.slane %v7315, 3
    %v7582 = vrot.slane %v7316, 3
    %v7583 = vsel %vm538, %v7581, %v7582
    %v7584 = vrot.slane %v7317, 3
    %v7585 = vrot.slane %v7318, 3
    %v7586 = vsel %vm538, %v7584, %v7585
    %v7589 = vpack.c.bf16 %v7586, %v7583
    %s7590 = scalar_lea.vmem [#allocation8], 2112
    %v7591 = vld [vmem:[%s7590] sm:$0xf]
    %v7592 = vld [vmem:[%s7590 + $0x4] sm:$0xf]
    %v7593 = vld [vmem:[%s7590 + $0x8] sm:$0xf]
    %v7594 = vld [vmem:[%s7590 + $0xc] sm:$0xf]
    %v7595 = vld [vmem:[%s7590 + $0x10] sm:$0xf]
    %v7596 = vld [vmem:[%s7590 + $0x14] sm:$0xf]
    %v7597 = vld [vmem:[%s7590 + $0x18] sm:$0xf]
    %v7598 = vld [vmem:[%s7590 + $0x1c] sm:$0xf]
    %v7599 = vld [vmem:[%s7590 + $0x20] sm:$0xf]
    %v7600 = vld [vmem:[%s7590 + $0x24] sm:$0xf]
    %v7601 = vld [vmem:[%s7590 + $0x28] sm:$0xf]
    %v7602 = vld [vmem:[%s7590 + $0x2c] sm:$0xf]
    %v7603 = vld [vmem:[%s7590 + $0x30] sm:$0xf]
    %v7604 = vld [vmem:[%s7590 + $0x34] sm:$0xf]
    %v7605 = vld [vmem:[%s7590 + $0x38] sm:$0xf]
    %v7606 = vld [vmem:[%s7590 + $0x3c] sm:$0xf]
    %v7623 = vunpack.c.l.b16 %v7591
    %v7624 = vunpack.c.l.b16 %v7592
    %v7625 = vunpack.c.l.b16 %v7593
    %v7626 = vunpack.c.l.b16 %v7594
    %v7627 = vunpack.c.l.b16 %v7595
    %v7628 = vunpack.c.l.b16 %v7596
    %v7629 = vunpack.c.l.b16 %v7597
    %v7630 = vunpack.c.l.b16 %v7598
    %v7631 = vunpack.c.l.b16 %v7599
    %v7632 = vunpack.c.l.b16 %v7600
    %v7633 = vunpack.c.l.b16 %v7601
    %v7634 = vunpack.c.l.b16 %v7602
    %v7635 = vunpack.c.l.b16 %v7603
    %v7636 = vunpack.c.l.b16 %v7604
    %v7637 = vunpack.c.l.b16 %v7605
    %v7638 = vunpack.c.l.b16 %v7606
    %v7639 = vpack.c.b16 %v7624, %v7623
    %v7640 = vpack.c.b16 %v7626, %v7625
    %v7641 = vpack.c.b16 %v7628, %v7627
    %v7642 = vpack.c.b16 %v7630, %v7629
    %v7643 = vpack.c.b16 %v7632, %v7631
    %v7644 = vpack.c.b16 %v7634, %v7633
    %v7645 = vpack.c.b16 %v7636, %v7635
    %v7646 = vpack.c.b16 %v7638, %v7637
    %7655 = vmatpush.bf16.msra.mxu0 %v7646
    %7656 = vmatpush.bf16.msra.mxu0 %v7645
    %7657 = vmatpush.bf16.msra.mxu0 %v7644
    %7658 = vmatpush.bf16.msra.mxu0 %v7643
    %7659 = vmatpush.bf16.msra.mxu0 %v7642
    %7660 = vmatpush.bf16.msra.mxu0 %v7641
    %7661 = vmatpush.bf16.msra.mxu0 %v7640
    %7662 = vmatpush.bf16.msra.mxu0 %v7639
    %7663 = vmatmul.bf16.gmra.mxu0 %v7589
    %v7664 = vpop.f32.mrf.mxu0
    %v7665 = vadd.f32 0.0, %v7664
    %v7666 = vpop.f32.mrf.mxu0
    %v7667 = vadd.f32 0.0, %v7666
    %7668 = vdwg.mxu0
    %v7669 = vadd.f32 %v7579, %v7665
    %v7670 = vadd.f32 %v7580, %v7667
    %v7671 = vrot.slane %v7315, 4
    %v7672 = vrot.slane %v7316, 4
    %v7673 = vsel %vm629, %v7671, %v7672
    %v7674 = vrot.slane %v7317, 4
    %v7675 = vrot.slane %v7318, 4
    %v7676 = vsel %vm629, %v7674, %v7675
    %v7679 = vpack.c.bf16 %v7676, %v7673
    %s7680 = scalar_lea.vmem [#allocation8], 2176
    %v7681 = vld [vmem:[%s7680] sm:$0xf]
    %v7682 = vld [vmem:[%s7680 + $0x4] sm:$0xf]
    %v7683 = vld [vmem:[%s7680 + $0x8] sm:$0xf]
    %v7684 = vld [vmem:[%s7680 + $0xc] sm:$0xf]
    %v7685 = vld [vmem:[%s7680 + $0x10] sm:$0xf]
    %v7686 = vld [vmem:[%s7680 + $0x14] sm:$0xf]
    %v7687 = vld [vmem:[%s7680 + $0x18] sm:$0xf]
    %v7688 = vld [vmem:[%s7680 + $0x1c] sm:$0xf]
    %v7689 = vld [vmem:[%s7680 + $0x20] sm:$0xf]
    %v7690 = vld [vmem:[%s7680 + $0x24] sm:$0xf]
    %v7691 = vld [vmem:[%s7680 + $0x28] sm:$0xf]
    %v7692 = vld [vmem:[%s7680 + $0x2c] sm:$0xf]
    %v7693 = vld [vmem:[%s7680 + $0x30] sm:$0xf]
    %v7694 = vld [vmem:[%s7680 + $0x34] sm:$0xf]
    %v7695 = vld [vmem:[%s7680 + $0x38] sm:$0xf]
    %v7696 = vld [vmem:[%s7680 + $0x3c] sm:$0xf]
    %v7713 = vunpack.c.l.b16 %v7681
    %v7714 = vunpack.c.l.b16 %v7682
    %v7715 = vunpack.c.l.b16 %v7683
    %v7716 = vunpack.c.l.b16 %v7684
    %v7717 = vunpack.c.l.b16 %v7685
    %v7718 = vunpack.c.l.b16 %v7686
    %v7719 = vunpack.c.l.b16 %v7687
    %v7720 = vunpack.c.l.b16 %v7688
    %v7721 = vunpack.c.l.b16 %v7689
    %v7722 = vunpack.c.l.b16 %v7690
    %v7723 = vunpack.c.l.b16 %v7691
    %v7724 = vunpack.c.l.b16 %v7692
    %v7725 = vunpack.c.l.b16 %v7693
    %v7726 = vunpack.c.l.b16 %v7694
    %v7727 = vunpack.c.l.b16 %v7695
    %v7728 = vunpack.c.l.b16 %v7696
    %v7729 = vpack.c.b16 %v7714, %v7713
    %v7730 = vpack.c.b16 %v7716, %v7715
    %v7731 = vpack.c.b16 %v7718, %v7717
    %v7732 = vpack.c.b16 %v7720, %v7719
    %v7733 = vpack.c.b16 %v7722, %v7721
    %v7734 = vpack.c.b16 %v7724, %v7723
    %v7735 = vpack.c.b16 %v7726, %v7725
    %v7736 = vpack.c.b16 %v7728, %v7727
    %7745 = vmatpush.bf16.msra.mxu0 %v7736
    %7746 = vmatpush.bf16.msra.mxu0 %v7735
    %7747 = vmatpush.bf16.msra.mxu0 %v7734
    %7748 = vmatpush.bf16.msra.mxu0 %v7733
    %7749 = vmatpush.bf16.msra.mxu0 %v7732
    %7750 = vmatpush.bf16.msra.mxu0 %v7731
    %7751 = vmatpush.bf16.msra.mxu0 %v7730
    %7752 = vmatpush.bf16.msra.mxu0 %v7729
    %7753 = vmatmul.bf16.gmra.mxu0 %v7679
    %v7754 = vpop.f32.mrf.mxu0
    %v7755 = vadd.f32 0.0, %v7754
    %v7756 = vpop.f32.mrf.mxu0
    %v7757 = vadd.f32 0.0, %v7756
    %7758 = vdwg.mxu0
    %v7759 = vadd.f32 %v7669, %v7755
    %v7760 = vadd.f32 %v7670, %v7757
    %v7761 = vadd.f32 %v7759, %v7760
    %v7762 = vrot.slane %v7761, 4
    %v7763 = vadd.f32 %v7761, %v7762
    %v7764 = vrot.slane %v7763, 2
    %v7765 = vadd.f32 %v7763, %v7764
    %v7766 = vrot.slane %v7765, 1
    %v7767 = vadd.f32 %v7765, %v7766
    %v7768 = vmul.f32 %v7767, %v733
    %v7769 = vsub.f32 %v7759, %v7768
    %v7770 = vsub.f32 %v7760, %v7768
    %v7771 = vmul.f32 %v7769, %v7769
    %v7772 = vmul.f32 %v7770, %v7770
    %v7773 = vadd.f32 %v7771, %v7772
    %v7774 = vrot.slane %v7773, 4
    %v7775 = vadd.f32 %v7773, %v7774
    %v7776 = vrot.slane %v7775, 2
    %v7777 = vadd.f32 %v7775, %v7776
    %v7778 = vrot.slane %v7777, 1
    %v7779 = vadd.f32 %v7777, %v7778
    %v7780 = vmul.f32 %v7779, %v733
    %v7781 = vadd.f32 %v7780, 1e-05
    %v7782 = vrsqrt.pop %v7781
    %v7783 = vmul.f32 %v7782, %v7781
    %v7784 = vmul.f32 %v7783, %v7782
    %v7785 = vmul.f32 0.5, %v7784
    %v7786 = vsub.f32 1.5, %v7785
    %v7787 = vmul.f32 %v7782, %v7786
    %vm7788 = vweird.f32 %v7781
    %vm7789 = vweird.f32 %v7782
    %vm7790 = vmor %vm7788, %vm7789
    %v7791 = vsel %vm7790, %v7782, %v7787
    %v7792 = vmul.f32 %v7769, %v7791
    %v7793 = vmul.f32 %v7770, %v7791
    %s7794 = scalar_lea.vmem [#allocation9], 6
    %v7795 = vld [vmem:[%s7794] sm:$0x1]
    %v7797 = vperm.slane %v7795, 0
    %v7799 = vmul.f32 %v7792, %v7797
    %v7800 = vmul.f32 %v7793, %v7797
    %s7801 = scalar_lea.vmem [#allocation11], 6
    %v7802 = vld [vmem:[%s7801] sm:$0x1]
    %v7804 = vperm.slane %v7802, 0
    %v7806 = vadd.f32 %v7799, %v7804
    %v7807 = vadd.f32 %v7800, %v7804
    %v7808 = vmax.f32 %v7806, 0.0
    %v7809 = vmax.f32 %v7807, 0.0
    %7810 = vst [vmem:[#allocation2 + $0x2] sm:$0xff] %v7808
    %7811 = vst [vmem:[#allocation2 + $0x12] sm:$0xff] %v7809
    %v7812 = vpack.c.bf16 %v7808, %v7808
    %v7813 = vpack.c.bf16 %v7809, %v7809
    %s7814 = scalar_lea.vmem [#allocation12], 3072
    %v7815 = vld [vmem:[%s7814] sm:$0xf]
    %v7816 = vld [vmem:[%s7814 + $0x4] sm:$0xf]
    %v7817 = vld [vmem:[%s7814 + $0x8] sm:$0xf]
    %v7818 = vld [vmem:[%s7814 + $0xc] sm:$0xf]
    %v7819 = vld [vmem:[%s7814 + $0x10] sm:$0xf]
    %v7820 = vld [vmem:[%s7814 + $0x14] sm:$0xf]
    %v7821 = vld [vmem:[%s7814 + $0x18] sm:$0xf]
    %v7822 = vld [vmem:[%s7814 + $0x1c] sm:$0xf]
    %v7823 = vld [vmem:[%s7814 + $0x20] sm:$0xf]
    %v7824 = vld [vmem:[%s7814 + $0x24] sm:$0xf]
    %v7825 = vld [vmem:[%s7814 + $0x28] sm:$0xf]
    %v7826 = vld [vmem:[%s7814 + $0x2c] sm:$0xf]
    %v7827 = vld [vmem:[%s7814 + $0x30] sm:$0xf]
    %v7828 = vld [vmem:[%s7814 + $0x34] sm:$0xf]
    %v7829 = vld [vmem:[%s7814 + $0x38] sm:$0xf]
    %v7830 = vld [vmem:[%s7814 + $0x3c] sm:$0xf]
    %v7833 = vunpack.c.l.b16 %v7812
    %v7834 = vunpack.c.l.b16 %v7813
    %v7835 = vrot.slane %v7834, 7
    %v7836 = vsel %vm816, %v7835, %v7833
    %v7837 = vpack.c.b16 %v7836, %v7836
    %v7855 = vunpack.c.l.b16 %v7815
    %v7856 = vunpack.c.l.b16 %v7816
    %v7857 = vunpack.c.l.b16 %v7817
    %v7858 = vunpack.c.l.b16 %v7818
    %v7859 = vunpack.c.l.b16 %v7819
    %v7860 = vunpack.c.l.b16 %v7820
    %v7861 = vunpack.c.l.b16 %v7821
    %v7862 = vunpack.c.l.b16 %v7822
    %v7863 = vunpack.c.l.b16 %v7823
    %v7864 = vunpack.c.l.b16 %v7824
    %v7865 = vunpack.c.l.b16 %v7825
    %v7866 = vunpack.c.l.b16 %v7826
    %v7867 = vunpack.c.l.b16 %v7827
    %v7868 = vunpack.c.l.b16 %v7828
    %v7869 = vunpack.c.l.b16 %v7829
    %v7870 = vunpack.c.l.b16 %v7830
    %v7871 = vpack.c.b16 %v7856, %v7855
    %v7872 = vpack.c.b16 %v7858, %v7857
    %v7873 = vpack.c.b16 %v7860, %v7859
    %v7874 = vpack.c.b16 %v7862, %v7861
    %v7875 = vpack.c.b16 %v7864, %v7863
    %v7876 = vpack.c.b16 %v7866, %v7865
    %v7877 = vpack.c.b16 %v7868, %v7867
    %v7878 = vpack.c.b16 %v7870, %v7869
    %7887 = vmatpush.bf16.msra.mxu0 %v7878
    %7888 = vmatpush.bf16.msra.mxu0 %v7877
    %7889 = vmatpush.bf16.msra.mxu0 %v7876
    %7890 = vmatpush.bf16.msra.mxu0 %v7875
    %7891 = vmatpush.bf16.msra.mxu0 %v7874
    %7892 = vmatpush.bf16.msra.mxu0 %v7873
    %7893 = vmatpush.bf16.msra.mxu0 %v7872
    %7894 = vmatpush.bf16.msra.mxu0 %v7871
    %7895 = vmatmul.bf16.gmra.mxu0 %v7837
    %v7896 = vpop.f32.mrf.mxu0
    %v7897 = vadd.f32 0.0, %v7896
    %v7898 = vpop.f32.mrf.mxu0
    %7899 = vdwg.mxu0
    %v7900 = vadd.f32 %v7314, %v7897
    %s7901 = scalar_lea.vmem [#allocation12], 3136
    %v7902 = vld [vmem:[%s7901] sm:$0xf]
    %v7903 = vld [vmem:[%s7901 + $0x4] sm:$0xf]
    %v7904 = vld [vmem:[%s7901 + $0x8] sm:$0xf]
    %v7905 = vld [vmem:[%s7901 + $0xc] sm:$0xf]
    %v7906 = vld [vmem:[%s7901 + $0x10] sm:$0xf]
    %v7907 = vld [vmem:[%s7901 + $0x14] sm:$0xf]
    %v7908 = vld [vmem:[%s7901 + $0x18] sm:$0xf]
    %v7909 = vld [vmem:[%s7901 + $0x1c] sm:$0xf]
    %v7910 = vld [vmem:[%s7901 + $0x20] sm:$0xf]
    %v7911 = vld [vmem:[%s7901 + $0x24] sm:$0xf]
    %v7912 = vld [vmem:[%s7901 + $0x28] sm:$0xf]
    %v7913 = vld [vmem:[%s7901 + $0x2c] sm:$0xf]
    %v7914 = vld [vmem:[%s7901 + $0x30] sm:$0xf]
    %v7915 = vld [vmem:[%s7901 + $0x34] sm:$0xf]
    %v7916 = vld [vmem:[%s7901 + $0x38] sm:$0xf]
    %v7917 = vld [vmem:[%s7901 + $0x3c] sm:$0xf]
    %v7918 = vrot.slane %v7833, 1
    %v7919 = vsel %vm816, %v7834, %v7918
    %v7920 = vpack.c.b16 %v7919, %v7919
    %v7938 = vunpack.c.l.b16 %v7902
    %v7939 = vunpack.c.l.b16 %v7903
    %v7940 = vunpack.c.l.b16 %v7904
    %v7941 = vunpack.c.l.b16 %v7905
    %v7942 = vunpack.c.l.b16 %v7906
    %v7943 = vunpack.c.l.b16 %v7907
    %v7944 = vunpack.c.l.b16 %v7908
    %v7945 = vunpack.c.l.b16 %v7909
    %v7946 = vunpack.c.l.b16 %v7910
    %v7947 = vunpack.c.l.b16 %v7911
    %v7948 = vunpack.c.l.b16 %v7912
    %v7949 = vunpack.c.l.b16 %v7913
    %v7950 = vunpack.c.l.b16 %v7914
    %v7951 = vunpack.c.l.b16 %v7915
    %v7952 = vunpack.c.l.b16 %v7916
    %v7953 = vunpack.c.l.b16 %v7917
    %v7954 = vpack.c.b16 %v7939, %v7938
    %v7955 = vpack.c.b16 %v7941, %v7940
    %v7956 = vpack.c.b16 %v7943, %v7942
    %v7957 = vpack.c.b16 %v7945, %v7944
    %v7958 = vpack.c.b16 %v7947, %v7946
    %v7959 = vpack.c.b16 %v7949, %v7948
    %v7960 = vpack.c.b16 %v7951, %v7950
    %v7961 = vpack.c.b16 %v7953, %v7952
    %7970 = vmatpush.bf16.msra.mxu0 %v7961
    %7971 = vmatpush.bf16.msra.mxu0 %v7960
    %7972 = vmatpush.bf16.msra.mxu0 %v7959
    %7973 = vmatpush.bf16.msra.mxu0 %v7958
    %7974 = vmatpush.bf16.msra.mxu0 %v7957
    %7975 = vmatpush.bf16.msra.mxu0 %v7956
    %7976 = vmatpush.bf16.msra.mxu0 %v7955
    %7977 = vmatpush.bf16.msra.mxu0 %v7954
    %7978 = vmatmul.bf16.gmra.mxu0 %v7920
    %v7979 = vpop.f32.mrf.mxu0
    %v7980 = vadd.f32 0.0, %v7979
    %v7981 = vpop.f32.mrf.mxu0
    %7982 = vdwg.mxu0
    %v7983 = vadd.f32 %v7900, %v7980
    %s7984 = scalar_lea.vmem [#allocation12], 3200
    %v7985 = vld [vmem:[%s7984] sm:$0xf]
    %v7986 = vld [vmem:[%s7984 + $0x4] sm:$0xf]
    %v7987 = vld [vmem:[%s7984 + $0x8] sm:$0xf]
    %v7988 = vld [vmem:[%s7984 + $0xc] sm:$0xf]
    %v7989 = vld [vmem:[%s7984 + $0x10] sm:$0xf]
    %v7990 = vld [vmem:[%s7984 + $0x14] sm:$0xf]
    %v7991 = vld [vmem:[%s7984 + $0x18] sm:$0xf]
    %v7992 = vld [vmem:[%s7984 + $0x1c] sm:$0xf]
    %v7993 = vld [vmem:[%s7984 + $0x20] sm:$0xf]
    %v7994 = vld [vmem:[%s7984 + $0x24] sm:$0xf]
    %v7995 = vld [vmem:[%s7984 + $0x28] sm:$0xf]
    %v7996 = vld [vmem:[%s7984 + $0x2c] sm:$0xf]
    %v7997 = vld [vmem:[%s7984 + $0x30] sm:$0xf]
    %v7998 = vld [vmem:[%s7984 + $0x34] sm:$0xf]
    %v7999 = vld [vmem:[%s7984 + $0x38] sm:$0xf]
    %v8000 = vld [vmem:[%s7984 + $0x3c] sm:$0xf]
    %v8001 = vrot.slane %v7833, 2
    %v8002 = vrot.slane %v7834, 1
    %v8003 = vsel %vm816, %v8002, %v8001
    %v8004 = vpack.c.b16 %v8003, %v8003
    %v8022 = vunpack.c.l.b16 %v7985
    %v8023 = vunpack.c.l.b16 %v7986
    %v8024 = vunpack.c.l.b16 %v7987
    %v8025 = vunpack.c.l.b16 %v7988
    %v8026 = vunpack.c.l.b16 %v7989
    %v8027 = vunpack.c.l.b16 %v7990
    %v8028 = vunpack.c.l.b16 %v7991
    %v8029 = vunpack.c.l.b16 %v7992
    %v8030 = vunpack.c.l.b16 %v7993
    %v8031 = vunpack.c.l.b16 %v7994
    %v8032 = vunpack.c.l.b16 %v7995
    %v8033 = vunpack.c.l.b16 %v7996
    %v8034 = vunpack.c.l.b16 %v7997
    %v8035 = vunpack.c.l.b16 %v7998
    %v8036 = vunpack.c.l.b16 %v7999
    %v8037 = vunpack.c.l.b16 %v8000
    %v8038 = vpack.c.b16 %v8023, %v8022
    %v8039 = vpack.c.b16 %v8025, %v8024
    %v8040 = vpack.c.b16 %v8027, %v8026
    %v8041 = vpack.c.b16 %v8029, %v8028
    %v8042 = vpack.c.b16 %v8031, %v8030
    %v8043 = vpack.c.b16 %v8033, %v8032
    %v8044 = vpack.c.b16 %v8035, %v8034
    %v8045 = vpack.c.b16 %v8037, %v8036
    %8054 = vmatpush.bf16.msra.mxu0 %v8045
    %8055 = vmatpush.bf16.msra.mxu0 %v8044
    %8056 = vmatpush.bf16.msra.mxu0 %v8043
    %8057 = vmatpush.bf16.msra.mxu0 %v8042
    %8058 = vmatpush.bf16.msra.mxu0 %v8041
    %8059 = vmatpush.bf16.msra.mxu0 %v8040
    %8060 = vmatpush.bf16.msra.mxu0 %v8039
    %8061 = vmatpush.bf16.msra.mxu0 %v8038
    %8062 = vmatmul.bf16.gmra.mxu0 %v8004
    %v8063 = vpop.f32.mrf.mxu0
    %v8064 = vadd.f32 0.0, %v8063
    %v8065 = vpop.f32.mrf.mxu0
    %8066 = vdwg.mxu0
    %v8067 = vadd.f32 %v7983, %v8064
    %s8068 = scalar_lea.vmem [#allocation12], 3264
    %v8069 = vld [vmem:[%s8068] sm:$0xf]
    %v8070 = vld [vmem:[%s8068 + $0x4] sm:$0xf]
    %v8071 = vld [vmem:[%s8068 + $0x8] sm:$0xf]
    %v8072 = vld [vmem:[%s8068 + $0xc] sm:$0xf]
    %v8073 = vld [vmem:[%s8068 + $0x10] sm:$0xf]
    %v8074 = vld [vmem:[%s8068 + $0x14] sm:$0xf]
    %v8075 = vld [vmem:[%s8068 + $0x18] sm:$0xf]
    %v8076 = vld [vmem:[%s8068 + $0x1c] sm:$0xf]
    %v8077 = vld [vmem:[%s8068 + $0x20] sm:$0xf]
    %v8078 = vld [vmem:[%s8068 + $0x24] sm:$0xf]
    %v8079 = vld [vmem:[%s8068 + $0x28] sm:$0xf]
    %v8080 = vld [vmem:[%s8068 + $0x2c] sm:$0xf]
    %v8081 = vld [vmem:[%s8068 + $0x30] sm:$0xf]
    %v8082 = vld [vmem:[%s8068 + $0x34] sm:$0xf]
    %v8083 = vld [vmem:[%s8068 + $0x38] sm:$0xf]
    %v8084 = vld [vmem:[%s8068 + $0x3c] sm:$0xf]
    %v8085 = vrot.slane %v7833, 3
    %v8086 = vrot.slane %v7834, 2
    %v8087 = vsel %vm816, %v8086, %v8085
    %v8088 = vpack.c.b16 %v8087, %v8087
    %v8106 = vunpack.c.l.b16 %v8069
    %v8107 = vunpack.c.l.b16 %v8070
    %v8108 = vunpack.c.l.b16 %v8071
    %v8109 = vunpack.c.l.b16 %v8072
    %v8110 = vunpack.c.l.b16 %v8073
    %v8111 = vunpack.c.l.b16 %v8074
    %v8112 = vunpack.c.l.b16 %v8075
    %v8113 = vunpack.c.l.b16 %v8076
    %v8114 = vunpack.c.l.b16 %v8077
    %v8115 = vunpack.c.l.b16 %v8078
    %v8116 = vunpack.c.l.b16 %v8079
    %v8117 = vunpack.c.l.b16 %v8080
    %v8118 = vunpack.c.l.b16 %v8081
    %v8119 = vunpack.c.l.b16 %v8082
    %v8120 = vunpack.c.l.b16 %v8083
    %v8121 = vunpack.c.l.b16 %v8084
    %v8122 = vpack.c.b16 %v8107, %v8106
    %v8123 = vpack.c.b16 %v8109, %v8108
    %v8124 = vpack.c.b16 %v8111, %v8110
    %v8125 = vpack.c.b16 %v8113, %v8112
    %v8126 = vpack.c.b16 %v8115, %v8114
    %v8127 = vpack.c.b16 %v8117, %v8116
    %v8128 = vpack.c.b16 %v8119, %v8118
    %v8129 = vpack.c.b16 %v8121, %v8120
    %8138 = vmatpush.bf16.msra.mxu0 %v8129
    %8139 = vmatpush.bf16.msra.mxu0 %v8128
    %8140 = vmatpush.bf16.msra.mxu0 %v8127
    %8141 = vmatpush.bf16.msra.mxu0 %v8126
    %8142 = vmatpush.bf16.msra.mxu0 %v8125
    %8143 = vmatpush.bf16.msra.mxu0 %v8124
    %8144 = vmatpush.bf16.msra.mxu0 %v8123
    %8145 = vmatpush.bf16.msra.mxu0 %v8122
    %8146 = vmatmul.bf16.gmra.mxu0 %v8088
    %v8147 = vpop.f32.mrf.mxu0
    %v8148 = vadd.f32 0.0, %v8147
    %v8149 = vpop.f32.mrf.mxu0
    %8150 = vdwg.mxu0
    %v8151 = vadd.f32 %v8067, %v8148
    %s8152 = scalar_lea.vmem [#allocation12], 3328
    %v8153 = vld [vmem:[%s8152] sm:$0xf]
    %v8154 = vld [vmem:[%s8152 + $0x4] sm:$0xf]
    %v8155 = vld [vmem:[%s8152 + $0x8] sm:$0xf]
    %v8156 = vld [vmem:[%s8152 + $0xc] sm:$0xf]
    %v8157 = vld [vmem:[%s8152 + $0x10] sm:$0xf]
    %v8158 = vld [vmem:[%s8152 + $0x14] sm:$0xf]
    %v8159 = vld [vmem:[%s8152 + $0x18] sm:$0xf]
    %v8160 = vld [vmem:[%s8152 + $0x1c] sm:$0xf]
    %v8161 = vld [vmem:[%s8152 + $0x20] sm:$0xf]
    %v8162 = vld [vmem:[%s8152 + $0x24] sm:$0xf]
    %v8163 = vld [vmem:[%s8152 + $0x28] sm:$0xf]
    %v8164 = vld [vmem:[%s8152 + $0x2c] sm:$0xf]
    %v8165 = vld [vmem:[%s8152 + $0x30] sm:$0xf]
    %v8166 = vld [vmem:[%s8152 + $0x34] sm:$0xf]
    %v8167 = vld [vmem:[%s8152 + $0x38] sm:$0xf]
    %v8168 = vld [vmem:[%s8152 + $0x3c] sm:$0xf]
    %v8169 = vrot.slane %v7833, 4
    %v8170 = vrot.slane %v7834, 3
    %v8171 = vsel %vm816, %v8170, %v8169
    %v8172 = vpack.c.b16 %v8171, %v8171
    %v8190 = vunpack.c.l.b16 %v8153
    %v8191 = vunpack.c.l.b16 %v8154
    %v8192 = vunpack.c.l.b16 %v8155
    %v8193 = vunpack.c.l.b16 %v8156
    %v8194 = vunpack.c.l.b16 %v8157
    %v8195 = vunpack.c.l.b16 %v8158
    %v8196 = vunpack.c.l.b16 %v8159
    %v8197 = vunpack.c.l.b16 %v8160
    %v8198 = vunpack.c.l.b16 %v8161
    %v8199 = vunpack.c.l.b16 %v8162
    %v8200 = vunpack.c.l.b16 %v8163
    %v8201 = vunpack.c.l.b16 %v8164
    %v8202 = vunpack.c.l.b16 %v8165
    %v8203 = vunpack.c.l.b16 %v8166
    %v8204 = vunpack.c.l.b16 %v8167
    %v8205 = vunpack.c.l.b16 %v8168
    %v8206 = vpack.c.b16 %v8191, %v8190
    %v8207 = vpack.c.b16 %v8193, %v8192
    %v8208 = vpack.c.b16 %v8195, %v8194
    %v8209 = vpack.c.b16 %v8197, %v8196
    %v8210 = vpack.c.b16 %v8199, %v8198
    %v8211 = vpack.c.b16 %v8201, %v8200
    %v8212 = vpack.c.b16 %v8203, %v8202
    %v8213 = vpack.c.b16 %v8205, %v8204
    %8222 = vmatpush.bf16.msra.mxu0 %v8213
    %8223 = vmatpush.bf16.msra.mxu0 %v8212
    %8224 = vmatpush.bf16.msra.mxu0 %v8211
    %8225 = vmatpush.bf16.msra.mxu0 %v8210
    %8226 = vmatpush.bf16.msra.mxu0 %v8209
    %8227 = vmatpush.bf16.msra.mxu0 %v8208
    %8228 = vmatpush.bf16.msra.mxu0 %v8207
    %8229 = vmatpush.bf16.msra.mxu0 %v8206
    %8230 = vmatmul.bf16.gmra.mxu0 %v8172
    %v8231 = vpop.f32.mrf.mxu0
    %v8232 = vadd.f32 0.0, %v8231
    %v8233 = vpop.f32.mrf.mxu0
    %8234 = vdwg.mxu0
    %v8235 = vadd.f32 %v8151, %v8232
    %s8236 = scalar_lea.vmem [#allocation12], 3392
    %v8237 = vld [vmem:[%s8236] sm:$0xf]
    %v8238 = vld [vmem:[%s8236 + $0x4] sm:$0xf]
    %v8239 = vld [vmem:[%s8236 + $0x8] sm:$0xf]
    %v8240 = vld [vmem:[%s8236 + $0xc] sm:$0xf]
    %v8241 = vld [vmem:[%s8236 + $0x10] sm:$0xf]
    %v8242 = vld [vmem:[%s8236 + $0x14] sm:$0xf]
    %v8243 = vld [vmem:[%s8236 + $0x18] sm:$0xf]
    %v8244 = vld [vmem:[%s8236 + $0x1c] sm:$0xf]
    %v8245 = vld [vmem:[%s8236 + $0x20] sm:$0xf]
    %v8246 = vld [vmem:[%s8236 + $0x24] sm:$0xf]
    %v8247 = vld [vmem:[%s8236 + $0x28] sm:$0xf]
    %v8248 = vld [vmem:[%s8236 + $0x2c] sm:$0xf]
    %v8249 = vld [vmem:[%s8236 + $0x30] sm:$0xf]
    %v8250 = vld [vmem:[%s8236 + $0x34] sm:$0xf]
    %v8251 = vld [vmem:[%s8236 + $0x38] sm:$0xf]
    %v8252 = vld [vmem:[%s8236 + $0x3c] sm:$0xf]
    %v8253 = vrot.slane %v7833, 5
    %v8254 = vrot.slane %v7834, 4
    %v8255 = vsel %vm816, %v8254, %v8253
    %v8256 = vpack.c.b16 %v8255, %v8255
    %v8274 = vunpack.c.l.b16 %v8237
    %v8275 = vunpack.c.l.b16 %v8238
    %v8276 = vunpack.c.l.b16 %v8239
    %v8277 = vunpack.c.l.b16 %v8240
    %v8278 = vunpack.c.l.b16 %v8241
    %v8279 = vunpack.c.l.b16 %v8242
    %v8280 = vunpack.c.l.b16 %v8243
    %v8281 = vunpack.c.l.b16 %v8244
    %v8282 = vunpack.c.l.b16 %v8245
    %v8283 = vunpack.c.l.b16 %v8246
    %v8284 = vunpack.c.l.b16 %v8247
    %v8285 = vunpack.c.l.b16 %v8248
    %v8286 = vunpack.c.l.b16 %v8249
    %v8287 = vunpack.c.l.b16 %v8250
    %v8288 = vunpack.c.l.b16 %v8251
    %v8289 = vunpack.c.l.b16 %v8252
    %v8290 = vpack.c.b16 %v8275, %v8274
    %v8291 = vpack.c.b16 %v8277, %v8276
    %v8292 = vpack.c.b16 %v8279, %v8278
    %v8293 = vpack.c.b16 %v8281, %v8280
    %v8294 = vpack.c.b16 %v8283, %v8282
    %v8295 = vpack.c.b16 %v8285, %v8284
    %v8296 = vpack.c.b16 %v8287, %v8286
    %v8297 = vpack.c.b16 %v8289, %v8288
    %8306 = vmatpush.bf16.msra.mxu0 %v8297
    %8307 = vmatpush.bf16.msra.mxu0 %v8296
    %8308 = vmatpush.bf16.msra.mxu0 %v8295
    %8309 = vmatpush.bf16.msra.mxu0 %v8294
    %8310 = vmatpush.bf16.msra.mxu0 %v8293
    %8311 = vmatpush.bf16.msra.mxu0 %v8292
    %8312 = vmatpush.bf16.msra.mxu0 %v8291
    %8313 = vmatpush.bf16.msra.mxu0 %v8290
    %8314 = vmatmul.bf16.gmra.mxu0 %v8256
    %v8315 = vpop.f32.mrf.mxu0
    %v8316 = vadd.f32 0.0, %v8315
    %v8317 = vpop.f32.mrf.mxu0
    %8318 = vdwg.mxu0
    %v8319 = vadd.f32 %v8235, %v8316
    %s8320 = scalar_lea.vmem [#allocation12], 3456
    %v8321 = vld [vmem:[%s8320] sm:$0xf]
    %v8322 = vld [vmem:[%s8320 + $0x4] sm:$0xf]
    %v8323 = vld [vmem:[%s8320 + $0x8] sm:$0xf]
    %v8324 = vld [vmem:[%s8320 + $0xc] sm:$0xf]
    %v8325 = vld [vmem:[%s8320 + $0x10] sm:$0xf]
    %v8326 = vld [vmem:[%s8320 + $0x14] sm:$0xf]
    %v8327 = vld [vmem:[%s8320 + $0x18] sm:$0xf]
    %v8328 = vld [vmem:[%s8320 + $0x1c] sm:$0xf]
    %v8329 = vld [vmem:[%s8320 + $0x20] sm:$0xf]
    %v8330 = vld [vmem:[%s8320 + $0x24] sm:$0xf]
    %v8331 = vld [vmem:[%s8320 + $0x28] sm:$0xf]
    %v8332 = vld [vmem:[%s8320 + $0x2c] sm:$0xf]
    %v8333 = vld [vmem:[%s8320 + $0x30] sm:$0xf]
    %v8334 = vld [vmem:[%s8320 + $0x34] sm:$0xf]
    %v8335 = vld [vmem:[%s8320 + $0x38] sm:$0xf]
    %v8336 = vld [vmem:[%s8320 + $0x3c] sm:$0xf]
    %v8337 = vrot.slane %v7833, 6
    %v8338 = vrot.slane %v7834, 5
    %v8339 = vsel %vm816, %v8338, %v8337
    %v8340 = vpack.c.b16 %v8339, %v8339
    %v8358 = vunpack.c.l.b16 %v8321
    %v8359 = vunpack.c.l.b16 %v8322
    %v8360 = vunpack.c.l.b16 %v8323
    %v8361 = vunpack.c.l.b16 %v8324
    %v8362 = vunpack.c.l.b16 %v8325
    %v8363 = vunpack.c.l.b16 %v8326
    %v8364 = vunpack.c.l.b16 %v8327
    %v8365 = vunpack.c.l.b16 %v8328
    %v8366 = vunpack.c.l.b16 %v8329
    %v8367 = vunpack.c.l.b16 %v8330
    %v8368 = vunpack.c.l.b16 %v8331
    %v8369 = vunpack.c.l.b16 %v8332
    %v8370 = vunpack.c.l.b16 %v8333
    %v8371 = vunpack.c.l.b16 %v8334
    %v8372 = vunpack.c.l.b16 %v8335
    %v8373 = vunpack.c.l.b16 %v8336
    %v8374 = vpack.c.b16 %v8359, %v8358
    %v8375 = vpack.c.b16 %v8361, %v8360
    %v8376 = vpack.c.b16 %v8363, %v8362
    %v8377 = vpack.c.b16 %v8365, %v8364
    %v8378 = vpack.c.b16 %v8367, %v8366
    %v8379 = vpack.c.b16 %v8369, %v8368
    %v8380 = vpack.c.b16 %v8371, %v8370
    %v8381 = vpack.c.b16 %v8373, %v8372
    %8390 = vmatpush.bf16.msra.mxu0 %v8381
    %8391 = vmatpush.bf16.msra.mxu0 %v8380
    %8392 = vmatpush.bf16.msra.mxu0 %v8379
    %8393 = vmatpush.bf16.msra.mxu0 %v8378
    %8394 = vmatpush.bf16.msra.mxu0 %v8377
    %8395 = vmatpush.bf16.msra.mxu0 %v8376
    %8396 = vmatpush.bf16.msra.mxu0 %v8375
    %8397 = vmatpush.bf16.msra.mxu0 %v8374
    %8398 = vmatmul.bf16.gmra.mxu0 %v8340
    %v8399 = vpop.f32.mrf.mxu0
    %v8400 = vadd.f32 0.0, %v8399
    %v8401 = vpop.f32.mrf.mxu0
    %8402 = vdwg.mxu0
    %v8403 = vadd.f32 %v8319, %v8400
    %s8404 = scalar_lea.vmem [#allocation12], 3520
    %v8405 = vld [vmem:[%s8404] sm:$0xf]
    %v8406 = vld [vmem:[%s8404 + $0x4] sm:$0xf]
    %v8407 = vld [vmem:[%s8404 + $0x8] sm:$0xf]
    %v8408 = vld [vmem:[%s8404 + $0xc] sm:$0xf]
    %v8409 = vld [vmem:[%s8404 + $0x10] sm:$0xf]
    %v8410 = vld [vmem:[%s8404 + $0x14] sm:$0xf]
    %v8411 = vld [vmem:[%s8404 + $0x18] sm:$0xf]
    %v8412 = vld [vmem:[%s8404 + $0x1c] sm:$0xf]
    %v8413 = vld [vmem:[%s8404 + $0x20] sm:$0xf]
    %v8414 = vld [vmem:[%s8404 + $0x24] sm:$0xf]
    %v8415 = vld [vmem:[%s8404 + $0x28] sm:$0xf]
    %v8416 = vld [vmem:[%s8404 + $0x2c] sm:$0xf]
    %v8417 = vld [vmem:[%s8404 + $0x30] sm:$0xf]
    %v8418 = vld [vmem:[%s8404 + $0x34] sm:$0xf]
    %v8419 = vld [vmem:[%s8404 + $0x38] sm:$0xf]
    %v8420 = vld [vmem:[%s8404 + $0x3c] sm:$0xf]
    %v8421 = vrot.slane %v7833, 7
    %v8422 = vrot.slane %v7834, 6
    %v8423 = vsel %vm816, %v8422, %v8421
    %v8424 = vpack.c.b16 %v8423, %v8423
    %v8442 = vunpack.c.l.b16 %v8405
    %v8443 = vunpack.c.l.b16 %v8406
    %v8444 = vunpack.c.l.b16 %v8407
    %v8445 = vunpack.c.l.b16 %v8408
    %v8446 = vunpack.c.l.b16 %v8409
    %v8447 = vunpack.c.l.b16 %v8410
    %v8448 = vunpack.c.l.b16 %v8411
    %v8449 = vunpack.c.l.b16 %v8412
    %v8450 = vunpack.c.l.b16 %v8413
    %v8451 = vunpack.c.l.b16 %v8414
    %v8452 = vunpack.c.l.b16 %v8415
    %v8453 = vunpack.c.l.b16 %v8416
    %v8454 = vunpack.c.l.b16 %v8417
    %v8455 = vunpack.c.l.b16 %v8418
    %v8456 = vunpack.c.l.b16 %v8419
    %v8457 = vunpack.c.l.b16 %v8420
    %v8458 = vpack.c.b16 %v8443, %v8442
    %v8459 = vpack.c.b16 %v8445, %v8444
    %v8460 = vpack.c.b16 %v8447, %v8446
    %v8461 = vpack.c.b16 %v8449, %v8448
    %v8462 = vpack.c.b16 %v8451, %v8450
    %v8463 = vpack.c.b16 %v8453, %v8452
    %v8464 = vpack.c.b16 %v8455, %v8454
    %v8465 = vpack.c.b16 %v8457, %v8456
    %8474 = vmatpush.bf16.msra.mxu0 %v8465
    %8475 = vmatpush.bf16.msra.mxu0 %v8464
    %8476 = vmatpush.bf16.msra.mxu0 %v8463
    %8477 = vmatpush.bf16.msra.mxu0 %v8462
    %8478 = vmatpush.bf16.msra.mxu0 %v8461
    %8479 = vmatpush.bf16.msra.mxu0 %v8460
    %8480 = vmatpush.bf16.msra.mxu0 %v8459
    %8481 = vmatpush.bf16.msra.mxu0 %v8458
    %8482 = vmatmul.bf16.gmra.mxu0 %v8424
    %v8483 = vpop.f32.mrf.mxu0
    %v8484 = vadd.f32 0.0, %v8483
    %v8485 = vpop.f32.mrf.mxu0
    %8486 = vdwg.mxu0
    %v8487 = vadd.f32 %v8403, %v8484
    %v8488 = vld [vmem:[#allocation2] sm:$0xff]
    %v8489 = vld [vmem:[#allocation2 + $0x8] sm:$0xf]
    %v8490 = vld [vmem:[#allocation2 + $0x10] sm:$0xff]
    %v8491 = vld [vmem:[#allocation2 + $0x18] sm:$0xf]
    %v8492 = vpack.c.bf16 %v8490, %v8488
    %s8493 = scalar_lea.vmem [#allocation8], 2240
    %v8494 = vld [vmem:[%s8493] sm:$0xf]
    %v8495 = vld [vmem:[%s8493 + $0x4] sm:$0xf]
    %v8496 = vld [vmem:[%s8493 + $0x8] sm:$0xf]
    %v8497 = vld [vmem:[%s8493 + $0xc] sm:$0xf]
    %v8498 = vld [vmem:[%s8493 + $0x10] sm:$0xf]
    %v8499 = vld [vmem:[%s8493 + $0x14] sm:$0xf]
    %v8500 = vld [vmem:[%s8493 + $0x18] sm:$0xf]
    %v8501 = vld [vmem:[%s8493 + $0x1c] sm:$0xf]
    %v8502 = vld [vmem:[%s8493 + $0x20] sm:$0xf]
    %v8503 = vld [vmem:[%s8493 + $0x24] sm:$0xf]
    %v8504 = vld [vmem:[%s8493 + $0x28] sm:$0xf]
    %v8505 = vld [vmem:[%s8493 + $0x2c] sm:$0xf]
    %v8506 = vld [vmem:[%s8493 + $0x30] sm:$0xf]
    %v8507 = vld [vmem:[%s8493 + $0x34] sm:$0xf]
    %v8508 = vld [vmem:[%s8493 + $0x38] sm:$0xf]
    %v8509 = vld [vmem:[%s8493 + $0x3c] sm:$0xf]
    %v8514 = vrot.slane %v8488, 1
    %v8515 = vrot.slane %v8489, 1
    %v8516 = vsel %vm215, %v8514, %v8515
    %v8517 = vrot.slane %v8490, 1
    %v8518 = vrot.slane %v8491, 1
    %v8519 = vsel %vm215, %v8517, %v8518
    %v8522 = vpack.c.bf16 %v8519, %v8516
    %s8523 = scalar_lea.vmem [#allocation8], 2304
    %v8524 = vld [vmem:[%s8523] sm:$0xf]
    %v8525 = vld [vmem:[%s8523 + $0x4] sm:$0xf]
    %v8526 = vld [vmem:[%s8523 + $0x8] sm:$0xf]
    %v8527 = vld [vmem:[%s8523 + $0xc] sm:$0xf]
    %v8528 = vld [vmem:[%s8523 + $0x10] sm:$0xf]
    %v8529 = vld [vmem:[%s8523 + $0x14] sm:$0xf]
    %v8530 = vld [vmem:[%s8523 + $0x18] sm:$0xf]
    %v8531 = vld [vmem:[%s8523 + $0x1c] sm:$0xf]
    %v8532 = vld [vmem:[%s8523 + $0x20] sm:$0xf]
    %v8533 = vld [vmem:[%s8523 + $0x24] sm:$0xf]
    %v8534 = vld [vmem:[%s8523 + $0x28] sm:$0xf]
    %v8535 = vld [vmem:[%s8523 + $0x2c] sm:$0xf]
    %v8536 = vld [vmem:[%s8523 + $0x30] sm:$0xf]
    %v8537 = vld [vmem:[%s8523 + $0x34] sm:$0xf]
    %v8538 = vld [vmem:[%s8523 + $0x38] sm:$0xf]
    %v8539 = vld [vmem:[%s8523 + $0x3c] sm:$0xf]
    %v8556 = vunpack.c.l.b16 %v8524
    %v8557 = vunpack.c.l.b16 %v8525
    %v8558 = vunpack.c.l.b16 %v8526
    %v8559 = vunpack.c.l.b16 %v8527
    %v8560 = vunpack.c.l.b16 %v8528
    %v8561 = vunpack.c.l.b16 %v8529
    %v8562 = vunpack.c.l.b16 %v8530
    %v8563 = vunpack.c.l.b16 %v8531
    %v8564 = vunpack.c.l.b16 %v8532
    %v8565 = vunpack.c.l.b16 %v8533
    %v8566 = vunpack.c.l.b16 %v8534
    %v8567 = vunpack.c.l.b16 %v8535
    %v8568 = vunpack.c.l.b16 %v8536
    %v8569 = vunpack.c.l.b16 %v8537
    %v8570 = vunpack.c.l.b16 %v8538
    %v8571 = vunpack.c.l.b16 %v8539
    %v8572 = vpack.c.b16 %v8557, %v8556
    %v8573 = vpack.c.b16 %v8559, %v8558
    %v8574 = vpack.c.b16 %v8561, %v8560
    %v8575 = vpack.c.b16 %v8563, %v8562
    %v8576 = vpack.c.b16 %v8565, %v8564
    %v8577 = vpack.c.b16 %v8567, %v8566
    %v8578 = vpack.c.b16 %v8569, %v8568
    %v8579 = vpack.c.b16 %v8571, %v8570
    %8588 = vmatpush.bf16.msra.mxu0 %v8579
    %8589 = vmatpush.bf16.msra.mxu0 %v8578
    %8590 = vmatpush.bf16.msra.mxu0 %v8577
    %8591 = vmatpush.bf16.msra.mxu0 %v8576
    %8592 = vmatpush.bf16.msra.mxu0 %v8575
    %8593 = vmatpush.bf16.msra.mxu0 %v8574
    %8594 = vmatpush.bf16.msra.mxu0 %v8573
    %8595 = vmatpush.bf16.msra.mxu0 %v8572
    %8596 = vmatmul.bf16.gmra.mxu0 %v8522
    %v8597 = vpop.f32.mrf.mxu0
    %v8598 = vadd.f32 0.0, %v8597
    %v8599 = vpop.f32.mrf.mxu0
    %v8600 = vadd.f32 0.0, %v8599
    %8601 = vdwg.mxu0
    %v8618 = vunpack.c.l.b16 %v8494
    %v8619 = vunpack.c.l.b16 %v8495
    %v8620 = vunpack.c.l.b16 %v8496
    %v8621 = vunpack.c.l.b16 %v8497
    %v8622 = vunpack.c.l.b16 %v8498
    %v8623 = vunpack.c.l.b16 %v8499
    %v8624 = vunpack.c.l.b16 %v8500
    %v8625 = vunpack.c.l.b16 %v8501
    %v8626 = vunpack.c.l.b16 %v8502
    %v8627 = vunpack.c.l.b16 %v8503
    %v8628 = vunpack.c.l.b16 %v8504
    %v8629 = vunpack.c.l.b16 %v8505
    %v8630 = vunpack.c.l.b16 %v8506
    %v8631 = vunpack.c.l.b16 %v8507
    %v8632 = vunpack.c.l.b16 %v8508
    %v8633 = vunpack.c.l.b16 %v8509
    %v8634 = vpack.c.b16 %v8619, %v8618
    %v8635 = vpack.c.b16 %v8621, %v8620
    %v8636 = vpack.c.b16 %v8623, %v8622
    %v8637 = vpack.c.b16 %v8625, %v8624
    %v8638 = vpack.c.b16 %v8627, %v8626
    %v8639 = vpack.c.b16 %v8629, %v8628
    %v8640 = vpack.c.b16 %v8631, %v8630
    %v8641 = vpack.c.b16 %v8633, %v8632
    %8650 = vmatpush.bf16.msra.mxu0 %v8641
    %8651 = vmatpush.bf16.msra.mxu0 %v8640
    %8652 = vmatpush.bf16.msra.mxu0 %v8639
    %8653 = vmatpush.bf16.msra.mxu0 %v8638
    %8654 = vmatpush.bf16.msra.mxu0 %v8637
    %8655 = vmatpush.bf16.msra.mxu0 %v8636
    %8656 = vmatpush.bf16.msra.mxu0 %v8635
    %8657 = vmatpush.bf16.msra.mxu0 %v8634
    %8658 = vmatmul.bf16.gmra.mxu0 %v8492
    %v8659 = vpop.f32.mrf.mxu0
    %v8660 = vadd.f32 %v8598, %v8659
    %v8661 = vpop.f32.mrf.mxu0
    %v8662 = vadd.f32 %v8600, %v8661
    %8663 = vdwg.mxu0
    %v8664 = vrot.slane %v8488, 2
    %v8665 = vrot.slane %v8489, 2
    %v8666 = vsel %vm234, %v8664, %v8665
    %v8667 = vrot.slane %v8490, 2
    %v8668 = vrot.slane %v8491, 2
    %v8669 = vsel %vm234, %v8667, %v8668
    %v8672 = vpack.c.bf16 %v8669, %v8666
    %s8673 = scalar_lea.vmem [#allocation8], 2368
    %v8674 = vld [vmem:[%s8673] sm:$0xf]
    %v8675 = vld [vmem:[%s8673 + $0x4] sm:$0xf]
    %v8676 = vld [vmem:[%s8673 + $0x8] sm:$0xf]
    %v8677 = vld [vmem:[%s8673 + $0xc] sm:$0xf]
    %v8678 = vld [vmem:[%s8673 + $0x10] sm:$0xf]
    %v8679 = vld [vmem:[%s8673 + $0x14] sm:$0xf]
    %v8680 = vld [vmem:[%s8673 + $0x18] sm:$0xf]
    %v8681 = vld [vmem:[%s8673 + $0x1c] sm:$0xf]
    %v8682 = vld [vmem:[%s8673 + $0x20] sm:$0xf]
    %v8683 = vld [vmem:[%s8673 + $0x24] sm:$0xf]
    %v8684 = vld [vmem:[%s8673 + $0x28] sm:$0xf]
    %v8685 = vld [vmem:[%s8673 + $0x2c] sm:$0xf]
    %v8686 = vld [vmem:[%s8673 + $0x30] sm:$0xf]
    %v8687 = vld [vmem:[%s8673 + $0x34] sm:$0xf]
    %v8688 = vld [vmem:[%s8673 + $0x38] sm:$0xf]
    %v8689 = vld [vmem:[%s8673 + $0x3c] sm:$0xf]
    %v8706 = vunpack.c.l.b16 %v8674
    %v8707 = vunpack.c.l.b16 %v8675
    %v8708 = vunpack.c.l.b16 %v8676
    %v8709 = vunpack.c.l.b16 %v8677
    %v8710 = vunpack.c.l.b16 %v8678
    %v8711 = vunpack.c.l.b16 %v8679
    %v8712 = vunpack.c.l.b16 %v8680
    %v8713 = vunpack.c.l.b16 %v8681
    %v8714 = vunpack.c.l.b16 %v8682
    %v8715 = vunpack.c.l.b16 %v8683
    %v8716 = vunpack.c.l.b16 %v8684
    %v8717 = vunpack.c.l.b16 %v8685
    %v8718 = vunpack.c.l.b16 %v8686
    %v8719 = vunpack.c.l.b16 %v8687
    %v8720 = vunpack.c.l.b16 %v8688
    %v8721 = vunpack.c.l.b16 %v8689
    %v8722 = vpack.c.b16 %v8707, %v8706
    %v8723 = vpack.c.b16 %v8709, %v8708
    %v8724 = vpack.c.b16 %v8711, %v8710
    %v8725 = vpack.c.b16 %v8713, %v8712
    %v8726 = vpack.c.b16 %v8715, %v8714
    %v8727 = vpack.c.b16 %v8717, %v8716
    %v8728 = vpack.c.b16 %v8719, %v8718
    %v8729 = vpack.c.b16 %v8721, %v8720
    %8738 = vmatpush.bf16.msra.mxu0 %v8729
    %8739 = vmatpush.bf16.msra.mxu0 %v8728
    %8740 = vmatpush.bf16.msra.mxu0 %v8727
    %8741 = vmatpush.bf16.msra.mxu0 %v8726
    %8742 = vmatpush.bf16.msra.mxu0 %v8725
    %8743 = vmatpush.bf16.msra.mxu0 %v8724
    %8744 = vmatpush.bf16.msra.mxu0 %v8723
    %8745 = vmatpush.bf16.msra.mxu0 %v8722
    %8746 = vmatmul.bf16.gmra.mxu0 %v8672
    %v8747 = vpop.f32.mrf.mxu0
    %v8748 = vadd.f32 0.0, %v8747
    %v8749 = vpop.f32.mrf.mxu0
    %v8750 = vadd.f32 0.0, %v8749
    %8751 = vdwg.mxu0
    %v8752 = vadd.f32 %v8660, %v8748
    %v8753 = vadd.f32 %v8662, %v8750
    %v8754 = vrot.slane %v8488, 3
    %v8755 = vrot.slane %v8489, 3
    %v8756 = vsel %vm538, %v8754, %v8755
    %v8757 = vrot.slane %v8490, 3
    %v8758 = vrot.slane %v8491, 3
    %v8759 = vsel %vm538, %v8757, %v8758
    %v8762 = vpack.c.bf16 %v8759, %v8756
    %s8763 = scalar_lea.vmem [#allocation8], 2432
    %v8764 = vld [vmem:[%s8763] sm:$0xf]
    %v8765 = vld [vmem:[%s8763 + $0x4] sm:$0xf]
    %v8766 = vld [vmem:[%s8763 + $0x8] sm:$0xf]
    %v8767 = vld [vmem:[%s8763 + $0xc] sm:$0xf]
    %v8768 = vld [vmem:[%s8763 + $0x10] sm:$0xf]
    %v8769 = vld [vmem:[%s8763 + $0x14] sm:$0xf]
    %v8770 = vld [vmem:[%s8763 + $0x18] sm:$0xf]
    %v8771 = vld [vmem:[%s8763 + $0x1c] sm:$0xf]
    %v8772 = vld [vmem:[%s8763 + $0x20] sm:$0xf]
    %v8773 = vld [vmem:[%s8763 + $0x24] sm:$0xf]
    %v8774 = vld [vmem:[%s8763 + $0x28] sm:$0xf]
    %v8775 = vld [vmem:[%s8763 + $0x2c] sm:$0xf]
    %v8776 = vld [vmem:[%s8763 + $0x30] sm:$0xf]
    %v8777 = vld [vmem:[%s8763 + $0x34] sm:$0xf]
    %v8778 = vld [vmem:[%s8763 + $0x38] sm:$0xf]
    %v8779 = vld [vmem:[%s8763 + $0x3c] sm:$0xf]
    %v8796 = vunpack.c.l.b16 %v8764
    %v8797 = vunpack.c.l.b16 %v8765
    %v8798 = vunpack.c.l.b16 %v8766
    %v8799 = vunpack.c.l.b16 %v8767
    %v8800 = vunpack.c.l.b16 %v8768
    %v8801 = vunpack.c.l.b16 %v8769
    %v8802 = vunpack.c.l.b16 %v8770
    %v8803 = vunpack.c.l.b16 %v8771
    %v8804 = vunpack.c.l.b16 %v8772
    %v8805 = vunpack.c.l.b16 %v8773
    %v8806 = vunpack.c.l.b16 %v8774
    %v8807 = vunpack.c.l.b16 %v8775
    %v8808 = vunpack.c.l.b16 %v8776
    %v8809 = vunpack.c.l.b16 %v8777
    %v8810 = vunpack.c.l.b16 %v8778
    %v8811 = vunpack.c.l.b16 %v8779
    %v8812 = vpack.c.b16 %v8797, %v8796
    %v8813 = vpack.c.b16 %v8799, %v8798
    %v8814 = vpack.c.b16 %v8801, %v8800
    %v8815 = vpack.c.b16 %v8803, %v8802
    %v8816 = vpack.c.b16 %v8805, %v8804
    %v8817 = vpack.c.b16 %v8807, %v8806
    %v8818 = vpack.c.b16 %v8809, %v8808
    %v8819 = vpack.c.b16 %v8811, %v8810
    %8828 = vmatpush.bf16.msra.mxu0 %v8819
    %8829 = vmatpush.bf16.msra.mxu0 %v8818
    %8830 = vmatpush.bf16.msra.mxu0 %v8817
    %8831 = vmatpush.bf16.msra.mxu0 %v8816
    %8832 = vmatpush.bf16.msra.mxu0 %v8815
    %8833 = vmatpush.bf16.msra.mxu0 %v8814
    %8834 = vmatpush.bf16.msra.mxu0 %v8813
    %8835 = vmatpush.bf16.msra.mxu0 %v8812
    %8836 = vmatmul.bf16.gmra.mxu0 %v8762
    %v8837 = vpop.f32.mrf.mxu0
    %v8838 = vadd.f32 0.0, %v8837
    %v8839 = vpop.f32.mrf.mxu0
    %v8840 = vadd.f32 0.0, %v8839
    %8841 = vdwg.mxu0
    %v8842 = vadd.f32 %v8752, %v8838
    %v8843 = vadd.f32 %v8753, %v8840
    %v8844 = vrot.slane %v8488, 4
    %v8845 = vrot.slane %v8489, 4
    %v8846 = vsel %vm629, %v8844, %v8845
    %v8847 = vrot.slane %v8490, 4
    %v8848 = vrot.slane %v8491, 4
    %v8849 = vsel %vm629, %v8847, %v8848
    %v8852 = vpack.c.bf16 %v8849, %v8846
    %s8853 = scalar_lea.vmem [#allocation8], 2496
    %v8854 = vld [vmem:[%s8853] sm:$0xf]
    %v8855 = vld [vmem:[%s8853 + $0x4] sm:$0xf]
    %v8856 = vld [vmem:[%s8853 + $0x8] sm:$0xf]
    %v8857 = vld [vmem:[%s8853 + $0xc] sm:$0xf]
    %v8858 = vld [vmem:[%s8853 + $0x10] sm:$0xf]
    %v8859 = vld [vmem:[%s8853 + $0x14] sm:$0xf]
    %v8860 = vld [vmem:[%s8853 + $0x18] sm:$0xf]
    %v8861 = vld [vmem:[%s8853 + $0x1c] sm:$0xf]
    %v8862 = vld [vmem:[%s8853 + $0x20] sm:$0xf]
    %v8863 = vld [vmem:[%s8853 + $0x24] sm:$0xf]
    %v8864 = vld [vmem:[%s8853 + $0x28] sm:$0xf]
    %v8865 = vld [vmem:[%s8853 + $0x2c] sm:$0xf]
    %v8866 = vld [vmem:[%s8853 + $0x30] sm:$0xf]
    %v8867 = vld [vmem:[%s8853 + $0x34] sm:$0xf]
    %v8868 = vld [vmem:[%s8853 + $0x38] sm:$0xf]
    %v8869 = vld [vmem:[%s8853 + $0x3c] sm:$0xf]
    %v8886 = vunpack.c.l.b16 %v8854
    %v8887 = vunpack.c.l.b16 %v8855
    %v8888 = vunpack.c.l.b16 %v8856
    %v8889 = vunpack.c.l.b16 %v8857
    %v8890 = vunpack.c.l.b16 %v8858
    %v8891 = vunpack.c.l.b16 %v8859
    %v8892 = vunpack.c.l.b16 %v8860
    %v8893 = vunpack.c.l.b16 %v8861
    %v8894 = vunpack.c.l.b16 %v8862
    %v8895 = vunpack.c.l.b16 %v8863
    %v8896 = vunpack.c.l.b16 %v8864
    %v8897 = vunpack.c.l.b16 %v8865
    %v8898 = vunpack.c.l.b16 %v8866
    %v8899 = vunpack.c.l.b16 %v8867
    %v8900 = vunpack.c.l.b16 %v8868
    %v8901 = vunpack.c.l.b16 %v8869
    %v8902 = vpack.c.b16 %v8887, %v8886
    %v8903 = vpack.c.b16 %v8889, %v8888
    %v8904 = vpack.c.b16 %v8891, %v8890
    %v8905 = vpack.c.b16 %v8893, %v8892
    %v8906 = vpack.c.b16 %v8895, %v8894
    %v8907 = vpack.c.b16 %v8897, %v8896
    %v8908 = vpack.c.b16 %v8899, %v8898
    %v8909 = vpack.c.b16 %v8901, %v8900
    %8918 = vmatpush.bf16.msra.mxu0 %v8909
    %8919 = vmatpush.bf16.msra.mxu0 %v8908
    %8920 = vmatpush.bf16.msra.mxu0 %v8907
    %8921 = vmatpush.bf16.msra.mxu0 %v8906
    %8922 = vmatpush.bf16.msra.mxu0 %v8905
    %8923 = vmatpush.bf16.msra.mxu0 %v8904
    %8924 = vmatpush.bf16.msra.mxu0 %v8903
    %8925 = vmatpush.bf16.msra.mxu0 %v8902
    %8926 = vmatmul.bf16.gmra.mxu0 %v8852
    %v8927 = vpop.f32.mrf.mxu0
    %v8928 = vadd.f32 0.0, %v8927
    %v8929 = vpop.f32.mrf.mxu0
    %v8930 = vadd.f32 0.0, %v8929
    %8931 = vdwg.mxu0
    %v8932 = vadd.f32 %v8842, %v8928
    %v8933 = vadd.f32 %v8843, %v8930
    %v8934 = vadd.f32 %v8932, %v8933
    %v8935 = vrot.slane %v8934, 4
    %v8936 = vadd.f32 %v8934, %v8935
    %v8937 = vrot.slane %v8936, 2
    %v8938 = vadd.f32 %v8936, %v8937
    %v8939 = vrot.slane %v8938, 1
    %v8940 = vadd.f32 %v8938, %v8939
    %v8941 = vmul.f32 %v8940, %v733
    %v8942 = vsub.f32 %v8932, %v8941
    %v8943 = vsub.f32 %v8933, %v8941
    %v8944 = vmul.f32 %v8942, %v8942
    %v8945 = vmul.f32 %v8943, %v8943
    %v8946 = vadd.f32 %v8944, %v8945
    %v8947 = vrot.slane %v8946, 4
    %v8948 = vadd.f32 %v8946, %v8947
    %v8949 = vrot.slane %v8948, 2
    %v8950 = vadd.f32 %v8948, %v8949
    %v8951 = vrot.slane %v8950, 1
    %v8952 = vadd.f32 %v8950, %v8951
    %v8953 = vmul.f32 %v8952, %v733
    %v8954 = vadd.f32 %v8953, 1e-05
    %v8955 = vrsqrt.pop %v8954
    %v8956 = vmul.f32 %v8955, %v8954
    %v8957 = vmul.f32 %v8956, %v8955
    %v8958 = vmul.f32 0.5, %v8957
    %v8959 = vsub.f32 1.5, %v8958
    %v8960 = vmul.f32 %v8955, %v8959
    %vm8961 = vweird.f32 %v8954
    %vm8962 = vweird.f32 %v8955
    %vm8963 = vmor %vm8961, %vm8962
    %v8964 = vsel %vm8963, %v8955, %v8960
    %v8965 = vmul.f32 %v8942, %v8964
    %v8966 = vmul.f32 %v8943, %v8964
    %s8967 = scalar_lea.vmem [#allocation9], 7
    %v8968 = vld [vmem:[%s8967] sm:$0x1]
    %v8970 = vperm.slane %v8968, 0
    %v8972 = vmul.f32 %v8965, %v8970
    %v8973 = vmul.f32 %v8966, %v8970
    %s8974 = scalar_lea.vmem [#allocation11], 7
    %v8975 = vld [vmem:[%s8974] sm:$0x1]
    %v8977 = vperm.slane %v8975, 0
    %v8979 = vadd.f32 %v8972, %v8977
    %v8980 = vadd.f32 %v8973, %v8977
    %v8981 = vmax.f32 %v8979, 0.0
    %v8982 = vmax.f32 %v8980, 0.0
    %8983 = vst [vmem:[#allocation2 + $0x2] sm:$0xff] %v8981
    %8984 = vst [vmem:[#allocation2 + $0x12] sm:$0xff] %v8982
    %v8985 = vpack.c.bf16 %v8981, %v8981
    %v8986 = vpack.c.bf16 %v8982, %v8982
    %s8987 = scalar_lea.vmem [#allocation12], 3584
    %v8988 = vld [vmem:[%s8987] sm:$0xf]
    %v8989 = vld [vmem:[%s8987 + $0x4] sm:$0xf]
    %v8990 = vld [vmem:[%s8987 + $0x8] sm:$0xf]
    %v8991 = vld [vmem:[%s8987 + $0xc] sm:$0xf]
    %v8992 = vld [vmem:[%s8987 + $0x10] sm:$0xf]
    %v8993 = vld [vmem:[%s8987 + $0x14] sm:$0xf]
    %v8994 = vld [vmem:[%s8987 + $0x18] sm:$0xf]
    %v8995 = vld [vmem:[%s8987 + $0x1c] sm:$0xf]
    %v8996 = vld [vmem:[%s8987 + $0x20] sm:$0xf]
    %v8997 = vld [vmem:[%s8987 + $0x24] sm:$0xf]
    %v8998 = vld [vmem:[%s8987 + $0x28] sm:$0xf]
    %v8999 = vld [vmem:[%s8987 + $0x2c] sm:$0xf]
    %v9000 = vld [vmem:[%s8987 + $0x30] sm:$0xf]
    %v9001 = vld [vmem:[%s8987 + $0x34] sm:$0xf]
    %v9002 = vld [vmem:[%s8987 + $0x38] sm:$0xf]
    %v9003 = vld [vmem:[%s8987 + $0x3c] sm:$0xf]
    %v9006 = vunpack.c.l.b16 %v8985
    %v9007 = vunpack.c.l.b16 %v8986
    %v9008 = vrot.slane %v9007, 7
    %v9009 = vsel %vm816, %v9008, %v9006
    %v9010 = vpack.c.b16 %v9009, %v9009
    %v9028 = vunpack.c.l.b16 %v8988
    %v9029 = vunpack.c.l.b16 %v8989
    %v9030 = vunpack.c.l.b16 %v8990
    %v9031 = vunpack.c.l.b16 %v8991
    %v9032 = vunpack.c.l.b16 %v8992
    %v9033 = vunpack.c.l.b16 %v8993
    %v9034 = vunpack.c.l.b16 %v8994
    %v9035 = vunpack.c.l.b16 %v8995
    %v9036 = vunpack.c.l.b16 %v8996
    %v9037 = vunpack.c.l.b16 %v8997
    %v9038 = vunpack.c.l.b16 %v8998
    %v9039 = vunpack.c.l.b16 %v8999
    %v9040 = vunpack.c.l.b16 %v9000
    %v9041 = vunpack.c.l.b16 %v9001
    %v9042 = vunpack.c.l.b16 %v9002
    %v9043 = vunpack.c.l.b16 %v9003
    %v9044 = vpack.c.b16 %v9029, %v9028
    %v9045 = vpack.c.b16 %v9031, %v9030
    %v9046 = vpack.c.b16 %v9033, %v9032
    %v9047 = vpack.c.b16 %v9035, %v9034
    %v9048 = vpack.c.b16 %v9037, %v9036
    %v9049 = vpack.c.b16 %v9039, %v9038
    %v9050 = vpack.c.b16 %v9041, %v9040
    %v9051 = vpack.c.b16 %v9043, %v9042
    %9060 = vmatpush.bf16.msra.mxu0 %v9051
    %9061 = vmatpush.bf16.msra.mxu0 %v9050
    %9062 = vmatpush.bf16.msra.mxu0 %v9049
    %9063 = vmatpush.bf16.msra.mxu0 %v9048
    %9064 = vmatpush.bf16.msra.mxu0 %v9047
    %9065 = vmatpush.bf16.msra.mxu0 %v9046
    %9066 = vmatpush.bf16.msra.mxu0 %v9045
    %9067 = vmatpush.bf16.msra.mxu0 %v9044
    %9068 = vmatmul.bf16.gmra.mxu0 %v9010
    %v9069 = vpop.f32.mrf.mxu0
    %v9070 = vadd.f32 0.0, %v9069
    %v9071 = vpop.f32.mrf.mxu0
    %9072 = vdwg.mxu0
    %v9073 = vadd.f32 %v8487, %v9070
    %s9074 = scalar_lea.vmem [#allocation12], 3648
    %v9075 = vld [vmem:[%s9074] sm:$0xf]
    %v9076 = vld [vmem:[%s9074 + $0x4] sm:$0xf]
    %v9077 = vld [vmem:[%s9074 + $0x8] sm:$0xf]
    %v9078 = vld [vmem:[%s9074 + $0xc] sm:$0xf]
    %v9079 = vld [vmem:[%s9074 + $0x10] sm:$0xf]
    %v9080 = vld [vmem:[%s9074 + $0x14] sm:$0xf]
    %v9081 = vld [vmem:[%s9074 + $0x18] sm:$0xf]
    %v9082 = vld [vmem:[%s9074 + $0x1c] sm:$0xf]
    %v9083 = vld [vmem:[%s9074 + $0x20] sm:$0xf]
    %v9084 = vld [vmem:[%s9074 + $0x24] sm:$0xf]
    %v9085 = vld [vmem:[%s9074 + $0x28] sm:$0xf]
    %v9086 = vld [vmem:[%s9074 + $0x2c] sm:$0xf]
    %v9087 = vld [vmem:[%s9074 + $0x30] sm:$0xf]
    %v9088 = vld [vmem:[%s9074 + $0x34] sm:$0xf]
    %v9089 = vld [vmem:[%s9074 + $0x38] sm:$0xf]
    %v9090 = vld [vmem:[%s9074 + $0x3c] sm:$0xf]
    %v9091 = vrot.slane %v9006, 1
    %v9092 = vsel %vm816, %v9007, %v9091
    %v9093 = vpack.c.b16 %v9092, %v9092
    %v9111 = vunpack.c.l.b16 %v9075
    %v9112 = vunpack.c.l.b16 %v9076
    %v9113 = vunpack.c.l.b16 %v9077
    %v9114 = vunpack.c.l.b16 %v9078
    %v9115 = vunpack.c.l.b16 %v9079
    %v9116 = vunpack.c.l.b16 %v9080
    %v9117 = vunpack.c.l.b16 %v9081
    %v9118 = vunpack.c.l.b16 %v9082
    %v9119 = vunpack.c.l.b16 %v9083
    %v9120 = vunpack.c.l.b16 %v9084
    %v9121 = vunpack.c.l.b16 %v9085
    %v9122 = vunpack.c.l.b16 %v9086
    %v9123 = vunpack.c.l.b16 %v9087
    %v9124 = vunpack.c.l.b16 %v9088
    %v9125 = vunpack.c.l.b16 %v9089
    %v9126 = vunpack.c.l.b16 %v9090
    %v9127 = vpack.c.b16 %v9112, %v9111
    %v9128 = vpack.c.b16 %v9114, %v9113
    %v9129 = vpack.c.b16 %v9116, %v9115
    %v9130 = vpack.c.b16 %v9118, %v9117
    %v9131 = vpack.c.b16 %v9120, %v9119
    %v9132 = vpack.c.b16 %v9122, %v9121
    %v9133 = vpack.c.b16 %v9124, %v9123
    %v9134 = vpack.c.b16 %v9126, %v9125
    %9143 = vmatpush.bf16.msra.mxu0 %v9134
    %9144 = vmatpush.bf16.msra.mxu0 %v9133
    %9145 = vmatpush.bf16.msra.mxu0 %v9132
    %9146 = vmatpush.bf16.msra.mxu0 %v9131
    %9147 = vmatpush.bf16.msra.mxu0 %v9130
    %9148 = vmatpush.bf16.msra.mxu0 %v9129
    %9149 = vmatpush.bf16.msra.mxu0 %v9128
    %9150 = vmatpush.bf16.msra.mxu0 %v9127
    %9151 = vmatmul.bf16.gmra.mxu0 %v9093
    %v9152 = vpop.f32.mrf.mxu0
    %v9153 = vadd.f32 0.0, %v9152
    %v9154 = vpop.f32.mrf.mxu0
    %9155 = vdwg.mxu0
    %v9156 = vadd.f32 %v9073, %v9153
    %s9157 = scalar_lea.vmem [#allocation12], 3712
    %v9158 = vld [vmem:[%s9157] sm:$0xf]
    %v9159 = vld [vmem:[%s9157 + $0x4] sm:$0xf]
    %v9160 = vld [vmem:[%s9157 + $0x8] sm:$0xf]
    %v9161 = vld [vmem:[%s9157 + $0xc] sm:$0xf]
    %v9162 = vld [vmem:[%s9157 + $0x10] sm:$0xf]
    %v9163 = vld [vmem:[%s9157 + $0x14] sm:$0xf]
    %v9164 = vld [vmem:[%s9157 + $0x18] sm:$0xf]
    %v9165 = vld [vmem:[%s9157 + $0x1c] sm:$0xf]
    %v9166 = vld [vmem:[%s9157 + $0x20] sm:$0xf]
    %v9167 = vld [vmem:[%s9157 + $0x24] sm:$0xf]
    %v9168 = vld [vmem:[%s9157 + $0x28] sm:$0xf]
    %v9169 = vld [vmem:[%s9157 + $0x2c] sm:$0xf]
    %v9170 = vld [vmem:[%s9157 + $0x30] sm:$0xf]
    %v9171 = vld [vmem:[%s9157 + $0x34] sm:$0xf]
    %v9172 = vld [vmem:[%s9157 + $0x38] sm:$0xf]
    %v9173 = vld [vmem:[%s9157 + $0x3c] sm:$0xf]
    %v9174 = vrot.slane %v9006, 2
    %v9175 = vrot.slane %v9007, 1
    %v9176 = vsel %vm816, %v9175, %v9174
    %v9177 = vpack.c.b16 %v9176, %v9176
    %v9195 = vunpack.c.l.b16 %v9158
    %v9196 = vunpack.c.l.b16 %v9159
    %v9197 = vunpack.c.l.b16 %v9160
    %v9198 = vunpack.c.l.b16 %v9161
    %v9199 = vunpack.c.l.b16 %v9162
    %v9200 = vunpack.c.l.b16 %v9163
    %v9201 = vunpack.c.l.b16 %v9164
    %v9202 = vunpack.c.l.b16 %v9165
    %v9203 = vunpack.c.l.b16 %v9166
    %v9204 = vunpack.c.l.b16 %v9167
    %v9205 = vunpack.c.l.b16 %v9168
    %v9206 = vunpack.c.l.b16 %v9169
    %v9207 = vunpack.c.l.b16 %v9170
    %v9208 = vunpack.c.l.b16 %v9171
    %v9209 = vunpack.c.l.b16 %v9172
    %v9210 = vunpack.c.l.b16 %v9173
    %v9211 = vpack.c.b16 %v9196, %v9195
    %v9212 = vpack.c.b16 %v9198, %v9197
    %v9213 = vpack.c.b16 %v9200, %v9199
    %v9214 = vpack.c.b16 %v9202, %v9201
    %v9215 = vpack.c.b16 %v9204, %v9203
    %v9216 = vpack.c.b16 %v9206, %v9205
    %v9217 = vpack.c.b16 %v9208, %v9207
    %v9218 = vpack.c.b16 %v9210, %v9209
    %9227 = vmatpush.bf16.msra.mxu0 %v9218
    %9228 = vmatpush.bf16.msra.mxu0 %v9217
    %9229 = vmatpush.bf16.msra.mxu0 %v9216
    %9230 = vmatpush.bf16.msra.mxu0 %v9215
    %9231 = vmatpush.bf16.msra.mxu0 %v9214
    %9232 = vmatpush.bf16.msra.mxu0 %v9213
    %9233 = vmatpush.bf16.msra.mxu0 %v9212
    %9234 = vmatpush.bf16.msra.mxu0 %v9211
    %9235 = vmatmul.bf16.gmra.mxu0 %v9177
    %v9236 = vpop.f32.mrf.mxu0
    %v9237 = vadd.f32 0.0, %v9236
    %v9238 = vpop.f32.mrf.mxu0
    %9239 = vdwg.mxu0
    %v9240 = vadd.f32 %v9156, %v9237
    %s9241 = scalar_lea.vmem [#allocation12], 3776
    %v9242 = vld [vmem:[%s9241] sm:$0xf]
    %v9243 = vld [vmem:[%s9241 + $0x4] sm:$0xf]
    %v9244 = vld [vmem:[%s9241 + $0x8] sm:$0xf]
    %v9245 = vld [vmem:[%s9241 + $0xc] sm:$0xf]
    %v9246 = vld [vmem:[%s9241 + $0x10] sm:$0xf]
    %v9247 = vld [vmem:[%s9241 + $0x14] sm:$0xf]
    %v9248 = vld [vmem:[%s9241 + $0x18] sm:$0xf]
    %v9249 = vld [vmem:[%s9241 + $0x1c] sm:$0xf]
    %v9250 = vld [vmem:[%s9241 + $0x20] sm:$0xf]
    %v9251 = vld [vmem:[%s9241 + $0x24] sm:$0xf]
    %v9252 = vld [vmem:[%s9241 + $0x28] sm:$0xf]
    %v9253 = vld [vmem:[%s9241 + $0x2c] sm:$0xf]
    %v9254 = vld [vmem:[%s9241 + $0x30] sm:$0xf]
    %v9255 = vld [vmem:[%s9241 + $0x34] sm:$0xf]
    %v9256 = vld [vmem:[%s9241 + $0x38] sm:$0xf]
    %v9257 = vld [vmem:[%s9241 + $0x3c] sm:$0xf]
    %v9258 = vrot.slane %v9006, 3
    %v9259 = vrot.slane %v9007, 2
    %v9260 = vsel %vm816, %v9259, %v9258
    %v9261 = vpack.c.b16 %v9260, %v9260
    %v9279 = vunpack.c.l.b16 %v9242
    %v9280 = vunpack.c.l.b16 %v9243
    %v9281 = vunpack.c.l.b16 %v9244
    %v9282 = vunpack.c.l.b16 %v9245
    %v9283 = vunpack.c.l.b16 %v9246
    %v9284 = vunpack.c.l.b16 %v9247
    %v9285 = vunpack.c.l.b16 %v9248
    %v9286 = vunpack.c.l.b16 %v9249
    %v9287 = vunpack.c.l.b16 %v9250
    %v9288 = vunpack.c.l.b16 %v9251
    %v9289 = vunpack.c.l.b16 %v9252
    %v9290 = vunpack.c.l.b16 %v9253
    %v9291 = vunpack.c.l.b16 %v9254
    %v9292 = vunpack.c.l.b16 %v9255
    %v9293 = vunpack.c.l.b16 %v9256
    %v9294 = vunpack.c.l.b16 %v9257
    %v9295 = vpack.c.b16 %v9280, %v9279
    %v9296 = vpack.c.b16 %v9282, %v9281
    %v9297 = vpack.c.b16 %v9284, %v9283
    %v9298 = vpack.c.b16 %v9286, %v9285
    %v9299 = vpack.c.b16 %v9288, %v9287
    %v9300 = vpack.c.b16 %v9290, %v9289
    %v9301 = vpack.c.b16 %v9292, %v9291
    %v9302 = vpack.c.b16 %v9294, %v9293
    %9311 = vmatpush.bf16.msra.mxu0 %v9302
    %9312 = vmatpush.bf16.msra.mxu0 %v9301
    %9313 = vmatpush.bf16.msra.mxu0 %v9300
    %9314 = vmatpush.bf16.msra.mxu0 %v9299
    %9315 = vmatpush.bf16.msra.mxu0 %v9298
    %9316 = vmatpush.bf16.msra.mxu0 %v9297
    %9317 = vmatpush.bf16.msra.mxu0 %v9296
    %9318 = vmatpush.bf16.msra.mxu0 %v9295
    %9319 = vmatmul.bf16.gmra.mxu0 %v9261
    %v9320 = vpop.f32.mrf.mxu0
    %v9321 = vadd.f32 0.0, %v9320
    %v9322 = vpop.f32.mrf.mxu0
    %9323 = vdwg.mxu0
    %v9324 = vadd.f32 %v9240, %v9321
    %s9325 = scalar_lea.vmem [#allocation12], 3840
    %v9326 = vld [vmem:[%s9325] sm:$0xf]
    %v9327 = vld [vmem:[%s9325 + $0x4] sm:$0xf]
    %v9328 = vld [vmem:[%s9325 + $0x8] sm:$0xf]
    %v9329 = vld [vmem:[%s9325 + $0xc] sm:$0xf]
    %v9330 = vld [vmem:[%s9325 + $0x10] sm:$0xf]
    %v9331 = vld [vmem:[%s9325 + $0x14] sm:$0xf]
    %v9332 = vld [vmem:[%s9325 + $0x18] sm:$0xf]
    %v9333 = vld [vmem:[%s9325 + $0x1c] sm:$0xf]
    %v9334 = vld [vmem:[%s9325 + $0x20] sm:$0xf]
    %v9335 = vld [vmem:[%s9325 + $0x24] sm:$0xf]
    %v9336 = vld [vmem:[%s9325 + $0x28] sm:$0xf]
    %v9337 = vld [vmem:[%s9325 + $0x2c] sm:$0xf]
    %v9338 = vld [vmem:[%s9325 + $0x30] sm:$0xf]
    %v9339 = vld [vmem:[%s9325 + $0x34] sm:$0xf]
    %v9340 = vld [vmem:[%s9325 + $0x38] sm:$0xf]
    %v9341 = vld [vmem:[%s9325 + $0x3c] sm:$0xf]
    %v9342 = vrot.slane %v9006, 4
    %v9343 = vrot.slane %v9007, 3
    %v9344 = vsel %vm816, %v9343, %v9342
    %v9345 = vpack.c.b16 %v9344, %v9344
    %v9363 = vunpack.c.l.b16 %v9326
    %v9364 = vunpack.c.l.b16 %v9327
    %v9365 = vunpack.c.l.b16 %v9328
    %v9366 = vunpack.c.l.b16 %v9329
    %v9367 = vunpack.c.l.b16 %v9330
    %v9368 = vunpack.c.l.b16 %v9331
    %v9369 = vunpack.c.l.b16 %v9332
    %v9370 = vunpack.c.l.b16 %v9333
    %v9371 = vunpack.c.l.b16 %v9334
    %v9372 = vunpack.c.l.b16 %v9335
    %v9373 = vunpack.c.l.b16 %v9336
    %v9374 = vunpack.c.l.b16 %v9337
    %v9375 = vunpack.c.l.b16 %v9338
    %v9376 = vunpack.c.l.b16 %v9339
    %v9377 = vunpack.c.l.b16 %v9340
    %v9378 = vunpack.c.l.b16 %v9341
    %v9379 = vpack.c.b16 %v9364, %v9363
    %v9380 = vpack.c.b16 %v9366, %v9365
    %v9381 = vpack.c.b16 %v9368, %v9367
    %v9382 = vpack.c.b16 %v9370, %v9369
    %v9383 = vpack.c.b16 %v9372, %v9371
    %v9384 = vpack.c.b16 %v9374, %v9373
    %v9385 = vpack.c.b16 %v9376, %v9375
    %v9386 = vpack.c.b16 %v9378, %v9377
    %9395 = vmatpush.bf16.msra.mxu0 %v9386
    %9396 = vmatpush.bf16.msra.mxu0 %v9385
    %9397 = vmatpush.bf16.msra.mxu0 %v9384
    %9398 = vmatpush.bf16.msra.mxu0 %v9383
    %9399 = vmatpush.bf16.msra.mxu0 %v9382
    %9400 = vmatpush.bf16.msra.mxu0 %v9381
    %9401 = vmatpush.bf16.msra.mxu0 %v9380
    %9402 = vmatpush.bf16.msra.mxu0 %v9379
    %9403 = vmatmul.bf16.gmra.mxu0 %v9345
    %v9404 = vpop.f32.mrf.mxu0
    %v9405 = vadd.f32 0.0, %v9404
    %v9406 = vpop.f32.mrf.mxu0
    %9407 = vdwg.mxu0
    %v9408 = vadd.f32 %v9324, %v9405
    %s9409 = scalar_lea.vmem [#allocation12], 3904
    %v9410 = vld [vmem:[%s9409] sm:$0xf]
    %v9411 = vld [vmem:[%s9409 + $0x4] sm:$0xf]
    %v9412 = vld [vmem:[%s9409 + $0x8] sm:$0xf]
    %v9413 = vld [vmem:[%s9409 + $0xc] sm:$0xf]
    %v9414 = vld [vmem:[%s9409 + $0x10] sm:$0xf]
    %v9415 = vld [vmem:[%s9409 + $0x14] sm:$0xf]
    %v9416 = vld [vmem:[%s9409 + $0x18] sm:$0xf]
    %v9417 = vld [vmem:[%s9409 + $0x1c] sm:$0xf]
    %v9418 = vld [vmem:[%s9409 + $0x20] sm:$0xf]
    %v9419 = vld [vmem:[%s9409 + $0x24] sm:$0xf]
    %v9420 = vld [vmem:[%s9409 + $0x28] sm:$0xf]
    %v9421 = vld [vmem:[%s9409 + $0x2c] sm:$0xf]
    %v9422 = vld [vmem:[%s9409 + $0x30] sm:$0xf]
    %v9423 = vld [vmem:[%s9409 + $0x34] sm:$0xf]
    %v9424 = vld [vmem:[%s9409 + $0x38] sm:$0xf]
    %v9425 = vld [vmem:[%s9409 + $0x3c] sm:$0xf]
    %v9426 = vrot.slane %v9006, 5
    %v9427 = vrot.slane %v9007, 4
    %v9428 = vsel %vm816, %v9427, %v9426
    %v9429 = vpack.c.b16 %v9428, %v9428
    %v9447 = vunpack.c.l.b16 %v9410
    %v9448 = vunpack.c.l.b16 %v9411
    %v9449 = vunpack.c.l.b16 %v9412
    %v9450 = vunpack.c.l.b16 %v9413
    %v9451 = vunpack.c.l.b16 %v9414
    %v9452 = vunpack.c.l.b16 %v9415
    %v9453 = vunpack.c.l.b16 %v9416
    %v9454 = vunpack.c.l.b16 %v9417
    %v9455 = vunpack.c.l.b16 %v9418
    %v9456 = vunpack.c.l.b16 %v9419
    %v9457 = vunpack.c.l.b16 %v9420
    %v9458 = vunpack.c.l.b16 %v9421
    %v9459 = vunpack.c.l.b16 %v9422
    %v9460 = vunpack.c.l.b16 %v9423
    %v9461 = vunpack.c.l.b16 %v9424
    %v9462 = vunpack.c.l.b16 %v9425
    %v9463 = vpack.c.b16 %v9448, %v9447
    %v9464 = vpack.c.b16 %v9450, %v9449
    %v9465 = vpack.c.b16 %v9452, %v9451
    %v9466 = vpack.c.b16 %v9454, %v9453
    %v9467 = vpack.c.b16 %v9456, %v9455
    %v9468 = vpack.c.b16 %v9458, %v9457
    %v9469 = vpack.c.b16 %v9460, %v9459
    %v9470 = vpack.c.b16 %v9462, %v9461
    %9479 = vmatpush.bf16.msra.mxu0 %v9470
    %9480 = vmatpush.bf16.msra.mxu0 %v9469
    %9481 = vmatpush.bf16.msra.mxu0 %v9468
    %9482 = vmatpush.bf16.msra.mxu0 %v9467
    %9483 = vmatpush.bf16.msra.mxu0 %v9466
    %9484 = vmatpush.bf16.msra.mxu0 %v9465
    %9485 = vmatpush.bf16.msra.mxu0 %v9464
    %9486 = vmatpush.bf16.msra.mxu0 %v9463
    %9487 = vmatmul.bf16.gmra.mxu0 %v9429
    %v9488 = vpop.f32.mrf.mxu0
    %v9489 = vadd.f32 0.0, %v9488
    %v9490 = vpop.f32.mrf.mxu0
    %9491 = vdwg.mxu0
    %v9492 = vadd.f32 %v9408, %v9489
    %s9493 = scalar_lea.vmem [#allocation12], 3968
    %v9494 = vld [vmem:[%s9493] sm:$0xf]
    %v9495 = vld [vmem:[%s9493 + $0x4] sm:$0xf]
    %v9496 = vld [vmem:[%s9493 + $0x8] sm:$0xf]
    %v9497 = vld [vmem:[%s9493 + $0xc] sm:$0xf]
    %v9498 = vld [vmem:[%s9493 + $0x10] sm:$0xf]
    %v9499 = vld [vmem:[%s9493 + $0x14] sm:$0xf]
    %v9500 = vld [vmem:[%s9493 + $0x18] sm:$0xf]
    %v9501 = vld [vmem:[%s9493 + $0x1c] sm:$0xf]
    %v9502 = vld [vmem:[%s9493 + $0x20] sm:$0xf]
    %v9503 = vld [vmem:[%s9493 + $0x24] sm:$0xf]
    %v9504 = vld [vmem:[%s9493 + $0x28] sm:$0xf]
    %v9505 = vld [vmem:[%s9493 + $0x2c] sm:$0xf]
    %v9506 = vld [vmem:[%s9493 + $0x30] sm:$0xf]
    %v9507 = vld [vmem:[%s9493 + $0x34] sm:$0xf]
    %v9508 = vld [vmem:[%s9493 + $0x38] sm:$0xf]
    %v9509 = vld [vmem:[%s9493 + $0x3c] sm:$0xf]
    %v9510 = vrot.slane %v9006, 6
    %v9511 = vrot.slane %v9007, 5
    %v9512 = vsel %vm816, %v9511, %v9510
    %v9513 = vpack.c.b16 %v9512, %v9512
    %v9531 = vunpack.c.l.b16 %v9494
    %v9532 = vunpack.c.l.b16 %v9495
    %v9533 = vunpack.c.l.b16 %v9496
    %v9534 = vunpack.c.l.b16 %v9497
    %v9535 = vunpack.c.l.b16 %v9498
    %v9536 = vunpack.c.l.b16 %v9499
    %v9537 = vunpack.c.l.b16 %v9500
    %v9538 = vunpack.c.l.b16 %v9501
    %v9539 = vunpack.c.l.b16 %v9502
    %v9540 = vunpack.c.l.b16 %v9503
    %v9541 = vunpack.c.l.b16 %v9504
    %v9542 = vunpack.c.l.b16 %v9505
    %v9543 = vunpack.c.l.b16 %v9506
    %v9544 = vunpack.c.l.b16 %v9507
    %v9545 = vunpack.c.l.b16 %v9508
    %v9546 = vunpack.c.l.b16 %v9509
    %v9547 = vpack.c.b16 %v9532, %v9531
    %v9548 = vpack.c.b16 %v9534, %v9533
    %v9549 = vpack.c.b16 %v9536, %v9535
    %v9550 = vpack.c.b16 %v9538, %v9537
    %v9551 = vpack.c.b16 %v9540, %v9539
    %v9552 = vpack.c.b16 %v9542, %v9541
    %v9553 = vpack.c.b16 %v9544, %v9543
    %v9554 = vpack.c.b16 %v9546, %v9545
    %9563 = vmatpush.bf16.msra.mxu0 %v9554
    %9564 = vmatpush.bf16.msra.mxu0 %v9553
    %9565 = vmatpush.bf16.msra.mxu0 %v9552
    %9566 = vmatpush.bf16.msra.mxu0 %v9551
    %9567 = vmatpush.bf16.msra.mxu0 %v9550
    %9568 = vmatpush.bf16.msra.mxu0 %v9549
    %9569 = vmatpush.bf16.msra.mxu0 %v9548
    %9570 = vmatpush.bf16.msra.mxu0 %v9547
    %9571 = vmatmul.bf16.gmra.mxu0 %v9513
    %v9572 = vpop.f32.mrf.mxu0
    %v9573 = vadd.f32 0.0, %v9572
    %v9574 = vpop.f32.mrf.mxu0
    %9575 = vdwg.mxu0
    %v9576 = vadd.f32 %v9492, %v9573
    %s9577 = scalar_lea.vmem [#allocation12], 4032
    %v9578 = vld [vmem:[%s9577] sm:$0xf]
    %v9579 = vld [vmem:[%s9577 + $0x4] sm:$0xf]
    %v9580 = vld [vmem:[%s9577 + $0x8] sm:$0xf]
    %v9581 = vld [vmem:[%s9577 + $0xc] sm:$0xf]
    %v9582 = vld [vmem:[%s9577 + $0x10] sm:$0xf]
    %v9583 = vld [vmem:[%s9577 + $0x14] sm:$0xf]
    %v9584 = vld [vmem:[%s9577 + $0x18] sm:$0xf]
    %v9585 = vld [vmem:[%s9577 + $0x1c] sm:$0xf]
    %v9586 = vld [vmem:[%s9577 + $0x20] sm:$0xf]
    %v9587 = vld [vmem:[%s9577 + $0x24] sm:$0xf]
    %v9588 = vld [vmem:[%s9577 + $0x28] sm:$0xf]
    %v9589 = vld [vmem:[%s9577 + $0x2c] sm:$0xf]
    %v9590 = vld [vmem:[%s9577 + $0x30] sm:$0xf]
    %v9591 = vld [vmem:[%s9577 + $0x34] sm:$0xf]
    %v9592 = vld [vmem:[%s9577 + $0x38] sm:$0xf]
    %v9593 = vld [vmem:[%s9577 + $0x3c] sm:$0xf]
    %v9594 = vrot.slane %v9006, 7
    %v9595 = vrot.slane %v9007, 6
    %v9596 = vsel %vm816, %v9595, %v9594
    %v9597 = vpack.c.b16 %v9596, %v9596
    %v9615 = vunpack.c.l.b16 %v9578
    %v9616 = vunpack.c.l.b16 %v9579
    %v9617 = vunpack.c.l.b16 %v9580
    %v9618 = vunpack.c.l.b16 %v9581
    %v9619 = vunpack.c.l.b16 %v9582
    %v9620 = vunpack.c.l.b16 %v9583
    %v9621 = vunpack.c.l.b16 %v9584
    %v9622 = vunpack.c.l.b16 %v9585
    %v9623 = vunpack.c.l.b16 %v9586
    %v9624 = vunpack.c.l.b16 %v9587
    %v9625 = vunpack.c.l.b16 %v9588
    %v9626 = vunpack.c.l.b16 %v9589
    %v9627 = vunpack.c.l.b16 %v9590
    %v9628 = vunpack.c.l.b16 %v9591
    %v9629 = vunpack.c.l.b16 %v9592
    %v9630 = vunpack.c.l.b16 %v9593
    %v9631 = vpack.c.b16 %v9616, %v9615
    %v9632 = vpack.c.b16 %v9618, %v9617
    %v9633 = vpack.c.b16 %v9620, %v9619
    %v9634 = vpack.c.b16 %v9622, %v9621
    %v9635 = vpack.c.b16 %v9624, %v9623
    %v9636 = vpack.c.b16 %v9626, %v9625
    %v9637 = vpack.c.b16 %v9628, %v9627
    %v9638 = vpack.c.b16 %v9630, %v9629
    %9647 = vmatpush.bf16.msra.mxu0 %v9638
    %9648 = vmatpush.bf16.msra.mxu0 %v9637
    %9649 = vmatpush.bf16.msra.mxu0 %v9636
    %9650 = vmatpush.bf16.msra.mxu0 %v9635
    %9651 = vmatpush.bf16.msra.mxu0 %v9634
    %9652 = vmatpush.bf16.msra.mxu0 %v9633
    %9653 = vmatpush.bf16.msra.mxu0 %v9632
    %9654 = vmatpush.bf16.msra.mxu0 %v9631
    %9655 = vmatmul.bf16.gmra.mxu0 %v9597
    %v9656 = vpop.f32.mrf.mxu0
    %v9657 = vadd.f32 0.0, %v9656
    %v9658 = vpop.f32.mrf.mxu0
    %9659 = vdwg.mxu0
    %v9660 = vadd.f32 %v9576, %v9657
    %v9661 = vld [vmem:[#allocation14] sm:$0x1]
    %v9663 = vperm.slane %v9661, 0
    %v9665 = vadd.f32 %v9660, %v9663
    %v9666 = vsel %vm165, %v9665, -inf
    %9667 = vmax.xlane.f32.xlu0 %v9666
    %v9668 = vpop.xlane.xlu0 %9667
    %v9669 = vsub.f32 %v9665, %v9668
    %v9670 = vmul.f32 %v9669, 1.442695
    %v9671 = vpow.pop %v9670
    %v9672 = vsel %vm165, %v9671, 0.0
    %9673 = vadd.xlane.f32.xlu0 %v9672
    %v9674 = vpop.xlane.xlu0 %9673
    %v9675 = vlog2.pop %v9674
    %v9676 = vmul.f32 %v9675, 0.6931472
    %v9677 = vsub.f32 %v9669, %v9676
    %9678 = vst [vmem:[#allocation15] sm:$0x3] %v9677
    // Predicated region
    $region62: #{htaggnet_forward.1} parent=1 // pred_check
      _
    $region63: #{htaggnet_forward.1} parent=1 // pred_check_branch
      %9680 = sbr.rel (0) target = $region65
    $region64: #{htaggnet_forward.1} parent=1 // pred_region
      %9682 = vsyncadd [#allocation5], 0
      %s9684 = sshll.u32 [#allocation15], 4
      %s9685 = int_to_ptr.vmem [resolvable:$true] %s9684
      %s9686 = sshll.u32 %s8, 4
      %s9687 = int_to_ptr.hbm [resolvable:$true] %s9686
      %9689 = dma.vmem_to_hbm [thread:$0]  %s9685, 32, %s9687, [#allocation5]
    $region65: #{htaggnet_forward.1} parent=1 // pred_fallthru
      _
    // Predicated region
    $region66: #{htaggnet_forward.1} parent=1 // pred_check
      _
    $region67: #{htaggnet_forward.1} parent=1 // pred_check_branch
      %9691 = sbr.rel (0) target = $region69
    $region68: #{htaggnet_forward.1} parent=1 // pred_region
      %9693 = dma.done [#allocation5], 32
    $region69: #{htaggnet_forward.1} parent=1 // pred_fallthru
      _
    %9694 = vsyncpa [#allocation4], 1
    %9695 = vsyncpa [#allocation7], 1
    %9696 = vsyncpa [#allocation10], 1
    %9697 = vsyncpa [#allocation13], 1
    %9698 = vsyncpa [#allocation5], 1

</llo_original>
